<compile_context>
chip_gen: v5e
topology: v5e:2x2
jax: 0.10.0
libtpu: 0.0.40
codegen_flags: <defaults>
</compile_context>

<pallas_src>
import numpy as np

import jax
import jax.numpy as jnp
from jax.experimental import pallas as pl
from jax.experimental.pallas import tpu as pltpu


# ----------------------------------------------------------------------------
# Fused Pallas kernel: conv1+pool+relu -> conv2+pool+relu -> fc
# ----------------------------------------------------------------------------
def _cnn_fused_kernel(xb_ref, w1_ref, b1_ref, w2_ref, b2_ref, wfc_ref, bfc_ref,
                      o_ref):
    """Per grid step: TB images, everything resident in VMEM.

    xb_ref : (12*TB, 256)  bf16  banded images, row = I*TB + t (band-major)
    w1_ref : (256, 512)    bf16  stage-1 conv matrix, 4 phases x 128 channels
    b1_ref : (1, 128)      f32   conv1 bias (120 real + 8 zero pad)
    w2_ref : (1536, 1536)  bf16  stage-2 conv matrix, 4 phases x 384 outputs
    b2_ref : (1, 384)      f32   conv2 bias (320 real + 64 zero pad)
    wfc_ref: (384, 128)    bf16  FC weights, K padded 320->384, classes 10->128
    bfc_ref: (1, 128)      f32
    o_ref  : (TB, 128)     f32   padded logits
    """
    f32 = jnp.float32
    tb = o_ref.shape[0]

    # Hoisted bias loads (JAX does not CSE broadcast_in_dim).
    b1 = b1_ref[...]
    b2 = b2_ref[...]
    bfc = bfc_ref[...]

    # ---- stage 1: conv1 + maxpool + bias + ReLU, one matmul (M = 12*TB) ----
    s1 = jnp.dot(xb_ref[...], w1_ref[...], preferred_element_type=f32)  # (12*TB,512)
    p1 = jnp.maximum(jnp.maximum(s1[:, 0:128], s1[:, 128:256]),
                     jnp.maximum(s1[:, 256:384], s1[:, 384:512]))       # pool max
    h1b = jnp.maximum(p1 + b1, 0.0).astype(jnp.bfloat16)                # (12*TB,128)

    # Reassemble per-image h1: 12 aligned 128-lane block copies -> (TB, 1536).
    h1 = jnp.concatenate([h1b[i * tb:(i + 1) * tb, :] for i in range(12)], axis=1)

    # ---- stage 2: conv2 + maxpool + bias + ReLU, one matmul (K = N = 1536) ---
    s2 = jnp.dot(h1, w2_ref[...], preferred_element_type=f32)           # (TB,1536)
    p2 = jnp.maximum(jnp.maximum(s2[:, 0:384], s2[:, 384:768]),
                     jnp.maximum(s2[:, 768:1152], s2[:, 1152:1536]))
    h2 = jnp.maximum(p2 + b2, 0.0).astype(jnp.bfloat16)                 # (TB, 384)

    # ---- stage 3: fully connected (lane-dense 128-wide output) --------------
    out = jnp.dot(h2, wfc_ref[...], preferred_element_type=f32) + bfc
    o_ref[...] = out.astype(o_ref.dtype)


# ----------------------------------------------------------------------------
# One-time weight re-layout (hoisted out of the per-forward hot path)
# ----------------------------------------------------------------------------
def prepare_params(params):
    """Build the conv/FC matrices consumed by the fused kernel (call once)."""
    w1, b1, w2, b2, wfc, bfc = params

    # --- stage 1: (256, 512) banded conv matrix --------------------------------
    # Input row (per band I) = image rows 2I..2I+5 flattened (168 px, padded to
    # 256). Output column p*128 + J*10 + co = conv1 response at pre-pool
    # position (2I + r, 2J + c), channel co, phase p = 2r + c. Channels padded
    # 120 -> 128 with zeros.
    m1 = np.zeros((4, 25, 12, 256), np.float32)
    for p in range(4):
        r, c = divmod(p, 2)
        for di in range(5):
            for dj in range(5):
                for J in range(12):
                    m1[p, di * 5 + dj, J, (r + di) * 28 + 2 * J + c + dj] = 1.0
    w1f = w1.reshape(10, 25)                                   # (co, tap)
    w1t = jnp.einsum('ptJk,ot->pJok', jnp.asarray(m1), w1f)    # (4, 12, 10, 256)
    w1t = jnp.pad(w1t.reshape(4, 120, 256), ((0, 0), (0, 8), (0, 0)))  # (4,128,256)
    w1m = w1t.transpose(2, 0, 1).reshape(256, 512)

    b1v = jnp.pad(jnp.tile(b1, 12), (0, 8)).reshape(1, 128).astype(jnp.float32)

    # --- stage 2: (1536, 1536) conv matrix --------------------------------------
    # Row index I*128 + J*10 + c1 (h1 layout, 8 zero rows per band). Column
    # p*384 + (i*4 + j)*20 + co2 = conv2 response at pre-pool (2i+r, 2j+c),
    # phase p = 2r + c; each phase padded 320 -> 384 with zeros.
    m2 = np.zeros((4, 25, 4, 4, 12, 12), np.float32)
    for p in range(4):
        r, c = divmod(p, 2)
        for di in range(5):
            for dj in range(5):
                for i in range(4):
                    for j in range(4):
                        m2[p, di * 5 + dj, i, j, 2 * i + r + di, 2 * j + c + dj] = 1.0
    w2f = w2.reshape(20, 10, 25)                               # (co2, c1, tap)
    w2t = jnp.einsum('ptijIJ,oct->IJcpijo', jnp.asarray(m2), w2f)  # (12,12,10,4,4,4,20)
    w2t = w2t.reshape(12, 120, 4, 320)
    w2t = jnp.pad(w2t, ((0, 0), (0, 8), (0, 0), (0, 64)))      # (12, 128, 4, 384)
    w2m = w2t.reshape(1536, 1536)

    b2v = jnp.pad(jnp.tile(b2, 16), (0, 64)).reshape(1, 384).astype(jnp.float32)

    # --- FC: permute PyTorch's (co2, i, j) flatten to our (i, j, co2) layout,
    #     pad K 320 -> 384 (zero rows) and classes 10 -> 128 (zero cols).
    wfcm = wfc.reshape(10, 20, 4, 4).transpose(2, 3, 1, 0).reshape(320, 10)
    wfcm = jnp.pad(wfcm, ((0, 64), (0, 118)))                  # (384, 128)
    bfcv = jnp.pad(bfc, (0, 118)).reshape(1, 128).astype(jnp.float32)

    return (w1m.astype(jnp.bfloat16), b1v,
            w2m.astype(jnp.bfloat16), b2v,
            wfcm.astype(jnp.bfloat16), bfcv)


# ----------------------------------------------------------------------------
# Wrapper
# ----------------------------------------------------------------------------
def _round_up(x, m):
    return (x + m - 1) // m * m


def cnn_forward(x, prepared, *, tb=256, vmem_limit_bytes=48 * 1024 * 1024):
    """x: (B, 1, 28, 28) float32 (NCHW, like PyTorch) -> logits (B, 10)."""
    w1m, b1v, w2m, b2v, wfcm, bfcv = prepared
    batch = x.shape[0]

    # Batch tile: multiple of 16 (bf16 sublane packing). Ensure >= 2 grid steps
    # whenever possible so ("parallel",) uses both TensorCores on v7x.
    tb = max(16, min(_round_up(int(tb), 16), _round_up(batch, 16)))
    bpad = _round_up(batch, tb)
    if bpad // tb < 2 and bpad > 16:
        tb = _round_up(bpad // 2, 16)
        bpad = _round_up(batch, tb)
    g = bpad // tb

    # Pre-band the images (wrapper-side): band I = image rows 2I..2I+5 (168 px)
    # zero-padded to 256 lanes; within each grid block rows are band-major
    # (row = I*tb + t) so the kernel's 12 h1 pieces are aligned sublane slices.
    xi = x.reshape(batch, 28, 28).astype(jnp.bfloat16)
    if bpad != batch:
        xi = jnp.pad(xi, ((0, bpad - batch), (0, 0), (0, 0)))
    bands = jnp.stack(
        [xi[:, 2 * I:2 * I + 6, :].reshape(bpad, 168) for I in range(12)], axis=1)
    bands = jnp.pad(bands, ((0, 0), (0, 0), (0, 88)))          # (bpad, 12, 256)
    xb = bands.reshape(g, tb, 12, 256).transpose(0, 2, 1, 3).reshape(g * 12 * tb, 256)

    flops = g * (12 * tb * 256 * 512 * 2          # stage 1
                 + tb * 1536 * 1536 * 2           # stage 2
                 + tb * 384 * 128 * 2)            # fc
    weight_bytes = sum(int(np.prod(a.shape)) * a.dtype.itemsize
                       for a in (w1m, b1v, w2m, b2v, wfcm, bfcv))
    cost = pl.CostEstimate(
        flops=int(flops), transcendentals=0,
        bytes_accessed=int(xb.size) * 2 + bpad * 128 * 4 + weight_bytes)

    out = pl.pallas_call(
        _cnn_fused_kernel,
        out_shape=jax.ShapeDtypeStruct((bpad, 128), jnp.float32),
        grid=(g,),
        in_specs=[
            pl.BlockSpec((12 * tb, 256), lambda b: (b, 0)),     # banded images
            pl.BlockSpec((256, 512), lambda b: (0, 0)),         # resident weights
            pl.BlockSpec((1, 128), lambda b: (0, 0)),
            pl.BlockSpec((1536, 1536), lambda b: (0, 0)),
            pl.BlockSpec((1, 384), lambda b: (0, 0)),
            pl.BlockSpec((384, 128), lambda b: (0, 0)),
            pl.BlockSpec((1, 128), lambda b: (0, 0)),
        ],
        out_specs=pl.BlockSpec((tb, 128), lambda b: (b, 0)),
        compiler_params=pltpu.CompilerParams(
            dimension_semantics=("parallel",),   # megacore / both TCs on v7x
            vmem_limit_bytes=vmem_limit_bytes,
        ),
        cost_estimate=cost,
    )(xb, w1m, b1v, w2m, b2v, wfcm, bfcv)

    return out[:batch, :10]


# ----------------------------------------------------------------------------
# Pure-JAX reference (for the correctness check)
# ----------------------------------------------------------------------------
def cnn_reference(x, params):
    w1, b1, w2, b2, wfc, bfc = params

    def conv(a, w, b):
        y = jax.lax.conv_general_dilated(
            a, w, (1, 1), "VALID", dimension_numbers=("NCHW", "OIHW", "NCHW"))
        return y + b[None, :, None, None]

    def mp(a):
        return jax.lax.reduce_window(
            a, -jnp.inf, jax.lax.max, (1, 1, 2, 2), (1, 1, 2, 2), "VALID")

    h = jax.nn.relu(mp(conv(x, w1, b1)))
    h = jax.nn.relu(mp(conv(h, w2, b2)))
    h = h.reshape(x.shape[0], -1)
    return h @ wfc.T + bfc


# ----------------------------------------------------------------------------
if __name__ == "__main__":
    key = jax.random.PRNGKey(0)
    kx, k1, k2, k3, k4, k5, k6 = jax.random.split(key, 7)

    # Input: MNIST-shaped (fc(320) forces 28x28). B=32 -> 2 grid steps of 16.
    B = 32
    x = jax.random.normal(kx, (B, 1, 28, 28), dtype=jnp.float32)

    # Deterministic parameter init (uniform +-1/sqrt(fan_in), PyTorch-style).
    def u(k, shape, fan_in):
        bound = 1.0 / (fan_in ** 0.5)
        return jax.random.uniform(k, shape, jnp.float32, -bound, bound)

    w1 = u(k1, (10, 1, 5, 5), 1 * 5 * 5)
    b1 = u(k2, (10,), 1 * 5 * 5)
    w2 = u(k3, (20, 10, 5, 5), 10 * 5 * 5)
    b2 = u(k4, (20,), 10 * 5 * 5)
    wfc = u(k5, (10, 320), 320)
    bfc = u(k6, (10,), 320)
    params = (w1, b1, w2, b2, wfc, bfc)

    prepared = prepare_params(params)            # one-time weight re-layout

    fwd = jax.jit(cnn_forward, static_argnames=("tb", "vmem_limit_bytes"))
    out = jax.block_until_ready(fwd(x, prepared, tb=256))

    ref = cnn_reference(x, params)
    assert out.shape == (B, 10), out.shape
    # bf16 matmul operands (f32 accumulation) vs. f32 reference -> loose tol.
    err = float(jnp.max(jnp.abs(out - ref)))
    assert err < 5e-2, err

    print("KERNEL_OK")
</pallas_src>

<mosaic_0001>
module attributes {stable_mosaic.version = 11 : i64} {
  func.func @_cnn_fused_kernel(%arg0: i32, %arg1: memref<192x256xbf16, #tpu.memory_space<vmem>>, %arg2: memref<256x512xbf16, #tpu.memory_space<vmem>>, %arg3: memref<1x128xf32, #tpu.memory_space<vmem>>, %arg4: memref<1536x1536xbf16, #tpu.memory_space<vmem>>, %arg5: memref<1x384xf32, #tpu.memory_space<vmem>>, %arg6: memref<384x128xbf16, #tpu.memory_space<vmem>>, %arg7: memref<1x128xf32, #tpu.memory_space<vmem>>, %arg8: memref<16x128xf32, #tpu.memory_space<vmem>>) attributes {dimension_semantics = [#tpu.dimension_semantics<parallel>], iteration_bounds = array<i64: 2>, scalar_prefetch = 0 : i64, scratch_operands = 0 : i64, tpu.core_type = #tpu.core_type<tc>, window_params = [{transform_indices = @transform_0, window_bounds = array<i64: 192, 256>}, {pipeline_mode = #tpu.pipeline_mode<synchronous>, transform_indices = @transform_1, window_bounds = array<i64: 256, 512>}, {pipeline_mode = #tpu.pipeline_mode<synchronous>, transform_indices = @transform_2, window_bounds = array<i64: 1, 128>}, {pipeline_mode = #tpu.pipeline_mode<synchronous>, transform_indices = @transform_3, window_bounds = array<i64: 1536, 1536>}, {pipeline_mode = #tpu.pipeline_mode<synchronous>, transform_indices = @transform_4, window_bounds = array<i64: 1, 384>}, {pipeline_mode = #tpu.pipeline_mode<synchronous>, transform_indices = @transform_5, window_bounds = array<i64: 384, 128>}, {pipeline_mode = #tpu.pipeline_mode<synchronous>, transform_indices = @transform_6, window_bounds = array<i64: 1, 128>}, {transform_indices = @transform_7, window_bounds = array<i64: 16, 128>}]} {
    %c0 = arith.constant 0 : index
    %c0_0 = arith.constant 0 : index
    %0 = vector.load %arg3[%c0, %c0_0] : memref<1x128xf32, #tpu.memory_space<vmem>>, vector<1x128xf32>
    %c0_1 = arith.constant 0 : index
    %c0_2 = arith.constant 0 : index
    %1 = vector.load %arg5[%c0_1, %c0_2] : memref<1x384xf32, #tpu.memory_space<vmem>>, vector<1x384xf32>
    %c0_3 = arith.constant 0 : index
    %c0_4 = arith.constant 0 : index
    %2 = vector.load %arg7[%c0_3, %c0_4] : memref<1x128xf32, #tpu.memory_space<vmem>>, vector<1x128xf32>
    %c0_5 = arith.constant 0 : index
    %c0_6 = arith.constant 0 : index
    %3 = vector.load %arg1[%c0_5, %c0_6] : memref<192x256xbf16, #tpu.memory_space<vmem>>, vector<192x256xbf16>
    %c0_7 = arith.constant 0 : index
    %c0_8 = arith.constant 0 : index
    %4 = vector.load %arg2[%c0_7, %c0_8] : memref<256x512xbf16, #tpu.memory_space<vmem>>, vector<256x512xbf16>
    %cst = arith.constant dense<0.000000e+00> : vector<192x512xf32>
    %5 = tpu.matmul %3, %4, %cst {dimension_numbers = #tpu.dot_dimension_numbers<[1], [0], [0], [1], [0, 0, 1, 1], [], []>} : vector<192x256xbf16>, vector<256x512xbf16>, vector<192x512xf32> -> vector<192x512xf32>
    %6 = vector.extract_strided_slice %5 {offsets = [0, 0], sizes = [192, 128], strides = [1, 1]} : vector<192x512xf32> to vector<192x128xf32>
    %7 = vector.extract_strided_slice %5 {offsets = [0, 128], sizes = [192, 128], strides = [1, 1]} : vector<192x512xf32> to vector<192x128xf32>
    %8 = arith.maximumf %6, %7 : vector<192x128xf32>
    %9 = vector.extract_strided_slice %5 {offsets = [0, 256], sizes = [192, 128], strides = [1, 1]} : vector<192x512xf32> to vector<192x128xf32>
    %10 = vector.extract_strided_slice %5 {offsets = [0, 384], sizes = [192, 128], strides = [1, 1]} : vector<192x512xf32> to vector<192x128xf32>
    %11 = arith.maximumf %9, %10 : vector<192x128xf32>
    %12 = arith.maximumf %8, %11 : vector<192x128xf32>
    %13 = vector.broadcast %0 : vector<1x128xf32> to vector<192x128xf32>
    %14 = arith.addf %12, %13 : vector<192x128xf32>
    %cst_9 = arith.constant 0.000000e+00 : f32
    %15 = vector.broadcast %cst_9 : f32 to vector<192x128xf32>
    %16 = arith.maximumf %14, %15 : vector<192x128xf32>
    %17 = arith.truncf %16 : vector<192x128xf32> to vector<192x128xbf16>
    %18 = vector.extract_strided_slice %17 {offsets = [0, 0], sizes = [16, 128], strides = [1, 1]} : vector<192x128xbf16> to vector<16x128xbf16>
    %19 = vector.extract_strided_slice %17 {offsets = [16, 0], sizes = [16, 128], strides = [1, 1]} : vector<192x128xbf16> to vector<16x128xbf16>
    %20 = vector.extract_strided_slice %17 {offsets = [32, 0], sizes = [16, 128], strides = [1, 1]} : vector<192x128xbf16> to vector<16x128xbf16>
    %21 = vector.extract_strided_slice %17 {offsets = [48, 0], sizes = [16, 128], strides = [1, 1]} : vector<192x128xbf16> to vector<16x128xbf16>
    %22 = vector.extract_strided_slice %17 {offsets = [64, 0], sizes = [16, 128], strides = [1, 1]} : vector<192x128xbf16> to vector<16x128xbf16>
    %23 = vector.extract_strided_slice %17 {offsets = [80, 0], sizes = [16, 128], strides = [1, 1]} : vector<192x128xbf16> to vector<16x128xbf16>
    %24 = vector.extract_strided_slice %17 {offsets = [96, 0], sizes = [16, 128], strides = [1, 1]} : vector<192x128xbf16> to vector<16x128xbf16>
    %25 = vector.extract_strided_slice %17 {offsets = [112, 0], sizes = [16, 128], strides = [1, 1]} : vector<192x128xbf16> to vector<16x128xbf16>
    %26 = vector.extract_strided_slice %17 {offsets = [128, 0], sizes = [16, 128], strides = [1, 1]} : vector<192x128xbf16> to vector<16x128xbf16>
    %27 = vector.extract_strided_slice %17 {offsets = [144, 0], sizes = [16, 128], strides = [1, 1]} : vector<192x128xbf16> to vector<16x128xbf16>
    %28 = vector.extract_strided_slice %17 {offsets = [160, 0], sizes = [16, 128], strides = [1, 1]} : vector<192x128xbf16> to vector<16x128xbf16>
    %29 = vector.extract_strided_slice %17 {offsets = [176, 0], sizes = [16, 128], strides = [1, 1]} : vector<192x128xbf16> to vector<16x128xbf16>
    %30 = tpu.concatenate %18, %19, %20, %21, %22, %23, %24, %25, %26, %27, %28, %29 in 1 : vector<16x128xbf16>, vector<16x128xbf16>, vector<16x128xbf16>, vector<16x128xbf16>, vector<16x128xbf16>, vector<16x128xbf16>, vector<16x128xbf16>, vector<16x128xbf16>, vector<16x128xbf16>, vector<16x128xbf16>, vector<16x128xbf16>, vector<16x128xbf16> -> vector<16x1536xbf16>
    %c0_10 = arith.constant 0 : index
    %c0_11 = arith.constant 0 : index
    %31 = vector.load %arg4[%c0_10, %c0_11] : memref<1536x1536xbf16, #tpu.memory_space<vmem>>, vector<1536x1536xbf16>
    %cst_12 = arith.constant dense<0.000000e+00> : vector<16x1536xf32>
    %32 = tpu.matmul %30, %31, %cst_12 {dimension_numbers = #tpu.dot_dimension_numbers<[1], [0], [0], [1], [0, 0, 1, 1], [], []>} : vector<16x1536xbf16>, vector<1536x1536xbf16>, vector<16x1536xf32> -> vector<16x1536xf32>
    %33 = vector.extract_strided_slice %32 {offsets = [0, 0], sizes = [16, 384], strides = [1, 1]} : vector<16x1536xf32> to vector<16x384xf32>
    %34 = vector.extract_strided_slice %32 {offsets = [0, 384], sizes = [16, 384], strides = [1, 1]} : vector<16x1536xf32> to vector<16x384xf32>
    %35 = arith.maximumf %33, %34 : vector<16x384xf32>
    %36 = vector.extract_strided_slice %32 {offsets = [0, 768], sizes = [16, 384], strides = [1, 1]} : vector<16x1536xf32> to vector<16x384xf32>
    %37 = vector.extract_strided_slice %32 {offsets = [0, 1152], sizes = [16, 384], strides = [1, 1]} : vector<16x1536xf32> to vector<16x384xf32>
    %38 = arith.maximumf %36, %37 : vector<16x384xf32>
    %39 = arith.maximumf %35, %38 : vector<16x384xf32>
    %40 = vector.broadcast %1 : vector<1x384xf32> to vector<16x384xf32>
    %41 = arith.addf %39, %40 : vector<16x384xf32>
    %cst_13 = arith.constant 0.000000e+00 : f32
    %42 = vector.broadcast %cst_13 : f32 to vector<16x384xf32>
    %43 = arith.maximumf %41, %42 : vector<16x384xf32>
    %44 = arith.truncf %43 : vector<16x384xf32> to vector<16x384xbf16>
    %c0_14 = arith.constant 0 : index
    %c0_15 = arith.constant 0 : index
    %45 = vector.load %arg6[%c0_14, %c0_15] : memref<384x128xbf16, #tpu.memory_space<vmem>>, vector<384x128xbf16>
    %cst_16 = arith.constant dense<0.000000e+00> : vector<16x128xf32>
    %46 = tpu.matmul %44, %45, %cst_16 {dimension_numbers = #tpu.dot_dimension_numbers<[1], [0], [0], [1], [0, 0, 1, 1], [], []>} : vector<16x384xbf16>, vector<384x128xbf16>, vector<16x128xf32> -> vector<16x128xf32>
    %47 = vector.broadcast %2 : vector<1x128xf32> to vector<16x128xf32>
    %48 = arith.addf %46, %47 : vector<16x128xf32>
    %c0_17 = arith.constant 0 : index
    %c0_18 = arith.constant 0 : index
    %49 = vector.load %arg8[%c0_17, %c0_18] : memref<16x128xf32, #tpu.memory_space<vmem>>, vector<16x128xf32>
    tpu.vector_store %arg8[%c0_17, %c0_18], %48 {strides = array<i32>} : memref<16x128xf32, #tpu.memory_space<vmem>>, vector<16x128xf32>,
    return
  }
  func.func @transform_0(%arg0: i32) -> (i32, i32) {
    %c0_i32 = arith.constant 0 : i32
    %c0_i32_0 = arith.constant 0 : i32
    return %arg0, %c0_i32 : i32, i32
  }
  func.func @transform_1(%arg0: i32) -> (i32, i32) {
    %c0_i32 = arith.constant 0 : i32
    %c0_i32_0 = arith.constant 0 : i32
    %c0_i32_1 = arith.constant 0 : i32
    return %c0_i32, %c0_i32_0 : i32, i32
  }
  func.func @transform_2(%arg0: i32) -> (i32, i32) {
    %c0_i32 = arith.constant 0 : i32
    %c0_i32_0 = arith.constant 0 : i32
    %c0_i32_1 = arith.constant 0 : i32
    return %c0_i32, %c0_i32_0 : i32, i32
  }
  func.func @transform_3(%arg0: i32) -> (i32, i32) {
    %c0_i32 = arith.constant 0 : i32
    %c0_i32_0 = arith.constant 0 : i32
    %c0_i32_1 = arith.constant 0 : i32
    return %c0_i32, %c0_i32_0 : i32, i32
  }
  func.func @transform_4(%arg0: i32) -> (i32, i32) {
    %c0_i32 = arith.constant 0 : i32
    %c0_i32_0 = arith.constant 0 : i32
    %c0_i32_1 = arith.constant 0 : i32
    return %c0_i32, %c0_i32_0 : i32, i32
  }
  func.func @transform_5(%arg0: i32) -> (i32, i32) {
    %c0_i32 = arith.constant 0 : i32
    %c0_i32_0 = arith.constant 0 : i32
    %c0_i32_1 = arith.constant 0 : i32
    return %c0_i32, %c0_i32_0 : i32, i32
  }
  func.func @transform_6(%arg0: i32) -> (i32, i32) {
    %c0_i32 = arith.constant 0 : i32
    %c0_i32_0 = arith.constant 0 : i32
    %c0_i32_1 = arith.constant 0 : i32
    return %c0_i32, %c0_i32_0 : i32, i32
  }
  func.func @transform_7(%arg0: i32) -> (i32, i32) {
    %c0_i32 = arith.constant 0 : i32
    %c0_i32_0 = arith.constant 0 : i32
    return %arg0, %c0_i32 : i32, i32
  }
}

</mosaic_0001>

<llo_original>
// kernel: cnn_forward.1
$region0: #{cnn_forward.1}
  #allocation0 [shape = 'u32[]', space=smem, size = 0x4, offset = 0x4, fixed_abs, tag = 'smem constant byte address 0x4 - core index']
  #allocation1 [shape = 'u32[72,128]{1,0:T(1,128)}', space=vmem, size = 0x9000, scoped, tag = 'internal scratch']
  %s0 = inlined_call_operand.vmem [shape: bf16[384,256], index: 0, kind: input, shape index: {}]
  %s1 = inlined_call_operand.vmem [shape: bf16[256,512], index: 1, kind: input, shape index: {}]
  %s2 = inlined_call_operand.vmem [shape: f32[1,128], index: 2, kind: input, shape index: {}]
  %s3 = inlined_call_operand.vmem [shape: bf16[1536,1536], index: 3, kind: input, shape index: {}]
  %s4 = inlined_call_operand.vmem [shape: f32[1,384], index: 4, kind: input, shape index: {}]
  %s5 = inlined_call_operand.vmem [shape: bf16[384,128], index: 5, kind: input, shape index: {}]
  %s6 = inlined_call_operand.vmem [shape: f32[1,128], index: 6, kind: input, shape index: {}]
  %s7 = inlined_call_operand.vmem [shape: f32[32,128], index: 7, kind: output, shape index: {}]
  %s8 = sld [smem:[#allocation0]]
  $region61: #{cnn_forward.1} parent=0
    _
  %s10 = ssub.s32 1, %s8
  %s11 = scalar_select 0, %s10, %s8
  loop: start=0, step=1, limit=4
  $region2: #{cnn_forward.1} parent=0 // loop_pre_header
    _
  $region3: #{cnn_forward.1} parent=0 // loop_header
    %s13 = sphi 0, %s17
    %p14 = scmp.ge.s32.totalorder %s13, 4
    %s23 = sphi 0, %s25
    %s26 = sphi 0, %s23
    %s27 = sphi 0, %s26
    %s43 = sphi 0, %s27
    %s47 = sphi 0, %s47
    %s49 = sphi 0, %s47
    %s50 = sphi 0, %s49
    %s64 = sphi 0, %s50
    %s68 = sphi 0, %s68
    %s70 = sphi 0, %s68
    %s71 = sphi 0, %s70
    %s85 = sphi 0, %s71
    %s89 = sphi 0, %s89
    %s91 = sphi 0, %s89
    %s92 = sphi 0, %s91
    %s106 = sphi 0, %s92
    %s110 = sphi 0, %s110
    %s112 = sphi 0, %s110
    %s113 = sphi 0, %s112
    %s127 = sphi 0, %s113
    %s131 = sphi 0, %s131
    %s133 = sphi 0, %s131
    %s134 = sphi 0, %s133
    %s148 = sphi 0, %s134
    %s152 = sphi 0, %s152
    %s154 = sphi 0, %s152
    %s155 = sphi 0, %s154
    %s169 = sphi 0, %s155
    %s175 = sphi 0, %s177
    %s178 = sphi 0, %s175
    %s179 = sphi 0, %s178
    %s195 = sphi 0, %s179
  $region4: #{cnn_forward.1} parent=0 // loop_header_branch
    %16 = sbr.rel (%p14) target = $region8
  $region5: #{cnn_forward.1} parent=0 // loop_body
    %s18 = ssub.s32 %s13, 1
    %s19 = ssub.s32 %s13, 2
    %s20 = sadd.s32 %s13, 1
    %s21 = ssub.s32 %s13, %s20
    %p22 = scmp.eq.s32.totalorder %s21, 0
    %s24 = sadd.s32 %s23, 1
    %s25 = scalar_select %p22, %s23, %s24
    %p28 = pneg %p22
    %p29 = scmp.eq.s32.totalorder %s13, 1
    %p30 = por %p28, %p29
    %p31 = scmp.ne.s32.totalorder %s23, %s26
    %p32 = scmp.eq.s32.totalorder %s13, 0
    %p33 = por %p31, %p32
    %p34 = scmp.ne.s32.totalorder %s23, %s26
    %p35 = scmp.eq.s32.totalorder %s18, 1
    %p36 = por %p34, %p35
    %p37 = scmp.ne.s32.totalorder %s26, %s27
    %p38 = scmp.eq.s32.totalorder %s18, 0
    %p39 = por %p37, %p38
    %p40 = scmp.ne.s32.totalorder %s26, %s27
    %p41 = scmp.eq.s32.totalorder %s19, 1
    %p42 = por %p40, %p41
    %p44 = scmp.ne.s32.totalorder %s27, %s43
    %p45 = scmp.eq.s32.totalorder %s19, 0
    %p46 = por %p44, %p45
    %s48 = sadd.s32 %s47, 1
    %p51 = scmp.eq.s32.totalorder %s13, 1
    %p52 = scmp.ne.s32.totalorder %s47, %s49
    %p53 = scmp.eq.s32.totalorder %s13, 0
    %p54 = por %p52, %p53
    %p55 = scmp.ne.s32.totalorder %s47, %s49
    %p56 = scmp.eq.s32.totalorder %s18, 1
    %p57 = por %p55, %p56
    %p58 = scmp.ne.s32.totalorder %s49, %s50
    %p59 = scmp.eq.s32.totalorder %s18, 0
    %p60 = por %p58, %p59
    %p61 = scmp.ne.s32.totalorder %s49, %s50
    %p62 = scmp.eq.s32.totalorder %s19, 1
    %p63 = por %p61, %p62
    %p65 = scmp.ne.s32.totalorder %s50, %s64
    %p66 = scmp.eq.s32.totalorder %s19, 0
    %p67 = por %p65, %p66
    %s69 = sadd.s32 %s68, 1
    %p72 = scmp.eq.s32.totalorder %s13, 1
    %p73 = scmp.ne.s32.totalorder %s68, %s70
    %p74 = scmp.eq.s32.totalorder %s13, 0
    %p75 = por %p73, %p74
    %p76 = scmp.ne.s32.totalorder %s68, %s70
    %p77 = scmp.eq.s32.totalorder %s18, 1
    %p78 = por %p76, %p77
    %p79 = scmp.ne.s32.totalorder %s70, %s71
    %p80 = scmp.eq.s32.totalorder %s18, 0
    %p81 = por %p79, %p80
    %p82 = scmp.ne.s32.totalorder %s70, %s71
    %p83 = scmp.eq.s32.totalorder %s19, 1
    %p84 = por %p82, %p83
    %p86 = scmp.ne.s32.totalorder %s71, %s85
    %p87 = scmp.eq.s32.totalorder %s19, 0
    %p88 = por %p86, %p87
    %s90 = sadd.s32 %s89, 1
    %p93 = scmp.eq.s32.totalorder %s13, 1
    %p94 = scmp.ne.s32.totalorder %s89, %s91
    %p95 = scmp.eq.s32.totalorder %s13, 0
    %p96 = por %p94, %p95
    %p97 = scmp.ne.s32.totalorder %s89, %s91
    %p98 = scmp.eq.s32.totalorder %s18, 1
    %p99 = por %p97, %p98
    %p100 = scmp.ne.s32.totalorder %s91, %s92
    %p101 = scmp.eq.s32.totalorder %s18, 0
    %p102 = por %p100, %p101
    %p103 = scmp.ne.s32.totalorder %s91, %s92
    %p104 = scmp.eq.s32.totalorder %s19, 1
    %p105 = por %p103, %p104
    %p107 = scmp.ne.s32.totalorder %s92, %s106
    %p108 = scmp.eq.s32.totalorder %s19, 0
    %p109 = por %p107, %p108
    %s111 = sadd.s32 %s110, 1
    %p114 = scmp.eq.s32.totalorder %s13, 1
    %p115 = scmp.ne.s32.totalorder %s110, %s112
    %p116 = scmp.eq.s32.totalorder %s13, 0
    %p117 = por %p115, %p116
    %p118 = scmp.ne.s32.totalorder %s110, %s112
    %p119 = scmp.eq.s32.totalorder %s18, 1
    %p120 = por %p118, %p119
    %p121 = scmp.ne.s32.totalorder %s112, %s113
    %p122 = scmp.eq.s32.totalorder %s18, 0
    %p123 = por %p121, %p122
    %p124 = scmp.ne.s32.totalorder %s112, %s113
    %p125 = scmp.eq.s32.totalorder %s19, 1
    %p126 = por %p124, %p125
    %p128 = scmp.ne.s32.totalorder %s113, %s127
    %p129 = scmp.eq.s32.totalorder %s19, 0
    %p130 = por %p128, %p129
    %s132 = sadd.s32 %s131, 1
    %p135 = scmp.eq.s32.totalorder %s13, 1
    %p136 = scmp.ne.s32.totalorder %s131, %s133
    %p137 = scmp.eq.s32.totalorder %s13, 0
    %p138 = por %p136, %p137
    %p139 = scmp.ne.s32.totalorder %s131, %s133
    %p140 = scmp.eq.s32.totalorder %s18, 1
    %p141 = por %p139, %p140
    %p142 = scmp.ne.s32.totalorder %s133, %s134
    %p143 = scmp.eq.s32.totalorder %s18, 0
    %p144 = por %p142, %p143
    %p145 = scmp.ne.s32.totalorder %s133, %s134
    %p146 = scmp.eq.s32.totalorder %s19, 1
    %p147 = por %p145, %p146
    %p149 = scmp.ne.s32.totalorder %s134, %s148
    %p150 = scmp.eq.s32.totalorder %s19, 0
    %p151 = por %p149, %p150
    %s153 = sadd.s32 %s152, 1
    %p156 = scmp.eq.s32.totalorder %s13, 1
    %p157 = scmp.ne.s32.totalorder %s152, %s154
    %p158 = scmp.eq.s32.totalorder %s13, 0
    %p159 = por %p157, %p158
    %p160 = scmp.ne.s32.totalorder %s152, %s154
    %p161 = scmp.eq.s32.totalorder %s18, 1
    %p162 = por %p160, %p161
    %p163 = scmp.ne.s32.totalorder %s154, %s155
    %p164 = scmp.eq.s32.totalorder %s18, 0
    %p165 = por %p163, %p164
    %p166 = scmp.ne.s32.totalorder %s154, %s155
    %p167 = scmp.eq.s32.totalorder %s19, 1
    %p168 = por %p166, %p167
    %p170 = scmp.ne.s32.totalorder %s155, %s169
    %p171 = scmp.eq.s32.totalorder %s19, 0
    %p172 = por %p170, %p171
    %s173 = ssub.s32 %s13, %s20
    %p174 = scmp.eq.s32.totalorder %s173, 0
    %s176 = sadd.s32 %s175, 1
    %s177 = scalar_select %p174, %s175, %s176
    %p180 = pneg %p174
    %p181 = scmp.eq.s32.totalorder %s13, 1
    %p182 = por %p180, %p181
    %p183 = scmp.ne.s32.totalorder %s175, %s178
    %p184 = scmp.eq.s32.totalorder %s13, 0
    %p185 = por %p183, %p184
    %p186 = scmp.ne.s32.totalorder %s175, %s178
    %p187 = scmp.eq.s32.totalorder %s18, 1
    %p188 = por %p186, %p187
    %p189 = scmp.ne.s32.totalorder %s178, %s179
    %p190 = scmp.eq.s32.totalorder %s18, 0
    %p191 = por %p189, %p190
    %p192 = scmp.ne.s32.totalorder %s178, %s179
    %p193 = scmp.eq.s32.totalorder %s19, 1
    %p194 = por %p192, %p193
    %p196 = scmp.ne.s32.totalorder %s179, %s195
    %p197 = scmp.eq.s32.totalorder %s19, 0
    %p198 = por %p196, %p197
    %p199 = scmp.le.s32.totalorder 1, %s13
    %p200 = scmp.lt.s32.totalorder %s13, 3
    %p201 = pnand %p199, %p200
    %p202 = pneg %p201
    // Predicated region
    $region9: #{cnn_forward.1} parent=5 // pred_check
      _
    $region10: #{cnn_forward.1} parent=5 // pred_check_branch
      %204 = sbr.rel (%p201) target = $region12
    $region11: #{cnn_forward.1} parent=5 // pred_region
      %s205 = ssub.s32 %s13, 1
      // Predicated region
      $region13: #{cnn_forward.1} parent=11 // pred_check
        %p206 = pneg %p60
      $region14: #{cnn_forward.1} parent=11 // pred_check_branch
        %208 = sbr.rel (%p206) target = $region16
      $region15: #{cnn_forward.1} parent=11 // pred_region
        _
      $region16: #{cnn_forward.1} parent=11 // pred_fallthru
        _
      // Predicated region
      $region17: #{cnn_forward.1} parent=11 // pred_check
        %p209 = pneg %p81
      $region18: #{cnn_forward.1} parent=11 // pred_check_branch
        %211 = sbr.rel (%p209) target = $region20
      $region19: #{cnn_forward.1} parent=11 // pred_region
        _
      $region20: #{cnn_forward.1} parent=11 // pred_fallthru
        _
      // Predicated region
      $region21: #{cnn_forward.1} parent=11 // pred_check
        %p212 = pneg %p102
      $region22: #{cnn_forward.1} parent=11 // pred_check_branch
        %214 = sbr.rel (%p212) target = $region24
      $region23: #{cnn_forward.1} parent=11 // pred_region
        _
      $region24: #{cnn_forward.1} parent=11 // pred_fallthru
        _
      // Predicated region
      $region25: #{cnn_forward.1} parent=11 // pred_check
        %p215 = pneg %p123
      $region26: #{cnn_forward.1} parent=11 // pred_check_branch
        %217 = sbr.rel (%p215) target = $region28
      $region27: #{cnn_forward.1} parent=11 // pred_region
        _
      $region28: #{cnn_forward.1} parent=11 // pred_fallthru
        _
      // Predicated region
      $region29: #{cnn_forward.1} parent=11 // pred_check
        %p218 = pneg %p144
      $region30: #{cnn_forward.1} parent=11 // pred_check_branch
        %220 = sbr.rel (%p218) target = $region32
      $region31: #{cnn_forward.1} parent=11 // pred_region
        _
      $region32: #{cnn_forward.1} parent=11 // pred_fallthru
        _
      // Predicated region
      $region33: #{cnn_forward.1} parent=11 // pred_check
        %p221 = pneg %p165
      $region34: #{cnn_forward.1} parent=11 // pred_check_branch
        %223 = sbr.rel (%p221) target = $region36
      $region35: #{cnn_forward.1} parent=11 // pred_region
        _
      $region36: #{cnn_forward.1} parent=11 // pred_fallthru
        _
    $region12: #{cnn_forward.1} parent=5 // pred_fallthru
      _
    %p224 = scmp.lt.s32.totalorder %s13, 2
    // Predicated region
    $region37: #{cnn_forward.1} parent=5 // pred_check
      %p225 = pneg %p224
    $region38: #{cnn_forward.1} parent=5 // pred_check_branch
      %227 = sbr.rel (%p225) target = $region40
    $region39: #{cnn_forward.1} parent=5 // pred_region
      // Predicated region
      $region41: #{cnn_forward.1} parent=39 // pred_check
        %p228 = pneg %p33
      $region42: #{cnn_forward.1} parent=39 // pred_check_branch
        %230 = sbr.rel (%p228) target = $region44
      $region43: #{cnn_forward.1} parent=39 // pred_region
        %s231 = smul.u32 24, %s13
        %p232 = scmp.lt.s32.totalorder %s231, 47
        %s233 = scalar_select %p232, %s231, 47
        %s234 = smul.addr %s233, 2
        %s235 = smul.addr %s234, 4
        %s236 = scalar_lea.vmem %s0, %s235
        %s237 = smul.u32 24, %s13
      $region44: #{cnn_forward.1} parent=39 // pred_fallthru
        _
    $region40: #{cnn_forward.1} parent=5 // pred_fallthru
      _
    %p238 = scmp.le.s32.totalorder 1, %s13
    %p239 = scmp.lt.s32.totalorder %s13, 3
    %p240 = pnand %p238, %p239
    %p241 = pneg %p240
    // Predicated region
    $region45: #{cnn_forward.1} parent=5 // pred_check
      _
    $region46: #{cnn_forward.1} parent=5 // pred_check_branch
      %243 = sbr.rel (%p240) target = $region48
    $region47: #{cnn_forward.1} parent=5 // pred_region
      %s244 = ssub.s32 %s13, 1
      %s245 = smul.u32 24, %s18
      %p246 = scmp.lt.s32.totalorder %s245, 47
      %s247 = scalar_select %p246, %s245, 47
      %s248 = smul.addr %s247, 2
      %s249 = smul.addr %s248, 4
      %s250 = scalar_lea.vmem %s0, %s249
      %p251 = pneg %p39
      %p252 = pneg %p36
      %p253 = pneg %p60
      %p254 = pneg %p57
      %p255 = pneg %p81
      %p256 = pneg %p78
      %p257 = pneg %p102
      %p258 = pneg %p99
      %p259 = pneg %p123
      %p260 = pneg %p120
      %p261 = pneg %p144
      %p262 = pneg %p141
      %p263 = pneg %p165
      %p264 = pneg %p162
      %p265 = pneg %p191
      %p266 = pneg %p188
      %s267 = smul.u32 2, %s18
      %p268 = scmp.lt.s32.totalorder %s267, 3
      %s269 = scalar_select %p268, %s267, 3
      %s270 = smul.addr %s269, 8
      %s271 = scalar_lea.vmem %s7, %s270
      %s272 = smul.u32 24, %s18
      %p273 = scmp.lt.s32.totalorder %s272, 47
      %s274 = scalar_select %p273, %s272, 47
      %s275 = smul.addr %s274, 2
      %s276 = smul.addr %s275, 4
      %s277 = scalar_lea.vmem %s0, %s276
      %s278 = smul.u32 24, %s18
      %s279 = smul.u32 2, %s18
      %p280 = scmp.lt.s32.totalorder %s279, 3
      %s281 = scalar_select %p280, %s279, 3
      %s282 = smul.addr %s281, 8
      %s283 = scalar_lea.vmem %s7, %s282
      %s284 = smul.u32 2, %s18
      %v285 = vld [vmem:[%s2] sm:$0x1]
      %v286 = vld [vmem:[%s4] sm:$0x7]
      %v287 = vld [vmem:[%s6] sm:$0x1]
      %v288 = vld [vmem:[%s277] sm:$0xff]
      %v289 = vld [vmem:[%s277 + $0x8] sm:$0xff]
      %v290 = vld [vmem:[%s277 + $0x10] sm:$0xff]
      %v291 = vld [vmem:[%s277 + $0x18] sm:$0xff]
      %v292 = vld [vmem:[%s277 + $0x20] sm:$0xff]
      %v293 = vld [vmem:[%s277 + $0x28] sm:$0xff]
      %v294 = vld [vmem:[%s277 + $0x30] sm:$0xff]
      %v295 = vld [vmem:[%s277 + $0x38] sm:$0xff]
      %v296 = vld [vmem:[%s277 + $0x40] sm:$0xff]
      %v297 = vld [vmem:[%s277 + $0x48] sm:$0xff]
      %v298 = vld [vmem:[%s277 + $0x50] sm:$0xff]
      %v299 = vld [vmem:[%s277 + $0x58] sm:$0xff]
      %v300 = vld [vmem:[%s277 + $0x60] sm:$0xff]
      %v301 = vld [vmem:[%s277 + $0x68] sm:$0xff]
      %v302 = vld [vmem:[%s277 + $0x70] sm:$0xff]
      %v303 = vld [vmem:[%s277 + $0x78] sm:$0xff]
      %v304 = vld [vmem:[%s277 + $0x80] sm:$0xff]
      %v305 = vld [vmem:[%s277 + $0x88] sm:$0xff]
      %v306 = vld [vmem:[%s277 + $0x90] sm:$0xff]
      %v307 = vld [vmem:[%s277 + $0x98] sm:$0xff]
      %v308 = vld [vmem:[%s277 + $0xa0] sm:$0xff]
      %v309 = vld [vmem:[%s277 + $0xa8] sm:$0xff]
      %v310 = vld [vmem:[%s277 + $0xb0] sm:$0xff]
      %v311 = vld [vmem:[%s277 + $0xb8] sm:$0xff]
      %v312 = vld [vmem:[%s1] sm:$0xff]
      %v313 = vld [vmem:[%s1 + $0x8] sm:$0xff]
      %v314 = vld [vmem:[%s1 + $0x10] sm:$0xff]
      %v315 = vld [vmem:[%s1 + $0x18] sm:$0xff]
      %v316 = vld [vmem:[%s1 + $0x20] sm:$0xff]
      %v317 = vld [vmem:[%s1 + $0x28] sm:$0xff]
      %v318 = vld [vmem:[%s1 + $0x30] sm:$0xff]
      %v319 = vld [vmem:[%s1 + $0x38] sm:$0xff]
      %v320 = vld [vmem:[%s1 + $0x40] sm:$0xff]
      %v321 = vld [vmem:[%s1 + $0x48] sm:$0xff]
      %v322 = vld [vmem:[%s1 + $0x50] sm:$0xff]
      %v323 = vld [vmem:[%s1 + $0x58] sm:$0xff]
      %v324 = vld [vmem:[%s1 + $0x60] sm:$0xff]
      %v325 = vld [vmem:[%s1 + $0x68] sm:$0xff]
      %v326 = vld [vmem:[%s1 + $0x70] sm:$0xff]
      %v327 = vld [vmem:[%s1 + $0x78] sm:$0xff]
      %v328 = vld [vmem:[%s1 + $0x80] sm:$0xff]
      %v329 = vld [vmem:[%s1 + $0x88] sm:$0xff]
      %v330 = vld [vmem:[%s1 + $0x90] sm:$0xff]
      %v331 = vld [vmem:[%s1 + $0x98] sm:$0xff]
      %v332 = vld [vmem:[%s1 + $0xa0] sm:$0xff]
      %v333 = vld [vmem:[%s1 + $0xa8] sm:$0xff]
      %v334 = vld [vmem:[%s1 + $0xb0] sm:$0xff]
      %v335 = vld [vmem:[%s1 + $0xb8] sm:$0xff]
      %v336 = vld [vmem:[%s1 + $0xc0] sm:$0xff]
      %v337 = vld [vmem:[%s1 + $0xc8] sm:$0xff]
      %v338 = vld [vmem:[%s1 + $0xd0] sm:$0xff]
      %v339 = vld [vmem:[%s1 + $0xd8] sm:$0xff]
      %v340 = vld [vmem:[%s1 + $0xe0] sm:$0xff]
      %v341 = vld [vmem:[%s1 + $0xe8] sm:$0xff]
      %v342 = vld [vmem:[%s1 + $0xf0] sm:$0xff]
      %v343 = vld [vmem:[%s1 + $0xf8] sm:$0xff]
      %v344 = vld [vmem:[%s1 + $0x100] sm:$0xff]
      %v345 = vld [vmem:[%s1 + $0x108] sm:$0xff]
      %v346 = vld [vmem:[%s1 + $0x110] sm:$0xff]
      %v347 = vld [vmem:[%s1 + $0x118] sm:$0xff]
      %v348 = vld [vmem:[%s1 + $0x120] sm:$0xff]
      %v349 = vld [vmem:[%s1 + $0x128] sm:$0xff]
      %v350 = vld [vmem:[%s1 + $0x130] sm:$0xff]
      %v351 = vld [vmem:[%s1 + $0x138] sm:$0xff]
      %v352 = vld [vmem:[%s1 + $0x140] sm:$0xff]
      %v353 = vld [vmem:[%s1 + $0x148] sm:$0xff]
      %v354 = vld [vmem:[%s1 + $0x150] sm:$0xff]
      %v355 = vld [vmem:[%s1 + $0x158] sm:$0xff]
      %v356 = vld [vmem:[%s1 + $0x160] sm:$0xff]
      %v357 = vld [vmem:[%s1 + $0x168] sm:$0xff]
      %v358 = vld [vmem:[%s1 + $0x170] sm:$0xff]
      %v359 = vld [vmem:[%s1 + $0x178] sm:$0xff]
      %v360 = vld [vmem:[%s1 + $0x180] sm:$0xff]
      %v361 = vld [vmem:[%s1 + $0x188] sm:$0xff]
      %v362 = vld [vmem:[%s1 + $0x190] sm:$0xff]
      %v363 = vld [vmem:[%s1 + $0x198] sm:$0xff]
      %v364 = vld [vmem:[%s1 + $0x1a0] sm:$0xff]
      %v365 = vld [vmem:[%s1 + $0x1a8] sm:$0xff]
      %v366 = vld [vmem:[%s1 + $0x1b0] sm:$0xff]
      %v367 = vld [vmem:[%s1 + $0x1b8] sm:$0xff]
      %v368 = vld [vmem:[%s1 + $0x1c0] sm:$0xff]
      %v369 = vld [vmem:[%s1 + $0x1c8] sm:$0xff]
      %v370 = vld [vmem:[%s1 + $0x1d0] sm:$0xff]
      %v371 = vld [vmem:[%s1 + $0x1d8] sm:$0xff]
      %v372 = vld [vmem:[%s1 + $0x1e0] sm:$0xff]
      %v373 = vld [vmem:[%s1 + $0x1e8] sm:$0xff]
      %v374 = vld [vmem:[%s1 + $0x1f0] sm:$0xff]
      %v375 = vld [vmem:[%s1 + $0x1f8] sm:$0xff]
      %v400 = vunpack.c.l.b16 %v288
      %v401 = vunpack.c.h.b16 %v288
      %v402 = vunpack.c.l.b16 %v289
      %v403 = vunpack.c.h.b16 %v289
      %v404 = vunpack.c.l.b16 %v290
      %v405 = vunpack.c.h.b16 %v290
      %v406 = vunpack.c.l.b16 %v291
      %v407 = vunpack.c.h.b16 %v291
      %v408 = vunpack.c.l.b16 %v292
      %v409 = vunpack.c.h.b16 %v292
      %v410 = vunpack.c.l.b16 %v293
      %v411 = vunpack.c.h.b16 %v293
      %v412 = vunpack.c.l.b16 %v294
      %v413 = vunpack.c.h.b16 %v294
      %v414 = vunpack.c.l.b16 %v295
      %v415 = vunpack.c.h.b16 %v295
      %v416 = vunpack.c.l.b16 %v296
      %v417 = vunpack.c.h.b16 %v296
      %v418 = vunpack.c.l.b16 %v297
      %v419 = vunpack.c.h.b16 %v297
      %v420 = vunpack.c.l.b16 %v298
      %v421 = vunpack.c.h.b16 %v298
      %v422 = vunpack.c.l.b16 %v299
      %v423 = vunpack.c.h.b16 %v299
      %v424 = vunpack.c.l.b16 %v300
      %v425 = vunpack.c.h.b16 %v300
      %v426 = vunpack.c.l.b16 %v301
      %v427 = vunpack.c.h.b16 %v301
      %v428 = vunpack.c.l.b16 %v302
      %v429 = vunpack.c.h.b16 %v302
      %v430 = vunpack.c.l.b16 %v303
      %v431 = vunpack.c.h.b16 %v303
      %v432 = vunpack.c.l.b16 %v304
      %v433 = vunpack.c.h.b16 %v304
      %v434 = vunpack.c.l.b16 %v305
      %v435 = vunpack.c.h.b16 %v305
      %v436 = vunpack.c.l.b16 %v306
      %v437 = vunpack.c.h.b16 %v306
      %v438 = vunpack.c.l.b16 %v307
      %v439 = vunpack.c.h.b16 %v307
      %v440 = vunpack.c.l.b16 %v308
      %v441 = vunpack.c.h.b16 %v308
      %v442 = vunpack.c.l.b16 %v309
      %v443 = vunpack.c.h.b16 %v309
      %v444 = vunpack.c.l.b16 %v310
      %v445 = vunpack.c.h.b16 %v310
      %v446 = vunpack.c.l.b16 %v311
      %v447 = vunpack.c.h.b16 %v311
      %v448 = vpack.c.b16 %v402, %v400
      %v449 = vpack.c.b16 %v403, %v401
      %v450 = vpack.c.b16 %v406, %v404
      %v451 = vpack.c.b16 %v407, %v405
      %v452 = vpack.c.b16 %v410, %v408
      %v453 = vpack.c.b16 %v411, %v409
      %v454 = vpack.c.b16 %v414, %v412
      %v455 = vpack.c.b16 %v415, %v413
      %v456 = vpack.c.b16 %v418, %v416
      %v457 = vpack.c.b16 %v419, %v417
      %v458 = vpack.c.b16 %v422, %v420
      %v459 = vpack.c.b16 %v423, %v421
      %v460 = vpack.c.b16 %v426, %v424
      %v461 = vpack.c.b16 %v427, %v425
      %v462 = vpack.c.b16 %v430, %v428
      %v463 = vpack.c.b16 %v431, %v429
      %v464 = vpack.c.b16 %v434, %v432
      %v465 = vpack.c.b16 %v435, %v433
      %v466 = vpack.c.b16 %v438, %v436
      %v467 = vpack.c.b16 %v439, %v437
      %v468 = vpack.c.b16 %v442, %v440
      %v469 = vpack.c.b16 %v443, %v441
      %v470 = vpack.c.b16 %v446, %v444
      %v471 = vpack.c.b16 %v447, %v445
      %v560 = vunpack.c.l.b16 %v312
      %v561 = vunpack.c.h.b16 %v312
      %v562 = vunpack.c.l.b16 %v313
      %v563 = vunpack.c.h.b16 %v313
      %v564 = vunpack.c.l.b16 %v314
      %v565 = vunpack.c.h.b16 %v314
      %v566 = vunpack.c.l.b16 %v315
      %v567 = vunpack.c.h.b16 %v315
      %v568 = vunpack.c.l.b16 %v316
      %v569 = vunpack.c.h.b16 %v316
      %v570 = vunpack.c.l.b16 %v317
      %v571 = vunpack.c.h.b16 %v317
      %v572 = vunpack.c.l.b16 %v318
      %v573 = vunpack.c.h.b16 %v318
      %v574 = vunpack.c.l.b16 %v319
      %v575 = vunpack.c.h.b16 %v319
      %v576 = vunpack.c.l.b16 %v320
      %v577 = vunpack.c.h.b16 %v320
      %v578 = vunpack.c.l.b16 %v321
      %v579 = vunpack.c.h.b16 %v321
      %v580 = vunpack.c.l.b16 %v322
      %v581 = vunpack.c.h.b16 %v322
      %v582 = vunpack.c.l.b16 %v323
      %v583 = vunpack.c.h.b16 %v323
      %v584 = vunpack.c.l.b16 %v324
      %v585 = vunpack.c.h.b16 %v324
      %v586 = vunpack.c.l.b16 %v325
      %v587 = vunpack.c.h.b16 %v325
      %v588 = vunpack.c.l.b16 %v326
      %v589 = vunpack.c.h.b16 %v326
      %v590 = vunpack.c.l.b16 %v327
      %v591 = vunpack.c.h.b16 %v327
      %v592 = vunpack.c.l.b16 %v328
      %v593 = vunpack.c.h.b16 %v328
      %v594 = vunpack.c.l.b16 %v329
      %v595 = vunpack.c.h.b16 %v329
      %v596 = vunpack.c.l.b16 %v330
      %v597 = vunpack.c.h.b16 %v330
      %v598 = vunpack.c.l.b16 %v331
      %v599 = vunpack.c.h.b16 %v331
      %v600 = vunpack.c.l.b16 %v332
      %v601 = vunpack.c.h.b16 %v332
      %v602 = vunpack.c.l.b16 %v333
      %v603 = vunpack.c.h.b16 %v333
      %v604 = vunpack.c.l.b16 %v334
      %v605 = vunpack.c.h.b16 %v334
      %v606 = vunpack.c.l.b16 %v335
      %v607 = vunpack.c.h.b16 %v335
      %v608 = vunpack.c.l.b16 %v336
      %v609 = vunpack.c.h.b16 %v336
      %v610 = vunpack.c.l.b16 %v337
      %v611 = vunpack.c.h.b16 %v337
      %v612 = vunpack.c.l.b16 %v338
      %v613 = vunpack.c.h.b16 %v338
      %v614 = vunpack.c.l.b16 %v339
      %v615 = vunpack.c.h.b16 %v339
      %v616 = vunpack.c.l.b16 %v340
      %v617 = vunpack.c.h.b16 %v340
      %v618 = vunpack.c.l.b16 %v341
      %v619 = vunpack.c.h.b16 %v341
      %v620 = vunpack.c.l.b16 %v342
      %v621 = vunpack.c.h.b16 %v342
      %v622 = vunpack.c.l.b16 %v343
      %v623 = vunpack.c.h.b16 %v343
      %v624 = vunpack.c.l.b16 %v344
      %v625 = vunpack.c.h.b16 %v344
      %v626 = vunpack.c.l.b16 %v345
      %v627 = vunpack.c.h.b16 %v345
      %v628 = vunpack.c.l.b16 %v346
      %v629 = vunpack.c.h.b16 %v346
      %v630 = vunpack.c.l.b16 %v347
      %v631 = vunpack.c.h.b16 %v347
      %v632 = vunpack.c.l.b16 %v348
      %v633 = vunpack.c.h.b16 %v348
      %v634 = vunpack.c.l.b16 %v349
      %v635 = vunpack.c.h.b16 %v349
      %v636 = vunpack.c.l.b16 %v350
      %v637 = vunpack.c.h.b16 %v350
      %v638 = vunpack.c.l.b16 %v351
      %v639 = vunpack.c.h.b16 %v351
      %v640 = vunpack.c.l.b16 %v352
      %v641 = vunpack.c.h.b16 %v352
      %v642 = vunpack.c.l.b16 %v353
      %v643 = vunpack.c.h.b16 %v353
      %v644 = vunpack.c.l.b16 %v354
      %v645 = vunpack.c.h.b16 %v354
      %v646 = vunpack.c.l.b16 %v355
      %v647 = vunpack.c.h.b16 %v355
      %v648 = vunpack.c.l.b16 %v356
      %v649 = vunpack.c.h.b16 %v356
      %v650 = vunpack.c.l.b16 %v357
      %v651 = vunpack.c.h.b16 %v357
      %v652 = vunpack.c.l.b16 %v358
      %v653 = vunpack.c.h.b16 %v358
      %v654 = vunpack.c.l.b16 %v359
      %v655 = vunpack.c.h.b16 %v359
      %v656 = vunpack.c.l.b16 %v360
      %v657 = vunpack.c.h.b16 %v360
      %v658 = vunpack.c.l.b16 %v361
      %v659 = vunpack.c.h.b16 %v361
      %v660 = vunpack.c.l.b16 %v362
      %v661 = vunpack.c.h.b16 %v362
      %v662 = vunpack.c.l.b16 %v363
      %v663 = vunpack.c.h.b16 %v363
      %v664 = vunpack.c.l.b16 %v364
      %v665 = vunpack.c.h.b16 %v364
      %v666 = vunpack.c.l.b16 %v365
      %v667 = vunpack.c.h.b16 %v365
      %v668 = vunpack.c.l.b16 %v366
      %v669 = vunpack.c.h.b16 %v366
      %v670 = vunpack.c.l.b16 %v367
      %v671 = vunpack.c.h.b16 %v367
      %v672 = vunpack.c.l.b16 %v368
      %v673 = vunpack.c.h.b16 %v368
      %v674 = vunpack.c.l.b16 %v369
      %v675 = vunpack.c.h.b16 %v369
      %v676 = vunpack.c.l.b16 %v370
      %v677 = vunpack.c.h.b16 %v370
      %v678 = vunpack.c.l.b16 %v371
      %v679 = vunpack.c.h.b16 %v371
      %v680 = vunpack.c.l.b16 %v372
      %v681 = vunpack.c.h.b16 %v372
      %v682 = vunpack.c.l.b16 %v373
      %v683 = vunpack.c.h.b16 %v373
      %v684 = vunpack.c.l.b16 %v374
      %v685 = vunpack.c.h.b16 %v374
      %v686 = vunpack.c.l.b16 %v375
      %v687 = vunpack.c.h.b16 %v375
      %v688 = vpack.c.b16 %v564, %v560
      %v689 = vpack.c.b16 %v565, %v561
      %v690 = vpack.c.b16 %v566, %v562
      %v691 = vpack.c.b16 %v567, %v563
      %v692 = vpack.c.b16 %v572, %v568
      %v693 = vpack.c.b16 %v573, %v569
      %v694 = vpack.c.b16 %v574, %v570
      %v695 = vpack.c.b16 %v575, %v571
      %v696 = vpack.c.b16 %v580, %v576
      %v697 = vpack.c.b16 %v581, %v577
      %v698 = vpack.c.b16 %v582, %v578
      %v699 = vpack.c.b16 %v583, %v579
      %v700 = vpack.c.b16 %v588, %v584
      %v701 = vpack.c.b16 %v589, %v585
      %v702 = vpack.c.b16 %v590, %v586
      %v703 = vpack.c.b16 %v591, %v587
      %v704 = vpack.c.b16 %v596, %v592
      %v705 = vpack.c.b16 %v597, %v593
      %v706 = vpack.c.b16 %v598, %v594
      %v707 = vpack.c.b16 %v599, %v595
      %v708 = vpack.c.b16 %v604, %v600
      %v709 = vpack.c.b16 %v605, %v601
      %v710 = vpack.c.b16 %v606, %v602
      %v711 = vpack.c.b16 %v607, %v603
      %v712 = vpack.c.b16 %v612, %v608
      %v713 = vpack.c.b16 %v613, %v609
      %v714 = vpack.c.b16 %v614, %v610
      %v715 = vpack.c.b16 %v615, %v611
      %v716 = vpack.c.b16 %v620, %v616
      %v717 = vpack.c.b16 %v621, %v617
      %v718 = vpack.c.b16 %v622, %v618
      %v719 = vpack.c.b16 %v623, %v619
      %v720 = vpack.c.b16 %v628, %v624
      %v721 = vpack.c.b16 %v629, %v625
      %v722 = vpack.c.b16 %v630, %v626
      %v723 = vpack.c.b16 %v631, %v627
      %v724 = vpack.c.b16 %v636, %v632
      %v725 = vpack.c.b16 %v637, %v633
      %v726 = vpack.c.b16 %v638, %v634
      %v727 = vpack.c.b16 %v639, %v635
      %v728 = vpack.c.b16 %v644, %v640
      %v729 = vpack.c.b16 %v645, %v641
      %v730 = vpack.c.b16 %v646, %v642
      %v731 = vpack.c.b16 %v647, %v643
      %v732 = vpack.c.b16 %v652, %v648
      %v733 = vpack.c.b16 %v653, %v649
      %v734 = vpack.c.b16 %v654, %v650
      %v735 = vpack.c.b16 %v655, %v651
      %v736 = vpack.c.b16 %v660, %v656
      %v737 = vpack.c.b16 %v661, %v657
      %v738 = vpack.c.b16 %v662, %v658
      %v739 = vpack.c.b16 %v663, %v659
      %v740 = vpack.c.b16 %v668, %v664
      %v741 = vpack.c.b16 %v669, %v665
      %v742 = vpack.c.b16 %v670, %v666
      %v743 = vpack.c.b16 %v671, %v667
      %v744 = vpack.c.b16 %v676, %v672
      %v745 = vpack.c.b16 %v677, %v673
      %v746 = vpack.c.b16 %v678, %v674
      %v747 = vpack.c.b16 %v679, %v675
      %v748 = vpack.c.b16 %v684, %v680
      %v749 = vpack.c.b16 %v685, %v681
      %v750 = vpack.c.b16 %v686, %v682
      %v751 = vpack.c.b16 %v687, %v683
      %816 = vmatpush.bf16.msra.mxu0 %v716
      %817 = vmatpush.bf16.msra.mxu0 %v712
      %818 = vmatpush.bf16.msra.mxu0 %v708
      %819 = vmatpush.bf16.msra.mxu0 %v704
      %820 = vmatpush.bf16.msra.mxu0 %v700
      %821 = vmatpush.bf16.msra.mxu0 %v696
      %822 = vmatpush.bf16.msra.mxu0 %v692
      %823 = vmatpush.bf16.msra.mxu0 %v688
      %824 = vmatmul.bf16.gmra.mxu0 %v448
      %v825 = vpop.f32.mrf.mxu0
      %v826 = vadd.f32 0.0, %v825
      %v827 = vpop.f32.mrf.mxu0
      %v828 = vadd.f32 0.0, %v827
      %829 = vmatmul.bf16.gmra.mxu0 %v450
      %v830 = vpop.f32.mrf.mxu0
      %v831 = vadd.f32 0.0, %v830
      %v832 = vpop.f32.mrf.mxu0
      %v833 = vadd.f32 0.0, %v832
      %834 = vmatmul.bf16.gmra.mxu0 %v452
      %v835 = vpop.f32.mrf.mxu0
      %v836 = vadd.f32 0.0, %v835
      %v837 = vpop.f32.mrf.mxu0
      %v838 = vadd.f32 0.0, %v837
      %839 = vmatmul.bf16.gmra.mxu0 %v454
      %v840 = vpop.f32.mrf.mxu0
      %v841 = vadd.f32 0.0, %v840
      %v842 = vpop.f32.mrf.mxu0
      %v843 = vadd.f32 0.0, %v842
      %844 = vmatmul.bf16.gmra.mxu0 %v456
      %v845 = vpop.f32.mrf.mxu0
      %v846 = vadd.f32 0.0, %v845
      %v847 = vpop.f32.mrf.mxu0
      %v848 = vadd.f32 0.0, %v847
      %849 = vmatmul.bf16.gmra.mxu0 %v458
      %v850 = vpop.f32.mrf.mxu0
      %v851 = vadd.f32 0.0, %v850
      %v852 = vpop.f32.mrf.mxu0
      %v853 = vadd.f32 0.0, %v852
      %854 = vmatmul.bf16.gmra.mxu0 %v460
      %v855 = vpop.f32.mrf.mxu0
      %v856 = vadd.f32 0.0, %v855
      %v857 = vpop.f32.mrf.mxu0
      %v858 = vadd.f32 0.0, %v857
      %859 = vmatmul.bf16.gmra.mxu0 %v462
      %v860 = vpop.f32.mrf.mxu0
      %v861 = vadd.f32 0.0, %v860
      %v862 = vpop.f32.mrf.mxu0
      %v863 = vadd.f32 0.0, %v862
      %864 = vmatmul.bf16.gmra.mxu0 %v464
      %v865 = vpop.f32.mrf.mxu0
      %v866 = vadd.f32 0.0, %v865
      %v867 = vpop.f32.mrf.mxu0
      %v868 = vadd.f32 0.0, %v867
      %869 = vmatmul.bf16.gmra.mxu0 %v466
      %v870 = vpop.f32.mrf.mxu0
      %v871 = vadd.f32 0.0, %v870
      %v872 = vpop.f32.mrf.mxu0
      %v873 = vadd.f32 0.0, %v872
      %874 = vmatmul.bf16.gmra.mxu0 %v468
      %v875 = vpop.f32.mrf.mxu0
      %v876 = vadd.f32 0.0, %v875
      %v877 = vpop.f32.mrf.mxu0
      %v878 = vadd.f32 0.0, %v877
      %879 = vmatmul.bf16.gmra.mxu0 %v470
      %v880 = vpop.f32.mrf.mxu0
      %v881 = vadd.f32 0.0, %v880
      %v882 = vpop.f32.mrf.mxu0
      %v883 = vadd.f32 0.0, %v882
      %884 = vdwg.mxu0
      %885 = vmatpush.bf16.msra.mxu0 %v748
      %886 = vmatpush.bf16.msra.mxu0 %v744
      %887 = vmatpush.bf16.msra.mxu0 %v740
      %888 = vmatpush.bf16.msra.mxu0 %v736
      %889 = vmatpush.bf16.msra.mxu0 %v732
      %890 = vmatpush.bf16.msra.mxu0 %v728
      %891 = vmatpush.bf16.msra.mxu0 %v724
      %892 = vmatpush.bf16.msra.mxu0 %v720
      %893 = vmatmul.bf16.gmra.mxu0 %v449
      %v894 = vpop.f32.mrf.mxu0
      %v895 = vadd.f32 %v826, %v894
      %v896 = vpop.f32.mrf.mxu0
      %v897 = vadd.f32 %v828, %v896
      %898 = vmatmul.bf16.gmra.mxu0 %v451
      %v899 = vpop.f32.mrf.mxu0
      %v900 = vadd.f32 %v831, %v899
      %v901 = vpop.f32.mrf.mxu0
      %v902 = vadd.f32 %v833, %v901
      %903 = vmatmul.bf16.gmra.mxu0 %v453
      %v904 = vpop.f32.mrf.mxu0
      %v905 = vadd.f32 %v836, %v904
      %v906 = vpop.f32.mrf.mxu0
      %v907 = vadd.f32 %v838, %v906
      %908 = vmatmul.bf16.gmra.mxu0 %v455
      %v909 = vpop.f32.mrf.mxu0
      %v910 = vadd.f32 %v841, %v909
      %v911 = vpop.f32.mrf.mxu0
      %v912 = vadd.f32 %v843, %v911
      %913 = vmatmul.bf16.gmra.mxu0 %v457
      %v914 = vpop.f32.mrf.mxu0
      %v915 = vadd.f32 %v846, %v914
      %v916 = vpop.f32.mrf.mxu0
      %v917 = vadd.f32 %v848, %v916
      %918 = vmatmul.bf16.gmra.mxu0 %v459
      %v919 = vpop.f32.mrf.mxu0
      %v920 = vadd.f32 %v851, %v919
      %v921 = vpop.f32.mrf.mxu0
      %v922 = vadd.f32 %v853, %v921
      %923 = vmatmul.bf16.gmra.mxu0 %v461
      %v924 = vpop.f32.mrf.mxu0
      %v925 = vadd.f32 %v856, %v924
      %v926 = vpop.f32.mrf.mxu0
      %v927 = vadd.f32 %v858, %v926
      %928 = vmatmul.bf16.gmra.mxu0 %v463
      %v929 = vpop.f32.mrf.mxu0
      %v930 = vadd.f32 %v861, %v929
      %v931 = vpop.f32.mrf.mxu0
      %v932 = vadd.f32 %v863, %v931
      %933 = vmatmul.bf16.gmra.mxu0 %v465
      %v934 = vpop.f32.mrf.mxu0
      %v935 = vadd.f32 %v866, %v934
      %v936 = vpop.f32.mrf.mxu0
      %v937 = vadd.f32 %v868, %v936
      %938 = vmatmul.bf16.gmra.mxu0 %v467
      %v939 = vpop.f32.mrf.mxu0
      %v940 = vadd.f32 %v871, %v939
      %v941 = vpop.f32.mrf.mxu0
      %v942 = vadd.f32 %v873, %v941
      %943 = vmatmul.bf16.gmra.mxu0 %v469
      %v944 = vpop.f32.mrf.mxu0
      %v945 = vadd.f32 %v876, %v944
      %v946 = vpop.f32.mrf.mxu0
      %v947 = vadd.f32 %v878, %v946
      %948 = vmatmul.bf16.gmra.mxu0 %v471
      %v949 = vpop.f32.mrf.mxu0
      %v950 = vadd.f32 %v881, %v949
      %v951 = vpop.f32.mrf.mxu0
      %v952 = vadd.f32 %v883, %v951
      %953 = vdwg.mxu0
      %954 = vmatpush.bf16.msra.mxu0 %v717
      %955 = vmatpush.bf16.msra.mxu0 %v713
      %956 = vmatpush.bf16.msra.mxu0 %v709
      %957 = vmatpush.bf16.msra.mxu0 %v705
      %958 = vmatpush.bf16.msra.mxu0 %v701
      %959 = vmatpush.bf16.msra.mxu0 %v697
      %960 = vmatpush.bf16.msra.mxu0 %v693
      %961 = vmatpush.bf16.msra.mxu0 %v689
      %962 = vmatmul.bf16.gmra.mxu0 %v448
      %v963 = vpop.f32.mrf.mxu0
      %v964 = vadd.f32 0.0, %v963
      %v965 = vpop.f32.mrf.mxu0
      %v966 = vadd.f32 0.0, %v965
      %967 = vmatmul.bf16.gmra.mxu0 %v450
      %v968 = vpop.f32.mrf.mxu0
      %v969 = vadd.f32 0.0, %v968
      %v970 = vpop.f32.mrf.mxu0
      %v971 = vadd.f32 0.0, %v970
      %972 = vmatmul.bf16.gmra.mxu0 %v452
      %v973 = vpop.f32.mrf.mxu0
      %v974 = vadd.f32 0.0, %v973
      %v975 = vpop.f32.mrf.mxu0
      %v976 = vadd.f32 0.0, %v975
      %977 = vmatmul.bf16.gmra.mxu0 %v454
      %v978 = vpop.f32.mrf.mxu0
      %v979 = vadd.f32 0.0, %v978
      %v980 = vpop.f32.mrf.mxu0
      %v981 = vadd.f32 0.0, %v980
      %982 = vmatmul.bf16.gmra.mxu0 %v456
      %v983 = vpop.f32.mrf.mxu0
      %v984 = vadd.f32 0.0, %v983
      %v985 = vpop.f32.mrf.mxu0
      %v986 = vadd.f32 0.0, %v985
      %987 = vmatmul.bf16.gmra.mxu0 %v458
      %v988 = vpop.f32.mrf.mxu0
      %v989 = vadd.f32 0.0, %v988
      %v990 = vpop.f32.mrf.mxu0
      %v991 = vadd.f32 0.0, %v990
      %992 = vmatmul.bf16.gmra.mxu0 %v460
      %v993 = vpop.f32.mrf.mxu0
      %v994 = vadd.f32 0.0, %v993
      %v995 = vpop.f32.mrf.mxu0
      %v996 = vadd.f32 0.0, %v995
      %997 = vmatmul.bf16.gmra.mxu0 %v462
      %v998 = vpop.f32.mrf.mxu0
      %v999 = vadd.f32 0.0, %v998
      %v1000 = vpop.f32.mrf.mxu0
      %v1001 = vadd.f32 0.0, %v1000
      %1002 = vmatmul.bf16.gmra.mxu0 %v464
      %v1003 = vpop.f32.mrf.mxu0
      %v1004 = vadd.f32 0.0, %v1003
      %v1005 = vpop.f32.mrf.mxu0
      %v1006 = vadd.f32 0.0, %v1005
      %1007 = vmatmul.bf16.gmra.mxu0 %v466
      %v1008 = vpop.f32.mrf.mxu0
      %v1009 = vadd.f32 0.0, %v1008
      %v1010 = vpop.f32.mrf.mxu0
      %v1011 = vadd.f32 0.0, %v1010
      %1012 = vmatmul.bf16.gmra.mxu0 %v468
      %v1013 = vpop.f32.mrf.mxu0
      %v1014 = vadd.f32 0.0, %v1013
      %v1015 = vpop.f32.mrf.mxu0
      %v1016 = vadd.f32 0.0, %v1015
      %1017 = vmatmul.bf16.gmra.mxu0 %v470
      %v1018 = vpop.f32.mrf.mxu0
      %v1019 = vadd.f32 0.0, %v1018
      %v1020 = vpop.f32.mrf.mxu0
      %v1021 = vadd.f32 0.0, %v1020
      %1022 = vdwg.mxu0
      %1023 = vmatpush.bf16.msra.mxu0 %v749
      %1024 = vmatpush.bf16.msra.mxu0 %v745
      %1025 = vmatpush.bf16.msra.mxu0 %v741
      %1026 = vmatpush.bf16.msra.mxu0 %v737
      %1027 = vmatpush.bf16.msra.mxu0 %v733
      %1028 = vmatpush.bf16.msra.mxu0 %v729
      %1029 = vmatpush.bf16.msra.mxu0 %v725
      %1030 = vmatpush.bf16.msra.mxu0 %v721
      %1031 = vmatmul.bf16.gmra.mxu0 %v449
      %v1032 = vpop.f32.mrf.mxu0
      %v1033 = vadd.f32 %v964, %v1032
      %v1034 = vpop.f32.mrf.mxu0
      %v1035 = vadd.f32 %v966, %v1034
      %1036 = vmatmul.bf16.gmra.mxu0 %v451
      %v1037 = vpop.f32.mrf.mxu0
      %v1038 = vadd.f32 %v969, %v1037
      %v1039 = vpop.f32.mrf.mxu0
      %v1040 = vadd.f32 %v971, %v1039
      %1041 = vmatmul.bf16.gmra.mxu0 %v453
      %v1042 = vpop.f32.mrf.mxu0
      %v1043 = vadd.f32 %v974, %v1042
      %v1044 = vpop.f32.mrf.mxu0
      %v1045 = vadd.f32 %v976, %v1044
      %1046 = vmatmul.bf16.gmra.mxu0 %v455
      %v1047 = vpop.f32.mrf.mxu0
      %v1048 = vadd.f32 %v979, %v1047
      %v1049 = vpop.f32.mrf.mxu0
      %v1050 = vadd.f32 %v981, %v1049
      %1051 = vmatmul.bf16.gmra.mxu0 %v457
      %v1052 = vpop.f32.mrf.mxu0
      %v1053 = vadd.f32 %v984, %v1052
      %v1054 = vpop.f32.mrf.mxu0
      %v1055 = vadd.f32 %v986, %v1054
      %1056 = vmatmul.bf16.gmra.mxu0 %v459
      %v1057 = vpop.f32.mrf.mxu0
      %v1058 = vadd.f32 %v989, %v1057
      %v1059 = vpop.f32.mrf.mxu0
      %v1060 = vadd.f32 %v991, %v1059
      %1061 = vmatmul.bf16.gmra.mxu0 %v461
      %v1062 = vpop.f32.mrf.mxu0
      %v1063 = vadd.f32 %v994, %v1062
      %v1064 = vpop.f32.mrf.mxu0
      %v1065 = vadd.f32 %v996, %v1064
      %1066 = vmatmul.bf16.gmra.mxu0 %v463
      %v1067 = vpop.f32.mrf.mxu0
      %v1068 = vadd.f32 %v999, %v1067
      %v1069 = vpop.f32.mrf.mxu0
      %v1070 = vadd.f32 %v1001, %v1069
      %1071 = vmatmul.bf16.gmra.mxu0 %v465
      %v1072 = vpop.f32.mrf.mxu0
      %v1073 = vadd.f32 %v1004, %v1072
      %v1074 = vpop.f32.mrf.mxu0
      %v1075 = vadd.f32 %v1006, %v1074
      %1076 = vmatmul.bf16.gmra.mxu0 %v467
      %v1077 = vpop.f32.mrf.mxu0
      %v1078 = vadd.f32 %v1009, %v1077
      %v1079 = vpop.f32.mrf.mxu0
      %v1080 = vadd.f32 %v1011, %v1079
      %1081 = vmatmul.bf16.gmra.mxu0 %v469
      %v1082 = vpop.f32.mrf.mxu0
      %v1083 = vadd.f32 %v1014, %v1082
      %v1084 = vpop.f32.mrf.mxu0
      %v1085 = vadd.f32 %v1016, %v1084
      %1086 = vmatmul.bf16.gmra.mxu0 %v471
      %v1087 = vpop.f32.mrf.mxu0
      %v1088 = vadd.f32 %v1019, %v1087
      %v1089 = vpop.f32.mrf.mxu0
      %v1090 = vadd.f32 %v1021, %v1089
      %1091 = vdwg.mxu0
      %1092 = vmatpush.bf16.msra.mxu0 %v718
      %1093 = vmatpush.bf16.msra.mxu0 %v714
      %1094 = vmatpush.bf16.msra.mxu0 %v710
      %1095 = vmatpush.bf16.msra.mxu0 %v706
      %1096 = vmatpush.bf16.msra.mxu0 %v702
      %1097 = vmatpush.bf16.msra.mxu0 %v698
      %1098 = vmatpush.bf16.msra.mxu0 %v694
      %1099 = vmatpush.bf16.msra.mxu0 %v690
      %1100 = vmatmul.bf16.gmra.mxu0 %v448
      %v1101 = vpop.f32.mrf.mxu0
      %v1102 = vadd.f32 0.0, %v1101
      %v1103 = vpop.f32.mrf.mxu0
      %v1104 = vadd.f32 0.0, %v1103
      %1105 = vmatmul.bf16.gmra.mxu0 %v450
      %v1106 = vpop.f32.mrf.mxu0
      %v1107 = vadd.f32 0.0, %v1106
      %v1108 = vpop.f32.mrf.mxu0
      %v1109 = vadd.f32 0.0, %v1108
      %1110 = vmatmul.bf16.gmra.mxu0 %v452
      %v1111 = vpop.f32.mrf.mxu0
      %v1112 = vadd.f32 0.0, %v1111
      %v1113 = vpop.f32.mrf.mxu0
      %v1114 = vadd.f32 0.0, %v1113
      %1115 = vmatmul.bf16.gmra.mxu0 %v454
      %v1116 = vpop.f32.mrf.mxu0
      %v1117 = vadd.f32 0.0, %v1116
      %v1118 = vpop.f32.mrf.mxu0
      %v1119 = vadd.f32 0.0, %v1118
      %1120 = vmatmul.bf16.gmra.mxu0 %v456
      %v1121 = vpop.f32.mrf.mxu0
      %v1122 = vadd.f32 0.0, %v1121
      %v1123 = vpop.f32.mrf.mxu0
      %v1124 = vadd.f32 0.0, %v1123
      %1125 = vmatmul.bf16.gmra.mxu0 %v458
      %v1126 = vpop.f32.mrf.mxu0
      %v1127 = vadd.f32 0.0, %v1126
      %v1128 = vpop.f32.mrf.mxu0
      %v1129 = vadd.f32 0.0, %v1128
      %1130 = vmatmul.bf16.gmra.mxu0 %v460
      %v1131 = vpop.f32.mrf.mxu0
      %v1132 = vadd.f32 0.0, %v1131
      %v1133 = vpop.f32.mrf.mxu0
      %v1134 = vadd.f32 0.0, %v1133
      %1135 = vmatmul.bf16.gmra.mxu0 %v462
      %v1136 = vpop.f32.mrf.mxu0
      %v1137 = vadd.f32 0.0, %v1136
      %v1138 = vpop.f32.mrf.mxu0
      %v1139 = vadd.f32 0.0, %v1138
      %1140 = vmatmul.bf16.gmra.mxu0 %v464
      %v1141 = vpop.f32.mrf.mxu0
      %v1142 = vadd.f32 0.0, %v1141
      %v1143 = vpop.f32.mrf.mxu0
      %v1144 = vadd.f32 0.0, %v1143
      %1145 = vmatmul.bf16.gmra.mxu0 %v466
      %v1146 = vpop.f32.mrf.mxu0
      %v1147 = vadd.f32 0.0, %v1146
      %v1148 = vpop.f32.mrf.mxu0
      %v1149 = vadd.f32 0.0, %v1148
      %1150 = vmatmul.bf16.gmra.mxu0 %v468
      %v1151 = vpop.f32.mrf.mxu0
      %v1152 = vadd.f32 0.0, %v1151
      %v1153 = vpop.f32.mrf.mxu0
      %v1154 = vadd.f32 0.0, %v1153
      %1155 = vmatmul.bf16.gmra.mxu0 %v470
      %v1156 = vpop.f32.mrf.mxu0
      %v1157 = vadd.f32 0.0, %v1156
      %v1158 = vpop.f32.mrf.mxu0
      %v1159 = vadd.f32 0.0, %v1158
      %1160 = vdwg.mxu0
      %1161 = vmatpush.bf16.msra.mxu0 %v750
      %1162 = vmatpush.bf16.msra.mxu0 %v746
      %1163 = vmatpush.bf16.msra.mxu0 %v742
      %1164 = vmatpush.bf16.msra.mxu0 %v738
      %1165 = vmatpush.bf16.msra.mxu0 %v734
      %1166 = vmatpush.bf16.msra.mxu0 %v730
      %1167 = vmatpush.bf16.msra.mxu0 %v726
      %1168 = vmatpush.bf16.msra.mxu0 %v722
      %1169 = vmatmul.bf16.gmra.mxu0 %v449
      %v1170 = vpop.f32.mrf.mxu0
      %v1171 = vadd.f32 %v1102, %v1170
      %v1172 = vpop.f32.mrf.mxu0
      %v1173 = vadd.f32 %v1104, %v1172
      %1174 = vmatmul.bf16.gmra.mxu0 %v451
      %v1175 = vpop.f32.mrf.mxu0
      %v1176 = vadd.f32 %v1107, %v1175
      %v1177 = vpop.f32.mrf.mxu0
      %v1178 = vadd.f32 %v1109, %v1177
      %1179 = vmatmul.bf16.gmra.mxu0 %v453
      %v1180 = vpop.f32.mrf.mxu0
      %v1181 = vadd.f32 %v1112, %v1180
      %v1182 = vpop.f32.mrf.mxu0
      %v1183 = vadd.f32 %v1114, %v1182
      %1184 = vmatmul.bf16.gmra.mxu0 %v455
      %v1185 = vpop.f32.mrf.mxu0
      %v1186 = vadd.f32 %v1117, %v1185
      %v1187 = vpop.f32.mrf.mxu0
      %v1188 = vadd.f32 %v1119, %v1187
      %1189 = vmatmul.bf16.gmra.mxu0 %v457
      %v1190 = vpop.f32.mrf.mxu0
      %v1191 = vadd.f32 %v1122, %v1190
      %v1192 = vpop.f32.mrf.mxu0
      %v1193 = vadd.f32 %v1124, %v1192
      %1194 = vmatmul.bf16.gmra.mxu0 %v459
      %v1195 = vpop.f32.mrf.mxu0
      %v1196 = vadd.f32 %v1127, %v1195
      %v1197 = vpop.f32.mrf.mxu0
      %v1198 = vadd.f32 %v1129, %v1197
      %1199 = vmatmul.bf16.gmra.mxu0 %v461
      %v1200 = vpop.f32.mrf.mxu0
      %v1201 = vadd.f32 %v1132, %v1200
      %v1202 = vpop.f32.mrf.mxu0
      %v1203 = vadd.f32 %v1134, %v1202
      %1204 = vmatmul.bf16.gmra.mxu0 %v463
      %v1205 = vpop.f32.mrf.mxu0
      %v1206 = vadd.f32 %v1137, %v1205
      %v1207 = vpop.f32.mrf.mxu0
      %v1208 = vadd.f32 %v1139, %v1207
      %1209 = vmatmul.bf16.gmra.mxu0 %v465
      %v1210 = vpop.f32.mrf.mxu0
      %v1211 = vadd.f32 %v1142, %v1210
      %v1212 = vpop.f32.mrf.mxu0
      %v1213 = vadd.f32 %v1144, %v1212
      %1214 = vmatmul.bf16.gmra.mxu0 %v467
      %v1215 = vpop.f32.mrf.mxu0
      %v1216 = vadd.f32 %v1147, %v1215
      %v1217 = vpop.f32.mrf.mxu0
      %v1218 = vadd.f32 %v1149, %v1217
      %1219 = vmatmul.bf16.gmra.mxu0 %v469
      %v1220 = vpop.f32.mrf.mxu0
      %v1221 = vadd.f32 %v1152, %v1220
      %v1222 = vpop.f32.mrf.mxu0
      %v1223 = vadd.f32 %v1154, %v1222
      %1224 = vmatmul.bf16.gmra.mxu0 %v471
      %v1225 = vpop.f32.mrf.mxu0
      %v1226 = vadd.f32 %v1157, %v1225
      %v1227 = vpop.f32.mrf.mxu0
      %v1228 = vadd.f32 %v1159, %v1227
      %1229 = vdwg.mxu0
      %1230 = vmatpush.bf16.msra.mxu0 %v719
      %1231 = vmatpush.bf16.msra.mxu0 %v715
      %1232 = vmatpush.bf16.msra.mxu0 %v711
      %1233 = vmatpush.bf16.msra.mxu0 %v707
      %1234 = vmatpush.bf16.msra.mxu0 %v703
      %1235 = vmatpush.bf16.msra.mxu0 %v699
      %1236 = vmatpush.bf16.msra.mxu0 %v695
      %1237 = vmatpush.bf16.msra.mxu0 %v691
      %1238 = vmatmul.bf16.gmra.mxu0 %v448
      %v1239 = vpop.f32.mrf.mxu0
      %v1240 = vadd.f32 0.0, %v1239
      %v1241 = vpop.f32.mrf.mxu0
      %v1242 = vadd.f32 0.0, %v1241
      %1243 = vmatmul.bf16.gmra.mxu0 %v450
      %v1244 = vpop.f32.mrf.mxu0
      %v1245 = vadd.f32 0.0, %v1244
      %v1246 = vpop.f32.mrf.mxu0
      %v1247 = vadd.f32 0.0, %v1246
      %1248 = vmatmul.bf16.gmra.mxu0 %v452
      %v1249 = vpop.f32.mrf.mxu0
      %v1250 = vadd.f32 0.0, %v1249
      %v1251 = vpop.f32.mrf.mxu0
      %v1252 = vadd.f32 0.0, %v1251
      %1253 = vmatmul.bf16.gmra.mxu0 %v454
      %v1254 = vpop.f32.mrf.mxu0
      %v1255 = vadd.f32 0.0, %v1254
      %v1256 = vpop.f32.mrf.mxu0
      %v1257 = vadd.f32 0.0, %v1256
      %1258 = vmatmul.bf16.gmra.mxu0 %v456
      %v1259 = vpop.f32.mrf.mxu0
      %v1260 = vadd.f32 0.0, %v1259
      %v1261 = vpop.f32.mrf.mxu0
      %v1262 = vadd.f32 0.0, %v1261
      %1263 = vmatmul.bf16.gmra.mxu0 %v458
      %v1264 = vpop.f32.mrf.mxu0
      %v1265 = vadd.f32 0.0, %v1264
      %v1266 = vpop.f32.mrf.mxu0
      %v1267 = vadd.f32 0.0, %v1266
      %1268 = vmatmul.bf16.gmra.mxu0 %v460
      %v1269 = vpop.f32.mrf.mxu0
      %v1270 = vadd.f32 0.0, %v1269
      %v1271 = vpop.f32.mrf.mxu0
      %v1272 = vadd.f32 0.0, %v1271
      %1273 = vmatmul.bf16.gmra.mxu0 %v462
      %v1274 = vpop.f32.mrf.mxu0
      %v1275 = vadd.f32 0.0, %v1274
      %v1276 = vpop.f32.mrf.mxu0
      %v1277 = vadd.f32 0.0, %v1276
      %1278 = vmatmul.bf16.gmra.mxu0 %v464
      %v1279 = vpop.f32.mrf.mxu0
      %v1280 = vadd.f32 0.0, %v1279
      %v1281 = vpop.f32.mrf.mxu0
      %v1282 = vadd.f32 0.0, %v1281
      %1283 = vmatmul.bf16.gmra.mxu0 %v466
      %v1284 = vpop.f32.mrf.mxu0
      %v1285 = vadd.f32 0.0, %v1284
      %v1286 = vpop.f32.mrf.mxu0
      %v1287 = vadd.f32 0.0, %v1286
      %1288 = vmatmul.bf16.gmra.mxu0 %v468
      %v1289 = vpop.f32.mrf.mxu0
      %v1290 = vadd.f32 0.0, %v1289
      %v1291 = vpop.f32.mrf.mxu0
      %v1292 = vadd.f32 0.0, %v1291
      %1293 = vmatmul.bf16.gmra.mxu0 %v470
      %v1294 = vpop.f32.mrf.mxu0
      %v1295 = vadd.f32 0.0, %v1294
      %v1296 = vpop.f32.mrf.mxu0
      %v1297 = vadd.f32 0.0, %v1296
      %1298 = vdwg.mxu0
      %1299 = vmatpush.bf16.msra.mxu0 %v751
      %1300 = vmatpush.bf16.msra.mxu0 %v747
      %1301 = vmatpush.bf16.msra.mxu0 %v743
      %1302 = vmatpush.bf16.msra.mxu0 %v739
      %1303 = vmatpush.bf16.msra.mxu0 %v735
      %1304 = vmatpush.bf16.msra.mxu0 %v731
      %1305 = vmatpush.bf16.msra.mxu0 %v727
      %1306 = vmatpush.bf16.msra.mxu0 %v723
      %1307 = vmatmul.bf16.gmra.mxu0 %v449
      %v1308 = vpop.f32.mrf.mxu0
      %v1309 = vadd.f32 %v1240, %v1308
      %v1310 = vpop.f32.mrf.mxu0
      %v1311 = vadd.f32 %v1242, %v1310
      %1312 = vmatmul.bf16.gmra.mxu0 %v451
      %v1313 = vpop.f32.mrf.mxu0
      %v1314 = vadd.f32 %v1245, %v1313
      %v1315 = vpop.f32.mrf.mxu0
      %v1316 = vadd.f32 %v1247, %v1315
      %1317 = vmatmul.bf16.gmra.mxu0 %v453
      %v1318 = vpop.f32.mrf.mxu0
      %v1319 = vadd.f32 %v1250, %v1318
      %v1320 = vpop.f32.mrf.mxu0
      %v1321 = vadd.f32 %v1252, %v1320
      %1322 = vmatmul.bf16.gmra.mxu0 %v455
      %v1323 = vpop.f32.mrf.mxu0
      %v1324 = vadd.f32 %v1255, %v1323
      %v1325 = vpop.f32.mrf.mxu0
      %v1326 = vadd.f32 %v1257, %v1325
      %1327 = vmatmul.bf16.gmra.mxu0 %v457
      %v1328 = vpop.f32.mrf.mxu0
      %v1329 = vadd.f32 %v1260, %v1328
      %v1330 = vpop.f32.mrf.mxu0
      %v1331 = vadd.f32 %v1262, %v1330
      %1332 = vmatmul.bf16.gmra.mxu0 %v459
      %v1333 = vpop.f32.mrf.mxu0
      %v1334 = vadd.f32 %v1265, %v1333
      %v1335 = vpop.f32.mrf.mxu0
      %v1336 = vadd.f32 %v1267, %v1335
      %1337 = vmatmul.bf16.gmra.mxu0 %v461
      %v1338 = vpop.f32.mrf.mxu0
      %v1339 = vadd.f32 %v1270, %v1338
      %v1340 = vpop.f32.mrf.mxu0
      %v1341 = vadd.f32 %v1272, %v1340
      %1342 = vmatmul.bf16.gmra.mxu0 %v463
      %v1343 = vpop.f32.mrf.mxu0
      %v1344 = vadd.f32 %v1275, %v1343
      %v1345 = vpop.f32.mrf.mxu0
      %v1346 = vadd.f32 %v1277, %v1345
      %1347 = vmatmul.bf16.gmra.mxu0 %v465
      %v1348 = vpop.f32.mrf.mxu0
      %v1349 = vadd.f32 %v1280, %v1348
      %v1350 = vpop.f32.mrf.mxu0
      %v1351 = vadd.f32 %v1282, %v1350
      %1352 = vmatmul.bf16.gmra.mxu0 %v467
      %v1353 = vpop.f32.mrf.mxu0
      %v1354 = vadd.f32 %v1285, %v1353
      %v1355 = vpop.f32.mrf.mxu0
      %v1356 = vadd.f32 %v1287, %v1355
      %1357 = vmatmul.bf16.gmra.mxu0 %v469
      %v1358 = vpop.f32.mrf.mxu0
      %v1359 = vadd.f32 %v1290, %v1358
      %v1360 = vpop.f32.mrf.mxu0
      %v1361 = vadd.f32 %v1292, %v1360
      %1362 = vmatmul.bf16.gmra.mxu0 %v471
      %v1363 = vpop.f32.mrf.mxu0
      %v1364 = vadd.f32 %v1295, %v1363
      %v1365 = vpop.f32.mrf.mxu0
      %v1366 = vadd.f32 %v1297, %v1365
      %1367 = vdwg.mxu0
      %v1368 = vmax.f32 %v895, %v1033
      %v1369 = vmax.f32 %v897, %v1035
      %v1370 = vmax.f32 %v900, %v1038
      %v1371 = vmax.f32 %v902, %v1040
      %v1372 = vmax.f32 %v905, %v1043
      %v1373 = vmax.f32 %v907, %v1045
      %v1374 = vmax.f32 %v910, %v1048
      %v1375 = vmax.f32 %v912, %v1050
      %v1376 = vmax.f32 %v915, %v1053
      %v1377 = vmax.f32 %v917, %v1055
      %v1378 = vmax.f32 %v920, %v1058
      %v1379 = vmax.f32 %v922, %v1060
      %v1380 = vmax.f32 %v925, %v1063
      %v1381 = vmax.f32 %v927, %v1065
      %v1382 = vmax.f32 %v930, %v1068
      %v1383 = vmax.f32 %v932, %v1070
      %v1384 = vmax.f32 %v935, %v1073
      %v1385 = vmax.f32 %v937, %v1075
      %v1386 = vmax.f32 %v940, %v1078
      %v1387 = vmax.f32 %v942, %v1080
      %v1388 = vmax.f32 %v945, %v1083
      %v1389 = vmax.f32 %v947, %v1085
      %v1390 = vmax.f32 %v950, %v1088
      %v1391 = vmax.f32 %v952, %v1090
      %v1392 = vmax.f32 %v1171, %v1309
      %v1393 = vmax.f32 %v1173, %v1311
      %v1394 = vmax.f32 %v1176, %v1314
      %v1395 = vmax.f32 %v1178, %v1316
      %v1396 = vmax.f32 %v1181, %v1319
      %v1397 = vmax.f32 %v1183, %v1321
      %v1398 = vmax.f32 %v1186, %v1324
      %v1399 = vmax.f32 %v1188, %v1326
      %v1400 = vmax.f32 %v1191, %v1329
      %v1401 = vmax.f32 %v1193, %v1331
      %v1402 = vmax.f32 %v1196, %v1334
      %v1403 = vmax.f32 %v1198, %v1336
      %v1404 = vmax.f32 %v1201, %v1339
      %v1405 = vmax.f32 %v1203, %v1341
      %v1406 = vmax.f32 %v1206, %v1344
      %v1407 = vmax.f32 %v1208, %v1346
      %v1408 = vmax.f32 %v1211, %v1349
      %v1409 = vmax.f32 %v1213, %v1351
      %v1410 = vmax.f32 %v1216, %v1354
      %v1411 = vmax.f32 %v1218, %v1356
      %v1412 = vmax.f32 %v1221, %v1359
      %v1413 = vmax.f32 %v1223, %v1361
      %v1414 = vmax.f32 %v1226, %v1364
      %v1415 = vmax.f32 %v1228, %v1366
      %v1416 = vmax.f32 %v1368, %v1392
      %v1417 = vmax.f32 %v1369, %v1393
      %v1418 = vmax.f32 %v1370, %v1394
      %v1419 = vmax.f32 %v1371, %v1395
      %v1420 = vmax.f32 %v1372, %v1396
      %v1421 = vmax.f32 %v1373, %v1397
      %v1422 = vmax.f32 %v1374, %v1398
      %v1423 = vmax.f32 %v1375, %v1399
      %v1424 = vmax.f32 %v1376, %v1400
      %v1425 = vmax.f32 %v1377, %v1401
      %v1426 = vmax.f32 %v1378, %v1402
      %v1427 = vmax.f32 %v1379, %v1403
      %v1428 = vmax.f32 %v1380, %v1404
      %v1429 = vmax.f32 %v1381, %v1405
      %v1430 = vmax.f32 %v1382, %v1406
      %v1431 = vmax.f32 %v1383, %v1407
      %v1432 = vmax.f32 %v1384, %v1408
      %v1433 = vmax.f32 %v1385, %v1409
      %v1434 = vmax.f32 %v1386, %v1410
      %v1435 = vmax.f32 %v1387, %v1411
      %v1436 = vmax.f32 %v1388, %v1412
      %v1437 = vmax.f32 %v1389, %v1413
      %v1438 = vmax.f32 %v1390, %v1414
      %v1439 = vmax.f32 %v1391, %v1415
      %v1441 = vperm.slane %v285, 0
      %v1443 = vadd.f32 %v1416, %v1441
      %v1444 = vadd.f32 %v1417, %v1441
      %v1445 = vadd.f32 %v1418, %v1441
      %v1446 = vadd.f32 %v1419, %v1441
      %v1447 = vadd.f32 %v1420, %v1441
      %v1448 = vadd.f32 %v1421, %v1441
      %v1449 = vadd.f32 %v1422, %v1441
      %v1450 = vadd.f32 %v1423, %v1441
      %v1451 = vadd.f32 %v1424, %v1441
      %v1452 = vadd.f32 %v1425, %v1441
      %v1453 = vadd.f32 %v1426, %v1441
      %v1454 = vadd.f32 %v1427, %v1441
      %v1455 = vadd.f32 %v1428, %v1441
      %v1456 = vadd.f32 %v1429, %v1441
      %v1457 = vadd.f32 %v1430, %v1441
      %v1458 = vadd.f32 %v1431, %v1441
      %v1459 = vadd.f32 %v1432, %v1441
      %v1460 = vadd.f32 %v1433, %v1441
      %v1461 = vadd.f32 %v1434, %v1441
      %v1462 = vadd.f32 %v1435, %v1441
      %v1463 = vadd.f32 %v1436, %v1441
      %v1464 = vadd.f32 %v1437, %v1441
      %v1465 = vadd.f32 %v1438, %v1441
      %v1466 = vadd.f32 %v1439, %v1441
      %v1467 = vmax.f32 %v1443, 0.0
      %v1468 = vmax.f32 %v1444, 0.0
      %v1469 = vmax.f32 %v1445, 0.0
      %v1470 = vmax.f32 %v1446, 0.0
      %v1471 = vmax.f32 %v1447, 0.0
      %v1472 = vmax.f32 %v1448, 0.0
      %v1473 = vmax.f32 %v1449, 0.0
      %v1474 = vmax.f32 %v1450, 0.0
      %v1475 = vmax.f32 %v1451, 0.0
      %v1476 = vmax.f32 %v1452, 0.0
      %v1477 = vmax.f32 %v1453, 0.0
      %v1478 = vmax.f32 %v1454, 0.0
      %v1479 = vmax.f32 %v1455, 0.0
      %v1480 = vmax.f32 %v1456, 0.0
      %v1481 = vmax.f32 %v1457, 0.0
      %v1482 = vmax.f32 %v1458, 0.0
      %v1483 = vmax.f32 %v1459, 0.0
      %v1484 = vmax.f32 %v1460, 0.0
      %v1485 = vmax.f32 %v1461, 0.0
      %v1486 = vmax.f32 %v1462, 0.0
      %v1487 = vmax.f32 %v1463, 0.0
      %v1488 = vmax.f32 %v1464, 0.0
      %v1489 = vmax.f32 %v1465, 0.0
      %v1490 = vmax.f32 %v1466, 0.0
      %v1491 = vpack.c.bf16 %v1467, %v1467
      %v1492 = vpack.c.bf16 %v1468, %v1468
      %v1493 = vpack.c.bf16 %v1469, %v1469
      %v1494 = vpack.c.bf16 %v1470, %v1470
      %v1495 = vpack.c.bf16 %v1471, %v1471
      %v1496 = vpack.c.bf16 %v1472, %v1472
      %v1497 = vpack.c.bf16 %v1473, %v1473
      %v1498 = vpack.c.bf16 %v1474, %v1474
      %v1499 = vpack.c.bf16 %v1475, %v1475
      %v1500 = vpack.c.bf16 %v1476, %v1476
      %v1501 = vpack.c.bf16 %v1477, %v1477
      %v1502 = vpack.c.bf16 %v1478, %v1478
      %v1503 = vpack.c.bf16 %v1479, %v1479
      %v1504 = vpack.c.bf16 %v1480, %v1480
      %v1505 = vpack.c.bf16 %v1481, %v1481
      %v1506 = vpack.c.bf16 %v1482, %v1482
      %v1507 = vpack.c.bf16 %v1483, %v1483
      %v1508 = vpack.c.bf16 %v1484, %v1484
      %v1509 = vpack.c.bf16 %v1485, %v1485
      %v1510 = vpack.c.bf16 %v1486, %v1486
      %v1511 = vpack.c.bf16 %v1487, %v1487
      %v1512 = vpack.c.bf16 %v1488, %v1488
      %v1513 = vpack.c.bf16 %v1489, %v1489
      %v1514 = vpack.c.bf16 %v1490, %v1490
      %v1517 = vunpack.c.l.b16 %v1491
      %v1518 = vunpack.c.l.b16 %v1492
      %v1519 = vpack.c.b16 %v1518, %v1517
      %v1523 = vunpack.c.l.b16 %v1493
      %v1524 = vunpack.c.l.b16 %v1494
      %v1525 = vpack.c.b16 %v1524, %v1523
      %v1529 = vunpack.c.l.b16 %v1495
      %v1530 = vunpack.c.l.b16 %v1496
      %v1531 = vpack.c.b16 %v1530, %v1529
      %v1535 = vunpack.c.l.b16 %v1497
      %v1536 = vunpack.c.l.b16 %v1498
      %v1537 = vpack.c.b16 %v1536, %v1535
      %v1541 = vunpack.c.l.b16 %v1499
      %v1542 = vunpack.c.l.b16 %v1500
      %v1543 = vpack.c.b16 %v1542, %v1541
      %v1547 = vunpack.c.l.b16 %v1501
      %v1548 = vunpack.c.l.b16 %v1502
      %v1549 = vpack.c.b16 %v1548, %v1547
      %v1553 = vunpack.c.l.b16 %v1503
      %v1554 = vunpack.c.l.b16 %v1504
      %v1555 = vpack.c.b16 %v1554, %v1553
      %v1559 = vunpack.c.l.b16 %v1505
      %v1560 = vunpack.c.l.b16 %v1506
      %v1561 = vpack.c.b16 %v1560, %v1559
      %v1565 = vunpack.c.l.b16 %v1507
      %v1566 = vunpack.c.l.b16 %v1508
      %v1567 = vpack.c.b16 %v1566, %v1565
      %v1571 = vunpack.c.l.b16 %v1509
      %v1572 = vunpack.c.l.b16 %v1510
      %v1573 = vpack.c.b16 %v1572, %v1571
      %v1577 = vunpack.c.l.b16 %v1511
      %v1578 = vunpack.c.l.b16 %v1512
      %v1579 = vpack.c.b16 %v1578, %v1577
      %v1583 = vunpack.c.l.b16 %v1513
      %v1584 = vunpack.c.l.b16 %v1514
      %v1585 = vpack.c.b16 %v1584, %v1583
      %v1587 = vld [vmem:[%s3] sm:$0xff]
      %v1588 = vld [vmem:[%s3 + $0x8] sm:$0xff]
      %v1589 = vld [vmem:[%s3 + $0x10] sm:$0xff]
      %v1590 = vld [vmem:[%s3 + $0x18] sm:$0xff]
      %v1591 = vld [vmem:[%s3 + $0x20] sm:$0xff]
      %v1592 = vld [vmem:[%s3 + $0x28] sm:$0xff]
      %v1593 = vld [vmem:[%s3 + $0x30] sm:$0xff]
      %v1594 = vld [vmem:[%s3 + $0x38] sm:$0xff]
      %v1595 = vld [vmem:[%s3 + $0x40] sm:$0xff]
      %v1596 = vld [vmem:[%s3 + $0x48] sm:$0xff]
      %v1597 = vld [vmem:[%s3 + $0x50] sm:$0xff]
      %v1598 = vld [vmem:[%s3 + $0x58] sm:$0xff]
      %v1599 = vld [vmem:[%s3 + $0x60] sm:$0xff]
      %v1600 = vld [vmem:[%s3 + $0x68] sm:$0xff]
      %v1601 = vld [vmem:[%s3 + $0x70] sm:$0xff]
      %v1602 = vld [vmem:[%s3 + $0x78] sm:$0xff]
      %v1603 = vld [vmem:[%s3 + $0x80] sm:$0xff]
      %v1604 = vld [vmem:[%s3 + $0x88] sm:$0xff]
      %v1605 = vld [vmem:[%s3 + $0x90] sm:$0xff]
      %v1606 = vld [vmem:[%s3 + $0x98] sm:$0xff]
      %v1607 = vld [vmem:[%s3 + $0xa0] sm:$0xff]
      %v1608 = vld [vmem:[%s3 + $0xa8] sm:$0xff]
      %v1609 = vld [vmem:[%s3 + $0xb0] sm:$0xff]
      %v1610 = vld [vmem:[%s3 + $0xb8] sm:$0xff]
      %v1611 = vld [vmem:[%s3 + $0xc0] sm:$0xff]
      %v1612 = vld [vmem:[%s3 + $0xc8] sm:$0xff]
      %v1613 = vld [vmem:[%s3 + $0xd0] sm:$0xff]
      %v1614 = vld [vmem:[%s3 + $0xd8] sm:$0xff]
      %v1615 = vld [vmem:[%s3 + $0xe0] sm:$0xff]
      %v1616 = vld [vmem:[%s3 + $0xe8] sm:$0xff]
      %v1617 = vld [vmem:[%s3 + $0xf0] sm:$0xff]
      %v1618 = vld [vmem:[%s3 + $0xf8] sm:$0xff]
      %v1619 = vld [vmem:[%s3 + $0x100] sm:$0xff]
      %v1620 = vld [vmem:[%s3 + $0x108] sm:$0xff]
      %v1621 = vld [vmem:[%s3 + $0x110] sm:$0xff]
      %v1622 = vld [vmem:[%s3 + $0x118] sm:$0xff]
      %v1623 = vld [vmem:[%s3 + $0x120] sm:$0xff]
      %v1624 = vld [vmem:[%s3 + $0x128] sm:$0xff]
      %v1625 = vld [vmem:[%s3 + $0x130] sm:$0xff]
      %v1626 = vld [vmem:[%s3 + $0x138] sm:$0xff]
      %v1627 = vld [vmem:[%s3 + $0x140] sm:$0xff]
      %v1628 = vld [vmem:[%s3 + $0x148] sm:$0xff]
      %v1629 = vld [vmem:[%s3 + $0x150] sm:$0xff]
      %v1630 = vld [vmem:[%s3 + $0x158] sm:$0xff]
      %v1631 = vld [vmem:[%s3 + $0x160] sm:$0xff]
      %v1632 = vld [vmem:[%s3 + $0x168] sm:$0xff]
      %v1633 = vld [vmem:[%s3 + $0x170] sm:$0xff]
      %v1634 = vld [vmem:[%s3 + $0x178] sm:$0xff]
      %v1635 = vld [vmem:[%s3 + $0x180] sm:$0xff]
      %v1636 = vld [vmem:[%s3 + $0x188] sm:$0xff]
      %v1637 = vld [vmem:[%s3 + $0x190] sm:$0xff]
      %v1638 = vld [vmem:[%s3 + $0x198] sm:$0xff]
      %v1639 = vld [vmem:[%s3 + $0x1a0] sm:$0xff]
      %v1640 = vld [vmem:[%s3 + $0x1a8] sm:$0xff]
      %v1641 = vld [vmem:[%s3 + $0x1b0] sm:$0xff]
      %v1642 = vld [vmem:[%s3 + $0x1b8] sm:$0xff]
      %v1643 = vld [vmem:[%s3 + $0x1c0] sm:$0xff]
      %v1644 = vld [vmem:[%s3 + $0x1c8] sm:$0xff]
      %v1645 = vld [vmem:[%s3 + $0x1d0] sm:$0xff]
      %v1646 = vld [vmem:[%s3 + $0x1d8] sm:$0xff]
      %v1647 = vld [vmem:[%s3 + $0x1e0] sm:$0xff]
      %v1648 = vld [vmem:[%s3 + $0x1e8] sm:$0xff]
      %v1649 = vld [vmem:[%s3 + $0x1f0] sm:$0xff]
      %v1650 = vld [vmem:[%s3 + $0x1f8] sm:$0xff]
      %v1651 = vld [vmem:[%s3 + $0x200] sm:$0xff]
      %v1652 = vld [vmem:[%s3 + $0x208] sm:$0xff]
      %v1653 = vld [vmem:[%s3 + $0x210] sm:$0xff]
      %v1654 = vld [vmem:[%s3 + $0x218] sm:$0xff]
      %v1655 = vld [vmem:[%s3 + $0x220] sm:$0xff]
      %v1656 = vld [vmem:[%s3 + $0x228] sm:$0xff]
      %v1657 = vld [vmem:[%s3 + $0x230] sm:$0xff]
      %v1658 = vld [vmem:[%s3 + $0x238] sm:$0xff]
      %v1659 = vld [vmem:[%s3 + $0x240] sm:$0xff]
      %v1660 = vld [vmem:[%s3 + $0x248] sm:$0xff]
      %v1661 = vld [vmem:[%s3 + $0x250] sm:$0xff]
      %v1662 = vld [vmem:[%s3 + $0x258] sm:$0xff]
      %v1663 = vld [vmem:[%s3 + $0x260] sm:$0xff]
      %v1664 = vld [vmem:[%s3 + $0x268] sm:$0xff]
      %v1665 = vld [vmem:[%s3 + $0x270] sm:$0xff]
      %v1666 = vld [vmem:[%s3 + $0x278] sm:$0xff]
      %v1667 = vld [vmem:[%s3 + $0x280] sm:$0xff]
      %v1668 = vld [vmem:[%s3 + $0x288] sm:$0xff]
      %v1669 = vld [vmem:[%s3 + $0x290] sm:$0xff]
      %v1670 = vld [vmem:[%s3 + $0x298] sm:$0xff]
      %v1671 = vld [vmem:[%s3 + $0x2a0] sm:$0xff]
      %v1672 = vld [vmem:[%s3 + $0x2a8] sm:$0xff]
      %v1673 = vld [vmem:[%s3 + $0x2b0] sm:$0xff]
      %v1674 = vld [vmem:[%s3 + $0x2b8] sm:$0xff]
      %v1675 = vld [vmem:[%s3 + $0x2c0] sm:$0xff]
      %v1676 = vld [vmem:[%s3 + $0x2c8] sm:$0xff]
      %v1677 = vld [vmem:[%s3 + $0x2d0] sm:$0xff]
      %v1678 = vld [vmem:[%s3 + $0x2d8] sm:$0xff]
      %v1679 = vld [vmem:[%s3 + $0x2e0] sm:$0xff]
      %v1680 = vld [vmem:[%s3 + $0x2e8] sm:$0xff]
      %v1681 = vld [vmem:[%s3 + $0x2f0] sm:$0xff]
      %v1682 = vld [vmem:[%s3 + $0x2f8] sm:$0xff]
      %v1683 = vld [vmem:[%s3 + $0x300] sm:$0xff]
      %v1684 = vld [vmem:[%s3 + $0x308] sm:$0xff]
      %v1685 = vld [vmem:[%s3 + $0x310] sm:$0xff]
      %v1686 = vld [vmem:[%s3 + $0x318] sm:$0xff]
      %v1687 = vld [vmem:[%s3 + $0x320] sm:$0xff]
      %v1688 = vld [vmem:[%s3 + $0x328] sm:$0xff]
      %v1689 = vld [vmem:[%s3 + $0x330] sm:$0xff]
      %v1690 = vld [vmem:[%s3 + $0x338] sm:$0xff]
      %v1691 = vld [vmem:[%s3 + $0x340] sm:$0xff]
      %v1692 = vld [vmem:[%s3 + $0x348] sm:$0xff]
      %v1693 = vld [vmem:[%s3 + $0x350] sm:$0xff]
      %v1694 = vld [vmem:[%s3 + $0x358] sm:$0xff]
      %v1695 = vld [vmem:[%s3 + $0x360] sm:$0xff]
      %v1696 = vld [vmem:[%s3 + $0x368] sm:$0xff]
      %v1697 = vld [vmem:[%s3 + $0x370] sm:$0xff]
      %v1698 = vld [vmem:[%s3 + $0x378] sm:$0xff]
      %v1699 = vld [vmem:[%s3 + $0x380] sm:$0xff]
      %v1700 = vld [vmem:[%s3 + $0x388] sm:$0xff]
      %v1701 = vld [vmem:[%s3 + $0x390] sm:$0xff]
      %v1702 = vld [vmem:[%s3 + $0x398] sm:$0xff]
      %v1703 = vld [vmem:[%s3 + $0x3a0] sm:$0xff]
      %v1704 = vld [vmem:[%s3 + $0x3a8] sm:$0xff]
      %v1705 = vld [vmem:[%s3 + $0x3b0] sm:$0xff]
      %v1706 = vld [vmem:[%s3 + $0x3b8] sm:$0xff]
      %v1707 = vld [vmem:[%s3 + $0x3c0] sm:$0xff]
      %v1708 = vld [vmem:[%s3 + $0x3c8] sm:$0xff]
      %v1709 = vld [vmem:[%s3 + $0x3d0] sm:$0xff]
      %v1710 = vld [vmem:[%s3 + $0x3d8] sm:$0xff]
      %v1711 = vld [vmem:[%s3 + $0x3e0] sm:$0xff]
      %v1712 = vld [vmem:[%s3 + $0x3e8] sm:$0xff]
      %v1713 = vld [vmem:[%s3 + $0x3f0] sm:$0xff]
      %v1714 = vld [vmem:[%s3 + $0x3f8] sm:$0xff]
      %v1715 = vld [vmem:[%s3 + $0x400] sm:$0xff]
      %v1716 = vld [vmem:[%s3 + $0x408] sm:$0xff]
      %v1717 = vld [vmem:[%s3 + $0x410] sm:$0xff]
      %v1718 = vld [vmem:[%s3 + $0x418] sm:$0xff]
      %v1719 = vld [vmem:[%s3 + $0x420] sm:$0xff]
      %v1720 = vld [vmem:[%s3 + $0x428] sm:$0xff]
      %v1721 = vld [vmem:[%s3 + $0x430] sm:$0xff]
      %v1722 = vld [vmem:[%s3 + $0x438] sm:$0xff]
      %v1723 = vld [vmem:[%s3 + $0x440] sm:$0xff]
      %v1724 = vld [vmem:[%s3 + $0x448] sm:$0xff]
      %v1725 = vld [vmem:[%s3 + $0x450] sm:$0xff]
      %v1726 = vld [vmem:[%s3 + $0x458] sm:$0xff]
      %v1727 = vld [vmem:[%s3 + $0x460] sm:$0xff]
      %v1728 = vld [vmem:[%s3 + $0x468] sm:$0xff]
      %v1729 = vld [vmem:[%s3 + $0x470] sm:$0xff]
      %v1730 = vld [vmem:[%s3 + $0x478] sm:$0xff]
      %v1731 = vld [vmem:[%s3 + $0x480] sm:$0xff]
      %v1732 = vld [vmem:[%s3 + $0x488] sm:$0xff]
      %v1733 = vld [vmem:[%s3 + $0x490] sm:$0xff]
      %v1734 = vld [vmem:[%s3 + $0x498] sm:$0xff]
      %v1735 = vld [vmem:[%s3 + $0x4a0] sm:$0xff]
      %v1736 = vld [vmem:[%s3 + $0x4a8] sm:$0xff]
      %v1737 = vld [vmem:[%s3 + $0x4b0] sm:$0xff]
      %v1738 = vld [vmem:[%s3 + $0x4b8] sm:$0xff]
      %v1739 = vld [vmem:[%s3 + $0x4c0] sm:$0xff]
      %v1740 = vld [vmem:[%s3 + $0x4c8] sm:$0xff]
      %v1741 = vld [vmem:[%s3 + $0x4d0] sm:$0xff]
      %v1742 = vld [vmem:[%s3 + $0x4d8] sm:$0xff]
      %v1743 = vld [vmem:[%s3 + $0x4e0] sm:$0xff]
      %v1744 = vld [vmem:[%s3 + $0x4e8] sm:$0xff]
      %v1745 = vld [vmem:[%s3 + $0x4f0] sm:$0xff]
      %v1746 = vld [vmem:[%s3 + $0x4f8] sm:$0xff]
      %v1747 = vld [vmem:[%s3 + $0x500] sm:$0xff]
      %v1748 = vld [vmem:[%s3 + $0x508] sm:$0xff]
      %v1749 = vld [vmem:[%s3 + $0x510] sm:$0xff]
      %v1750 = vld [vmem:[%s3 + $0x518] sm:$0xff]
      %v1751 = vld [vmem:[%s3 + $0x520] sm:$0xff]
      %v1752 = vld [vmem:[%s3 + $0x528] sm:$0xff]
      %v1753 = vld [vmem:[%s3 + $0x530] sm:$0xff]
      %v1754 = vld [vmem:[%s3 + $0x538] sm:$0xff]
      %v1755 = vld [vmem:[%s3 + $0x540] sm:$0xff]
      %v1756 = vld [vmem:[%s3 + $0x548] sm:$0xff]
      %v1757 = vld [vmem:[%s3 + $0x550] sm:$0xff]
      %v1758 = vld [vmem:[%s3 + $0x558] sm:$0xff]
      %v1759 = vld [vmem:[%s3 + $0x560] sm:$0xff]
      %v1760 = vld [vmem:[%s3 + $0x568] sm:$0xff]
      %v1761 = vld [vmem:[%s3 + $0x570] sm:$0xff]
      %v1762 = vld [vmem:[%s3 + $0x578] sm:$0xff]
      %v1763 = vld [vmem:[%s3 + $0x580] sm:$0xff]
      %v1764 = vld [vmem:[%s3 + $0x588] sm:$0xff]
      %v1765 = vld [vmem:[%s3 + $0x590] sm:$0xff]
      %v1766 = vld [vmem:[%s3 + $0x598] sm:$0xff]
      %v1767 = vld [vmem:[%s3 + $0x5a0] sm:$0xff]
      %v1768 = vld [vmem:[%s3 + $0x5a8] sm:$0xff]
      %v1769 = vld [vmem:[%s3 + $0x5b0] sm:$0xff]
      %v1770 = vld [vmem:[%s3 + $0x5b8] sm:$0xff]
      %v1771 = vld [vmem:[%s3 + $0x5c0] sm:$0xff]
      %v1772 = vld [vmem:[%s3 + $0x5c8] sm:$0xff]
      %v1773 = vld [vmem:[%s3 + $0x5d0] sm:$0xff]
      %v1774 = vld [vmem:[%s3 + $0x5d8] sm:$0xff]
      %v1775 = vld [vmem:[%s3 + $0x5e0] sm:$0xff]
      %v1776 = vld [vmem:[%s3 + $0x5e8] sm:$0xff]
      %v1777 = vld [vmem:[%s3 + $0x5f0] sm:$0xff]
      %v1778 = vld [vmem:[%s3 + $0x5f8] sm:$0xff]
      %v1779 = vld [vmem:[%s3 + $0x600] sm:$0xff]
      %v1780 = vld [vmem:[%s3 + $0x608] sm:$0xff]
      %v1781 = vld [vmem:[%s3 + $0x610] sm:$0xff]
      %v1782 = vld [vmem:[%s3 + $0x618] sm:$0xff]
      %v1783 = vld [vmem:[%s3 + $0x620] sm:$0xff]
      %v1784 = vld [vmem:[%s3 + $0x628] sm:$0xff]
      %v1785 = vld [vmem:[%s3 + $0x630] sm:$0xff]
      %v1786 = vld [vmem:[%s3 + $0x638] sm:$0xff]
      %v1787 = vld [vmem:[%s3 + $0x640] sm:$0xff]
      %v1788 = vld [vmem:[%s3 + $0x648] sm:$0xff]
      %v1789 = vld [vmem:[%s3 + $0x650] sm:$0xff]
      %v1790 = vld [vmem:[%s3 + $0x658] sm:$0xff]
      %v1791 = vld [vmem:[%s3 + $0x660] sm:$0xff]
      %v1792 = vld [vmem:[%s3 + $0x668] sm:$0xff]
      %v1793 = vld [vmem:[%s3 + $0x670] sm:$0xff]
      %v1794 = vld [vmem:[%s3 + $0x678] sm:$0xff]
      %v1795 = vld [vmem:[%s3 + $0x680] sm:$0xff]
      %v1796 = vld [vmem:[%s3 + $0x688] sm:$0xff]
      %v1797 = vld [vmem:[%s3 + $0x690] sm:$0xff]
      %v1798 = vld [vmem:[%s3 + $0x698] sm:$0xff]
      %v1799 = vld [vmem:[%s3 + $0x6a0] sm:$0xff]
      %v1800 = vld [vmem:[%s3 + $0x6a8] sm:$0xff]
      %v1801 = vld [vmem:[%s3 + $0x6b0] sm:$0xff]
      %v1802 = vld [vmem:[%s3 + $0x6b8] sm:$0xff]
      %v1803 = vld [vmem:[%s3 + $0x6c0] sm:$0xff]
      %v1804 = vld [vmem:[%s3 + $0x6c8] sm:$0xff]
      %v1805 = vld [vmem:[%s3 + $0x6d0] sm:$0xff]
      %v1806 = vld [vmem:[%s3 + $0x6d8] sm:$0xff]
      %v1807 = vld [vmem:[%s3 + $0x6e0] sm:$0xff]
      %v1808 = vld [vmem:[%s3 + $0x6e8] sm:$0xff]
      %v1809 = vld [vmem:[%s3 + $0x6f0] sm:$0xff]
      %v1810 = vld [vmem:[%s3 + $0x6f8] sm:$0xff]
      %v1811 = vld [vmem:[%s3 + $0x700] sm:$0xff]
      %v1812 = vld [vmem:[%s3 + $0x708] sm:$0xff]
      %v1813 = vld [vmem:[%s3 + $0x710] sm:$0xff]
      %v1814 = vld [vmem:[%s3 + $0x718] sm:$0xff]
      %v1815 = vld [vmem:[%s3 + $0x720] sm:$0xff]
      %v1816 = vld [vmem:[%s3 + $0x728] sm:$0xff]
      %v1817 = vld [vmem:[%s3 + $0x730] sm:$0xff]
      %v1818 = vld [vmem:[%s3 + $0x738] sm:$0xff]
      %v1819 = vld [vmem:[%s3 + $0x740] sm:$0xff]
      %v1820 = vld [vmem:[%s3 + $0x748] sm:$0xff]
      %v1821 = vld [vmem:[%s3 + $0x750] sm:$0xff]
      %v1822 = vld [vmem:[%s3 + $0x758] sm:$0xff]
      %v1823 = vld [vmem:[%s3 + $0x760] sm:$0xff]
      %v1824 = vld [vmem:[%s3 + $0x768] sm:$0xff]
      %v1825 = vld [vmem:[%s3 + $0x770] sm:$0xff]
      %v1826 = vld [vmem:[%s3 + $0x778] sm:$0xff]
      %v1827 = vld [vmem:[%s3 + $0x780] sm:$0xff]
      %v1828 = vld [vmem:[%s3 + $0x788] sm:$0xff]
      %v1829 = vld [vmem:[%s3 + $0x790] sm:$0xff]
      %v1830 = vld [vmem:[%s3 + $0x798] sm:$0xff]
      %v1831 = vld [vmem:[%s3 + $0x7a0] sm:$0xff]
      %v1832 = vld [vmem:[%s3 + $0x7a8] sm:$0xff]
      %v1833 = vld [vmem:[%s3 + $0x7b0] sm:$0xff]
      %v1834 = vld [vmem:[%s3 + $0x7b8] sm:$0xff]
      %v1835 = vld [vmem:[%s3 + $0x7c0] sm:$0xff]
      %v1836 = vld [vmem:[%s3 + $0x7c8] sm:$0xff]
      %v1837 = vld [vmem:[%s3 + $0x7d0] sm:$0xff]
      %v1838 = vld [vmem:[%s3 + $0x7d8] sm:$0xff]
      %v1839 = vld [vmem:[%s3 + $0x7e0] sm:$0xff]
      %v1840 = vld [vmem:[%s3 + $0x7e8] sm:$0xff]
      %v1841 = vld [vmem:[%s3 + $0x7f0] sm:$0xff]
      %v1842 = vld [vmem:[%s3 + $0x7f8] sm:$0xff]
      %v1843 = vld [vmem:[%s3 + $0x800] sm:$0xff]
      %v1844 = vld [vmem:[%s3 + $0x808] sm:$0xff]
      %v1845 = vld [vmem:[%s3 + $0x810] sm:$0xff]
      %v1846 = vld [vmem:[%s3 + $0x818] sm:$0xff]
      %v1847 = vld [vmem:[%s3 + $0x820] sm:$0xff]
      %v1848 = vld [vmem:[%s3 + $0x828] sm:$0xff]
      %v1849 = vld [vmem:[%s3 + $0x830] sm:$0xff]
      %v1850 = vld [vmem:[%s3 + $0x838] sm:$0xff]
      %v1851 = vld [vmem:[%s3 + $0x840] sm:$0xff]
      %v1852 = vld [vmem:[%s3 + $0x848] sm:$0xff]
      %v1853 = vld [vmem:[%s3 + $0x850] sm:$0xff]
      %v1854 = vld [vmem:[%s3 + $0x858] sm:$0xff]
      %v1855 = vld [vmem:[%s3 + $0x860] sm:$0xff]
      %v1856 = vld [vmem:[%s3 + $0x868] sm:$0xff]
      %v1857 = vld [vmem:[%s3 + $0x870] sm:$0xff]
      %v1858 = vld [vmem:[%s3 + $0x878] sm:$0xff]
      %v1859 = vld [vmem:[%s3 + $0x880] sm:$0xff]
      %v1860 = vld [vmem:[%s3 + $0x888] sm:$0xff]
      %v1861 = vld [vmem:[%s3 + $0x890] sm:$0xff]
      %v1862 = vld [vmem:[%s3 + $0x898] sm:$0xff]
      %v1863 = vld [vmem:[%s3 + $0x8a0] sm:$0xff]
      %v1864 = vld [vmem:[%s3 + $0x8a8] sm:$0xff]
      %v1865 = vld [vmem:[%s3 + $0x8b0] sm:$0xff]
      %v1866 = vld [vmem:[%s3 + $0x8b8] sm:$0xff]
      %v1867 = vld [vmem:[%s3 + $0x8c0] sm:$0xff]
      %v1868 = vld [vmem:[%s3 + $0x8c8] sm:$0xff]
      %v1869 = vld [vmem:[%s3 + $0x8d0] sm:$0xff]
      %v1870 = vld [vmem:[%s3 + $0x8d8] sm:$0xff]
      %v1871 = vld [vmem:[%s3 + $0x8e0] sm:$0xff]
      %v1872 = vld [vmem:[%s3 + $0x8e8] sm:$0xff]
      %v1873 = vld [vmem:[%s3 + $0x8f0] sm:$0xff]
      %v1874 = vld [vmem:[%s3 + $0x8f8] sm:$0xff]
      %v1875 = vld [vmem:[%s3 + $0x900] sm:$0xff]
      %v1876 = vld [vmem:[%s3 + $0x908] sm:$0xff]
      %v1877 = vld [vmem:[%s3 + $0x910] sm:$0xff]
      %v1878 = vld [vmem:[%s3 + $0x918] sm:$0xff]
      %v1879 = vld [vmem:[%s3 + $0x920] sm:$0xff]
      %v1880 = vld [vmem:[%s3 + $0x928] sm:$0xff]
      %v1881 = vld [vmem:[%s3 + $0x930] sm:$0xff]
      %v1882 = vld [vmem:[%s3 + $0x938] sm:$0xff]
      %v1883 = vld [vmem:[%s3 + $0x940] sm:$0xff]
      %v1884 = vld [vmem:[%s3 + $0x948] sm:$0xff]
      %v1885 = vld [vmem:[%s3 + $0x950] sm:$0xff]
      %v1886 = vld [vmem:[%s3 + $0x958] sm:$0xff]
      %v1887 = vld [vmem:[%s3 + $0x960] sm:$0xff]
      %v1888 = vld [vmem:[%s3 + $0x968] sm:$0xff]
      %v1889 = vld [vmem:[%s3 + $0x970] sm:$0xff]
      %v1890 = vld [vmem:[%s3 + $0x978] sm:$0xff]
      %v1891 = vld [vmem:[%s3 + $0x980] sm:$0xff]
      %v1892 = vld [vmem:[%s3 + $0x988] sm:$0xff]
      %v1893 = vld [vmem:[%s3 + $0x990] sm:$0xff]
      %v1894 = vld [vmem:[%s3 + $0x998] sm:$0xff]
      %v1895 = vld [vmem:[%s3 + $0x9a0] sm:$0xff]
      %v1896 = vld [vmem:[%s3 + $0x9a8] sm:$0xff]
      %v1897 = vld [vmem:[%s3 + $0x9b0] sm:$0xff]
      %v1898 = vld [vmem:[%s3 + $0x9b8] sm:$0xff]
      %v1899 = vld [vmem:[%s3 + $0x9c0] sm:$0xff]
      %v1900 = vld [vmem:[%s3 + $0x9c8] sm:$0xff]
      %v1901 = vld [vmem:[%s3 + $0x9d0] sm:$0xff]
      %v1902 = vld [vmem:[%s3 + $0x9d8] sm:$0xff]
      %v1903 = vld [vmem:[%s3 + $0x9e0] sm:$0xff]
      %v1904 = vld [vmem:[%s3 + $0x9e8] sm:$0xff]
      %v1905 = vld [vmem:[%s3 + $0x9f0] sm:$0xff]
      %v1906 = vld [vmem:[%s3 + $0x9f8] sm:$0xff]
      %v1907 = vld [vmem:[%s3 + $0xa00] sm:$0xff]
      %v1908 = vld [vmem:[%s3 + $0xa08] sm:$0xff]
      %v1909 = vld [vmem:[%s3 + $0xa10] sm:$0xff]
      %v1910 = vld [vmem:[%s3 + $0xa18] sm:$0xff]
      %v1911 = vld [vmem:[%s3 + $0xa20] sm:$0xff]
      %v1912 = vld [vmem:[%s3 + $0xa28] sm:$0xff]
      %v1913 = vld [vmem:[%s3 + $0xa30] sm:$0xff]
      %v1914 = vld [vmem:[%s3 + $0xa38] sm:$0xff]
      %v1915 = vld [vmem:[%s3 + $0xa40] sm:$0xff]
      %v1916 = vld [vmem:[%s3 + $0xa48] sm:$0xff]
      %v1917 = vld [vmem:[%s3 + $0xa50] sm:$0xff]
      %v1918 = vld [vmem:[%s3 + $0xa58] sm:$0xff]
      %v1919 = vld [vmem:[%s3 + $0xa60] sm:$0xff]
      %v1920 = vld [vmem:[%s3 + $0xa68] sm:$0xff]
      %v1921 = vld [vmem:[%s3 + $0xa70] sm:$0xff]
      %v1922 = vld [vmem:[%s3 + $0xa78] sm:$0xff]
      %v1923 = vld [vmem:[%s3 + $0xa80] sm:$0xff]
      %v1924 = vld [vmem:[%s3 + $0xa88] sm:$0xff]
      %v1925 = vld [vmem:[%s3 + $0xa90] sm:$0xff]
      %v1926 = vld [vmem:[%s3 + $0xa98] sm:$0xff]
      %v1927 = vld [vmem:[%s3 + $0xaa0] sm:$0xff]
      %v1928 = vld [vmem:[%s3 + $0xaa8] sm:$0xff]
      %v1929 = vld [vmem:[%s3 + $0xab0] sm:$0xff]
      %v1930 = vld [vmem:[%s3 + $0xab8] sm:$0xff]
      %v1931 = vld [vmem:[%s3 + $0xac0] sm:$0xff]
      %v1932 = vld [vmem:[%s3 + $0xac8] sm:$0xff]
      %v1933 = vld [vmem:[%s3 + $0xad0] sm:$0xff]
      %v1934 = vld [vmem:[%s3 + $0xad8] sm:$0xff]
      %v1935 = vld [vmem:[%s3 + $0xae0] sm:$0xff]
      %v1936 = vld [vmem:[%s3 + $0xae8] sm:$0xff]
      %v1937 = vld [vmem:[%s3 + $0xaf0] sm:$0xff]
      %v1938 = vld [vmem:[%s3 + $0xaf8] sm:$0xff]
      %v1939 = vld [vmem:[%s3 + $0xb00] sm:$0xff]
      %v1940 = vld [vmem:[%s3 + $0xb08] sm:$0xff]
      %v1941 = vld [vmem:[%s3 + $0xb10] sm:$0xff]
      %v1942 = vld [vmem:[%s3 + $0xb18] sm:$0xff]
      %v1943 = vld [vmem:[%s3 + $0xb20] sm:$0xff]
      %v1944 = vld [vmem:[%s3 + $0xb28] sm:$0xff]
      %v1945 = vld [vmem:[%s3 + $0xb30] sm:$0xff]
      %v1946 = vld [vmem:[%s3 + $0xb38] sm:$0xff]
      %v1947 = vld [vmem:[%s3 + $0xb40] sm:$0xff]
      %v1948 = vld [vmem:[%s3 + $0xb48] sm:$0xff]
      %v1949 = vld [vmem:[%s3 + $0xb50] sm:$0xff]
      %v1950 = vld [vmem:[%s3 + $0xb58] sm:$0xff]
      %v1951 = vld [vmem:[%s3 + $0xb60] sm:$0xff]
      %v1952 = vld [vmem:[%s3 + $0xb68] sm:$0xff]
      %v1953 = vld [vmem:[%s3 + $0xb70] sm:$0xff]
      %v1954 = vld [vmem:[%s3 + $0xb78] sm:$0xff]
      %v1955 = vld [vmem:[%s3 + $0xb80] sm:$0xff]
      %v1956 = vld [vmem:[%s3 + $0xb88] sm:$0xff]
      %v1957 = vld [vmem:[%s3 + $0xb90] sm:$0xff]
      %v1958 = vld [vmem:[%s3 + $0xb98] sm:$0xff]
      %v1959 = vld [vmem:[%s3 + $0xba0] sm:$0xff]
      %v1960 = vld [vmem:[%s3 + $0xba8] sm:$0xff]
      %v1961 = vld [vmem:[%s3 + $0xbb0] sm:$0xff]
      %v1962 = vld [vmem:[%s3 + $0xbb8] sm:$0xff]
      %v1963 = vld [vmem:[%s3 + $0xbc0] sm:$0xff]
      %v1964 = vld [vmem:[%s3 + $0xbc8] sm:$0xff]
      %v1965 = vld [vmem:[%s3 + $0xbd0] sm:$0xff]
      %v1966 = vld [vmem:[%s3 + $0xbd8] sm:$0xff]
      %v1967 = vld [vmem:[%s3 + $0xbe0] sm:$0xff]
      %v1968 = vld [vmem:[%s3 + $0xbe8] sm:$0xff]
      %v1969 = vld [vmem:[%s3 + $0xbf0] sm:$0xff]
      %v1970 = vld [vmem:[%s3 + $0xbf8] sm:$0xff]
      %v1971 = vld [vmem:[%s3 + $0xc00] sm:$0xff]
      %v1972 = vld [vmem:[%s3 + $0xc08] sm:$0xff]
      %v1973 = vld [vmem:[%s3 + $0xc10] sm:$0xff]
      %v1974 = vld [vmem:[%s3 + $0xc18] sm:$0xff]
      %v1975 = vld [vmem:[%s3 + $0xc20] sm:$0xff]
      %v1976 = vld [vmem:[%s3 + $0xc28] sm:$0xff]
      %v1977 = vld [vmem:[%s3 + $0xc30] sm:$0xff]
      %v1978 = vld [vmem:[%s3 + $0xc38] sm:$0xff]
      %v1979 = vld [vmem:[%s3 + $0xc40] sm:$0xff]
      %v1980 = vld [vmem:[%s3 + $0xc48] sm:$0xff]
      %v1981 = vld [vmem:[%s3 + $0xc50] sm:$0xff]
      %v1982 = vld [vmem:[%s3 + $0xc58] sm:$0xff]
      %v1983 = vld [vmem:[%s3 + $0xc60] sm:$0xff]
      %v1984 = vld [vmem:[%s3 + $0xc68] sm:$0xff]
      %v1985 = vld [vmem:[%s3 + $0xc70] sm:$0xff]
      %v1986 = vld [vmem:[%s3 + $0xc78] sm:$0xff]
      %v1987 = vld [vmem:[%s3 + $0xc80] sm:$0xff]
      %v1988 = vld [vmem:[%s3 + $0xc88] sm:$0xff]
      %v1989 = vld [vmem:[%s3 + $0xc90] sm:$0xff]
      %v1990 = vld [vmem:[%s3 + $0xc98] sm:$0xff]
      %v1991 = vld [vmem:[%s3 + $0xca0] sm:$0xff]
      %v1992 = vld [vmem:[%s3 + $0xca8] sm:$0xff]
      %v1993 = vld [vmem:[%s3 + $0xcb0] sm:$0xff]
      %v1994 = vld [vmem:[%s3 + $0xcb8] sm:$0xff]
      %v1995 = vld [vmem:[%s3 + $0xcc0] sm:$0xff]
      %v1996 = vld [vmem:[%s3 + $0xcc8] sm:$0xff]
      %v1997 = vld [vmem:[%s3 + $0xcd0] sm:$0xff]
      %v1998 = vld [vmem:[%s3 + $0xcd8] sm:$0xff]
      %v1999 = vld [vmem:[%s3 + $0xce0] sm:$0xff]
      %v2000 = vld [vmem:[%s3 + $0xce8] sm:$0xff]
      %v2001 = vld [vmem:[%s3 + $0xcf0] sm:$0xff]
      %v2002 = vld [vmem:[%s3 + $0xcf8] sm:$0xff]
      %v2003 = vld [vmem:[%s3 + $0xd00] sm:$0xff]
      %v2004 = vld [vmem:[%s3 + $0xd08] sm:$0xff]
      %v2005 = vld [vmem:[%s3 + $0xd10] sm:$0xff]
      %v2006 = vld [vmem:[%s3 + $0xd18] sm:$0xff]
      %v2007 = vld [vmem:[%s3 + $0xd20] sm:$0xff]
      %v2008 = vld [vmem:[%s3 + $0xd28] sm:$0xff]
      %v2009 = vld [vmem:[%s3 + $0xd30] sm:$0xff]
      %v2010 = vld [vmem:[%s3 + $0xd38] sm:$0xff]
      %v2011 = vld [vmem:[%s3 + $0xd40] sm:$0xff]
      %v2012 = vld [vmem:[%s3 + $0xd48] sm:$0xff]
      %v2013 = vld [vmem:[%s3 + $0xd50] sm:$0xff]
      %v2014 = vld [vmem:[%s3 + $0xd58] sm:$0xff]
      %v2015 = vld [vmem:[%s3 + $0xd60] sm:$0xff]
      %v2016 = vld [vmem:[%s3 + $0xd68] sm:$0xff]
      %v2017 = vld [vmem:[%s3 + $0xd70] sm:$0xff]
      %v2018 = vld [vmem:[%s3 + $0xd78] sm:$0xff]
      %v2019 = vld [vmem:[%s3 + $0xd80] sm:$0xff]
      %v2020 = vld [vmem:[%s3 + $0xd88] sm:$0xff]
      %v2021 = vld [vmem:[%s3 + $0xd90] sm:$0xff]
      %v2022 = vld [vmem:[%s3 + $0xd98] sm:$0xff]
      %v2023 = vld [vmem:[%s3 + $0xda0] sm:$0xff]
      %v2024 = vld [vmem:[%s3 + $0xda8] sm:$0xff]
      %v2025 = vld [vmem:[%s3 + $0xdb0] sm:$0xff]
      %v2026 = vld [vmem:[%s3 + $0xdb8] sm:$0xff]
      %v2027 = vld [vmem:[%s3 + $0xdc0] sm:$0xff]
      %v2028 = vld [vmem:[%s3 + $0xdc8] sm:$0xff]
      %v2029 = vld [vmem:[%s3 + $0xdd0] sm:$0xff]
      %v2030 = vld [vmem:[%s3 + $0xdd8] sm:$0xff]
      %v2031 = vld [vmem:[%s3 + $0xde0] sm:$0xff]
      %v2032 = vld [vmem:[%s3 + $0xde8] sm:$0xff]
      %v2033 = vld [vmem:[%s3 + $0xdf0] sm:$0xff]
      %v2034 = vld [vmem:[%s3 + $0xdf8] sm:$0xff]
      %v2035 = vld [vmem:[%s3 + $0xe00] sm:$0xff]
      %v2036 = vld [vmem:[%s3 + $0xe08] sm:$0xff]
      %v2037 = vld [vmem:[%s3 + $0xe10] sm:$0xff]
      %v2038 = vld [vmem:[%s3 + $0xe18] sm:$0xff]
      %v2039 = vld [vmem:[%s3 + $0xe20] sm:$0xff]
      %v2040 = vld [vmem:[%s3 + $0xe28] sm:$0xff]
      %v2041 = vld [vmem:[%s3 + $0xe30] sm:$0xff]
      %v2042 = vld [vmem:[%s3 + $0xe38] sm:$0xff]
      %v2043 = vld [vmem:[%s3 + $0xe40] sm:$0xff]
      %v2044 = vld [vmem:[%s3 + $0xe48] sm:$0xff]
      %v2045 = vld [vmem:[%s3 + $0xe50] sm:$0xff]
      %v2046 = vld [vmem:[%s3 + $0xe58] sm:$0xff]
      %v2047 = vld [vmem:[%s3 + $0xe60] sm:$0xff]
      %v2048 = vld [vmem:[%s3 + $0xe68] sm:$0xff]
      %v2049 = vld [vmem:[%s3 + $0xe70] sm:$0xff]
      %v2050 = vld [vmem:[%s3 + $0xe78] sm:$0xff]
      %v2051 = vld [vmem:[%s3 + $0xe80] sm:$0xff]
      %v2052 = vld [vmem:[%s3 + $0xe88] sm:$0xff]
      %v2053 = vld [vmem:[%s3 + $0xe90] sm:$0xff]
      %v2054 = vld [vmem:[%s3 + $0xe98] sm:$0xff]
      %v2055 = vld [vmem:[%s3 + $0xea0] sm:$0xff]
      %v2056 = vld [vmem:[%s3 + $0xea8] sm:$0xff]
      %v2057 = vld [vmem:[%s3 + $0xeb0] sm:$0xff]
      %v2058 = vld [vmem:[%s3 + $0xeb8] sm:$0xff]
      %v2059 = vld [vmem:[%s3 + $0xec0] sm:$0xff]
      %v2060 = vld [vmem:[%s3 + $0xec8] sm:$0xff]
      %v2061 = vld [vmem:[%s3 + $0xed0] sm:$0xff]
      %v2062 = vld [vmem:[%s3 + $0xed8] sm:$0xff]
      %v2063 = vld [vmem:[%s3 + $0xee0] sm:$0xff]
      %v2064 = vld [vmem:[%s3 + $0xee8] sm:$0xff]
      %v2065 = vld [vmem:[%s3 + $0xef0] sm:$0xff]
      %v2066 = vld [vmem:[%s3 + $0xef8] sm:$0xff]
      %v2067 = vld [vmem:[%s3 + $0xf00] sm:$0xff]
      %v2068 = vld [vmem:[%s3 + $0xf08] sm:$0xff]
      %v2069 = vld [vmem:[%s3 + $0xf10] sm:$0xff]
      %v2070 = vld [vmem:[%s3 + $0xf18] sm:$0xff]
      %v2071 = vld [vmem:[%s3 + $0xf20] sm:$0xff]
      %v2072 = vld [vmem:[%s3 + $0xf28] sm:$0xff]
      %v2073 = vld [vmem:[%s3 + $0xf30] sm:$0xff]
      %v2074 = vld [vmem:[%s3 + $0xf38] sm:$0xff]
      %v2075 = vld [vmem:[%s3 + $0xf40] sm:$0xff]
      %v2076 = vld [vmem:[%s3 + $0xf48] sm:$0xff]
      %v2077 = vld [vmem:[%s3 + $0xf50] sm:$0xff]
      %v2078 = vld [vmem:[%s3 + $0xf58] sm:$0xff]
      %v2079 = vld [vmem:[%s3 + $0xf60] sm:$0xff]
      %v2080 = vld [vmem:[%s3 + $0xf68] sm:$0xff]
      %v2081 = vld [vmem:[%s3 + $0xf70] sm:$0xff]
      %v2082 = vld [vmem:[%s3 + $0xf78] sm:$0xff]
      %v2083 = vld [vmem:[%s3 + $0xf80] sm:$0xff]
      %v2084 = vld [vmem:[%s3 + $0xf88] sm:$0xff]
      %v2085 = vld [vmem:[%s3 + $0xf90] sm:$0xff]
      %v2086 = vld [vmem:[%s3 + $0xf98] sm:$0xff]
      %v2087 = vld [vmem:[%s3 + $0xfa0] sm:$0xff]
      %v2088 = vld [vmem:[%s3 + $0xfa8] sm:$0xff]
      %v2089 = vld [vmem:[%s3 + $0xfb0] sm:$0xff]
      %v2090 = vld [vmem:[%s3 + $0xfb8] sm:$0xff]
      %v2091 = vld [vmem:[%s3 + $0xfc0] sm:$0xff]
      %v2092 = vld [vmem:[%s3 + $0xfc8] sm:$0xff]
      %v2093 = vld [vmem:[%s3 + $0xfd0] sm:$0xff]
      %v2094 = vld [vmem:[%s3 + $0xfd8] sm:$0xff]
      %v2095 = vld [vmem:[%s3 + $0xfe0] sm:$0xff]
      %v2096 = vld [vmem:[%s3 + $0xfe8] sm:$0xff]
      %v2097 = vld [vmem:[%s3 + $0xff0] sm:$0xff]
      %v2098 = vld [vmem:[%s3 + $0xff8] sm:$0xff]
      %v2099 = vld [vmem:[%s3 + $0x1000] sm:$0xff]
      %v2100 = vld [vmem:[%s3 + $0x1008] sm:$0xff]
      %v2101 = vld [vmem:[%s3 + $0x1010] sm:$0xff]
      %v2102 = vld [vmem:[%s3 + $0x1018] sm:$0xff]
      %v2103 = vld [vmem:[%s3 + $0x1020] sm:$0xff]
      %v2104 = vld [vmem:[%s3 + $0x1028] sm:$0xff]
      %v2105 = vld [vmem:[%s3 + $0x1030] sm:$0xff]
      %v2106 = vld [vmem:[%s3 + $0x1038] sm:$0xff]
      %v2107 = vld [vmem:[%s3 + $0x1040] sm:$0xff]
      %v2108 = vld [vmem:[%s3 + $0x1048] sm:$0xff]
      %v2109 = vld [vmem:[%s3 + $0x1050] sm:$0xff]
      %v2110 = vld [vmem:[%s3 + $0x1058] sm:$0xff]
      %v2111 = vld [vmem:[%s3 + $0x1060] sm:$0xff]
      %v2112 = vld [vmem:[%s3 + $0x1068] sm:$0xff]
      %v2113 = vld [vmem:[%s3 + $0x1070] sm:$0xff]
      %v2114 = vld [vmem:[%s3 + $0x1078] sm:$0xff]
      %v2115 = vld [vmem:[%s3 + $0x1080] sm:$0xff]
      %v2116 = vld [vmem:[%s3 + $0x1088] sm:$0xff]
      %v2117 = vld [vmem:[%s3 + $0x1090] sm:$0xff]
      %v2118 = vld [vmem:[%s3 + $0x1098] sm:$0xff]
      %v2119 = vld [vmem:[%s3 + $0x10a0] sm:$0xff]
      %v2120 = vld [vmem:[%s3 + $0x10a8] sm:$0xff]
      %v2121 = vld [vmem:[%s3 + $0x10b0] sm:$0xff]
      %v2122 = vld [vmem:[%s3 + $0x10b8] sm:$0xff]
      %v2123 = vld [vmem:[%s3 + $0x10c0] sm:$0xff]
      %v2124 = vld [vmem:[%s3 + $0x10c8] sm:$0xff]
      %v2125 = vld [vmem:[%s3 + $0x10d0] sm:$0xff]
      %v2126 = vld [vmem:[%s3 + $0x10d8] sm:$0xff]
      %v2127 = vld [vmem:[%s3 + $0x10e0] sm:$0xff]
      %v2128 = vld [vmem:[%s3 + $0x10e8] sm:$0xff]
      %v2129 = vld [vmem:[%s3 + $0x10f0] sm:$0xff]
      %v2130 = vld [vmem:[%s3 + $0x10f8] sm:$0xff]
      %v2131 = vld [vmem:[%s3 + $0x1100] sm:$0xff]
      %v2132 = vld [vmem:[%s3 + $0x1108] sm:$0xff]
      %v2133 = vld [vmem:[%s3 + $0x1110] sm:$0xff]
      %v2134 = vld [vmem:[%s3 + $0x1118] sm:$0xff]
      %v2135 = vld [vmem:[%s3 + $0x1120] sm:$0xff]
      %v2136 = vld [vmem:[%s3 + $0x1128] sm:$0xff]
      %v2137 = vld [vmem:[%s3 + $0x1130] sm:$0xff]
      %v2138 = vld [vmem:[%s3 + $0x1138] sm:$0xff]
      %v2139 = vld [vmem:[%s3 + $0x1140] sm:$0xff]
      %v2140 = vld [vmem:[%s3 + $0x1148] sm:$0xff]
      %v2141 = vld [vmem:[%s3 + $0x1150] sm:$0xff]
      %v2142 = vld [vmem:[%s3 + $0x1158] sm:$0xff]
      %v2143 = vld [vmem:[%s3 + $0x1160] sm:$0xff]
      %v2144 = vld [vmem:[%s3 + $0x1168] sm:$0xff]
      %v2145 = vld [vmem:[%s3 + $0x1170] sm:$0xff]
      %v2146 = vld [vmem:[%s3 + $0x1178] sm:$0xff]
      %v2147 = vld [vmem:[%s3 + $0x1180] sm:$0xff]
      %v2148 = vld [vmem:[%s3 + $0x1188] sm:$0xff]
      %v2149 = vld [vmem:[%s3 + $0x1190] sm:$0xff]
      %v2150 = vld [vmem:[%s3 + $0x1198] sm:$0xff]
      %v2151 = vld [vmem:[%s3 + $0x11a0] sm:$0xff]
      %v2152 = vld [vmem:[%s3 + $0x11a8] sm:$0xff]
      %v2153 = vld [vmem:[%s3 + $0x11b0] sm:$0xff]
      %v2154 = vld [vmem:[%s3 + $0x11b8] sm:$0xff]
      %v2155 = vld [vmem:[%s3 + $0x11c0] sm:$0xff]
      %v2156 = vld [vmem:[%s3 + $0x11c8] sm:$0xff]
      %v2157 = vld [vmem:[%s3 + $0x11d0] sm:$0xff]
      %v2158 = vld [vmem:[%s3 + $0x11d8] sm:$0xff]
      %v2159 = vld [vmem:[%s3 + $0x11e0] sm:$0xff]
      %v2160 = vld [vmem:[%s3 + $0x11e8] sm:$0xff]
      %v2161 = vld [vmem:[%s3 + $0x11f0] sm:$0xff]
      %v2162 = vld [vmem:[%s3 + $0x11f8] sm:$0xff]
      %v2163 = vld [vmem:[%s3 + $0x1200] sm:$0xff]
      %v2164 = vld [vmem:[%s3 + $0x1208] sm:$0xff]
      %v2165 = vld [vmem:[%s3 + $0x1210] sm:$0xff]
      %v2166 = vld [vmem:[%s3 + $0x1218] sm:$0xff]
      %v2167 = vld [vmem:[%s3 + $0x1220] sm:$0xff]
      %v2168 = vld [vmem:[%s3 + $0x1228] sm:$0xff]
      %v2169 = vld [vmem:[%s3 + $0x1230] sm:$0xff]
      %v2170 = vld [vmem:[%s3 + $0x1238] sm:$0xff]
      %v2171 = vld [vmem:[%s3 + $0x1240] sm:$0xff]
      %v2172 = vld [vmem:[%s3 + $0x1248] sm:$0xff]
      %v2173 = vld [vmem:[%s3 + $0x1250] sm:$0xff]
      %v2174 = vld [vmem:[%s3 + $0x1258] sm:$0xff]
      %v2175 = vld [vmem:[%s3 + $0x1260] sm:$0xff]
      %v2176 = vld [vmem:[%s3 + $0x1268] sm:$0xff]
      %v2177 = vld [vmem:[%s3 + $0x1270] sm:$0xff]
      %v2178 = vld [vmem:[%s3 + $0x1278] sm:$0xff]
      %v2179 = vld [vmem:[%s3 + $0x1280] sm:$0xff]
      %v2180 = vld [vmem:[%s3 + $0x1288] sm:$0xff]
      %v2181 = vld [vmem:[%s3 + $0x1290] sm:$0xff]
      %v2182 = vld [vmem:[%s3 + $0x1298] sm:$0xff]
      %v2183 = vld [vmem:[%s3 + $0x12a0] sm:$0xff]
      %v2184 = vld [vmem:[%s3 + $0x12a8] sm:$0xff]
      %v2185 = vld [vmem:[%s3 + $0x12b0] sm:$0xff]
      %v2186 = vld [vmem:[%s3 + $0x12b8] sm:$0xff]
      %v2187 = vld [vmem:[%s3 + $0x12c0] sm:$0xff]
      %v2188 = vld [vmem:[%s3 + $0x12c8] sm:$0xff]
      %v2189 = vld [vmem:[%s3 + $0x12d0] sm:$0xff]
      %v2190 = vld [vmem:[%s3 + $0x12d8] sm:$0xff]
      %v2191 = vld [vmem:[%s3 + $0x12e0] sm:$0xff]
      %v2192 = vld [vmem:[%s3 + $0x12e8] sm:$0xff]
      %v2193 = vld [vmem:[%s3 + $0x12f0] sm:$0xff]
      %v2194 = vld [vmem:[%s3 + $0x12f8] sm:$0xff]
      %v2195 = vld [vmem:[%s3 + $0x1300] sm:$0xff]
      %v2196 = vld [vmem:[%s3 + $0x1308] sm:$0xff]
      %v2197 = vld [vmem:[%s3 + $0x1310] sm:$0xff]
      %v2198 = vld [vmem:[%s3 + $0x1318] sm:$0xff]
      %v2199 = vld [vmem:[%s3 + $0x1320] sm:$0xff]
      %v2200 = vld [vmem:[%s3 + $0x1328] sm:$0xff]
      %v2201 = vld [vmem:[%s3 + $0x1330] sm:$0xff]
      %v2202 = vld [vmem:[%s3 + $0x1338] sm:$0xff]
      %v2203 = vld [vmem:[%s3 + $0x1340] sm:$0xff]
      %v2204 = vld [vmem:[%s3 + $0x1348] sm:$0xff]
      %v2205 = vld [vmem:[%s3 + $0x1350] sm:$0xff]
      %v2206 = vld [vmem:[%s3 + $0x1358] sm:$0xff]
      %v2207 = vld [vmem:[%s3 + $0x1360] sm:$0xff]
      %v2208 = vld [vmem:[%s3 + $0x1368] sm:$0xff]
      %v2209 = vld [vmem:[%s3 + $0x1370] sm:$0xff]
      %v2210 = vld [vmem:[%s3 + $0x1378] sm:$0xff]
      %v2211 = vld [vmem:[%s3 + $0x1380] sm:$0xff]
      %v2212 = vld [vmem:[%s3 + $0x1388] sm:$0xff]
      %v2213 = vld [vmem:[%s3 + $0x1390] sm:$0xff]
      %v2214 = vld [vmem:[%s3 + $0x1398] sm:$0xff]
      %v2215 = vld [vmem:[%s3 + $0x13a0] sm:$0xff]
      %v2216 = vld [vmem:[%s3 + $0x13a8] sm:$0xff]
      %v2217 = vld [vmem:[%s3 + $0x13b0] sm:$0xff]
      %v2218 = vld [vmem:[%s3 + $0x13b8] sm:$0xff]
      %v2219 = vld [vmem:[%s3 + $0x13c0] sm:$0xff]
      %v2220 = vld [vmem:[%s3 + $0x13c8] sm:$0xff]
      %v2221 = vld [vmem:[%s3 + $0x13d0] sm:$0xff]
      %v2222 = vld [vmem:[%s3 + $0x13d8] sm:$0xff]
      %v2223 = vld [vmem:[%s3 + $0x13e0] sm:$0xff]
      %v2224 = vld [vmem:[%s3 + $0x13e8] sm:$0xff]
      %v2225 = vld [vmem:[%s3 + $0x13f0] sm:$0xff]
      %v2226 = vld [vmem:[%s3 + $0x13f8] sm:$0xff]
      %v2227 = vld [vmem:[%s3 + $0x1400] sm:$0xff]
      %v2228 = vld [vmem:[%s3 + $0x1408] sm:$0xff]
      %v2229 = vld [vmem:[%s3 + $0x1410] sm:$0xff]
      %v2230 = vld [vmem:[%s3 + $0x1418] sm:$0xff]
      %v2231 = vld [vmem:[%s3 + $0x1420] sm:$0xff]
      %v2232 = vld [vmem:[%s3 + $0x1428] sm:$0xff]
      %v2233 = vld [vmem:[%s3 + $0x1430] sm:$0xff]
      %v2234 = vld [vmem:[%s3 + $0x1438] sm:$0xff]
      %v2235 = vld [vmem:[%s3 + $0x1440] sm:$0xff]
      %v2236 = vld [vmem:[%s3 + $0x1448] sm:$0xff]
      %v2237 = vld [vmem:[%s3 + $0x1450] sm:$0xff]
      %v2238 = vld [vmem:[%s3 + $0x1458] sm:$0xff]
      %v2239 = vld [vmem:[%s3 + $0x1460] sm:$0xff]
      %v2240 = vld [vmem:[%s3 + $0x1468] sm:$0xff]
      %v2241 = vld [vmem:[%s3 + $0x1470] sm:$0xff]
      %v2242 = vld [vmem:[%s3 + $0x1478] sm:$0xff]
      %v2243 = vld [vmem:[%s3 + $0x1480] sm:$0xff]
      %v2244 = vld [vmem:[%s3 + $0x1488] sm:$0xff]
      %v2245 = vld [vmem:[%s3 + $0x1490] sm:$0xff]
      %v2246 = vld [vmem:[%s3 + $0x1498] sm:$0xff]
      %v2247 = vld [vmem:[%s3 + $0x14a0] sm:$0xff]
      %v2248 = vld [vmem:[%s3 + $0x14a8] sm:$0xff]
      %v2249 = vld [vmem:[%s3 + $0x14b0] sm:$0xff]
      %v2250 = vld [vmem:[%s3 + $0x14b8] sm:$0xff]
      %v2251 = vld [vmem:[%s3 + $0x14c0] sm:$0xff]
      %v2252 = vld [vmem:[%s3 + $0x14c8] sm:$0xff]
      %v2253 = vld [vmem:[%s3 + $0x14d0] sm:$0xff]
      %v2254 = vld [vmem:[%s3 + $0x14d8] sm:$0xff]
      %v2255 = vld [vmem:[%s3 + $0x14e0] sm:$0xff]
      %v2256 = vld [vmem:[%s3 + $0x14e8] sm:$0xff]
      %v2257 = vld [vmem:[%s3 + $0x14f0] sm:$0xff]
      %v2258 = vld [vmem:[%s3 + $0x14f8] sm:$0xff]
      %v2259 = vld [vmem:[%s3 + $0x1500] sm:$0xff]
      %v2260 = vld [vmem:[%s3 + $0x1508] sm:$0xff]
      %v2261 = vld [vmem:[%s3 + $0x1510] sm:$0xff]
      %v2262 = vld [vmem:[%s3 + $0x1518] sm:$0xff]
      %v2263 = vld [vmem:[%s3 + $0x1520] sm:$0xff]
      %v2264 = vld [vmem:[%s3 + $0x1528] sm:$0xff]
      %v2265 = vld [vmem:[%s3 + $0x1530] sm:$0xff]
      %v2266 = vld [vmem:[%s3 + $0x1538] sm:$0xff]
      %v2267 = vld [vmem:[%s3 + $0x1540] sm:$0xff]
      %v2268 = vld [vmem:[%s3 + $0x1548] sm:$0xff]
      %v2269 = vld [vmem:[%s3 + $0x1550] sm:$0xff]
      %v2270 = vld [vmem:[%s3 + $0x1558] sm:$0xff]
      %v2271 = vld [vmem:[%s3 + $0x1560] sm:$0xff]
      %v2272 = vld [vmem:[%s3 + $0x1568] sm:$0xff]
      %v2273 = vld [vmem:[%s3 + $0x1570] sm:$0xff]
      %v2274 = vld [vmem:[%s3 + $0x1578] sm:$0xff]
      %v2275 = vld [vmem:[%s3 + $0x1580] sm:$0xff]
      %v2276 = vld [vmem:[%s3 + $0x1588] sm:$0xff]
      %v2277 = vld [vmem:[%s3 + $0x1590] sm:$0xff]
      %v2278 = vld [vmem:[%s3 + $0x1598] sm:$0xff]
      %v2279 = vld [vmem:[%s3 + $0x15a0] sm:$0xff]
      %v2280 = vld [vmem:[%s3 + $0x15a8] sm:$0xff]
      %v2281 = vld [vmem:[%s3 + $0x15b0] sm:$0xff]
      %v2282 = vld [vmem:[%s3 + $0x15b8] sm:$0xff]
      %v2283 = vld [vmem:[%s3 + $0x15c0] sm:$0xff]
      %v2284 = vld [vmem:[%s3 + $0x15c8] sm:$0xff]
      %v2285 = vld [vmem:[%s3 + $0x15d0] sm:$0xff]
      %v2286 = vld [vmem:[%s3 + $0x15d8] sm:$0xff]
      %v2287 = vld [vmem:[%s3 + $0x15e0] sm:$0xff]
      %v2288 = vld [vmem:[%s3 + $0x15e8] sm:$0xff]
      %v2289 = vld [vmem:[%s3 + $0x15f0] sm:$0xff]
      %v2290 = vld [vmem:[%s3 + $0x15f8] sm:$0xff]
      %v2291 = vld [vmem:[%s3 + $0x1600] sm:$0xff]
      %v2292 = vld [vmem:[%s3 + $0x1608] sm:$0xff]
      %v2293 = vld [vmem:[%s3 + $0x1610] sm:$0xff]
      %v2294 = vld [vmem:[%s3 + $0x1618] sm:$0xff]
      %v2295 = vld [vmem:[%s3 + $0x1620] sm:$0xff]
      %v2296 = vld [vmem:[%s3 + $0x1628] sm:$0xff]
      %v2297 = vld [vmem:[%s3 + $0x1630] sm:$0xff]
      %v2298 = vld [vmem:[%s3 + $0x1638] sm:$0xff]
      %v2299 = vld [vmem:[%s3 + $0x1640] sm:$0xff]
      %v2300 = vld [vmem:[%s3 + $0x1648] sm:$0xff]
      %v2301 = vld [vmem:[%s3 + $0x1650] sm:$0xff]
      %v2302 = vld [vmem:[%s3 + $0x1658] sm:$0xff]
      %v2303 = vld [vmem:[%s3 + $0x1660] sm:$0xff]
      %v2304 = vld [vmem:[%s3 + $0x1668] sm:$0xff]
      %v2305 = vld [vmem:[%s3 + $0x1670] sm:$0xff]
      %v2306 = vld [vmem:[%s3 + $0x1678] sm:$0xff]
      %v2307 = vld [vmem:[%s3 + $0x1680] sm:$0xff]
      %v2308 = vld [vmem:[%s3 + $0x1688] sm:$0xff]
      %v2309 = vld [vmem:[%s3 + $0x1690] sm:$0xff]
      %v2310 = vld [vmem:[%s3 + $0x1698] sm:$0xff]
      %v2311 = vld [vmem:[%s3 + $0x16a0] sm:$0xff]
      %v2312 = vld [vmem:[%s3 + $0x16a8] sm:$0xff]
      %v2313 = vld [vmem:[%s3 + $0x16b0] sm:$0xff]
      %v2314 = vld [vmem:[%s3 + $0x16b8] sm:$0xff]
      %v2315 = vld [vmem:[%s3 + $0x16c0] sm:$0xff]
      %v2316 = vld [vmem:[%s3 + $0x16c8] sm:$0xff]
      %v2317 = vld [vmem:[%s3 + $0x16d0] sm:$0xff]
      %v2318 = vld [vmem:[%s3 + $0x16d8] sm:$0xff]
      %v2319 = vld [vmem:[%s3 + $0x16e0] sm:$0xff]
      %v2320 = vld [vmem:[%s3 + $0x16e8] sm:$0xff]
      %v2321 = vld [vmem:[%s3 + $0x16f0] sm:$0xff]
      %v2322 = vld [vmem:[%s3 + $0x16f8] sm:$0xff]
      %v2323 = vld [vmem:[%s3 + $0x1700] sm:$0xff]
      %v2324 = vld [vmem:[%s3 + $0x1708] sm:$0xff]
      %v2325 = vld [vmem:[%s3 + $0x1710] sm:$0xff]
      %v2326 = vld [vmem:[%s3 + $0x1718] sm:$0xff]
      %v2327 = vld [vmem:[%s3 + $0x1720] sm:$0xff]
      %v2328 = vld [vmem:[%s3 + $0x1728] sm:$0xff]
      %v2329 = vld [vmem:[%s3 + $0x1730] sm:$0xff]
      %v2330 = vld [vmem:[%s3 + $0x1738] sm:$0xff]
      %v2331 = vld [vmem:[%s3 + $0x1740] sm:$0xff]
      %v2332 = vld [vmem:[%s3 + $0x1748] sm:$0xff]
      %v2333 = vld [vmem:[%s3 + $0x1750] sm:$0xff]
      %v2334 = vld [vmem:[%s3 + $0x1758] sm:$0xff]
      %v2335 = vld [vmem:[%s3 + $0x1760] sm:$0xff]
      %v2336 = vld [vmem:[%s3 + $0x1768] sm:$0xff]
      %v2337 = vld [vmem:[%s3 + $0x1770] sm:$0xff]
      %v2338 = vld [vmem:[%s3 + $0x1778] sm:$0xff]
      %v2339 = vld [vmem:[%s3 + $0x1780] sm:$0xff]
      %v2340 = vld [vmem:[%s3 + $0x1788] sm:$0xff]
      %v2341 = vld [vmem:[%s3 + $0x1790] sm:$0xff]
      %v2342 = vld [vmem:[%s3 + $0x1798] sm:$0xff]
      %v2343 = vld [vmem:[%s3 + $0x17a0] sm:$0xff]
      %v2344 = vld [vmem:[%s3 + $0x17a8] sm:$0xff]
      %v2345 = vld [vmem:[%s3 + $0x17b0] sm:$0xff]
      %v2346 = vld [vmem:[%s3 + $0x17b8] sm:$0xff]
      %v2347 = vld [vmem:[%s3 + $0x17c0] sm:$0xff]
      %v2348 = vld [vmem:[%s3 + $0x17c8] sm:$0xff]
      %v2349 = vld [vmem:[%s3 + $0x17d0] sm:$0xff]
      %v2350 = vld [vmem:[%s3 + $0x17d8] sm:$0xff]
      %v2351 = vld [vmem:[%s3 + $0x17e0] sm:$0xff]
      %v2352 = vld [vmem:[%s3 + $0x17e8] sm:$0xff]
      %v2353 = vld [vmem:[%s3 + $0x17f0] sm:$0xff]
      %v2354 = vld [vmem:[%s3 + $0x17f8] sm:$0xff]
      %v2355 = vld [vmem:[%s3 + $0x1800] sm:$0xff]
      %v2356 = vld [vmem:[%s3 + $0x1808] sm:$0xff]
      %v2357 = vld [vmem:[%s3 + $0x1810] sm:$0xff]
      %v2358 = vld [vmem:[%s3 + $0x1818] sm:$0xff]
      %v2359 = vld [vmem:[%s3 + $0x1820] sm:$0xff]
      %v2360 = vld [vmem:[%s3 + $0x1828] sm:$0xff]
      %v2361 = vld [vmem:[%s3 + $0x1830] sm:$0xff]
      %v2362 = vld [vmem:[%s3 + $0x1838] sm:$0xff]
      %v2363 = vld [vmem:[%s3 + $0x1840] sm:$0xff]
      %v2364 = vld [vmem:[%s3 + $0x1848] sm:$0xff]
      %v2365 = vld [vmem:[%s3 + $0x1850] sm:$0xff]
      %v2366 = vld [vmem:[%s3 + $0x1858] sm:$0xff]
      %v2367 = vld [vmem:[%s3 + $0x1860] sm:$0xff]
      %v2368 = vld [vmem:[%s3 + $0x1868] sm:$0xff]
      %v2369 = vld [vmem:[%s3 + $0x1870] sm:$0xff]
      %v2370 = vld [vmem:[%s3 + $0x1878] sm:$0xff]
      %v2371 = vld [vmem:[%s3 + $0x1880] sm:$0xff]
      %v2372 = vld [vmem:[%s3 + $0x1888] sm:$0xff]
      %v2373 = vld [vmem:[%s3 + $0x1890] sm:$0xff]
      %v2374 = vld [vmem:[%s3 + $0x1898] sm:$0xff]
      %v2375 = vld [vmem:[%s3 + $0x18a0] sm:$0xff]
      %v2376 = vld [vmem:[%s3 + $0x18a8] sm:$0xff]
      %v2377 = vld [vmem:[%s3 + $0x18b0] sm:$0xff]
      %v2378 = vld [vmem:[%s3 + $0x18b8] sm:$0xff]
      %v2379 = vld [vmem:[%s3 + $0x18c0] sm:$0xff]
      %v2380 = vld [vmem:[%s3 + $0x18c8] sm:$0xff]
      %v2381 = vld [vmem:[%s3 + $0x18d0] sm:$0xff]
      %v2382 = vld [vmem:[%s3 + $0x18d8] sm:$0xff]
      %v2383 = vld [vmem:[%s3 + $0x18e0] sm:$0xff]
      %v2384 = vld [vmem:[%s3 + $0x18e8] sm:$0xff]
      %v2385 = vld [vmem:[%s3 + $0x18f0] sm:$0xff]
      %v2386 = vld [vmem:[%s3 + $0x18f8] sm:$0xff]
      %v2387 = vld [vmem:[%s3 + $0x1900] sm:$0xff]
      %v2388 = vld [vmem:[%s3 + $0x1908] sm:$0xff]
      %v2389 = vld [vmem:[%s3 + $0x1910] sm:$0xff]
      %v2390 = vld [vmem:[%s3 + $0x1918] sm:$0xff]
      %v2391 = vld [vmem:[%s3 + $0x1920] sm:$0xff]
      %v2392 = vld [vmem:[%s3 + $0x1928] sm:$0xff]
      %v2393 = vld [vmem:[%s3 + $0x1930] sm:$0xff]
      %v2394 = vld [vmem:[%s3 + $0x1938] sm:$0xff]
      %v2395 = vld [vmem:[%s3 + $0x1940] sm:$0xff]
      %v2396 = vld [vmem:[%s3 + $0x1948] sm:$0xff]
      %v2397 = vld [vmem:[%s3 + $0x1950] sm:$0xff]
      %v2398 = vld [vmem:[%s3 + $0x1958] sm:$0xff]
      %v2399 = vld [vmem:[%s3 + $0x1960] sm:$0xff]
      %v2400 = vld [vmem:[%s3 + $0x1968] sm:$0xff]
      %v2401 = vld [vmem:[%s3 + $0x1970] sm:$0xff]
      %v2402 = vld [vmem:[%s3 + $0x1978] sm:$0xff]
      %v2403 = vld [vmem:[%s3 + $0x1980] sm:$0xff]
      %v2404 = vld [vmem:[%s3 + $0x1988] sm:$0xff]
      %v2405 = vld [vmem:[%s3 + $0x1990] sm:$0xff]
      %v2406 = vld [vmem:[%s3 + $0x1998] sm:$0xff]
      %v2407 = vld [vmem:[%s3 + $0x19a0] sm:$0xff]
      %v2408 = vld [vmem:[%s3 + $0x19a8] sm:$0xff]
      %v2409 = vld [vmem:[%s3 + $0x19b0] sm:$0xff]
      %v2410 = vld [vmem:[%s3 + $0x19b8] sm:$0xff]
      %v2411 = vld [vmem:[%s3 + $0x19c0] sm:$0xff]
      %v2412 = vld [vmem:[%s3 + $0x19c8] sm:$0xff]
      %v2413 = vld [vmem:[%s3 + $0x19d0] sm:$0xff]
      %v2414 = vld [vmem:[%s3 + $0x19d8] sm:$0xff]
      %v2415 = vld [vmem:[%s3 + $0x19e0] sm:$0xff]
      %v2416 = vld [vmem:[%s3 + $0x19e8] sm:$0xff]
      %v2417 = vld [vmem:[%s3 + $0x19f0] sm:$0xff]
      %v2418 = vld [vmem:[%s3 + $0x19f8] sm:$0xff]
      %v2419 = vld [vmem:[%s3 + $0x1a00] sm:$0xff]
      %v2420 = vld [vmem:[%s3 + $0x1a08] sm:$0xff]
      %v2421 = vld [vmem:[%s3 + $0x1a10] sm:$0xff]
      %v2422 = vld [vmem:[%s3 + $0x1a18] sm:$0xff]
      %v2423 = vld [vmem:[%s3 + $0x1a20] sm:$0xff]
      %v2424 = vld [vmem:[%s3 + $0x1a28] sm:$0xff]
      %v2425 = vld [vmem:[%s3 + $0x1a30] sm:$0xff]
      %v2426 = vld [vmem:[%s3 + $0x1a38] sm:$0xff]
      %v2427 = vld [vmem:[%s3 + $0x1a40] sm:$0xff]
      %v2428 = vld [vmem:[%s3 + $0x1a48] sm:$0xff]
      %v2429 = vld [vmem:[%s3 + $0x1a50] sm:$0xff]
      %v2430 = vld [vmem:[%s3 + $0x1a58] sm:$0xff]
      %v2431 = vld [vmem:[%s3 + $0x1a60] sm:$0xff]
      %v2432 = vld [vmem:[%s3 + $0x1a68] sm:$0xff]
      %v2433 = vld [vmem:[%s3 + $0x1a70] sm:$0xff]
      %v2434 = vld [vmem:[%s3 + $0x1a78] sm:$0xff]
      %v2435 = vld [vmem:[%s3 + $0x1a80] sm:$0xff]
      %v2436 = vld [vmem:[%s3 + $0x1a88] sm:$0xff]
      %v2437 = vld [vmem:[%s3 + $0x1a90] sm:$0xff]
      %v2438 = vld [vmem:[%s3 + $0x1a98] sm:$0xff]
      %v2439 = vld [vmem:[%s3 + $0x1aa0] sm:$0xff]
      %v2440 = vld [vmem:[%s3 + $0x1aa8] sm:$0xff]
      %v2441 = vld [vmem:[%s3 + $0x1ab0] sm:$0xff]
      %v2442 = vld [vmem:[%s3 + $0x1ab8] sm:$0xff]
      %v2443 = vld [vmem:[%s3 + $0x1ac0] sm:$0xff]
      %v2444 = vld [vmem:[%s3 + $0x1ac8] sm:$0xff]
      %v2445 = vld [vmem:[%s3 + $0x1ad0] sm:$0xff]
      %v2446 = vld [vmem:[%s3 + $0x1ad8] sm:$0xff]
      %v2447 = vld [vmem:[%s3 + $0x1ae0] sm:$0xff]
      %v2448 = vld [vmem:[%s3 + $0x1ae8] sm:$0xff]
      %v2449 = vld [vmem:[%s3 + $0x1af0] sm:$0xff]
      %v2450 = vld [vmem:[%s3 + $0x1af8] sm:$0xff]
      %v2451 = vld [vmem:[%s3 + $0x1b00] sm:$0xff]
      %v2452 = vld [vmem:[%s3 + $0x1b08] sm:$0xff]
      %v2453 = vld [vmem:[%s3 + $0x1b10] sm:$0xff]
      %v2454 = vld [vmem:[%s3 + $0x1b18] sm:$0xff]
      %v2455 = vld [vmem:[%s3 + $0x1b20] sm:$0xff]
      %v2456 = vld [vmem:[%s3 + $0x1b28] sm:$0xff]
      %v2457 = vld [vmem:[%s3 + $0x1b30] sm:$0xff]
      %v2458 = vld [vmem:[%s3 + $0x1b38] sm:$0xff]
      %v2459 = vld [vmem:[%s3 + $0x1b40] sm:$0xff]
      %v2460 = vld [vmem:[%s3 + $0x1b48] sm:$0xff]
      %v2461 = vld [vmem:[%s3 + $0x1b50] sm:$0xff]
      %v2462 = vld [vmem:[%s3 + $0x1b58] sm:$0xff]
      %v2463 = vld [vmem:[%s3 + $0x1b60] sm:$0xff]
      %v2464 = vld [vmem:[%s3 + $0x1b68] sm:$0xff]
      %v2465 = vld [vmem:[%s3 + $0x1b70] sm:$0xff]
      %v2466 = vld [vmem:[%s3 + $0x1b78] sm:$0xff]
      %v2467 = vld [vmem:[%s3 + $0x1b80] sm:$0xff]
      %v2468 = vld [vmem:[%s3 + $0x1b88] sm:$0xff]
      %v2469 = vld [vmem:[%s3 + $0x1b90] sm:$0xff]
      %v2470 = vld [vmem:[%s3 + $0x1b98] sm:$0xff]
      %v2471 = vld [vmem:[%s3 + $0x1ba0] sm:$0xff]
      %v2472 = vld [vmem:[%s3 + $0x1ba8] sm:$0xff]
      %v2473 = vld [vmem:[%s3 + $0x1bb0] sm:$0xff]
      %v2474 = vld [vmem:[%s3 + $0x1bb8] sm:$0xff]
      %v2475 = vld [vmem:[%s3 + $0x1bc0] sm:$0xff]
      %v2476 = vld [vmem:[%s3 + $0x1bc8] sm:$0xff]
      %v2477 = vld [vmem:[%s3 + $0x1bd0] sm:$0xff]
      %v2478 = vld [vmem:[%s3 + $0x1bd8] sm:$0xff]
      %v2479 = vld [vmem:[%s3 + $0x1be0] sm:$0xff]
      %v2480 = vld [vmem:[%s3 + $0x1be8] sm:$0xff]
      %v2481 = vld [vmem:[%s3 + $0x1bf0] sm:$0xff]
      %v2482 = vld [vmem:[%s3 + $0x1bf8] sm:$0xff]
      %v2483 = vld [vmem:[%s3 + $0x1c00] sm:$0xff]
      %v2484 = vld [vmem:[%s3 + $0x1c08] sm:$0xff]
      %v2485 = vld [vmem:[%s3 + $0x1c10] sm:$0xff]
      %v2486 = vld [vmem:[%s3 + $0x1c18] sm:$0xff]
      %v2487 = vld [vmem:[%s3 + $0x1c20] sm:$0xff]
      %v2488 = vld [vmem:[%s3 + $0x1c28] sm:$0xff]
      %v2489 = vld [vmem:[%s3 + $0x1c30] sm:$0xff]
      %v2490 = vld [vmem:[%s3 + $0x1c38] sm:$0xff]
      %v2491 = vld [vmem:[%s3 + $0x1c40] sm:$0xff]
      %v2492 = vld [vmem:[%s3 + $0x1c48] sm:$0xff]
      %v2493 = vld [vmem:[%s3 + $0x1c50] sm:$0xff]
      %v2494 = vld [vmem:[%s3 + $0x1c58] sm:$0xff]
      %v2495 = vld [vmem:[%s3 + $0x1c60] sm:$0xff]
      %v2496 = vld [vmem:[%s3 + $0x1c68] sm:$0xff]
      %v2497 = vld [vmem:[%s3 + $0x1c70] sm:$0xff]
      %v2498 = vld [vmem:[%s3 + $0x1c78] sm:$0xff]
      %v2499 = vld [vmem:[%s3 + $0x1c80] sm:$0xff]
      %v2500 = vld [vmem:[%s3 + $0x1c88] sm:$0xff]
      %v2501 = vld [vmem:[%s3 + $0x1c90] sm:$0xff]
      %v2502 = vld [vmem:[%s3 + $0x1c98] sm:$0xff]
      %v2503 = vld [vmem:[%s3 + $0x1ca0] sm:$0xff]
      %v2504 = vld [vmem:[%s3 + $0x1ca8] sm:$0xff]
      %v2505 = vld [vmem:[%s3 + $0x1cb0] sm:$0xff]
      %v2506 = vld [vmem:[%s3 + $0x1cb8] sm:$0xff]
      %v2507 = vld [vmem:[%s3 + $0x1cc0] sm:$0xff]
      %v2508 = vld [vmem:[%s3 + $0x1cc8] sm:$0xff]
      %v2509 = vld [vmem:[%s3 + $0x1cd0] sm:$0xff]
      %v2510 = vld [vmem:[%s3 + $0x1cd8] sm:$0xff]
      %v2511 = vld [vmem:[%s3 + $0x1ce0] sm:$0xff]
      %v2512 = vld [vmem:[%s3 + $0x1ce8] sm:$0xff]
      %v2513 = vld [vmem:[%s3 + $0x1cf0] sm:$0xff]
      %v2514 = vld [vmem:[%s3 + $0x1cf8] sm:$0xff]
      %v2515 = vld [vmem:[%s3 + $0x1d00] sm:$0xff]
      %v2516 = vld [vmem:[%s3 + $0x1d08] sm:$0xff]
      %v2517 = vld [vmem:[%s3 + $0x1d10] sm:$0xff]
      %v2518 = vld [vmem:[%s3 + $0x1d18] sm:$0xff]
      %v2519 = vld [vmem:[%s3 + $0x1d20] sm:$0xff]
      %v2520 = vld [vmem:[%s3 + $0x1d28] sm:$0xff]
      %v2521 = vld [vmem:[%s3 + $0x1d30] sm:$0xff]
      %v2522 = vld [vmem:[%s3 + $0x1d38] sm:$0xff]
      %v2523 = vld [vmem:[%s3 + $0x1d40] sm:$0xff]
      %v2524 = vld [vmem:[%s3 + $0x1d48] sm:$0xff]
      %v2525 = vld [vmem:[%s3 + $0x1d50] sm:$0xff]
      %v2526 = vld [vmem:[%s3 + $0x1d58] sm:$0xff]
      %v2527 = vld [vmem:[%s3 + $0x1d60] sm:$0xff]
      %v2528 = vld [vmem:[%s3 + $0x1d68] sm:$0xff]
      %v2529 = vld [vmem:[%s3 + $0x1d70] sm:$0xff]
      %v2530 = vld [vmem:[%s3 + $0x1d78] sm:$0xff]
      %v2531 = vld [vmem:[%s3 + $0x1d80] sm:$0xff]
      %v2532 = vld [vmem:[%s3 + $0x1d88] sm:$0xff]
      %v2533 = vld [vmem:[%s3 + $0x1d90] sm:$0xff]
      %v2534 = vld [vmem:[%s3 + $0x1d98] sm:$0xff]
      %v2535 = vld [vmem:[%s3 + $0x1da0] sm:$0xff]
      %v2536 = vld [vmem:[%s3 + $0x1da8] sm:$0xff]
      %v2537 = vld [vmem:[%s3 + $0x1db0] sm:$0xff]
      %v2538 = vld [vmem:[%s3 + $0x1db8] sm:$0xff]
      %v2539 = vld [vmem:[%s3 + $0x1dc0] sm:$0xff]
      %v2540 = vld [vmem:[%s3 + $0x1dc8] sm:$0xff]
      %v2541 = vld [vmem:[%s3 + $0x1dd0] sm:$0xff]
      %v2542 = vld [vmem:[%s3 + $0x1dd8] sm:$0xff]
      %v2543 = vld [vmem:[%s3 + $0x1de0] sm:$0xff]
      %v2544 = vld [vmem:[%s3 + $0x1de8] sm:$0xff]
      %v2545 = vld [vmem:[%s3 + $0x1df0] sm:$0xff]
      %v2546 = vld [vmem:[%s3 + $0x1df8] sm:$0xff]
      %v2547 = vld [vmem:[%s3 + $0x1e00] sm:$0xff]
      %v2548 = vld [vmem:[%s3 + $0x1e08] sm:$0xff]
      %v2549 = vld [vmem:[%s3 + $0x1e10] sm:$0xff]
      %v2550 = vld [vmem:[%s3 + $0x1e18] sm:$0xff]
      %v2551 = vld [vmem:[%s3 + $0x1e20] sm:$0xff]
      %v2552 = vld [vmem:[%s3 + $0x1e28] sm:$0xff]
      %v2553 = vld [vmem:[%s3 + $0x1e30] sm:$0xff]
      %v2554 = vld [vmem:[%s3 + $0x1e38] sm:$0xff]
      %v2555 = vld [vmem:[%s3 + $0x1e40] sm:$0xff]
      %v2556 = vld [vmem:[%s3 + $0x1e48] sm:$0xff]
      %v2557 = vld [vmem:[%s3 + $0x1e50] sm:$0xff]
      %v2558 = vld [vmem:[%s3 + $0x1e58] sm:$0xff]
      %v2559 = vld [vmem:[%s3 + $0x1e60] sm:$0xff]
      %v2560 = vld [vmem:[%s3 + $0x1e68] sm:$0xff]
      %v2561 = vld [vmem:[%s3 + $0x1e70] sm:$0xff]
      %v2562 = vld [vmem:[%s3 + $0x1e78] sm:$0xff]
      %v2563 = vld [vmem:[%s3 + $0x1e80] sm:$0xff]
      %v2564 = vld [vmem:[%s3 + $0x1e88] sm:$0xff]
      %v2565 = vld [vmem:[%s3 + $0x1e90] sm:$0xff]
      %v2566 = vld [vmem:[%s3 + $0x1e98] sm:$0xff]
      %v2567 = vld [vmem:[%s3 + $0x1ea0] sm:$0xff]
      %v2568 = vld [vmem:[%s3 + $0x1ea8] sm:$0xff]
      %v2569 = vld [vmem:[%s3 + $0x1eb0] sm:$0xff]
      %v2570 = vld [vmem:[%s3 + $0x1eb8] sm:$0xff]
      %v2571 = vld [vmem:[%s3 + $0x1ec0] sm:$0xff]
      %v2572 = vld [vmem:[%s3 + $0x1ec8] sm:$0xff]
      %v2573 = vld [vmem:[%s3 + $0x1ed0] sm:$0xff]
      %v2574 = vld [vmem:[%s3 + $0x1ed8] sm:$0xff]
      %v2575 = vld [vmem:[%s3 + $0x1ee0] sm:$0xff]
      %v2576 = vld [vmem:[%s3 + $0x1ee8] sm:$0xff]
      %v2577 = vld [vmem:[%s3 + $0x1ef0] sm:$0xff]
      %v2578 = vld [vmem:[%s3 + $0x1ef8] sm:$0xff]
      %v2579 = vld [vmem:[%s3 + $0x1f00] sm:$0xff]
      %v2580 = vld [vmem:[%s3 + $0x1f08] sm:$0xff]
      %v2581 = vld [vmem:[%s3 + $0x1f10] sm:$0xff]
      %v2582 = vld [vmem:[%s3 + $0x1f18] sm:$0xff]
      %v2583 = vld [vmem:[%s3 + $0x1f20] sm:$0xff]
      %v2584 = vld [vmem:[%s3 + $0x1f28] sm:$0xff]
      %v2585 = vld [vmem:[%s3 + $0x1f30] sm:$0xff]
      %v2586 = vld [vmem:[%s3 + $0x1f38] sm:$0xff]
      %v2587 = vld [vmem:[%s3 + $0x1f40] sm:$0xff]
      %v2588 = vld [vmem:[%s3 + $0x1f48] sm:$0xff]
      %v2589 = vld [vmem:[%s3 + $0x1f50] sm:$0xff]
      %v2590 = vld [vmem:[%s3 + $0x1f58] sm:$0xff]
      %v2591 = vld [vmem:[%s3 + $0x1f60] sm:$0xff]
      %v2592 = vld [vmem:[%s3 + $0x1f68] sm:$0xff]
      %v2593 = vld [vmem:[%s3 + $0x1f70] sm:$0xff]
      %v2594 = vld [vmem:[%s3 + $0x1f78] sm:$0xff]
      %v2595 = vld [vmem:[%s3 + $0x1f80] sm:$0xff]
      %v2596 = vld [vmem:[%s3 + $0x1f88] sm:$0xff]
      %v2597 = vld [vmem:[%s3 + $0x1f90] sm:$0xff]
      %v2598 = vld [vmem:[%s3 + $0x1f98] sm:$0xff]
      %v2599 = vld [vmem:[%s3 + $0x1fa0] sm:$0xff]
      %v2600 = vld [vmem:[%s3 + $0x1fa8] sm:$0xff]
      %v2601 = vld [vmem:[%s3 + $0x1fb0] sm:$0xff]
      %v2602 = vld [vmem:[%s3 + $0x1fb8] sm:$0xff]
      %v2603 = vld [vmem:[%s3 + $0x1fc0] sm:$0xff]
      %v2604 = vld [vmem:[%s3 + $0x1fc8] sm:$0xff]
      %v2605 = vld [vmem:[%s3 + $0x1fd0] sm:$0xff]
      %v2606 = vld [vmem:[%s3 + $0x1fd8] sm:$0xff]
      %v2607 = vld [vmem:[%s3 + $0x1fe0] sm:$0xff]
      %v2608 = vld [vmem:[%s3 + $0x1fe8] sm:$0xff]
      %v2609 = vld [vmem:[%s3 + $0x1ff0] sm:$0xff]
      %v2610 = vld [vmem:[%s3 + $0x1ff8] sm:$0xff]
      %v2611 = vld [vmem:[%s3 + $0x2000] sm:$0xff]
      %v2612 = vld [vmem:[%s3 + $0x2008] sm:$0xff]
      %v2613 = vld [vmem:[%s3 + $0x2010] sm:$0xff]
      %v2614 = vld [vmem:[%s3 + $0x2018] sm:$0xff]
      %v2615 = vld [vmem:[%s3 + $0x2020] sm:$0xff]
      %v2616 = vld [vmem:[%s3 + $0x2028] sm:$0xff]
      %v2617 = vld [vmem:[%s3 + $0x2030] sm:$0xff]
      %v2618 = vld [vmem:[%s3 + $0x2038] sm:$0xff]
      %v2619 = vld [vmem:[%s3 + $0x2040] sm:$0xff]
      %v2620 = vld [vmem:[%s3 + $0x2048] sm:$0xff]
      %v2621 = vld [vmem:[%s3 + $0x2050] sm:$0xff]
      %v2622 = vld [vmem:[%s3 + $0x2058] sm:$0xff]
      %v2623 = vld [vmem:[%s3 + $0x2060] sm:$0xff]
      %v2624 = vld [vmem:[%s3 + $0x2068] sm:$0xff]
      %v2625 = vld [vmem:[%s3 + $0x2070] sm:$0xff]
      %v2626 = vld [vmem:[%s3 + $0x2078] sm:$0xff]
      %v2627 = vld [vmem:[%s3 + $0x2080] sm:$0xff]
      %v2628 = vld [vmem:[%s3 + $0x2088] sm:$0xff]
      %v2629 = vld [vmem:[%s3 + $0x2090] sm:$0xff]
      %v2630 = vld [vmem:[%s3 + $0x2098] sm:$0xff]
      %v2631 = vld [vmem:[%s3 + $0x20a0] sm:$0xff]
      %v2632 = vld [vmem:[%s3 + $0x20a8] sm:$0xff]
      %v2633 = vld [vmem:[%s3 + $0x20b0] sm:$0xff]
      %v2634 = vld [vmem:[%s3 + $0x20b8] sm:$0xff]
      %v2635 = vld [vmem:[%s3 + $0x20c0] sm:$0xff]
      %v2636 = vld [vmem:[%s3 + $0x20c8] sm:$0xff]
      %v2637 = vld [vmem:[%s3 + $0x20d0] sm:$0xff]
      %v2638 = vld [vmem:[%s3 + $0x20d8] sm:$0xff]
      %v2639 = vld [vmem:[%s3 + $0x20e0] sm:$0xff]
      %v2640 = vld [vmem:[%s3 + $0x20e8] sm:$0xff]
      %v2641 = vld [vmem:[%s3 + $0x20f0] sm:$0xff]
      %v2642 = vld [vmem:[%s3 + $0x20f8] sm:$0xff]
      %v2643 = vld [vmem:[%s3 + $0x2100] sm:$0xff]
      %v2644 = vld [vmem:[%s3 + $0x2108] sm:$0xff]
      %v2645 = vld [vmem:[%s3 + $0x2110] sm:$0xff]
      %v2646 = vld [vmem:[%s3 + $0x2118] sm:$0xff]
      %v2647 = vld [vmem:[%s3 + $0x2120] sm:$0xff]
      %v2648 = vld [vmem:[%s3 + $0x2128] sm:$0xff]
      %v2649 = vld [vmem:[%s3 + $0x2130] sm:$0xff]
      %v2650 = vld [vmem:[%s3 + $0x2138] sm:$0xff]
      %v2651 = vld [vmem:[%s3 + $0x2140] sm:$0xff]
      %v2652 = vld [vmem:[%s3 + $0x2148] sm:$0xff]
      %v2653 = vld [vmem:[%s3 + $0x2150] sm:$0xff]
      %v2654 = vld [vmem:[%s3 + $0x2158] sm:$0xff]
      %v2655 = vld [vmem:[%s3 + $0x2160] sm:$0xff]
      %v2656 = vld [vmem:[%s3 + $0x2168] sm:$0xff]
      %v2657 = vld [vmem:[%s3 + $0x2170] sm:$0xff]
      %v2658 = vld [vmem:[%s3 + $0x2178] sm:$0xff]
      %v2659 = vld [vmem:[%s3 + $0x2180] sm:$0xff]
      %v2660 = vld [vmem:[%s3 + $0x2188] sm:$0xff]
      %v2661 = vld [vmem:[%s3 + $0x2190] sm:$0xff]
      %v2662 = vld [vmem:[%s3 + $0x2198] sm:$0xff]
      %v2663 = vld [vmem:[%s3 + $0x21a0] sm:$0xff]
      %v2664 = vld [vmem:[%s3 + $0x21a8] sm:$0xff]
      %v2665 = vld [vmem:[%s3 + $0x21b0] sm:$0xff]
      %v2666 = vld [vmem:[%s3 + $0x21b8] sm:$0xff]
      %v2667 = vld [vmem:[%s3 + $0x21c0] sm:$0xff]
      %v2668 = vld [vmem:[%s3 + $0x21c8] sm:$0xff]
      %v2669 = vld [vmem:[%s3 + $0x21d0] sm:$0xff]
      %v2670 = vld [vmem:[%s3 + $0x21d8] sm:$0xff]
      %v2671 = vld [vmem:[%s3 + $0x21e0] sm:$0xff]
      %v2672 = vld [vmem:[%s3 + $0x21e8] sm:$0xff]
      %v2673 = vld [vmem:[%s3 + $0x21f0] sm:$0xff]
      %v2674 = vld [vmem:[%s3 + $0x21f8] sm:$0xff]
      %v2675 = vld [vmem:[%s3 + $0x2200] sm:$0xff]
      %v2676 = vld [vmem:[%s3 + $0x2208] sm:$0xff]
      %v2677 = vld [vmem:[%s3 + $0x2210] sm:$0xff]
      %v2678 = vld [vmem:[%s3 + $0x2218] sm:$0xff]
      %v2679 = vld [vmem:[%s3 + $0x2220] sm:$0xff]
      %v2680 = vld [vmem:[%s3 + $0x2228] sm:$0xff]
      %v2681 = vld [vmem:[%s3 + $0x2230] sm:$0xff]
      %v2682 = vld [vmem:[%s3 + $0x2238] sm:$0xff]
      %v2683 = vld [vmem:[%s3 + $0x2240] sm:$0xff]
      %v2684 = vld [vmem:[%s3 + $0x2248] sm:$0xff]
      %v2685 = vld [vmem:[%s3 + $0x2250] sm:$0xff]
      %v2686 = vld [vmem:[%s3 + $0x2258] sm:$0xff]
      %v2687 = vld [vmem:[%s3 + $0x2260] sm:$0xff]
      %v2688 = vld [vmem:[%s3 + $0x2268] sm:$0xff]
      %v2689 = vld [vmem:[%s3 + $0x2270] sm:$0xff]
      %v2690 = vld [vmem:[%s3 + $0x2278] sm:$0xff]
      %v2691 = vld [vmem:[%s3 + $0x2280] sm:$0xff]
      %v2692 = vld [vmem:[%s3 + $0x2288] sm:$0xff]
      %v2693 = vld [vmem:[%s3 + $0x2290] sm:$0xff]
      %v2694 = vld [vmem:[%s3 + $0x2298] sm:$0xff]
      %v2695 = vld [vmem:[%s3 + $0x22a0] sm:$0xff]
      %v2696 = vld [vmem:[%s3 + $0x22a8] sm:$0xff]
      %v2697 = vld [vmem:[%s3 + $0x22b0] sm:$0xff]
      %v2698 = vld [vmem:[%s3 + $0x22b8] sm:$0xff]
      %v2699 = vld [vmem:[%s3 + $0x22c0] sm:$0xff]
      %v2700 = vld [vmem:[%s3 + $0x22c8] sm:$0xff]
      %v2701 = vld [vmem:[%s3 + $0x22d0] sm:$0xff]
      %v2702 = vld [vmem:[%s3 + $0x22d8] sm:$0xff]
      %v2703 = vld [vmem:[%s3 + $0x22e0] sm:$0xff]
      %v2704 = vld [vmem:[%s3 + $0x22e8] sm:$0xff]
      %v2705 = vld [vmem:[%s3 + $0x22f0] sm:$0xff]
      %v2706 = vld [vmem:[%s3 + $0x22f8] sm:$0xff]
      %v2707 = vld [vmem:[%s3 + $0x2300] sm:$0xff]
      %v2708 = vld [vmem:[%s3 + $0x2308] sm:$0xff]
      %v2709 = vld [vmem:[%s3 + $0x2310] sm:$0xff]
      %v2710 = vld [vmem:[%s3 + $0x2318] sm:$0xff]
      %v2711 = vld [vmem:[%s3 + $0x2320] sm:$0xff]
      %v2712 = vld [vmem:[%s3 + $0x2328] sm:$0xff]
      %v2713 = vld [vmem:[%s3 + $0x2330] sm:$0xff]
      %v2714 = vld [vmem:[%s3 + $0x2338] sm:$0xff]
      %v2715 = vld [vmem:[%s3 + $0x2340] sm:$0xff]
      %v2716 = vld [vmem:[%s3 + $0x2348] sm:$0xff]
      %v2717 = vld [vmem:[%s3 + $0x2350] sm:$0xff]
      %v2718 = vld [vmem:[%s3 + $0x2358] sm:$0xff]
      %v2719 = vld [vmem:[%s3 + $0x2360] sm:$0xff]
      %v2720 = vld [vmem:[%s3 + $0x2368] sm:$0xff]
      %v2721 = vld [vmem:[%s3 + $0x2370] sm:$0xff]
      %v2722 = vld [vmem:[%s3 + $0x2378] sm:$0xff]
      %v2723 = vld [vmem:[%s3 + $0x2380] sm:$0xff]
      %v2724 = vld [vmem:[%s3 + $0x2388] sm:$0xff]
      %v2725 = vld [vmem:[%s3 + $0x2390] sm:$0xff]
      %v2726 = vld [vmem:[%s3 + $0x2398] sm:$0xff]
      %v2727 = vld [vmem:[%s3 + $0x23a0] sm:$0xff]
      %v2728 = vld [vmem:[%s3 + $0x23a8] sm:$0xff]
      %v2729 = vld [vmem:[%s3 + $0x23b0] sm:$0xff]
      %v2730 = vld [vmem:[%s3 + $0x23b8] sm:$0xff]
      %v2731 = vld [vmem:[%s3 + $0x23c0] sm:$0xff]
      %v2732 = vld [vmem:[%s3 + $0x23c8] sm:$0xff]
      %v2733 = vld [vmem:[%s3 + $0x23d0] sm:$0xff]
      %v2734 = vld [vmem:[%s3 + $0x23d8] sm:$0xff]
      %v2735 = vld [vmem:[%s3 + $0x23e0] sm:$0xff]
      %v2736 = vld [vmem:[%s3 + $0x23e8] sm:$0xff]
      %v2737 = vld [vmem:[%s3 + $0x23f0] sm:$0xff]
      %v2738 = vld [vmem:[%s3 + $0x23f8] sm:$0xff]
      %v3891 = vunpack.c.l.b16 %v1587
      %v3892 = vunpack.c.h.b16 %v1587
      %v3893 = vunpack.c.l.b16 %v1588
      %v3894 = vunpack.c.h.b16 %v1588
      %v3895 = vunpack.c.l.b16 %v1589
      %v3896 = vunpack.c.h.b16 %v1589
      %v3897 = vunpack.c.l.b16 %v1590
      %v3898 = vunpack.c.h.b16 %v1590
      %v3899 = vunpack.c.l.b16 %v1591
      %v3900 = vunpack.c.h.b16 %v1591
      %v3901 = vunpack.c.l.b16 %v1592
      %v3902 = vunpack.c.h.b16 %v1592
      %v3903 = vunpack.c.l.b16 %v1593
      %v3904 = vunpack.c.h.b16 %v1593
      %v3905 = vunpack.c.l.b16 %v1594
      %v3906 = vunpack.c.h.b16 %v1594
      %v3907 = vunpack.c.l.b16 %v1595
      %v3908 = vunpack.c.h.b16 %v1595
      %v3909 = vunpack.c.l.b16 %v1596
      %v3910 = vunpack.c.h.b16 %v1596
      %v3911 = vunpack.c.l.b16 %v1597
      %v3912 = vunpack.c.h.b16 %v1597
      %v3913 = vunpack.c.l.b16 %v1598
      %v3914 = vunpack.c.h.b16 %v1598
      %v3915 = vunpack.c.l.b16 %v1599
      %v3916 = vunpack.c.h.b16 %v1599
      %v3917 = vunpack.c.l.b16 %v1600
      %v3918 = vunpack.c.h.b16 %v1600
      %v3919 = vunpack.c.l.b16 %v1601
      %v3920 = vunpack.c.h.b16 %v1601
      %v3921 = vunpack.c.l.b16 %v1602
      %v3922 = vunpack.c.h.b16 %v1602
      %v3923 = vunpack.c.l.b16 %v1603
      %v3924 = vunpack.c.h.b16 %v1603
      %v3925 = vunpack.c.l.b16 %v1604
      %v3926 = vunpack.c.h.b16 %v1604
      %v3927 = vunpack.c.l.b16 %v1605
      %v3928 = vunpack.c.h.b16 %v1605
      %v3929 = vunpack.c.l.b16 %v1606
      %v3930 = vunpack.c.h.b16 %v1606
      %v3931 = vunpack.c.l.b16 %v1607
      %v3932 = vunpack.c.h.b16 %v1607
      %v3933 = vunpack.c.l.b16 %v1608
      %v3934 = vunpack.c.h.b16 %v1608
      %v3935 = vunpack.c.l.b16 %v1609
      %v3936 = vunpack.c.h.b16 %v1609
      %v3937 = vunpack.c.l.b16 %v1610
      %v3938 = vunpack.c.h.b16 %v1610
      %v3939 = vunpack.c.l.b16 %v1611
      %v3940 = vunpack.c.h.b16 %v1611
      %v3941 = vunpack.c.l.b16 %v1612
      %v3942 = vunpack.c.h.b16 %v1612
      %v3943 = vunpack.c.l.b16 %v1613
      %v3944 = vunpack.c.h.b16 %v1613
      %v3945 = vunpack.c.l.b16 %v1614
      %v3946 = vunpack.c.h.b16 %v1614
      %v3947 = vunpack.c.l.b16 %v1615
      %v3948 = vunpack.c.h.b16 %v1615
      %v3949 = vunpack.c.l.b16 %v1616
      %v3950 = vunpack.c.h.b16 %v1616
      %v3951 = vunpack.c.l.b16 %v1617
      %v3952 = vunpack.c.h.b16 %v1617
      %v3953 = vunpack.c.l.b16 %v1618
      %v3954 = vunpack.c.h.b16 %v1618
      %v3955 = vunpack.c.l.b16 %v1619
      %v3956 = vunpack.c.h.b16 %v1619
      %v3957 = vunpack.c.l.b16 %v1620
      %v3958 = vunpack.c.h.b16 %v1620
      %v3959 = vunpack.c.l.b16 %v1621
      %v3960 = vunpack.c.h.b16 %v1621
      %v3961 = vunpack.c.l.b16 %v1622
      %v3962 = vunpack.c.h.b16 %v1622
      %v3963 = vunpack.c.l.b16 %v1623
      %v3964 = vunpack.c.h.b16 %v1623
      %v3965 = vunpack.c.l.b16 %v1624
      %v3966 = vunpack.c.h.b16 %v1624
      %v3967 = vunpack.c.l.b16 %v1625
      %v3968 = vunpack.c.h.b16 %v1625
      %v3969 = vunpack.c.l.b16 %v1626
      %v3970 = vunpack.c.h.b16 %v1626
      %v3971 = vunpack.c.l.b16 %v1627
      %v3972 = vunpack.c.h.b16 %v1627
      %v3973 = vunpack.c.l.b16 %v1628
      %v3974 = vunpack.c.h.b16 %v1628
      %v3975 = vunpack.c.l.b16 %v1629
      %v3976 = vunpack.c.h.b16 %v1629
      %v3977 = vunpack.c.l.b16 %v1630
      %v3978 = vunpack.c.h.b16 %v1630
      %v3979 = vunpack.c.l.b16 %v1631
      %v3980 = vunpack.c.h.b16 %v1631
      %v3981 = vunpack.c.l.b16 %v1632
      %v3982 = vunpack.c.h.b16 %v1632
      %v3983 = vunpack.c.l.b16 %v1633
      %v3984 = vunpack.c.h.b16 %v1633
      %v3985 = vunpack.c.l.b16 %v1634
      %v3986 = vunpack.c.h.b16 %v1634
      %v3987 = vunpack.c.l.b16 %v1635
      %v3988 = vunpack.c.h.b16 %v1635
      %v3989 = vunpack.c.l.b16 %v1636
      %v3990 = vunpack.c.h.b16 %v1636
      %v3991 = vunpack.c.l.b16 %v1637
      %v3992 = vunpack.c.h.b16 %v1637
      %v3993 = vunpack.c.l.b16 %v1638
      %v3994 = vunpack.c.h.b16 %v1638
      %v3995 = vunpack.c.l.b16 %v1639
      %v3996 = vunpack.c.h.b16 %v1639
      %v3997 = vunpack.c.l.b16 %v1640
      %v3998 = vunpack.c.h.b16 %v1640
      %v3999 = vunpack.c.l.b16 %v1641
      %v4000 = vunpack.c.h.b16 %v1641
      %v4001 = vunpack.c.l.b16 %v1642
      %v4002 = vunpack.c.h.b16 %v1642
      %v4003 = vunpack.c.l.b16 %v1643
      %v4004 = vunpack.c.h.b16 %v1643
      %v4005 = vunpack.c.l.b16 %v1644
      %v4006 = vunpack.c.h.b16 %v1644
      %v4007 = vunpack.c.l.b16 %v1645
      %v4008 = vunpack.c.h.b16 %v1645
      %v4009 = vunpack.c.l.b16 %v1646
      %v4010 = vunpack.c.h.b16 %v1646
      %v4011 = vunpack.c.l.b16 %v1647
      %v4012 = vunpack.c.h.b16 %v1647
      %v4013 = vunpack.c.l.b16 %v1648
      %v4014 = vunpack.c.h.b16 %v1648
      %v4015 = vunpack.c.l.b16 %v1649
      %v4016 = vunpack.c.h.b16 %v1649
      %v4017 = vunpack.c.l.b16 %v1650
      %v4018 = vunpack.c.h.b16 %v1650
      %v4019 = vunpack.c.l.b16 %v1651
      %v4020 = vunpack.c.h.b16 %v1651
      %v4021 = vunpack.c.l.b16 %v1652
      %v4022 = vunpack.c.h.b16 %v1652
      %v4023 = vunpack.c.l.b16 %v1653
      %v4024 = vunpack.c.h.b16 %v1653
      %v4025 = vunpack.c.l.b16 %v1654
      %v4026 = vunpack.c.h.b16 %v1654
      %v4027 = vunpack.c.l.b16 %v1655
      %v4028 = vunpack.c.h.b16 %v1655
      %v4029 = vunpack.c.l.b16 %v1656
      %v4030 = vunpack.c.h.b16 %v1656
      %v4031 = vunpack.c.l.b16 %v1657
      %v4032 = vunpack.c.h.b16 %v1657
      %v4033 = vunpack.c.l.b16 %v1658
      %v4034 = vunpack.c.h.b16 %v1658
      %v4035 = vunpack.c.l.b16 %v1659
      %v4036 = vunpack.c.h.b16 %v1659
      %v4037 = vunpack.c.l.b16 %v1660
      %v4038 = vunpack.c.h.b16 %v1660
      %v4039 = vunpack.c.l.b16 %v1661
      %v4040 = vunpack.c.h.b16 %v1661
      %v4041 = vunpack.c.l.b16 %v1662
      %v4042 = vunpack.c.h.b16 %v1662
      %v4043 = vunpack.c.l.b16 %v1663
      %v4044 = vunpack.c.h.b16 %v1663
      %v4045 = vunpack.c.l.b16 %v1664
      %v4046 = vunpack.c.h.b16 %v1664
      %v4047 = vunpack.c.l.b16 %v1665
      %v4048 = vunpack.c.h.b16 %v1665
      %v4049 = vunpack.c.l.b16 %v1666
      %v4050 = vunpack.c.h.b16 %v1666
      %v4051 = vunpack.c.l.b16 %v1667
      %v4052 = vunpack.c.h.b16 %v1667
      %v4053 = vunpack.c.l.b16 %v1668
      %v4054 = vunpack.c.h.b16 %v1668
      %v4055 = vunpack.c.l.b16 %v1669
      %v4056 = vunpack.c.h.b16 %v1669
      %v4057 = vunpack.c.l.b16 %v1670
      %v4058 = vunpack.c.h.b16 %v1670
      %v4059 = vunpack.c.l.b16 %v1671
      %v4060 = vunpack.c.h.b16 %v1671
      %v4061 = vunpack.c.l.b16 %v1672
      %v4062 = vunpack.c.h.b16 %v1672
      %v4063 = vunpack.c.l.b16 %v1673
      %v4064 = vunpack.c.h.b16 %v1673
      %v4065 = vunpack.c.l.b16 %v1674
      %v4066 = vunpack.c.h.b16 %v1674
      %v4067 = vunpack.c.l.b16 %v1675
      %v4068 = vunpack.c.h.b16 %v1675
      %v4069 = vunpack.c.l.b16 %v1676
      %v4070 = vunpack.c.h.b16 %v1676
      %v4071 = vunpack.c.l.b16 %v1677
      %v4072 = vunpack.c.h.b16 %v1677
      %v4073 = vunpack.c.l.b16 %v1678
      %v4074 = vunpack.c.h.b16 %v1678
      %v4075 = vunpack.c.l.b16 %v1679
      %v4076 = vunpack.c.h.b16 %v1679
      %v4077 = vunpack.c.l.b16 %v1680
      %v4078 = vunpack.c.h.b16 %v1680
      %v4079 = vunpack.c.l.b16 %v1681
      %v4080 = vunpack.c.h.b16 %v1681
      %v4081 = vunpack.c.l.b16 %v1682
      %v4082 = vunpack.c.h.b16 %v1682
      %v4083 = vunpack.c.l.b16 %v1683
      %v4084 = vunpack.c.h.b16 %v1683
      %v4085 = vunpack.c.l.b16 %v1684
      %v4086 = vunpack.c.h.b16 %v1684
      %v4087 = vunpack.c.l.b16 %v1685
      %v4088 = vunpack.c.h.b16 %v1685
      %v4089 = vunpack.c.l.b16 %v1686
      %v4090 = vunpack.c.h.b16 %v1686
      %v4091 = vunpack.c.l.b16 %v1687
      %v4092 = vunpack.c.h.b16 %v1687
      %v4093 = vunpack.c.l.b16 %v1688
      %v4094 = vunpack.c.h.b16 %v1688
      %v4095 = vunpack.c.l.b16 %v1689
      %v4096 = vunpack.c.h.b16 %v1689
      %v4097 = vunpack.c.l.b16 %v1690
      %v4098 = vunpack.c.h.b16 %v1690
      %v4099 = vunpack.c.l.b16 %v1691
      %v4100 = vunpack.c.h.b16 %v1691
      %v4101 = vunpack.c.l.b16 %v1692
      %v4102 = vunpack.c.h.b16 %v1692
      %v4103 = vunpack.c.l.b16 %v1693
      %v4104 = vunpack.c.h.b16 %v1693
      %v4105 = vunpack.c.l.b16 %v1694
      %v4106 = vunpack.c.h.b16 %v1694
      %v4107 = vunpack.c.l.b16 %v1695
      %v4108 = vunpack.c.h.b16 %v1695
      %v4109 = vunpack.c.l.b16 %v1696
      %v4110 = vunpack.c.h.b16 %v1696
      %v4111 = vunpack.c.l.b16 %v1697
      %v4112 = vunpack.c.h.b16 %v1697
      %v4113 = vunpack.c.l.b16 %v1698
      %v4114 = vunpack.c.h.b16 %v1698
      %v4115 = vunpack.c.l.b16 %v1699
      %v4116 = vunpack.c.h.b16 %v1699
      %v4117 = vunpack.c.l.b16 %v1700
      %v4118 = vunpack.c.h.b16 %v1700
      %v4119 = vunpack.c.l.b16 %v1701
      %v4120 = vunpack.c.h.b16 %v1701
      %v4121 = vunpack.c.l.b16 %v1702
      %v4122 = vunpack.c.h.b16 %v1702
      %v4123 = vunpack.c.l.b16 %v1703
      %v4124 = vunpack.c.h.b16 %v1703
      %v4125 = vunpack.c.l.b16 %v1704
      %v4126 = vunpack.c.h.b16 %v1704
      %v4127 = vunpack.c.l.b16 %v1705
      %v4128 = vunpack.c.h.b16 %v1705
      %v4129 = vunpack.c.l.b16 %v1706
      %v4130 = vunpack.c.h.b16 %v1706
      %v4131 = vunpack.c.l.b16 %v1707
      %v4132 = vunpack.c.h.b16 %v1707
      %v4133 = vunpack.c.l.b16 %v1708
      %v4134 = vunpack.c.h.b16 %v1708
      %v4135 = vunpack.c.l.b16 %v1709
      %v4136 = vunpack.c.h.b16 %v1709
      %v4137 = vunpack.c.l.b16 %v1710
      %v4138 = vunpack.c.h.b16 %v1710
      %v4139 = vunpack.c.l.b16 %v1711
      %v4140 = vunpack.c.h.b16 %v1711
      %v4141 = vunpack.c.l.b16 %v1712
      %v4142 = vunpack.c.h.b16 %v1712
      %v4143 = vunpack.c.l.b16 %v1713
      %v4144 = vunpack.c.h.b16 %v1713
      %v4145 = vunpack.c.l.b16 %v1714
      %v4146 = vunpack.c.h.b16 %v1714
      %v4147 = vunpack.c.l.b16 %v1715
      %v4148 = vunpack.c.h.b16 %v1715
      %v4149 = vunpack.c.l.b16 %v1716
      %v4150 = vunpack.c.h.b16 %v1716
      %v4151 = vunpack.c.l.b16 %v1717
      %v4152 = vunpack.c.h.b16 %v1717
      %v4153 = vunpack.c.l.b16 %v1718
      %v4154 = vunpack.c.h.b16 %v1718
      %v4155 = vunpack.c.l.b16 %v1719
      %v4156 = vunpack.c.h.b16 %v1719
      %v4157 = vunpack.c.l.b16 %v1720
      %v4158 = vunpack.c.h.b16 %v1720
      %v4159 = vunpack.c.l.b16 %v1721
      %v4160 = vunpack.c.h.b16 %v1721
      %v4161 = vunpack.c.l.b16 %v1722
      %v4162 = vunpack.c.h.b16 %v1722
      %v4163 = vunpack.c.l.b16 %v1723
      %v4164 = vunpack.c.h.b16 %v1723
      %v4165 = vunpack.c.l.b16 %v1724
      %v4166 = vunpack.c.h.b16 %v1724
      %v4167 = vunpack.c.l.b16 %v1725
      %v4168 = vunpack.c.h.b16 %v1725
      %v4169 = vunpack.c.l.b16 %v1726
      %v4170 = vunpack.c.h.b16 %v1726
      %v4171 = vunpack.c.l.b16 %v1727
      %v4172 = vunpack.c.h.b16 %v1727
      %v4173 = vunpack.c.l.b16 %v1728
      %v4174 = vunpack.c.h.b16 %v1728
      %v4175 = vunpack.c.l.b16 %v1729
      %v4176 = vunpack.c.h.b16 %v1729
      %v4177 = vunpack.c.l.b16 %v1730
      %v4178 = vunpack.c.h.b16 %v1730
      %v4179 = vunpack.c.l.b16 %v1731
      %v4180 = vunpack.c.h.b16 %v1731
      %v4181 = vunpack.c.l.b16 %v1732
      %v4182 = vunpack.c.h.b16 %v1732
      %v4183 = vunpack.c.l.b16 %v1733
      %v4184 = vunpack.c.h.b16 %v1733
      %v4185 = vunpack.c.l.b16 %v1734
      %v4186 = vunpack.c.h.b16 %v1734
      %v4187 = vunpack.c.l.b16 %v1735
      %v4188 = vunpack.c.h.b16 %v1735
      %v4189 = vunpack.c.l.b16 %v1736
      %v4190 = vunpack.c.h.b16 %v1736
      %v4191 = vunpack.c.l.b16 %v1737
      %v4192 = vunpack.c.h.b16 %v1737
      %v4193 = vunpack.c.l.b16 %v1738
      %v4194 = vunpack.c.h.b16 %v1738
      %v4195 = vunpack.c.l.b16 %v1739
      %v4196 = vunpack.c.h.b16 %v1739
      %v4197 = vunpack.c.l.b16 %v1740
      %v4198 = vunpack.c.h.b16 %v1740
      %v4199 = vunpack.c.l.b16 %v1741
      %v4200 = vunpack.c.h.b16 %v1741
      %v4201 = vunpack.c.l.b16 %v1742
      %v4202 = vunpack.c.h.b16 %v1742
      %v4203 = vunpack.c.l.b16 %v1743
      %v4204 = vunpack.c.h.b16 %v1743
      %v4205 = vunpack.c.l.b16 %v1744
      %v4206 = vunpack.c.h.b16 %v1744
      %v4207 = vunpack.c.l.b16 %v1745
      %v4208 = vunpack.c.h.b16 %v1745
      %v4209 = vunpack.c.l.b16 %v1746
      %v4210 = vunpack.c.h.b16 %v1746
      %v4211 = vunpack.c.l.b16 %v1747
      %v4212 = vunpack.c.h.b16 %v1747
      %v4213 = vunpack.c.l.b16 %v1748
      %v4214 = vunpack.c.h.b16 %v1748
      %v4215 = vunpack.c.l.b16 %v1749
      %v4216 = vunpack.c.h.b16 %v1749
      %v4217 = vunpack.c.l.b16 %v1750
      %v4218 = vunpack.c.h.b16 %v1750
      %v4219 = vunpack.c.l.b16 %v1751
      %v4220 = vunpack.c.h.b16 %v1751
      %v4221 = vunpack.c.l.b16 %v1752
      %v4222 = vunpack.c.h.b16 %v1752
      %v4223 = vunpack.c.l.b16 %v1753
      %v4224 = vunpack.c.h.b16 %v1753
      %v4225 = vunpack.c.l.b16 %v1754
      %v4226 = vunpack.c.h.b16 %v1754
      %v4227 = vunpack.c.l.b16 %v1755
      %v4228 = vunpack.c.h.b16 %v1755
      %v4229 = vunpack.c.l.b16 %v1756
      %v4230 = vunpack.c.h.b16 %v1756
      %v4231 = vunpack.c.l.b16 %v1757
      %v4232 = vunpack.c.h.b16 %v1757
      %v4233 = vunpack.c.l.b16 %v1758
      %v4234 = vunpack.c.h.b16 %v1758
      %v4235 = vunpack.c.l.b16 %v1759
      %v4236 = vunpack.c.h.b16 %v1759
      %v4237 = vunpack.c.l.b16 %v1760
      %v4238 = vunpack.c.h.b16 %v1760
      %v4239 = vunpack.c.l.b16 %v1761
      %v4240 = vunpack.c.h.b16 %v1761
      %v4241 = vunpack.c.l.b16 %v1762
      %v4242 = vunpack.c.h.b16 %v1762
      %v4243 = vunpack.c.l.b16 %v1763
      %v4244 = vunpack.c.h.b16 %v1763
      %v4245 = vunpack.c.l.b16 %v1764
      %v4246 = vunpack.c.h.b16 %v1764
      %v4247 = vunpack.c.l.b16 %v1765
      %v4248 = vunpack.c.h.b16 %v1765
      %v4249 = vunpack.c.l.b16 %v1766
      %v4250 = vunpack.c.h.b16 %v1766
      %v4251 = vunpack.c.l.b16 %v1767
      %v4252 = vunpack.c.h.b16 %v1767
      %v4253 = vunpack.c.l.b16 %v1768
      %v4254 = vunpack.c.h.b16 %v1768
      %v4255 = vunpack.c.l.b16 %v1769
      %v4256 = vunpack.c.h.b16 %v1769
      %v4257 = vunpack.c.l.b16 %v1770
      %v4258 = vunpack.c.h.b16 %v1770
      %v4259 = vunpack.c.l.b16 %v1771
      %v4260 = vunpack.c.h.b16 %v1771
      %v4261 = vunpack.c.l.b16 %v1772
      %v4262 = vunpack.c.h.b16 %v1772
      %v4263 = vunpack.c.l.b16 %v1773
      %v4264 = vunpack.c.h.b16 %v1773
      %v4265 = vunpack.c.l.b16 %v1774
      %v4266 = vunpack.c.h.b16 %v1774
      %v4267 = vunpack.c.l.b16 %v1775
      %v4268 = vunpack.c.h.b16 %v1775
      %v4269 = vunpack.c.l.b16 %v1776
      %v4270 = vunpack.c.h.b16 %v1776
      %v4271 = vunpack.c.l.b16 %v1777
      %v4272 = vunpack.c.h.b16 %v1777
      %v4273 = vunpack.c.l.b16 %v1778
      %v4274 = vunpack.c.h.b16 %v1778
      %v4275 = vunpack.c.l.b16 %v1779
      %v4276 = vunpack.c.h.b16 %v1779
      %v4277 = vunpack.c.l.b16 %v1780
      %v4278 = vunpack.c.h.b16 %v1780
      %v4279 = vunpack.c.l.b16 %v1781
      %v4280 = vunpack.c.h.b16 %v1781
      %v4281 = vunpack.c.l.b16 %v1782
      %v4282 = vunpack.c.h.b16 %v1782
      %v4283 = vunpack.c.l.b16 %v1783
      %v4284 = vunpack.c.h.b16 %v1783
      %v4285 = vunpack.c.l.b16 %v1784
      %v4286 = vunpack.c.h.b16 %v1784
      %v4287 = vunpack.c.l.b16 %v1785
      %v4288 = vunpack.c.h.b16 %v1785
      %v4289 = vunpack.c.l.b16 %v1786
      %v4290 = vunpack.c.h.b16 %v1786
      %v4291 = vunpack.c.l.b16 %v1787
      %v4292 = vunpack.c.h.b16 %v1787
      %v4293 = vunpack.c.l.b16 %v1788
      %v4294 = vunpack.c.h.b16 %v1788
      %v4295 = vunpack.c.l.b16 %v1789
      %v4296 = vunpack.c.h.b16 %v1789
      %v4297 = vunpack.c.l.b16 %v1790
      %v4298 = vunpack.c.h.b16 %v1790
      %v4299 = vunpack.c.l.b16 %v1791
      %v4300 = vunpack.c.h.b16 %v1791
      %v4301 = vunpack.c.l.b16 %v1792
      %v4302 = vunpack.c.h.b16 %v1792
      %v4303 = vunpack.c.l.b16 %v1793
      %v4304 = vunpack.c.h.b16 %v1793
      %v4305 = vunpack.c.l.b16 %v1794
      %v4306 = vunpack.c.h.b16 %v1794
      %v4307 = vunpack.c.l.b16 %v1795
      %v4308 = vunpack.c.h.b16 %v1795
      %v4309 = vunpack.c.l.b16 %v1796
      %v4310 = vunpack.c.h.b16 %v1796
      %v4311 = vunpack.c.l.b16 %v1797
      %v4312 = vunpack.c.h.b16 %v1797
      %v4313 = vunpack.c.l.b16 %v1798
      %v4314 = vunpack.c.h.b16 %v1798
      %v4315 = vunpack.c.l.b16 %v1799
      %v4316 = vunpack.c.h.b16 %v1799
      %v4317 = vunpack.c.l.b16 %v1800
      %v4318 = vunpack.c.h.b16 %v1800
      %v4319 = vunpack.c.l.b16 %v1801
      %v4320 = vunpack.c.h.b16 %v1801
      %v4321 = vunpack.c.l.b16 %v1802
      %v4322 = vunpack.c.h.b16 %v1802
      %v4323 = vunpack.c.l.b16 %v1803
      %v4324 = vunpack.c.h.b16 %v1803
      %v4325 = vunpack.c.l.b16 %v1804
      %v4326 = vunpack.c.h.b16 %v1804
      %v4327 = vunpack.c.l.b16 %v1805
      %v4328 = vunpack.c.h.b16 %v1805
      %v4329 = vunpack.c.l.b16 %v1806
      %v4330 = vunpack.c.h.b16 %v1806
      %v4331 = vunpack.c.l.b16 %v1807
      %v4332 = vunpack.c.h.b16 %v1807
      %v4333 = vunpack.c.l.b16 %v1808
      %v4334 = vunpack.c.h.b16 %v1808
      %v4335 = vunpack.c.l.b16 %v1809
      %v4336 = vunpack.c.h.b16 %v1809
      %v4337 = vunpack.c.l.b16 %v1810
      %v4338 = vunpack.c.h.b16 %v1810
      %v4339 = vunpack.c.l.b16 %v1811
      %v4340 = vunpack.c.h.b16 %v1811
      %v4341 = vunpack.c.l.b16 %v1812
      %v4342 = vunpack.c.h.b16 %v1812
      %v4343 = vunpack.c.l.b16 %v1813
      %v4344 = vunpack.c.h.b16 %v1813
      %v4345 = vunpack.c.l.b16 %v1814
      %v4346 = vunpack.c.h.b16 %v1814
      %v4347 = vunpack.c.l.b16 %v1815
      %v4348 = vunpack.c.h.b16 %v1815
      %v4349 = vunpack.c.l.b16 %v1816
      %v4350 = vunpack.c.h.b16 %v1816
      %v4351 = vunpack.c.l.b16 %v1817
      %v4352 = vunpack.c.h.b16 %v1817
      %v4353 = vunpack.c.l.b16 %v1818
      %v4354 = vunpack.c.h.b16 %v1818
      %v4355 = vunpack.c.l.b16 %v1819
      %v4356 = vunpack.c.h.b16 %v1819
      %v4357 = vunpack.c.l.b16 %v1820
      %v4358 = vunpack.c.h.b16 %v1820
      %v4359 = vunpack.c.l.b16 %v1821
      %v4360 = vunpack.c.h.b16 %v1821
      %v4361 = vunpack.c.l.b16 %v1822
      %v4362 = vunpack.c.h.b16 %v1822
      %v4363 = vunpack.c.l.b16 %v1823
      %v4364 = vunpack.c.h.b16 %v1823
      %v4365 = vunpack.c.l.b16 %v1824
      %v4366 = vunpack.c.h.b16 %v1824
      %v4367 = vunpack.c.l.b16 %v1825
      %v4368 = vunpack.c.h.b16 %v1825
      %v4369 = vunpack.c.l.b16 %v1826
      %v4370 = vunpack.c.h.b16 %v1826
      %v4371 = vunpack.c.l.b16 %v1827
      %v4372 = vunpack.c.h.b16 %v1827
      %v4373 = vunpack.c.l.b16 %v1828
      %v4374 = vunpack.c.h.b16 %v1828
      %v4375 = vunpack.c.l.b16 %v1829
      %v4376 = vunpack.c.h.b16 %v1829
      %v4377 = vunpack.c.l.b16 %v1830
      %v4378 = vunpack.c.h.b16 %v1830
      %v4379 = vunpack.c.l.b16 %v1831
      %v4380 = vunpack.c.h.b16 %v1831
      %v4381 = vunpack.c.l.b16 %v1832
      %v4382 = vunpack.c.h.b16 %v1832
      %v4383 = vunpack.c.l.b16 %v1833
      %v4384 = vunpack.c.h.b16 %v1833
      %v4385 = vunpack.c.l.b16 %v1834
      %v4386 = vunpack.c.h.b16 %v1834
      %v4387 = vunpack.c.l.b16 %v1835
      %v4388 = vunpack.c.h.b16 %v1835
      %v4389 = vunpack.c.l.b16 %v1836
      %v4390 = vunpack.c.h.b16 %v1836
      %v4391 = vunpack.c.l.b16 %v1837
      %v4392 = vunpack.c.h.b16 %v1837
      %v4393 = vunpack.c.l.b16 %v1838
      %v4394 = vunpack.c.h.b16 %v1838
      %v4395 = vunpack.c.l.b16 %v1839
      %v4396 = vunpack.c.h.b16 %v1839
      %v4397 = vunpack.c.l.b16 %v1840
      %v4398 = vunpack.c.h.b16 %v1840
      %v4399 = vunpack.c.l.b16 %v1841
      %v4400 = vunpack.c.h.b16 %v1841
      %v4401 = vunpack.c.l.b16 %v1842
      %v4402 = vunpack.c.h.b16 %v1842
      %v4403 = vunpack.c.l.b16 %v1843
      %v4404 = vunpack.c.h.b16 %v1843
      %v4405 = vunpack.c.l.b16 %v1844
      %v4406 = vunpack.c.h.b16 %v1844
      %v4407 = vunpack.c.l.b16 %v1845
      %v4408 = vunpack.c.h.b16 %v1845
      %v4409 = vunpack.c.l.b16 %v1846
      %v4410 = vunpack.c.h.b16 %v1846
      %v4411 = vunpack.c.l.b16 %v1847
      %v4412 = vunpack.c.h.b16 %v1847
      %v4413 = vunpack.c.l.b16 %v1848
      %v4414 = vunpack.c.h.b16 %v1848
      %v4415 = vunpack.c.l.b16 %v1849
      %v4416 = vunpack.c.h.b16 %v1849
      %v4417 = vunpack.c.l.b16 %v1850
      %v4418 = vunpack.c.h.b16 %v1850
      %v4419 = vunpack.c.l.b16 %v1851
      %v4420 = vunpack.c.h.b16 %v1851
      %v4421 = vunpack.c.l.b16 %v1852
      %v4422 = vunpack.c.h.b16 %v1852
      %v4423 = vunpack.c.l.b16 %v1853
      %v4424 = vunpack.c.h.b16 %v1853
      %v4425 = vunpack.c.l.b16 %v1854
      %v4426 = vunpack.c.h.b16 %v1854
      %v4427 = vunpack.c.l.b16 %v1855
      %v4428 = vunpack.c.h.b16 %v1855
      %v4429 = vunpack.c.l.b16 %v1856
      %v4430 = vunpack.c.h.b16 %v1856
      %v4431 = vunpack.c.l.b16 %v1857
      %v4432 = vunpack.c.h.b16 %v1857
      %v4433 = vunpack.c.l.b16 %v1858
      %v4434 = vunpack.c.h.b16 %v1858
      %v4435 = vunpack.c.l.b16 %v1859
      %v4436 = vunpack.c.h.b16 %v1859
      %v4437 = vunpack.c.l.b16 %v1860
      %v4438 = vunpack.c.h.b16 %v1860
      %v4439 = vunpack.c.l.b16 %v1861
      %v4440 = vunpack.c.h.b16 %v1861
      %v4441 = vunpack.c.l.b16 %v1862
      %v4442 = vunpack.c.h.b16 %v1862
      %v4443 = vunpack.c.l.b16 %v1863
      %v4444 = vunpack.c.h.b16 %v1863
      %v4445 = vunpack.c.l.b16 %v1864
      %v4446 = vunpack.c.h.b16 %v1864
      %v4447 = vunpack.c.l.b16 %v1865
      %v4448 = vunpack.c.h.b16 %v1865
      %v4449 = vunpack.c.l.b16 %v1866
      %v4450 = vunpack.c.h.b16 %v1866
      %v4451 = vunpack.c.l.b16 %v1867
      %v4452 = vunpack.c.h.b16 %v1867
      %v4453 = vunpack.c.l.b16 %v1868
      %v4454 = vunpack.c.h.b16 %v1868
      %v4455 = vunpack.c.l.b16 %v1869
      %v4456 = vunpack.c.h.b16 %v1869
      %v4457 = vunpack.c.l.b16 %v1870
      %v4458 = vunpack.c.h.b16 %v1870
      %v4459 = vunpack.c.l.b16 %v1871
      %v4460 = vunpack.c.h.b16 %v1871
      %v4461 = vunpack.c.l.b16 %v1872
      %v4462 = vunpack.c.h.b16 %v1872
      %v4463 = vunpack.c.l.b16 %v1873
      %v4464 = vunpack.c.h.b16 %v1873
      %v4465 = vunpack.c.l.b16 %v1874
      %v4466 = vunpack.c.h.b16 %v1874
      %v4467 = vunpack.c.l.b16 %v1875
      %v4468 = vunpack.c.h.b16 %v1875
      %v4469 = vunpack.c.l.b16 %v1876
      %v4470 = vunpack.c.h.b16 %v1876
      %v4471 = vunpack.c.l.b16 %v1877
      %v4472 = vunpack.c.h.b16 %v1877
      %v4473 = vunpack.c.l.b16 %v1878
      %v4474 = vunpack.c.h.b16 %v1878
      %v4475 = vunpack.c.l.b16 %v1879
      %v4476 = vunpack.c.h.b16 %v1879
      %v4477 = vunpack.c.l.b16 %v1880
      %v4478 = vunpack.c.h.b16 %v1880
      %v4479 = vunpack.c.l.b16 %v1881
      %v4480 = vunpack.c.h.b16 %v1881
      %v4481 = vunpack.c.l.b16 %v1882
      %v4482 = vunpack.c.h.b16 %v1882
      %v4483 = vunpack.c.l.b16 %v1883
      %v4484 = vunpack.c.h.b16 %v1883
      %v4485 = vunpack.c.l.b16 %v1884
      %v4486 = vunpack.c.h.b16 %v1884
      %v4487 = vunpack.c.l.b16 %v1885
      %v4488 = vunpack.c.h.b16 %v1885
      %v4489 = vunpack.c.l.b16 %v1886
      %v4490 = vunpack.c.h.b16 %v1886
      %v4491 = vunpack.c.l.b16 %v1887
      %v4492 = vunpack.c.h.b16 %v1887
      %v4493 = vunpack.c.l.b16 %v1888
      %v4494 = vunpack.c.h.b16 %v1888
      %v4495 = vunpack.c.l.b16 %v1889
      %v4496 = vunpack.c.h.b16 %v1889
      %v4497 = vunpack.c.l.b16 %v1890
      %v4498 = vunpack.c.h.b16 %v1890
      %v4499 = vunpack.c.l.b16 %v1891
      %v4500 = vunpack.c.h.b16 %v1891
      %v4501 = vunpack.c.l.b16 %v1892
      %v4502 = vunpack.c.h.b16 %v1892
      %v4503 = vunpack.c.l.b16 %v1893
      %v4504 = vunpack.c.h.b16 %v1893
      %v4505 = vunpack.c.l.b16 %v1894
      %v4506 = vunpack.c.h.b16 %v1894
      %v4507 = vunpack.c.l.b16 %v1895
      %v4508 = vunpack.c.h.b16 %v1895
      %v4509 = vunpack.c.l.b16 %v1896
      %v4510 = vunpack.c.h.b16 %v1896
      %v4511 = vunpack.c.l.b16 %v1897
      %v4512 = vunpack.c.h.b16 %v1897
      %v4513 = vunpack.c.l.b16 %v1898
      %v4514 = vunpack.c.h.b16 %v1898
      %v4515 = vunpack.c.l.b16 %v1899
      %v4516 = vunpack.c.h.b16 %v1899
      %v4517 = vunpack.c.l.b16 %v1900
      %v4518 = vunpack.c.h.b16 %v1900
      %v4519 = vunpack.c.l.b16 %v1901
      %v4520 = vunpack.c.h.b16 %v1901
      %v4521 = vunpack.c.l.b16 %v1902
      %v4522 = vunpack.c.h.b16 %v1902
      %v4523 = vunpack.c.l.b16 %v1903
      %v4524 = vunpack.c.h.b16 %v1903
      %v4525 = vunpack.c.l.b16 %v1904
      %v4526 = vunpack.c.h.b16 %v1904
      %v4527 = vunpack.c.l.b16 %v1905
      %v4528 = vunpack.c.h.b16 %v1905
      %v4529 = vunpack.c.l.b16 %v1906
      %v4530 = vunpack.c.h.b16 %v1906
      %v4531 = vunpack.c.l.b16 %v1907
      %v4532 = vunpack.c.h.b16 %v1907
      %v4533 = vunpack.c.l.b16 %v1908
      %v4534 = vunpack.c.h.b16 %v1908
      %v4535 = vunpack.c.l.b16 %v1909
      %v4536 = vunpack.c.h.b16 %v1909
      %v4537 = vunpack.c.l.b16 %v1910
      %v4538 = vunpack.c.h.b16 %v1910
      %v4539 = vunpack.c.l.b16 %v1911
      %v4540 = vunpack.c.h.b16 %v1911
      %v4541 = vunpack.c.l.b16 %v1912
      %v4542 = vunpack.c.h.b16 %v1912
      %v4543 = vunpack.c.l.b16 %v1913
      %v4544 = vunpack.c.h.b16 %v1913
      %v4545 = vunpack.c.l.b16 %v1914
      %v4546 = vunpack.c.h.b16 %v1914
      %v4547 = vunpack.c.l.b16 %v1915
      %v4548 = vunpack.c.h.b16 %v1915
      %v4549 = vunpack.c.l.b16 %v1916
      %v4550 = vunpack.c.h.b16 %v1916
      %v4551 = vunpack.c.l.b16 %v1917
      %v4552 = vunpack.c.h.b16 %v1917
      %v4553 = vunpack.c.l.b16 %v1918
      %v4554 = vunpack.c.h.b16 %v1918
      %v4555 = vunpack.c.l.b16 %v1919
      %v4556 = vunpack.c.h.b16 %v1919
      %v4557 = vunpack.c.l.b16 %v1920
      %v4558 = vunpack.c.h.b16 %v1920
      %v4559 = vunpack.c.l.b16 %v1921
      %v4560 = vunpack.c.h.b16 %v1921
      %v4561 = vunpack.c.l.b16 %v1922
      %v4562 = vunpack.c.h.b16 %v1922
      %v4563 = vunpack.c.l.b16 %v1923
      %v4564 = vunpack.c.h.b16 %v1923
      %v4565 = vunpack.c.l.b16 %v1924
      %v4566 = vunpack.c.h.b16 %v1924
      %v4567 = vunpack.c.l.b16 %v1925
      %v4568 = vunpack.c.h.b16 %v1925
      %v4569 = vunpack.c.l.b16 %v1926
      %v4570 = vunpack.c.h.b16 %v1926
      %v4571 = vunpack.c.l.b16 %v1927
      %v4572 = vunpack.c.h.b16 %v1927
      %v4573 = vunpack.c.l.b16 %v1928
      %v4574 = vunpack.c.h.b16 %v1928
      %v4575 = vunpack.c.l.b16 %v1929
      %v4576 = vunpack.c.h.b16 %v1929
      %v4577 = vunpack.c.l.b16 %v1930
      %v4578 = vunpack.c.h.b16 %v1930
      %v4579 = vunpack.c.l.b16 %v1931
      %v4580 = vunpack.c.h.b16 %v1931
      %v4581 = vunpack.c.l.b16 %v1932
      %v4582 = vunpack.c.h.b16 %v1932
      %v4583 = vunpack.c.l.b16 %v1933
      %v4584 = vunpack.c.h.b16 %v1933
      %v4585 = vunpack.c.l.b16 %v1934
      %v4586 = vunpack.c.h.b16 %v1934
      %v4587 = vunpack.c.l.b16 %v1935
      %v4588 = vunpack.c.h.b16 %v1935
      %v4589 = vunpack.c.l.b16 %v1936
      %v4590 = vunpack.c.h.b16 %v1936
      %v4591 = vunpack.c.l.b16 %v1937
      %v4592 = vunpack.c.h.b16 %v1937
      %v4593 = vunpack.c.l.b16 %v1938
      %v4594 = vunpack.c.h.b16 %v1938
      %v4595 = vunpack.c.l.b16 %v1939
      %v4596 = vunpack.c.h.b16 %v1939
      %v4597 = vunpack.c.l.b16 %v1940
      %v4598 = vunpack.c.h.b16 %v1940
      %v4599 = vunpack.c.l.b16 %v1941
      %v4600 = vunpack.c.h.b16 %v1941
      %v4601 = vunpack.c.l.b16 %v1942
      %v4602 = vunpack.c.h.b16 %v1942
      %v4603 = vunpack.c.l.b16 %v1943
      %v4604 = vunpack.c.h.b16 %v1943
      %v4605 = vunpack.c.l.b16 %v1944
      %v4606 = vunpack.c.h.b16 %v1944
      %v4607 = vunpack.c.l.b16 %v1945
      %v4608 = vunpack.c.h.b16 %v1945
      %v4609 = vunpack.c.l.b16 %v1946
      %v4610 = vunpack.c.h.b16 %v1946
      %v4611 = vunpack.c.l.b16 %v1947
      %v4612 = vunpack.c.h.b16 %v1947
      %v4613 = vunpack.c.l.b16 %v1948
      %v4614 = vunpack.c.h.b16 %v1948
      %v4615 = vunpack.c.l.b16 %v1949
      %v4616 = vunpack.c.h.b16 %v1949
      %v4617 = vunpack.c.l.b16 %v1950
      %v4618 = vunpack.c.h.b16 %v1950
      %v4619 = vunpack.c.l.b16 %v1951
      %v4620 = vunpack.c.h.b16 %v1951
      %v4621 = vunpack.c.l.b16 %v1952
      %v4622 = vunpack.c.h.b16 %v1952
      %v4623 = vunpack.c.l.b16 %v1953
      %v4624 = vunpack.c.h.b16 %v1953
      %v4625 = vunpack.c.l.b16 %v1954
      %v4626 = vunpack.c.h.b16 %v1954
      %v4627 = vunpack.c.l.b16 %v1955
      %v4628 = vunpack.c.h.b16 %v1955
      %v4629 = vunpack.c.l.b16 %v1956
      %v4630 = vunpack.c.h.b16 %v1956
      %v4631 = vunpack.c.l.b16 %v1957
      %v4632 = vunpack.c.h.b16 %v1957
      %v4633 = vunpack.c.l.b16 %v1958
      %v4634 = vunpack.c.h.b16 %v1958
      %v4635 = vunpack.c.l.b16 %v1959
      %v4636 = vunpack.c.h.b16 %v1959
      %v4637 = vunpack.c.l.b16 %v1960
      %v4638 = vunpack.c.h.b16 %v1960
      %v4639 = vunpack.c.l.b16 %v1961
      %v4640 = vunpack.c.h.b16 %v1961
      %v4641 = vunpack.c.l.b16 %v1962
      %v4642 = vunpack.c.h.b16 %v1962
      %v4643 = vunpack.c.l.b16 %v1963
      %v4644 = vunpack.c.h.b16 %v1963
      %v4645 = vunpack.c.l.b16 %v1964
      %v4646 = vunpack.c.h.b16 %v1964
      %v4647 = vunpack.c.l.b16 %v1965
      %v4648 = vunpack.c.h.b16 %v1965
      %v4649 = vunpack.c.l.b16 %v1966
      %v4650 = vunpack.c.h.b16 %v1966
      %v4651 = vunpack.c.l.b16 %v1967
      %v4652 = vunpack.c.h.b16 %v1967
      %v4653 = vunpack.c.l.b16 %v1968
      %v4654 = vunpack.c.h.b16 %v1968
      %v4655 = vunpack.c.l.b16 %v1969
      %v4656 = vunpack.c.h.b16 %v1969
      %v4657 = vunpack.c.l.b16 %v1970
      %v4658 = vunpack.c.h.b16 %v1970
      %v4659 = vunpack.c.l.b16 %v1971
      %v4660 = vunpack.c.h.b16 %v1971
      %v4661 = vunpack.c.l.b16 %v1972
      %v4662 = vunpack.c.h.b16 %v1972
      %v4663 = vunpack.c.l.b16 %v1973
      %v4664 = vunpack.c.h.b16 %v1973
      %v4665 = vunpack.c.l.b16 %v1974
      %v4666 = vunpack.c.h.b16 %v1974
      %v4667 = vunpack.c.l.b16 %v1975
      %v4668 = vunpack.c.h.b16 %v1975
      %v4669 = vunpack.c.l.b16 %v1976
      %v4670 = vunpack.c.h.b16 %v1976
      %v4671 = vunpack.c.l.b16 %v1977
      %v4672 = vunpack.c.h.b16 %v1977
      %v4673 = vunpack.c.l.b16 %v1978
      %v4674 = vunpack.c.h.b16 %v1978
      %v4675 = vunpack.c.l.b16 %v1979
      %v4676 = vunpack.c.h.b16 %v1979
      %v4677 = vunpack.c.l.b16 %v1980
      %v4678 = vunpack.c.h.b16 %v1980
      %v4679 = vunpack.c.l.b16 %v1981
      %v4680 = vunpack.c.h.b16 %v1981
      %v4681 = vunpack.c.l.b16 %v1982
      %v4682 = vunpack.c.h.b16 %v1982
      %v4683 = vunpack.c.l.b16 %v1983
      %v4684 = vunpack.c.h.b16 %v1983
      %v4685 = vunpack.c.l.b16 %v1984
      %v4686 = vunpack.c.h.b16 %v1984
      %v4687 = vunpack.c.l.b16 %v1985
      %v4688 = vunpack.c.h.b16 %v1985
      %v4689 = vunpack.c.l.b16 %v1986
      %v4690 = vunpack.c.h.b16 %v1986
      %v4691 = vunpack.c.l.b16 %v1987
      %v4692 = vunpack.c.h.b16 %v1987
      %v4693 = vunpack.c.l.b16 %v1988
      %v4694 = vunpack.c.h.b16 %v1988
      %v4695 = vunpack.c.l.b16 %v1989
      %v4696 = vunpack.c.h.b16 %v1989
      %v4697 = vunpack.c.l.b16 %v1990
      %v4698 = vunpack.c.h.b16 %v1990
      %v4699 = vunpack.c.l.b16 %v1991
      %v4700 = vunpack.c.h.b16 %v1991
      %v4701 = vunpack.c.l.b16 %v1992
      %v4702 = vunpack.c.h.b16 %v1992
      %v4703 = vunpack.c.l.b16 %v1993
      %v4704 = vunpack.c.h.b16 %v1993
      %v4705 = vunpack.c.l.b16 %v1994
      %v4706 = vunpack.c.h.b16 %v1994
      %v4707 = vunpack.c.l.b16 %v1995
      %v4708 = vunpack.c.h.b16 %v1995
      %v4709 = vunpack.c.l.b16 %v1996
      %v4710 = vunpack.c.h.b16 %v1996
      %v4711 = vunpack.c.l.b16 %v1997
      %v4712 = vunpack.c.h.b16 %v1997
      %v4713 = vunpack.c.l.b16 %v1998
      %v4714 = vunpack.c.h.b16 %v1998
      %v4715 = vunpack.c.l.b16 %v1999
      %v4716 = vunpack.c.h.b16 %v1999
      %v4717 = vunpack.c.l.b16 %v2000
      %v4718 = vunpack.c.h.b16 %v2000
      %v4719 = vunpack.c.l.b16 %v2001
      %v4720 = vunpack.c.h.b16 %v2001
      %v4721 = vunpack.c.l.b16 %v2002
      %v4722 = vunpack.c.h.b16 %v2002
      %v4723 = vunpack.c.l.b16 %v2003
      %v4724 = vunpack.c.h.b16 %v2003
      %v4725 = vunpack.c.l.b16 %v2004
      %v4726 = vunpack.c.h.b16 %v2004
      %v4727 = vunpack.c.l.b16 %v2005
      %v4728 = vunpack.c.h.b16 %v2005
      %v4729 = vunpack.c.l.b16 %v2006
      %v4730 = vunpack.c.h.b16 %v2006
      %v4731 = vunpack.c.l.b16 %v2007
      %v4732 = vunpack.c.h.b16 %v2007
      %v4733 = vunpack.c.l.b16 %v2008
      %v4734 = vunpack.c.h.b16 %v2008
      %v4735 = vunpack.c.l.b16 %v2009
      %v4736 = vunpack.c.h.b16 %v2009
      %v4737 = vunpack.c.l.b16 %v2010
      %v4738 = vunpack.c.h.b16 %v2010
      %v4739 = vunpack.c.l.b16 %v2011
      %v4740 = vunpack.c.h.b16 %v2011
      %v4741 = vunpack.c.l.b16 %v2012
      %v4742 = vunpack.c.h.b16 %v2012
      %v4743 = vunpack.c.l.b16 %v2013
      %v4744 = vunpack.c.h.b16 %v2013
      %v4745 = vunpack.c.l.b16 %v2014
      %v4746 = vunpack.c.h.b16 %v2014
      %v4747 = vunpack.c.l.b16 %v2015
      %v4748 = vunpack.c.h.b16 %v2015
      %v4749 = vunpack.c.l.b16 %v2016
      %v4750 = vunpack.c.h.b16 %v2016
      %v4751 = vunpack.c.l.b16 %v2017
      %v4752 = vunpack.c.h.b16 %v2017
      %v4753 = vunpack.c.l.b16 %v2018
      %v4754 = vunpack.c.h.b16 %v2018
      %v4755 = vunpack.c.l.b16 %v2019
      %v4756 = vunpack.c.h.b16 %v2019
      %v4757 = vunpack.c.l.b16 %v2020
      %v4758 = vunpack.c.h.b16 %v2020
      %v4759 = vunpack.c.l.b16 %v2021
      %v4760 = vunpack.c.h.b16 %v2021
      %v4761 = vunpack.c.l.b16 %v2022
      %v4762 = vunpack.c.h.b16 %v2022
      %v4763 = vunpack.c.l.b16 %v2023
      %v4764 = vunpack.c.h.b16 %v2023
      %v4765 = vunpack.c.l.b16 %v2024
      %v4766 = vunpack.c.h.b16 %v2024
      %v4767 = vunpack.c.l.b16 %v2025
      %v4768 = vunpack.c.h.b16 %v2025
      %v4769 = vunpack.c.l.b16 %v2026
      %v4770 = vunpack.c.h.b16 %v2026
      %v4771 = vunpack.c.l.b16 %v2027
      %v4772 = vunpack.c.h.b16 %v2027
      %v4773 = vunpack.c.l.b16 %v2028
      %v4774 = vunpack.c.h.b16 %v2028
      %v4775 = vunpack.c.l.b16 %v2029
      %v4776 = vunpack.c.h.b16 %v2029
      %v4777 = vunpack.c.l.b16 %v2030
      %v4778 = vunpack.c.h.b16 %v2030
      %v4779 = vunpack.c.l.b16 %v2031
      %v4780 = vunpack.c.h.b16 %v2031
      %v4781 = vunpack.c.l.b16 %v2032
      %v4782 = vunpack.c.h.b16 %v2032
      %v4783 = vunpack.c.l.b16 %v2033
      %v4784 = vunpack.c.h.b16 %v2033
      %v4785 = vunpack.c.l.b16 %v2034
      %v4786 = vunpack.c.h.b16 %v2034
      %v4787 = vunpack.c.l.b16 %v2035
      %v4788 = vunpack.c.h.b16 %v2035
      %v4789 = vunpack.c.l.b16 %v2036
      %v4790 = vunpack.c.h.b16 %v2036
      %v4791 = vunpack.c.l.b16 %v2037
      %v4792 = vunpack.c.h.b16 %v2037
      %v4793 = vunpack.c.l.b16 %v2038
      %v4794 = vunpack.c.h.b16 %v2038
      %v4795 = vunpack.c.l.b16 %v2039
      %v4796 = vunpack.c.h.b16 %v2039
      %v4797 = vunpack.c.l.b16 %v2040
      %v4798 = vunpack.c.h.b16 %v2040
      %v4799 = vunpack.c.l.b16 %v2041
      %v4800 = vunpack.c.h.b16 %v2041
      %v4801 = vunpack.c.l.b16 %v2042
      %v4802 = vunpack.c.h.b16 %v2042
      %v4803 = vunpack.c.l.b16 %v2043
      %v4804 = vunpack.c.h.b16 %v2043
      %v4805 = vunpack.c.l.b16 %v2044
      %v4806 = vunpack.c.h.b16 %v2044
      %v4807 = vunpack.c.l.b16 %v2045
      %v4808 = vunpack.c.h.b16 %v2045
      %v4809 = vunpack.c.l.b16 %v2046
      %v4810 = vunpack.c.h.b16 %v2046
      %v4811 = vunpack.c.l.b16 %v2047
      %v4812 = vunpack.c.h.b16 %v2047
      %v4813 = vunpack.c.l.b16 %v2048
      %v4814 = vunpack.c.h.b16 %v2048
      %v4815 = vunpack.c.l.b16 %v2049
      %v4816 = vunpack.c.h.b16 %v2049
      %v4817 = vunpack.c.l.b16 %v2050
      %v4818 = vunpack.c.h.b16 %v2050
      %v4819 = vunpack.c.l.b16 %v2051
      %v4820 = vunpack.c.h.b16 %v2051
      %v4821 = vunpack.c.l.b16 %v2052
      %v4822 = vunpack.c.h.b16 %v2052
      %v4823 = vunpack.c.l.b16 %v2053
      %v4824 = vunpack.c.h.b16 %v2053
      %v4825 = vunpack.c.l.b16 %v2054
      %v4826 = vunpack.c.h.b16 %v2054
      %v4827 = vunpack.c.l.b16 %v2055
      %v4828 = vunpack.c.h.b16 %v2055
      %v4829 = vunpack.c.l.b16 %v2056
      %v4830 = vunpack.c.h.b16 %v2056
      %v4831 = vunpack.c.l.b16 %v2057
      %v4832 = vunpack.c.h.b16 %v2057
      %v4833 = vunpack.c.l.b16 %v2058
      %v4834 = vunpack.c.h.b16 %v2058
      %v4835 = vunpack.c.l.b16 %v2059
      %v4836 = vunpack.c.h.b16 %v2059
      %v4837 = vunpack.c.l.b16 %v2060
      %v4838 = vunpack.c.h.b16 %v2060
      %v4839 = vunpack.c.l.b16 %v2061
      %v4840 = vunpack.c.h.b16 %v2061
      %v4841 = vunpack.c.l.b16 %v2062
      %v4842 = vunpack.c.h.b16 %v2062
      %v4843 = vunpack.c.l.b16 %v2063
      %v4844 = vunpack.c.h.b16 %v2063
      %v4845 = vunpack.c.l.b16 %v2064
      %v4846 = vunpack.c.h.b16 %v2064
      %v4847 = vunpack.c.l.b16 %v2065
      %v4848 = vunpack.c.h.b16 %v2065
      %v4849 = vunpack.c.l.b16 %v2066
      %v4850 = vunpack.c.h.b16 %v2066
      %v4851 = vunpack.c.l.b16 %v2067
      %v4852 = vunpack.c.h.b16 %v2067
      %v4853 = vunpack.c.l.b16 %v2068
      %v4854 = vunpack.c.h.b16 %v2068
      %v4855 = vunpack.c.l.b16 %v2069
      %v4856 = vunpack.c.h.b16 %v2069
      %v4857 = vunpack.c.l.b16 %v2070
      %v4858 = vunpack.c.h.b16 %v2070
      %v4859 = vunpack.c.l.b16 %v2071
      %v4860 = vunpack.c.h.b16 %v2071
      %v4861 = vunpack.c.l.b16 %v2072
      %v4862 = vunpack.c.h.b16 %v2072
      %v4863 = vunpack.c.l.b16 %v2073
      %v4864 = vunpack.c.h.b16 %v2073
      %v4865 = vunpack.c.l.b16 %v2074
      %v4866 = vunpack.c.h.b16 %v2074
      %v4867 = vunpack.c.l.b16 %v2075
      %v4868 = vunpack.c.h.b16 %v2075
      %v4869 = vunpack.c.l.b16 %v2076
      %v4870 = vunpack.c.h.b16 %v2076
      %v4871 = vunpack.c.l.b16 %v2077
      %v4872 = vunpack.c.h.b16 %v2077
      %v4873 = vunpack.c.l.b16 %v2078
      %v4874 = vunpack.c.h.b16 %v2078
      %v4875 = vunpack.c.l.b16 %v2079
      %v4876 = vunpack.c.h.b16 %v2079
      %v4877 = vunpack.c.l.b16 %v2080
      %v4878 = vunpack.c.h.b16 %v2080
      %v4879 = vunpack.c.l.b16 %v2081
      %v4880 = vunpack.c.h.b16 %v2081
      %v4881 = vunpack.c.l.b16 %v2082
      %v4882 = vunpack.c.h.b16 %v2082
      %v4883 = vunpack.c.l.b16 %v2083
      %v4884 = vunpack.c.h.b16 %v2083
      %v4885 = vunpack.c.l.b16 %v2084
      %v4886 = vunpack.c.h.b16 %v2084
      %v4887 = vunpack.c.l.b16 %v2085
      %v4888 = vunpack.c.h.b16 %v2085
      %v4889 = vunpack.c.l.b16 %v2086
      %v4890 = vunpack.c.h.b16 %v2086
      %v4891 = vunpack.c.l.b16 %v2087
      %v4892 = vunpack.c.h.b16 %v2087
      %v4893 = vunpack.c.l.b16 %v2088
      %v4894 = vunpack.c.h.b16 %v2088
      %v4895 = vunpack.c.l.b16 %v2089
      %v4896 = vunpack.c.h.b16 %v2089
      %v4897 = vunpack.c.l.b16 %v2090
      %v4898 = vunpack.c.h.b16 %v2090
      %v4899 = vunpack.c.l.b16 %v2091
      %v4900 = vunpack.c.h.b16 %v2091
      %v4901 = vunpack.c.l.b16 %v2092
      %v4902 = vunpack.c.h.b16 %v2092
      %v4903 = vunpack.c.l.b16 %v2093
      %v4904 = vunpack.c.h.b16 %v2093
      %v4905 = vunpack.c.l.b16 %v2094
      %v4906 = vunpack.c.h.b16 %v2094
      %v4907 = vunpack.c.l.b16 %v2095
      %v4908 = vunpack.c.h.b16 %v2095
      %v4909 = vunpack.c.l.b16 %v2096
      %v4910 = vunpack.c.h.b16 %v2096
      %v4911 = vunpack.c.l.b16 %v2097
      %v4912 = vunpack.c.h.b16 %v2097
      %v4913 = vunpack.c.l.b16 %v2098
      %v4914 = vunpack.c.h.b16 %v2098
      %v4915 = vunpack.c.l.b16 %v2099
      %v4916 = vunpack.c.h.b16 %v2099
      %v4917 = vunpack.c.l.b16 %v2100
      %v4918 = vunpack.c.h.b16 %v2100
      %v4919 = vunpack.c.l.b16 %v2101
      %v4920 = vunpack.c.h.b16 %v2101
      %v4921 = vunpack.c.l.b16 %v2102
      %v4922 = vunpack.c.h.b16 %v2102
      %v4923 = vunpack.c.l.b16 %v2103
      %v4924 = vunpack.c.h.b16 %v2103
      %v4925 = vunpack.c.l.b16 %v2104
      %v4926 = vunpack.c.h.b16 %v2104
      %v4927 = vunpack.c.l.b16 %v2105
      %v4928 = vunpack.c.h.b16 %v2105
      %v4929 = vunpack.c.l.b16 %v2106
      %v4930 = vunpack.c.h.b16 %v2106
      %v4931 = vunpack.c.l.b16 %v2107
      %v4932 = vunpack.c.h.b16 %v2107
      %v4933 = vunpack.c.l.b16 %v2108
      %v4934 = vunpack.c.h.b16 %v2108
      %v4935 = vunpack.c.l.b16 %v2109
      %v4936 = vunpack.c.h.b16 %v2109
      %v4937 = vunpack.c.l.b16 %v2110
      %v4938 = vunpack.c.h.b16 %v2110
      %v4939 = vunpack.c.l.b16 %v2111
      %v4940 = vunpack.c.h.b16 %v2111
      %v4941 = vunpack.c.l.b16 %v2112
      %v4942 = vunpack.c.h.b16 %v2112
      %v4943 = vunpack.c.l.b16 %v2113
      %v4944 = vunpack.c.h.b16 %v2113
      %v4945 = vunpack.c.l.b16 %v2114
      %v4946 = vunpack.c.h.b16 %v2114
      %v4947 = vunpack.c.l.b16 %v2115
      %v4948 = vunpack.c.h.b16 %v2115
      %v4949 = vunpack.c.l.b16 %v2116
      %v4950 = vunpack.c.h.b16 %v2116
      %v4951 = vunpack.c.l.b16 %v2117
      %v4952 = vunpack.c.h.b16 %v2117
      %v4953 = vunpack.c.l.b16 %v2118
      %v4954 = vunpack.c.h.b16 %v2118
      %v4955 = vunpack.c.l.b16 %v2119
      %v4956 = vunpack.c.h.b16 %v2119
      %v4957 = vunpack.c.l.b16 %v2120
      %v4958 = vunpack.c.h.b16 %v2120
      %v4959 = vunpack.c.l.b16 %v2121
      %v4960 = vunpack.c.h.b16 %v2121
      %v4961 = vunpack.c.l.b16 %v2122
      %v4962 = vunpack.c.h.b16 %v2122
      %v4963 = vunpack.c.l.b16 %v2123
      %v4964 = vunpack.c.h.b16 %v2123
      %v4965 = vunpack.c.l.b16 %v2124
      %v4966 = vunpack.c.h.b16 %v2124
      %v4967 = vunpack.c.l.b16 %v2125
      %v4968 = vunpack.c.h.b16 %v2125
      %v4969 = vunpack.c.l.b16 %v2126
      %v4970 = vunpack.c.h.b16 %v2126
      %v4971 = vunpack.c.l.b16 %v2127
      %v4972 = vunpack.c.h.b16 %v2127
      %v4973 = vunpack.c.l.b16 %v2128
      %v4974 = vunpack.c.h.b16 %v2128
      %v4975 = vunpack.c.l.b16 %v2129
      %v4976 = vunpack.c.h.b16 %v2129
      %v4977 = vunpack.c.l.b16 %v2130
      %v4978 = vunpack.c.h.b16 %v2130
      %v4979 = vunpack.c.l.b16 %v2131
      %v4980 = vunpack.c.h.b16 %v2131
      %v4981 = vunpack.c.l.b16 %v2132
      %v4982 = vunpack.c.h.b16 %v2132
      %v4983 = vunpack.c.l.b16 %v2133
      %v4984 = vunpack.c.h.b16 %v2133
      %v4985 = vunpack.c.l.b16 %v2134
      %v4986 = vunpack.c.h.b16 %v2134
      %v4987 = vunpack.c.l.b16 %v2135
      %v4988 = vunpack.c.h.b16 %v2135
      %v4989 = vunpack.c.l.b16 %v2136
      %v4990 = vunpack.c.h.b16 %v2136
      %v4991 = vunpack.c.l.b16 %v2137
      %v4992 = vunpack.c.h.b16 %v2137
      %v4993 = vunpack.c.l.b16 %v2138
      %v4994 = vunpack.c.h.b16 %v2138
      %v4995 = vunpack.c.l.b16 %v2139
      %v4996 = vunpack.c.h.b16 %v2139
      %v4997 = vunpack.c.l.b16 %v2140
      %v4998 = vunpack.c.h.b16 %v2140
      %v4999 = vunpack.c.l.b16 %v2141
      %v5000 = vunpack.c.h.b16 %v2141
      %v5001 = vunpack.c.l.b16 %v2142
      %v5002 = vunpack.c.h.b16 %v2142
      %v5003 = vunpack.c.l.b16 %v2143
      %v5004 = vunpack.c.h.b16 %v2143
      %v5005 = vunpack.c.l.b16 %v2144
      %v5006 = vunpack.c.h.b16 %v2144
      %v5007 = vunpack.c.l.b16 %v2145
      %v5008 = vunpack.c.h.b16 %v2145
      %v5009 = vunpack.c.l.b16 %v2146
      %v5010 = vunpack.c.h.b16 %v2146
      %v5011 = vunpack.c.l.b16 %v2147
      %v5012 = vunpack.c.h.b16 %v2147
      %v5013 = vunpack.c.l.b16 %v2148
      %v5014 = vunpack.c.h.b16 %v2148
      %v5015 = vunpack.c.l.b16 %v2149
      %v5016 = vunpack.c.h.b16 %v2149
      %v5017 = vunpack.c.l.b16 %v2150
      %v5018 = vunpack.c.h.b16 %v2150
      %v5019 = vunpack.c.l.b16 %v2151
      %v5020 = vunpack.c.h.b16 %v2151
      %v5021 = vunpack.c.l.b16 %v2152
      %v5022 = vunpack.c.h.b16 %v2152
      %v5023 = vunpack.c.l.b16 %v2153
      %v5024 = vunpack.c.h.b16 %v2153
      %v5025 = vunpack.c.l.b16 %v2154
      %v5026 = vunpack.c.h.b16 %v2154
      %v5027 = vunpack.c.l.b16 %v2155
      %v5028 = vunpack.c.h.b16 %v2155
      %v5029 = vunpack.c.l.b16 %v2156
      %v5030 = vunpack.c.h.b16 %v2156
      %v5031 = vunpack.c.l.b16 %v2157
      %v5032 = vunpack.c.h.b16 %v2157
      %v5033 = vunpack.c.l.b16 %v2158
      %v5034 = vunpack.c.h.b16 %v2158
      %v5035 = vunpack.c.l.b16 %v2159
      %v5036 = vunpack.c.h.b16 %v2159
      %v5037 = vunpack.c.l.b16 %v2160
      %v5038 = vunpack.c.h.b16 %v2160
      %v5039 = vunpack.c.l.b16 %v2161
      %v5040 = vunpack.c.h.b16 %v2161
      %v5041 = vunpack.c.l.b16 %v2162
      %v5042 = vunpack.c.h.b16 %v2162
      %v5043 = vunpack.c.l.b16 %v2163
      %v5044 = vunpack.c.h.b16 %v2163
      %v5045 = vunpack.c.l.b16 %v2164
      %v5046 = vunpack.c.h.b16 %v2164
      %v5047 = vunpack.c.l.b16 %v2165
      %v5048 = vunpack.c.h.b16 %v2165
      %v5049 = vunpack.c.l.b16 %v2166
      %v5050 = vunpack.c.h.b16 %v2166
      %v5051 = vunpack.c.l.b16 %v2167
      %v5052 = vunpack.c.h.b16 %v2167
      %v5053 = vunpack.c.l.b16 %v2168
      %v5054 = vunpack.c.h.b16 %v2168
      %v5055 = vunpack.c.l.b16 %v2169
      %v5056 = vunpack.c.h.b16 %v2169
      %v5057 = vunpack.c.l.b16 %v2170
      %v5058 = vunpack.c.h.b16 %v2170
      %v5059 = vunpack.c.l.b16 %v2171
      %v5060 = vunpack.c.h.b16 %v2171
      %v5061 = vunpack.c.l.b16 %v2172
      %v5062 = vunpack.c.h.b16 %v2172
      %v5063 = vunpack.c.l.b16 %v2173
      %v5064 = vunpack.c.h.b16 %v2173
      %v5065 = vunpack.c.l.b16 %v2174
      %v5066 = vunpack.c.h.b16 %v2174
      %v5067 = vunpack.c.l.b16 %v2175
      %v5068 = vunpack.c.h.b16 %v2175
      %v5069 = vunpack.c.l.b16 %v2176
      %v5070 = vunpack.c.h.b16 %v2176
      %v5071 = vunpack.c.l.b16 %v2177
      %v5072 = vunpack.c.h.b16 %v2177
      %v5073 = vunpack.c.l.b16 %v2178
      %v5074 = vunpack.c.h.b16 %v2178
      %v5075 = vunpack.c.l.b16 %v2179
      %v5076 = vunpack.c.h.b16 %v2179
      %v5077 = vunpack.c.l.b16 %v2180
      %v5078 = vunpack.c.h.b16 %v2180
      %v5079 = vunpack.c.l.b16 %v2181
      %v5080 = vunpack.c.h.b16 %v2181
      %v5081 = vunpack.c.l.b16 %v2182
      %v5082 = vunpack.c.h.b16 %v2182
      %v5083 = vunpack.c.l.b16 %v2183
      %v5084 = vunpack.c.h.b16 %v2183
      %v5085 = vunpack.c.l.b16 %v2184
      %v5086 = vunpack.c.h.b16 %v2184
      %v5087 = vunpack.c.l.b16 %v2185
      %v5088 = vunpack.c.h.b16 %v2185
      %v5089 = vunpack.c.l.b16 %v2186
      %v5090 = vunpack.c.h.b16 %v2186
      %v5091 = vunpack.c.l.b16 %v2187
      %v5092 = vunpack.c.h.b16 %v2187
      %v5093 = vunpack.c.l.b16 %v2188
      %v5094 = vunpack.c.h.b16 %v2188
      %v5095 = vunpack.c.l.b16 %v2189
      %v5096 = vunpack.c.h.b16 %v2189
      %v5097 = vunpack.c.l.b16 %v2190
      %v5098 = vunpack.c.h.b16 %v2190
      %v5099 = vunpack.c.l.b16 %v2191
      %v5100 = vunpack.c.h.b16 %v2191
      %v5101 = vunpack.c.l.b16 %v2192
      %v5102 = vunpack.c.h.b16 %v2192
      %v5103 = vunpack.c.l.b16 %v2193
      %v5104 = vunpack.c.h.b16 %v2193
      %v5105 = vunpack.c.l.b16 %v2194
      %v5106 = vunpack.c.h.b16 %v2194
      %v5107 = vunpack.c.l.b16 %v2195
      %v5108 = vunpack.c.h.b16 %v2195
      %v5109 = vunpack.c.l.b16 %v2196
      %v5110 = vunpack.c.h.b16 %v2196
      %v5111 = vunpack.c.l.b16 %v2197
      %v5112 = vunpack.c.h.b16 %v2197
      %v5113 = vunpack.c.l.b16 %v2198
      %v5114 = vunpack.c.h.b16 %v2198
      %v5115 = vunpack.c.l.b16 %v2199
      %v5116 = vunpack.c.h.b16 %v2199
      %v5117 = vunpack.c.l.b16 %v2200
      %v5118 = vunpack.c.h.b16 %v2200
      %v5119 = vunpack.c.l.b16 %v2201
      %v5120 = vunpack.c.h.b16 %v2201
      %v5121 = vunpack.c.l.b16 %v2202
      %v5122 = vunpack.c.h.b16 %v2202
      %v5123 = vunpack.c.l.b16 %v2203
      %v5124 = vunpack.c.h.b16 %v2203
      %v5125 = vunpack.c.l.b16 %v2204
      %v5126 = vunpack.c.h.b16 %v2204
      %v5127 = vunpack.c.l.b16 %v2205
      %v5128 = vunpack.c.h.b16 %v2205
      %v5129 = vunpack.c.l.b16 %v2206
      %v5130 = vunpack.c.h.b16 %v2206
      %v5131 = vunpack.c.l.b16 %v2207
      %v5132 = vunpack.c.h.b16 %v2207
      %v5133 = vunpack.c.l.b16 %v2208
      %v5134 = vunpack.c.h.b16 %v2208
      %v5135 = vunpack.c.l.b16 %v2209
      %v5136 = vunpack.c.h.b16 %v2209
      %v5137 = vunpack.c.l.b16 %v2210
      %v5138 = vunpack.c.h.b16 %v2210
      %v5139 = vunpack.c.l.b16 %v2211
      %v5140 = vunpack.c.h.b16 %v2211
      %v5141 = vunpack.c.l.b16 %v2212
      %v5142 = vunpack.c.h.b16 %v2212
      %v5143 = vunpack.c.l.b16 %v2213
      %v5144 = vunpack.c.h.b16 %v2213
      %v5145 = vunpack.c.l.b16 %v2214
      %v5146 = vunpack.c.h.b16 %v2214
      %v5147 = vunpack.c.l.b16 %v2215
      %v5148 = vunpack.c.h.b16 %v2215
      %v5149 = vunpack.c.l.b16 %v2216
      %v5150 = vunpack.c.h.b16 %v2216
      %v5151 = vunpack.c.l.b16 %v2217
      %v5152 = vunpack.c.h.b16 %v2217
      %v5153 = vunpack.c.l.b16 %v2218
      %v5154 = vunpack.c.h.b16 %v2218
      %v5155 = vunpack.c.l.b16 %v2219
      %v5156 = vunpack.c.h.b16 %v2219
      %v5157 = vunpack.c.l.b16 %v2220
      %v5158 = vunpack.c.h.b16 %v2220
      %v5159 = vunpack.c.l.b16 %v2221
      %v5160 = vunpack.c.h.b16 %v2221
      %v5161 = vunpack.c.l.b16 %v2222
      %v5162 = vunpack.c.h.b16 %v2222
      %v5163 = vunpack.c.l.b16 %v2223
      %v5164 = vunpack.c.h.b16 %v2223
      %v5165 = vunpack.c.l.b16 %v2224
      %v5166 = vunpack.c.h.b16 %v2224
      %v5167 = vunpack.c.l.b16 %v2225
      %v5168 = vunpack.c.h.b16 %v2225
      %v5169 = vunpack.c.l.b16 %v2226
      %v5170 = vunpack.c.h.b16 %v2226
      %v5171 = vunpack.c.l.b16 %v2227
      %v5172 = vunpack.c.h.b16 %v2227
      %v5173 = vunpack.c.l.b16 %v2228
      %v5174 = vunpack.c.h.b16 %v2228
      %v5175 = vunpack.c.l.b16 %v2229
      %v5176 = vunpack.c.h.b16 %v2229
      %v5177 = vunpack.c.l.b16 %v2230
      %v5178 = vunpack.c.h.b16 %v2230
      %v5179 = vunpack.c.l.b16 %v2231
      %v5180 = vunpack.c.h.b16 %v2231
      %v5181 = vunpack.c.l.b16 %v2232
      %v5182 = vunpack.c.h.b16 %v2232
      %v5183 = vunpack.c.l.b16 %v2233
      %v5184 = vunpack.c.h.b16 %v2233
      %v5185 = vunpack.c.l.b16 %v2234
      %v5186 = vunpack.c.h.b16 %v2234
      %v5187 = vunpack.c.l.b16 %v2235
      %v5188 = vunpack.c.h.b16 %v2235
      %v5189 = vunpack.c.l.b16 %v2236
      %v5190 = vunpack.c.h.b16 %v2236
      %v5191 = vunpack.c.l.b16 %v2237
      %v5192 = vunpack.c.h.b16 %v2237
      %v5193 = vunpack.c.l.b16 %v2238
      %v5194 = vunpack.c.h.b16 %v2238
      %v5195 = vunpack.c.l.b16 %v2239
      %v5196 = vunpack.c.h.b16 %v2239
      %v5197 = vunpack.c.l.b16 %v2240
      %v5198 = vunpack.c.h.b16 %v2240
      %v5199 = vunpack.c.l.b16 %v2241
      %v5200 = vunpack.c.h.b16 %v2241
      %v5201 = vunpack.c.l.b16 %v2242
      %v5202 = vunpack.c.h.b16 %v2242
      %v5203 = vunpack.c.l.b16 %v2243
      %v5204 = vunpack.c.h.b16 %v2243
      %v5205 = vunpack.c.l.b16 %v2244
      %v5206 = vunpack.c.h.b16 %v2244
      %v5207 = vunpack.c.l.b16 %v2245
      %v5208 = vunpack.c.h.b16 %v2245
      %v5209 = vunpack.c.l.b16 %v2246
      %v5210 = vunpack.c.h.b16 %v2246
      %v5211 = vunpack.c.l.b16 %v2247
      %v5212 = vunpack.c.h.b16 %v2247
      %v5213 = vunpack.c.l.b16 %v2248
      %v5214 = vunpack.c.h.b16 %v2248
      %v5215 = vunpack.c.l.b16 %v2249
      %v5216 = vunpack.c.h.b16 %v2249
      %v5217 = vunpack.c.l.b16 %v2250
      %v5218 = vunpack.c.h.b16 %v2250
      %v5219 = vunpack.c.l.b16 %v2251
      %v5220 = vunpack.c.h.b16 %v2251
      %v5221 = vunpack.c.l.b16 %v2252
      %v5222 = vunpack.c.h.b16 %v2252
      %v5223 = vunpack.c.l.b16 %v2253
      %v5224 = vunpack.c.h.b16 %v2253
      %v5225 = vunpack.c.l.b16 %v2254
      %v5226 = vunpack.c.h.b16 %v2254
      %v5227 = vunpack.c.l.b16 %v2255
      %v5228 = vunpack.c.h.b16 %v2255
      %v5229 = vunpack.c.l.b16 %v2256
      %v5230 = vunpack.c.h.b16 %v2256
      %v5231 = vunpack.c.l.b16 %v2257
      %v5232 = vunpack.c.h.b16 %v2257
      %v5233 = vunpack.c.l.b16 %v2258
      %v5234 = vunpack.c.h.b16 %v2258
      %v5235 = vunpack.c.l.b16 %v2259
      %v5236 = vunpack.c.h.b16 %v2259
      %v5237 = vunpack.c.l.b16 %v2260
      %v5238 = vunpack.c.h.b16 %v2260
      %v5239 = vunpack.c.l.b16 %v2261
      %v5240 = vunpack.c.h.b16 %v2261
      %v5241 = vunpack.c.l.b16 %v2262
      %v5242 = vunpack.c.h.b16 %v2262
      %v5243 = vunpack.c.l.b16 %v2263
      %v5244 = vunpack.c.h.b16 %v2263
      %v5245 = vunpack.c.l.b16 %v2264
      %v5246 = vunpack.c.h.b16 %v2264
      %v5247 = vunpack.c.l.b16 %v2265
      %v5248 = vunpack.c.h.b16 %v2265
      %v5249 = vunpack.c.l.b16 %v2266
      %v5250 = vunpack.c.h.b16 %v2266
      %v5251 = vunpack.c.l.b16 %v2267
      %v5252 = vunpack.c.h.b16 %v2267
      %v5253 = vunpack.c.l.b16 %v2268
      %v5254 = vunpack.c.h.b16 %v2268
      %v5255 = vunpack.c.l.b16 %v2269
      %v5256 = vunpack.c.h.b16 %v2269
      %v5257 = vunpack.c.l.b16 %v2270
      %v5258 = vunpack.c.h.b16 %v2270
      %v5259 = vunpack.c.l.b16 %v2271
      %v5260 = vunpack.c.h.b16 %v2271
      %v5261 = vunpack.c.l.b16 %v2272
      %v5262 = vunpack.c.h.b16 %v2272
      %v5263 = vunpack.c.l.b16 %v2273
      %v5264 = vunpack.c.h.b16 %v2273
      %v5265 = vunpack.c.l.b16 %v2274
      %v5266 = vunpack.c.h.b16 %v2274
      %v5267 = vunpack.c.l.b16 %v2275
      %v5268 = vunpack.c.h.b16 %v2275
      %v5269 = vunpack.c.l.b16 %v2276
      %v5270 = vunpack.c.h.b16 %v2276
      %v5271 = vunpack.c.l.b16 %v2277
      %v5272 = vunpack.c.h.b16 %v2277
      %v5273 = vunpack.c.l.b16 %v2278
      %v5274 = vunpack.c.h.b16 %v2278
      %v5275 = vunpack.c.l.b16 %v2279
      %v5276 = vunpack.c.h.b16 %v2279
      %v5277 = vunpack.c.l.b16 %v2280
      %v5278 = vunpack.c.h.b16 %v2280
      %v5279 = vunpack.c.l.b16 %v2281
      %v5280 = vunpack.c.h.b16 %v2281
      %v5281 = vunpack.c.l.b16 %v2282
      %v5282 = vunpack.c.h.b16 %v2282
      %v5283 = vunpack.c.l.b16 %v2283
      %v5284 = vunpack.c.h.b16 %v2283
      %v5285 = vunpack.c.l.b16 %v2284
      %v5286 = vunpack.c.h.b16 %v2284
      %v5287 = vunpack.c.l.b16 %v2285
      %v5288 = vunpack.c.h.b16 %v2285
      %v5289 = vunpack.c.l.b16 %v2286
      %v5290 = vunpack.c.h.b16 %v2286
      %v5291 = vunpack.c.l.b16 %v2287
      %v5292 = vunpack.c.h.b16 %v2287
      %v5293 = vunpack.c.l.b16 %v2288
      %v5294 = vunpack.c.h.b16 %v2288
      %v5295 = vunpack.c.l.b16 %v2289
      %v5296 = vunpack.c.h.b16 %v2289
      %v5297 = vunpack.c.l.b16 %v2290
      %v5298 = vunpack.c.h.b16 %v2290
      %v5299 = vunpack.c.l.b16 %v2291
      %v5300 = vunpack.c.h.b16 %v2291
      %v5301 = vunpack.c.l.b16 %v2292
      %v5302 = vunpack.c.h.b16 %v2292
      %v5303 = vunpack.c.l.b16 %v2293
      %v5304 = vunpack.c.h.b16 %v2293
      %v5305 = vunpack.c.l.b16 %v2294
      %v5306 = vunpack.c.h.b16 %v2294
      %v5307 = vunpack.c.l.b16 %v2295
      %v5308 = vunpack.c.h.b16 %v2295
      %v5309 = vunpack.c.l.b16 %v2296
      %v5310 = vunpack.c.h.b16 %v2296
      %v5311 = vunpack.c.l.b16 %v2297
      %v5312 = vunpack.c.h.b16 %v2297
      %v5313 = vunpack.c.l.b16 %v2298
      %v5314 = vunpack.c.h.b16 %v2298
      %v5315 = vunpack.c.l.b16 %v2299
      %v5316 = vunpack.c.h.b16 %v2299
      %v5317 = vunpack.c.l.b16 %v2300
      %v5318 = vunpack.c.h.b16 %v2300
      %v5319 = vunpack.c.l.b16 %v2301
      %v5320 = vunpack.c.h.b16 %v2301
      %v5321 = vunpack.c.l.b16 %v2302
      %v5322 = vunpack.c.h.b16 %v2302
      %v5323 = vunpack.c.l.b16 %v2303
      %v5324 = vunpack.c.h.b16 %v2303
      %v5325 = vunpack.c.l.b16 %v2304
      %v5326 = vunpack.c.h.b16 %v2304
      %v5327 = vunpack.c.l.b16 %v2305
      %v5328 = vunpack.c.h.b16 %v2305
      %v5329 = vunpack.c.l.b16 %v2306
      %v5330 = vunpack.c.h.b16 %v2306
      %v5331 = vunpack.c.l.b16 %v2307
      %v5332 = vunpack.c.h.b16 %v2307
      %v5333 = vunpack.c.l.b16 %v2308
      %v5334 = vunpack.c.h.b16 %v2308
      %v5335 = vunpack.c.l.b16 %v2309
      %v5336 = vunpack.c.h.b16 %v2309
      %v5337 = vunpack.c.l.b16 %v2310
      %v5338 = vunpack.c.h.b16 %v2310
      %v5339 = vunpack.c.l.b16 %v2311
      %v5340 = vunpack.c.h.b16 %v2311
      %v5341 = vunpack.c.l.b16 %v2312
      %v5342 = vunpack.c.h.b16 %v2312
      %v5343 = vunpack.c.l.b16 %v2313
      %v5344 = vunpack.c.h.b16 %v2313
      %v5345 = vunpack.c.l.b16 %v2314
      %v5346 = vunpack.c.h.b16 %v2314
      %v5347 = vunpack.c.l.b16 %v2315
      %v5348 = vunpack.c.h.b16 %v2315
      %v5349 = vunpack.c.l.b16 %v2316
      %v5350 = vunpack.c.h.b16 %v2316
      %v5351 = vunpack.c.l.b16 %v2317
      %v5352 = vunpack.c.h.b16 %v2317
      %v5353 = vunpack.c.l.b16 %v2318
      %v5354 = vunpack.c.h.b16 %v2318
      %v5355 = vunpack.c.l.b16 %v2319
      %v5356 = vunpack.c.h.b16 %v2319
      %v5357 = vunpack.c.l.b16 %v2320
      %v5358 = vunpack.c.h.b16 %v2320
      %v5359 = vunpack.c.l.b16 %v2321
      %v5360 = vunpack.c.h.b16 %v2321
      %v5361 = vunpack.c.l.b16 %v2322
      %v5362 = vunpack.c.h.b16 %v2322
      %v5363 = vunpack.c.l.b16 %v2323
      %v5364 = vunpack.c.h.b16 %v2323
      %v5365 = vunpack.c.l.b16 %v2324
      %v5366 = vunpack.c.h.b16 %v2324
      %v5367 = vunpack.c.l.b16 %v2325
      %v5368 = vunpack.c.h.b16 %v2325
      %v5369 = vunpack.c.l.b16 %v2326
      %v5370 = vunpack.c.h.b16 %v2326
      %v5371 = vunpack.c.l.b16 %v2327
      %v5372 = vunpack.c.h.b16 %v2327
      %v5373 = vunpack.c.l.b16 %v2328
      %v5374 = vunpack.c.h.b16 %v2328
      %v5375 = vunpack.c.l.b16 %v2329
      %v5376 = vunpack.c.h.b16 %v2329
      %v5377 = vunpack.c.l.b16 %v2330
      %v5378 = vunpack.c.h.b16 %v2330
      %v5379 = vunpack.c.l.b16 %v2331
      %v5380 = vunpack.c.h.b16 %v2331
      %v5381 = vunpack.c.l.b16 %v2332
      %v5382 = vunpack.c.h.b16 %v2332
      %v5383 = vunpack.c.l.b16 %v2333
      %v5384 = vunpack.c.h.b16 %v2333
      %v5385 = vunpack.c.l.b16 %v2334
      %v5386 = vunpack.c.h.b16 %v2334
      %v5387 = vunpack.c.l.b16 %v2335
      %v5388 = vunpack.c.h.b16 %v2335
      %v5389 = vunpack.c.l.b16 %v2336
      %v5390 = vunpack.c.h.b16 %v2336
      %v5391 = vunpack.c.l.b16 %v2337
      %v5392 = vunpack.c.h.b16 %v2337
      %v5393 = vunpack.c.l.b16 %v2338
      %v5394 = vunpack.c.h.b16 %v2338
      %v5395 = vunpack.c.l.b16 %v2339
      %v5396 = vunpack.c.h.b16 %v2339
      %v5397 = vunpack.c.l.b16 %v2340
      %v5398 = vunpack.c.h.b16 %v2340
      %v5399 = vunpack.c.l.b16 %v2341
      %v5400 = vunpack.c.h.b16 %v2341
      %v5401 = vunpack.c.l.b16 %v2342
      %v5402 = vunpack.c.h.b16 %v2342
      %v5403 = vunpack.c.l.b16 %v2343
      %v5404 = vunpack.c.h.b16 %v2343
      %v5405 = vunpack.c.l.b16 %v2344
      %v5406 = vunpack.c.h.b16 %v2344
      %v5407 = vunpack.c.l.b16 %v2345
      %v5408 = vunpack.c.h.b16 %v2345
      %v5409 = vunpack.c.l.b16 %v2346
      %v5410 = vunpack.c.h.b16 %v2346
      %v5411 = vunpack.c.l.b16 %v2347
      %v5412 = vunpack.c.h.b16 %v2347
      %v5413 = vunpack.c.l.b16 %v2348
      %v5414 = vunpack.c.h.b16 %v2348
      %v5415 = vunpack.c.l.b16 %v2349
      %v5416 = vunpack.c.h.b16 %v2349
      %v5417 = vunpack.c.l.b16 %v2350
      %v5418 = vunpack.c.h.b16 %v2350
      %v5419 = vunpack.c.l.b16 %v2351
      %v5420 = vunpack.c.h.b16 %v2351
      %v5421 = vunpack.c.l.b16 %v2352
      %v5422 = vunpack.c.h.b16 %v2352
      %v5423 = vunpack.c.l.b16 %v2353
      %v5424 = vunpack.c.h.b16 %v2353
      %v5425 = vunpack.c.l.b16 %v2354
      %v5426 = vunpack.c.h.b16 %v2354
      %v5427 = vunpack.c.l.b16 %v2355
      %v5428 = vunpack.c.h.b16 %v2355
      %v5429 = vunpack.c.l.b16 %v2356
      %v5430 = vunpack.c.h.b16 %v2356
      %v5431 = vunpack.c.l.b16 %v2357
      %v5432 = vunpack.c.h.b16 %v2357
      %v5433 = vunpack.c.l.b16 %v2358
      %v5434 = vunpack.c.h.b16 %v2358
      %v5435 = vunpack.c.l.b16 %v2359
      %v5436 = vunpack.c.h.b16 %v2359
      %v5437 = vunpack.c.l.b16 %v2360
      %v5438 = vunpack.c.h.b16 %v2360
      %v5439 = vunpack.c.l.b16 %v2361
      %v5440 = vunpack.c.h.b16 %v2361
      %v5441 = vunpack.c.l.b16 %v2362
      %v5442 = vunpack.c.h.b16 %v2362
      %v5443 = vunpack.c.l.b16 %v2363
      %v5444 = vunpack.c.h.b16 %v2363
      %v5445 = vunpack.c.l.b16 %v2364
      %v5446 = vunpack.c.h.b16 %v2364
      %v5447 = vunpack.c.l.b16 %v2365
      %v5448 = vunpack.c.h.b16 %v2365
      %v5449 = vunpack.c.l.b16 %v2366
      %v5450 = vunpack.c.h.b16 %v2366
      %v5451 = vunpack.c.l.b16 %v2367
      %v5452 = vunpack.c.h.b16 %v2367
      %v5453 = vunpack.c.l.b16 %v2368
      %v5454 = vunpack.c.h.b16 %v2368
      %v5455 = vunpack.c.l.b16 %v2369
      %v5456 = vunpack.c.h.b16 %v2369
      %v5457 = vunpack.c.l.b16 %v2370
      %v5458 = vunpack.c.h.b16 %v2370
      %v5459 = vunpack.c.l.b16 %v2371
      %v5460 = vunpack.c.h.b16 %v2371
      %v5461 = vunpack.c.l.b16 %v2372
      %v5462 = vunpack.c.h.b16 %v2372
      %v5463 = vunpack.c.l.b16 %v2373
      %v5464 = vunpack.c.h.b16 %v2373
      %v5465 = vunpack.c.l.b16 %v2374
      %v5466 = vunpack.c.h.b16 %v2374
      %v5467 = vunpack.c.l.b16 %v2375
      %v5468 = vunpack.c.h.b16 %v2375
      %v5469 = vunpack.c.l.b16 %v2376
      %v5470 = vunpack.c.h.b16 %v2376
      %v5471 = vunpack.c.l.b16 %v2377
      %v5472 = vunpack.c.h.b16 %v2377
      %v5473 = vunpack.c.l.b16 %v2378
      %v5474 = vunpack.c.h.b16 %v2378
      %v5475 = vunpack.c.l.b16 %v2379
      %v5476 = vunpack.c.h.b16 %v2379
      %v5477 = vunpack.c.l.b16 %v2380
      %v5478 = vunpack.c.h.b16 %v2380
      %v5479 = vunpack.c.l.b16 %v2381
      %v5480 = vunpack.c.h.b16 %v2381
      %v5481 = vunpack.c.l.b16 %v2382
      %v5482 = vunpack.c.h.b16 %v2382
      %v5483 = vunpack.c.l.b16 %v2383
      %v5484 = vunpack.c.h.b16 %v2383
      %v5485 = vunpack.c.l.b16 %v2384
      %v5486 = vunpack.c.h.b16 %v2384
      %v5487 = vunpack.c.l.b16 %v2385
      %v5488 = vunpack.c.h.b16 %v2385
      %v5489 = vunpack.c.l.b16 %v2386
      %v5490 = vunpack.c.h.b16 %v2386
      %v5491 = vunpack.c.l.b16 %v2387
      %v5492 = vunpack.c.h.b16 %v2387
      %v5493 = vunpack.c.l.b16 %v2388
      %v5494 = vunpack.c.h.b16 %v2388
      %v5495 = vunpack.c.l.b16 %v2389
      %v5496 = vunpack.c.h.b16 %v2389
      %v5497 = vunpack.c.l.b16 %v2390
      %v5498 = vunpack.c.h.b16 %v2390
      %v5499 = vunpack.c.l.b16 %v2391
      %v5500 = vunpack.c.h.b16 %v2391
      %v5501 = vunpack.c.l.b16 %v2392
      %v5502 = vunpack.c.h.b16 %v2392
      %v5503 = vunpack.c.l.b16 %v2393
      %v5504 = vunpack.c.h.b16 %v2393
      %v5505 = vunpack.c.l.b16 %v2394
      %v5506 = vunpack.c.h.b16 %v2394
      %v5507 = vunpack.c.l.b16 %v2395
      %v5508 = vunpack.c.h.b16 %v2395
      %v5509 = vunpack.c.l.b16 %v2396
      %v5510 = vunpack.c.h.b16 %v2396
      %v5511 = vunpack.c.l.b16 %v2397
      %v5512 = vunpack.c.h.b16 %v2397
      %v5513 = vunpack.c.l.b16 %v2398
      %v5514 = vunpack.c.h.b16 %v2398
      %v5515 = vunpack.c.l.b16 %v2399
      %v5516 = vunpack.c.h.b16 %v2399
      %v5517 = vunpack.c.l.b16 %v2400
      %v5518 = vunpack.c.h.b16 %v2400
      %v5519 = vunpack.c.l.b16 %v2401
      %v5520 = vunpack.c.h.b16 %v2401
      %v5521 = vunpack.c.l.b16 %v2402
      %v5522 = vunpack.c.h.b16 %v2402
      %v5523 = vunpack.c.l.b16 %v2403
      %v5524 = vunpack.c.h.b16 %v2403
      %v5525 = vunpack.c.l.b16 %v2404
      %v5526 = vunpack.c.h.b16 %v2404
      %v5527 = vunpack.c.l.b16 %v2405
      %v5528 = vunpack.c.h.b16 %v2405
      %v5529 = vunpack.c.l.b16 %v2406
      %v5530 = vunpack.c.h.b16 %v2406
      %v5531 = vunpack.c.l.b16 %v2407
      %v5532 = vunpack.c.h.b16 %v2407
      %v5533 = vunpack.c.l.b16 %v2408
      %v5534 = vunpack.c.h.b16 %v2408
      %v5535 = vunpack.c.l.b16 %v2409
      %v5536 = vunpack.c.h.b16 %v2409
      %v5537 = vunpack.c.l.b16 %v2410
      %v5538 = vunpack.c.h.b16 %v2410
      %v5539 = vunpack.c.l.b16 %v2411
      %v5540 = vunpack.c.h.b16 %v2411
      %v5541 = vunpack.c.l.b16 %v2412
      %v5542 = vunpack.c.h.b16 %v2412
      %v5543 = vunpack.c.l.b16 %v2413
      %v5544 = vunpack.c.h.b16 %v2413
      %v5545 = vunpack.c.l.b16 %v2414
      %v5546 = vunpack.c.h.b16 %v2414
      %v5547 = vunpack.c.l.b16 %v2415
      %v5548 = vunpack.c.h.b16 %v2415
      %v5549 = vunpack.c.l.b16 %v2416
      %v5550 = vunpack.c.h.b16 %v2416
      %v5551 = vunpack.c.l.b16 %v2417
      %v5552 = vunpack.c.h.b16 %v2417
      %v5553 = vunpack.c.l.b16 %v2418
      %v5554 = vunpack.c.h.b16 %v2418
      %v5555 = vunpack.c.l.b16 %v2419
      %v5556 = vunpack.c.h.b16 %v2419
      %v5557 = vunpack.c.l.b16 %v2420
      %v5558 = vunpack.c.h.b16 %v2420
      %v5559 = vunpack.c.l.b16 %v2421
      %v5560 = vunpack.c.h.b16 %v2421
      %v5561 = vunpack.c.l.b16 %v2422
      %v5562 = vunpack.c.h.b16 %v2422
      %v5563 = vunpack.c.l.b16 %v2423
      %v5564 = vunpack.c.h.b16 %v2423
      %v5565 = vunpack.c.l.b16 %v2424
      %v5566 = vunpack.c.h.b16 %v2424
      %v5567 = vunpack.c.l.b16 %v2425
      %v5568 = vunpack.c.h.b16 %v2425
      %v5569 = vunpack.c.l.b16 %v2426
      %v5570 = vunpack.c.h.b16 %v2426
      %v5571 = vunpack.c.l.b16 %v2427
      %v5572 = vunpack.c.h.b16 %v2427
      %v5573 = vunpack.c.l.b16 %v2428
      %v5574 = vunpack.c.h.b16 %v2428
      %v5575 = vunpack.c.l.b16 %v2429
      %v5576 = vunpack.c.h.b16 %v2429
      %v5577 = vunpack.c.l.b16 %v2430
      %v5578 = vunpack.c.h.b16 %v2430
      %v5579 = vunpack.c.l.b16 %v2431
      %v5580 = vunpack.c.h.b16 %v2431
      %v5581 = vunpack.c.l.b16 %v2432
      %v5582 = vunpack.c.h.b16 %v2432
      %v5583 = vunpack.c.l.b16 %v2433
      %v5584 = vunpack.c.h.b16 %v2433
      %v5585 = vunpack.c.l.b16 %v2434
      %v5586 = vunpack.c.h.b16 %v2434
      %v5587 = vunpack.c.l.b16 %v2435
      %v5588 = vunpack.c.h.b16 %v2435
      %v5589 = vunpack.c.l.b16 %v2436
      %v5590 = vunpack.c.h.b16 %v2436
      %v5591 = vunpack.c.l.b16 %v2437
      %v5592 = vunpack.c.h.b16 %v2437
      %v5593 = vunpack.c.l.b16 %v2438
      %v5594 = vunpack.c.h.b16 %v2438
      %v5595 = vunpack.c.l.b16 %v2439
      %v5596 = vunpack.c.h.b16 %v2439
      %v5597 = vunpack.c.l.b16 %v2440
      %v5598 = vunpack.c.h.b16 %v2440
      %v5599 = vunpack.c.l.b16 %v2441
      %v5600 = vunpack.c.h.b16 %v2441
      %v5601 = vunpack.c.l.b16 %v2442
      %v5602 = vunpack.c.h.b16 %v2442
      %v5603 = vunpack.c.l.b16 %v2443
      %v5604 = vunpack.c.h.b16 %v2443
      %v5605 = vunpack.c.l.b16 %v2444
      %v5606 = vunpack.c.h.b16 %v2444
      %v5607 = vunpack.c.l.b16 %v2445
      %v5608 = vunpack.c.h.b16 %v2445
      %v5609 = vunpack.c.l.b16 %v2446
      %v5610 = vunpack.c.h.b16 %v2446
      %v5611 = vunpack.c.l.b16 %v2447
      %v5612 = vunpack.c.h.b16 %v2447
      %v5613 = vunpack.c.l.b16 %v2448
      %v5614 = vunpack.c.h.b16 %v2448
      %v5615 = vunpack.c.l.b16 %v2449
      %v5616 = vunpack.c.h.b16 %v2449
      %v5617 = vunpack.c.l.b16 %v2450
      %v5618 = vunpack.c.h.b16 %v2450
      %v5619 = vunpack.c.l.b16 %v2451
      %v5620 = vunpack.c.h.b16 %v2451
      %v5621 = vunpack.c.l.b16 %v2452
      %v5622 = vunpack.c.h.b16 %v2452
      %v5623 = vunpack.c.l.b16 %v2453
      %v5624 = vunpack.c.h.b16 %v2453
      %v5625 = vunpack.c.l.b16 %v2454
      %v5626 = vunpack.c.h.b16 %v2454
      %v5627 = vunpack.c.l.b16 %v2455
      %v5628 = vunpack.c.h.b16 %v2455
      %v5629 = vunpack.c.l.b16 %v2456
      %v5630 = vunpack.c.h.b16 %v2456
      %v5631 = vunpack.c.l.b16 %v2457
      %v5632 = vunpack.c.h.b16 %v2457
      %v5633 = vunpack.c.l.b16 %v2458
      %v5634 = vunpack.c.h.b16 %v2458
      %v5635 = vunpack.c.l.b16 %v2459
      %v5636 = vunpack.c.h.b16 %v2459
      %v5637 = vunpack.c.l.b16 %v2460
      %v5638 = vunpack.c.h.b16 %v2460
      %v5639 = vunpack.c.l.b16 %v2461
      %v5640 = vunpack.c.h.b16 %v2461
      %v5641 = vunpack.c.l.b16 %v2462
      %v5642 = vunpack.c.h.b16 %v2462
      %v5643 = vunpack.c.l.b16 %v2463
      %v5644 = vunpack.c.h.b16 %v2463
      %v5645 = vunpack.c.l.b16 %v2464
      %v5646 = vunpack.c.h.b16 %v2464
      %v5647 = vunpack.c.l.b16 %v2465
      %v5648 = vunpack.c.h.b16 %v2465
      %v5649 = vunpack.c.l.b16 %v2466
      %v5650 = vunpack.c.h.b16 %v2466
      %v5651 = vunpack.c.l.b16 %v2467
      %v5652 = vunpack.c.h.b16 %v2467
      %v5653 = vunpack.c.l.b16 %v2468
      %v5654 = vunpack.c.h.b16 %v2468
      %v5655 = vunpack.c.l.b16 %v2469
      %v5656 = vunpack.c.h.b16 %v2469
      %v5657 = vunpack.c.l.b16 %v2470
      %v5658 = vunpack.c.h.b16 %v2470
      %v5659 = vunpack.c.l.b16 %v2471
      %v5660 = vunpack.c.h.b16 %v2471
      %v5661 = vunpack.c.l.b16 %v2472
      %v5662 = vunpack.c.h.b16 %v2472
      %v5663 = vunpack.c.l.b16 %v2473
      %v5664 = vunpack.c.h.b16 %v2473
      %v5665 = vunpack.c.l.b16 %v2474
      %v5666 = vunpack.c.h.b16 %v2474
      %v5667 = vunpack.c.l.b16 %v2475
      %v5668 = vunpack.c.h.b16 %v2475
      %v5669 = vunpack.c.l.b16 %v2476
      %v5670 = vunpack.c.h.b16 %v2476
      %v5671 = vunpack.c.l.b16 %v2477
      %v5672 = vunpack.c.h.b16 %v2477
      %v5673 = vunpack.c.l.b16 %v2478
      %v5674 = vunpack.c.h.b16 %v2478
      %v5675 = vunpack.c.l.b16 %v2479
      %v5676 = vunpack.c.h.b16 %v2479
      %v5677 = vunpack.c.l.b16 %v2480
      %v5678 = vunpack.c.h.b16 %v2480
      %v5679 = vunpack.c.l.b16 %v2481
      %v5680 = vunpack.c.h.b16 %v2481
      %v5681 = vunpack.c.l.b16 %v2482
      %v5682 = vunpack.c.h.b16 %v2482
      %v5683 = vunpack.c.l.b16 %v2483
      %v5684 = vunpack.c.h.b16 %v2483
      %v5685 = vunpack.c.l.b16 %v2484
      %v5686 = vunpack.c.h.b16 %v2484
      %v5687 = vunpack.c.l.b16 %v2485
      %v5688 = vunpack.c.h.b16 %v2485
      %v5689 = vunpack.c.l.b16 %v2486
      %v5690 = vunpack.c.h.b16 %v2486
      %v5691 = vunpack.c.l.b16 %v2487
      %v5692 = vunpack.c.h.b16 %v2487
      %v5693 = vunpack.c.l.b16 %v2488
      %v5694 = vunpack.c.h.b16 %v2488
      %v5695 = vunpack.c.l.b16 %v2489
      %v5696 = vunpack.c.h.b16 %v2489
      %v5697 = vunpack.c.l.b16 %v2490
      %v5698 = vunpack.c.h.b16 %v2490
      %v5699 = vunpack.c.l.b16 %v2491
      %v5700 = vunpack.c.h.b16 %v2491
      %v5701 = vunpack.c.l.b16 %v2492
      %v5702 = vunpack.c.h.b16 %v2492
      %v5703 = vunpack.c.l.b16 %v2493
      %v5704 = vunpack.c.h.b16 %v2493
      %v5705 = vunpack.c.l.b16 %v2494
      %v5706 = vunpack.c.h.b16 %v2494
      %v5707 = vunpack.c.l.b16 %v2495
      %v5708 = vunpack.c.h.b16 %v2495
      %v5709 = vunpack.c.l.b16 %v2496
      %v5710 = vunpack.c.h.b16 %v2496
      %v5711 = vunpack.c.l.b16 %v2497
      %v5712 = vunpack.c.h.b16 %v2497
      %v5713 = vunpack.c.l.b16 %v2498
      %v5714 = vunpack.c.h.b16 %v2498
      %v5715 = vunpack.c.l.b16 %v2499
      %v5716 = vunpack.c.h.b16 %v2499
      %v5717 = vunpack.c.l.b16 %v2500
      %v5718 = vunpack.c.h.b16 %v2500
      %v5719 = vunpack.c.l.b16 %v2501
      %v5720 = vunpack.c.h.b16 %v2501
      %v5721 = vunpack.c.l.b16 %v2502
      %v5722 = vunpack.c.h.b16 %v2502
      %v5723 = vunpack.c.l.b16 %v2503
      %v5724 = vunpack.c.h.b16 %v2503
      %v5725 = vunpack.c.l.b16 %v2504
      %v5726 = vunpack.c.h.b16 %v2504
      %v5727 = vunpack.c.l.b16 %v2505
      %v5728 = vunpack.c.h.b16 %v2505
      %v5729 = vunpack.c.l.b16 %v2506
      %v5730 = vunpack.c.h.b16 %v2506
      %v5731 = vunpack.c.l.b16 %v2507
      %v5732 = vunpack.c.h.b16 %v2507
      %v5733 = vunpack.c.l.b16 %v2508
      %v5734 = vunpack.c.h.b16 %v2508
      %v5735 = vunpack.c.l.b16 %v2509
      %v5736 = vunpack.c.h.b16 %v2509
      %v5737 = vunpack.c.l.b16 %v2510
      %v5738 = vunpack.c.h.b16 %v2510
      %v5739 = vunpack.c.l.b16 %v2511
      %v5740 = vunpack.c.h.b16 %v2511
      %v5741 = vunpack.c.l.b16 %v2512
      %v5742 = vunpack.c.h.b16 %v2512
      %v5743 = vunpack.c.l.b16 %v2513
      %v5744 = vunpack.c.h.b16 %v2513
      %v5745 = vunpack.c.l.b16 %v2514
      %v5746 = vunpack.c.h.b16 %v2514
      %v5747 = vunpack.c.l.b16 %v2515
      %v5748 = vunpack.c.h.b16 %v2515
      %v5749 = vunpack.c.l.b16 %v2516
      %v5750 = vunpack.c.h.b16 %v2516
      %v5751 = vunpack.c.l.b16 %v2517
      %v5752 = vunpack.c.h.b16 %v2517
      %v5753 = vunpack.c.l.b16 %v2518
      %v5754 = vunpack.c.h.b16 %v2518
      %v5755 = vunpack.c.l.b16 %v2519
      %v5756 = vunpack.c.h.b16 %v2519
      %v5757 = vunpack.c.l.b16 %v2520
      %v5758 = vunpack.c.h.b16 %v2520
      %v5759 = vunpack.c.l.b16 %v2521
      %v5760 = vunpack.c.h.b16 %v2521
      %v5761 = vunpack.c.l.b16 %v2522
      %v5762 = vunpack.c.h.b16 %v2522
      %v5763 = vunpack.c.l.b16 %v2523
      %v5764 = vunpack.c.h.b16 %v2523
      %v5765 = vunpack.c.l.b16 %v2524
      %v5766 = vunpack.c.h.b16 %v2524
      %v5767 = vunpack.c.l.b16 %v2525
      %v5768 = vunpack.c.h.b16 %v2525
      %v5769 = vunpack.c.l.b16 %v2526
      %v5770 = vunpack.c.h.b16 %v2526
      %v5771 = vunpack.c.l.b16 %v2527
      %v5772 = vunpack.c.h.b16 %v2527
      %v5773 = vunpack.c.l.b16 %v2528
      %v5774 = vunpack.c.h.b16 %v2528
      %v5775 = vunpack.c.l.b16 %v2529
      %v5776 = vunpack.c.h.b16 %v2529
      %v5777 = vunpack.c.l.b16 %v2530
      %v5778 = vunpack.c.h.b16 %v2530
      %v5779 = vunpack.c.l.b16 %v2531
      %v5780 = vunpack.c.h.b16 %v2531
      %v5781 = vunpack.c.l.b16 %v2532
      %v5782 = vunpack.c.h.b16 %v2532
      %v5783 = vunpack.c.l.b16 %v2533
      %v5784 = vunpack.c.h.b16 %v2533
      %v5785 = vunpack.c.l.b16 %v2534
      %v5786 = vunpack.c.h.b16 %v2534
      %v5787 = vunpack.c.l.b16 %v2535
      %v5788 = vunpack.c.h.b16 %v2535
      %v5789 = vunpack.c.l.b16 %v2536
      %v5790 = vunpack.c.h.b16 %v2536
      %v5791 = vunpack.c.l.b16 %v2537
      %v5792 = vunpack.c.h.b16 %v2537
      %v5793 = vunpack.c.l.b16 %v2538
      %v5794 = vunpack.c.h.b16 %v2538
      %v5795 = vunpack.c.l.b16 %v2539
      %v5796 = vunpack.c.h.b16 %v2539
      %v5797 = vunpack.c.l.b16 %v2540
      %v5798 = vunpack.c.h.b16 %v2540
      %v5799 = vunpack.c.l.b16 %v2541
      %v5800 = vunpack.c.h.b16 %v2541
      %v5801 = vunpack.c.l.b16 %v2542
      %v5802 = vunpack.c.h.b16 %v2542
      %v5803 = vunpack.c.l.b16 %v2543
      %v5804 = vunpack.c.h.b16 %v2543
      %v5805 = vunpack.c.l.b16 %v2544
      %v5806 = vunpack.c.h.b16 %v2544
      %v5807 = vunpack.c.l.b16 %v2545
      %v5808 = vunpack.c.h.b16 %v2545
      %v5809 = vunpack.c.l.b16 %v2546
      %v5810 = vunpack.c.h.b16 %v2546
      %v5811 = vunpack.c.l.b16 %v2547
      %v5812 = vunpack.c.h.b16 %v2547
      %v5813 = vunpack.c.l.b16 %v2548
      %v5814 = vunpack.c.h.b16 %v2548
      %v5815 = vunpack.c.l.b16 %v2549
      %v5816 = vunpack.c.h.b16 %v2549
      %v5817 = vunpack.c.l.b16 %v2550
      %v5818 = vunpack.c.h.b16 %v2550
      %v5819 = vunpack.c.l.b16 %v2551
      %v5820 = vunpack.c.h.b16 %v2551
      %v5821 = vunpack.c.l.b16 %v2552
      %v5822 = vunpack.c.h.b16 %v2552
      %v5823 = vunpack.c.l.b16 %v2553
      %v5824 = vunpack.c.h.b16 %v2553
      %v5825 = vunpack.c.l.b16 %v2554
      %v5826 = vunpack.c.h.b16 %v2554
      %v5827 = vunpack.c.l.b16 %v2555
      %v5828 = vunpack.c.h.b16 %v2555
      %v5829 = vunpack.c.l.b16 %v2556
      %v5830 = vunpack.c.h.b16 %v2556
      %v5831 = vunpack.c.l.b16 %v2557
      %v5832 = vunpack.c.h.b16 %v2557
      %v5833 = vunpack.c.l.b16 %v2558
      %v5834 = vunpack.c.h.b16 %v2558
      %v5835 = vunpack.c.l.b16 %v2559
      %v5836 = vunpack.c.h.b16 %v2559
      %v5837 = vunpack.c.l.b16 %v2560
      %v5838 = vunpack.c.h.b16 %v2560
      %v5839 = vunpack.c.l.b16 %v2561
      %v5840 = vunpack.c.h.b16 %v2561
      %v5841 = vunpack.c.l.b16 %v2562
      %v5842 = vunpack.c.h.b16 %v2562
      %v5843 = vunpack.c.l.b16 %v2563
      %v5844 = vunpack.c.h.b16 %v2563
      %v5845 = vunpack.c.l.b16 %v2564
      %v5846 = vunpack.c.h.b16 %v2564
      %v5847 = vunpack.c.l.b16 %v2565
      %v5848 = vunpack.c.h.b16 %v2565
      %v5849 = vunpack.c.l.b16 %v2566
      %v5850 = vunpack.c.h.b16 %v2566
      %v5851 = vunpack.c.l.b16 %v2567
      %v5852 = vunpack.c.h.b16 %v2567
      %v5853 = vunpack.c.l.b16 %v2568
      %v5854 = vunpack.c.h.b16 %v2568
      %v5855 = vunpack.c.l.b16 %v2569
      %v5856 = vunpack.c.h.b16 %v2569
      %v5857 = vunpack.c.l.b16 %v2570
      %v5858 = vunpack.c.h.b16 %v2570
      %v5859 = vunpack.c.l.b16 %v2571
      %v5860 = vunpack.c.h.b16 %v2571
      %v5861 = vunpack.c.l.b16 %v2572
      %v5862 = vunpack.c.h.b16 %v2572
      %v5863 = vunpack.c.l.b16 %v2573
      %v5864 = vunpack.c.h.b16 %v2573
      %v5865 = vunpack.c.l.b16 %v2574
      %v5866 = vunpack.c.h.b16 %v2574
      %v5867 = vunpack.c.l.b16 %v2575
      %v5868 = vunpack.c.h.b16 %v2575
      %v5869 = vunpack.c.l.b16 %v2576
      %v5870 = vunpack.c.h.b16 %v2576
      %v5871 = vunpack.c.l.b16 %v2577
      %v5872 = vunpack.c.h.b16 %v2577
      %v5873 = vunpack.c.l.b16 %v2578
      %v5874 = vunpack.c.h.b16 %v2578
      %v5875 = vunpack.c.l.b16 %v2579
      %v5876 = vunpack.c.h.b16 %v2579
      %v5877 = vunpack.c.l.b16 %v2580
      %v5878 = vunpack.c.h.b16 %v2580
      %v5879 = vunpack.c.l.b16 %v2581
      %v5880 = vunpack.c.h.b16 %v2581
      %v5881 = vunpack.c.l.b16 %v2582
      %v5882 = vunpack.c.h.b16 %v2582
      %v5883 = vunpack.c.l.b16 %v2583
      %v5884 = vunpack.c.h.b16 %v2583
      %v5885 = vunpack.c.l.b16 %v2584
      %v5886 = vunpack.c.h.b16 %v2584
      %v5887 = vunpack.c.l.b16 %v2585
      %v5888 = vunpack.c.h.b16 %v2585
      %v5889 = vunpack.c.l.b16 %v2586
      %v5890 = vunpack.c.h.b16 %v2586
      %v5891 = vunpack.c.l.b16 %v2587
      %v5892 = vunpack.c.h.b16 %v2587
      %v5893 = vunpack.c.l.b16 %v2588
      %v5894 = vunpack.c.h.b16 %v2588
      %v5895 = vunpack.c.l.b16 %v2589
      %v5896 = vunpack.c.h.b16 %v2589
      %v5897 = vunpack.c.l.b16 %v2590
      %v5898 = vunpack.c.h.b16 %v2590
      %v5899 = vunpack.c.l.b16 %v2591
      %v5900 = vunpack.c.h.b16 %v2591
      %v5901 = vunpack.c.l.b16 %v2592
      %v5902 = vunpack.c.h.b16 %v2592
      %v5903 = vunpack.c.l.b16 %v2593
      %v5904 = vunpack.c.h.b16 %v2593
      %v5905 = vunpack.c.l.b16 %v2594
      %v5906 = vunpack.c.h.b16 %v2594
      %v5907 = vunpack.c.l.b16 %v2595
      %v5908 = vunpack.c.h.b16 %v2595
      %v5909 = vunpack.c.l.b16 %v2596
      %v5910 = vunpack.c.h.b16 %v2596
      %v5911 = vunpack.c.l.b16 %v2597
      %v5912 = vunpack.c.h.b16 %v2597
      %v5913 = vunpack.c.l.b16 %v2598
      %v5914 = vunpack.c.h.b16 %v2598
      %v5915 = vunpack.c.l.b16 %v2599
      %v5916 = vunpack.c.h.b16 %v2599
      %v5917 = vunpack.c.l.b16 %v2600
      %v5918 = vunpack.c.h.b16 %v2600
      %v5919 = vunpack.c.l.b16 %v2601
      %v5920 = vunpack.c.h.b16 %v2601
      %v5921 = vunpack.c.l.b16 %v2602
      %v5922 = vunpack.c.h.b16 %v2602
      %v5923 = vunpack.c.l.b16 %v2603
      %v5924 = vunpack.c.h.b16 %v2603
      %v5925 = vunpack.c.l.b16 %v2604
      %v5926 = vunpack.c.h.b16 %v2604
      %v5927 = vunpack.c.l.b16 %v2605
      %v5928 = vunpack.c.h.b16 %v2605
      %v5929 = vunpack.c.l.b16 %v2606
      %v5930 = vunpack.c.h.b16 %v2606
      %v5931 = vunpack.c.l.b16 %v2607
      %v5932 = vunpack.c.h.b16 %v2607
      %v5933 = vunpack.c.l.b16 %v2608
      %v5934 = vunpack.c.h.b16 %v2608
      %v5935 = vunpack.c.l.b16 %v2609
      %v5936 = vunpack.c.h.b16 %v2609
      %v5937 = vunpack.c.l.b16 %v2610
      %v5938 = vunpack.c.h.b16 %v2610
      %v5939 = vunpack.c.l.b16 %v2611
      %v5940 = vunpack.c.h.b16 %v2611
      %v5941 = vunpack.c.l.b16 %v2612
      %v5942 = vunpack.c.h.b16 %v2612
      %v5943 = vunpack.c.l.b16 %v2613
      %v5944 = vunpack.c.h.b16 %v2613
      %v5945 = vunpack.c.l.b16 %v2614
      %v5946 = vunpack.c.h.b16 %v2614
      %v5947 = vunpack.c.l.b16 %v2615
      %v5948 = vunpack.c.h.b16 %v2615
      %v5949 = vunpack.c.l.b16 %v2616
      %v5950 = vunpack.c.h.b16 %v2616
      %v5951 = vunpack.c.l.b16 %v2617
      %v5952 = vunpack.c.h.b16 %v2617
      %v5953 = vunpack.c.l.b16 %v2618
      %v5954 = vunpack.c.h.b16 %v2618
      %v5955 = vunpack.c.l.b16 %v2619
      %v5956 = vunpack.c.h.b16 %v2619
      %v5957 = vunpack.c.l.b16 %v2620
      %v5958 = vunpack.c.h.b16 %v2620
      %v5959 = vunpack.c.l.b16 %v2621
      %v5960 = vunpack.c.h.b16 %v2621
      %v5961 = vunpack.c.l.b16 %v2622
      %v5962 = vunpack.c.h.b16 %v2622
      %v5963 = vunpack.c.l.b16 %v2623
      %v5964 = vunpack.c.h.b16 %v2623
      %v5965 = vunpack.c.l.b16 %v2624
      %v5966 = vunpack.c.h.b16 %v2624
      %v5967 = vunpack.c.l.b16 %v2625
      %v5968 = vunpack.c.h.b16 %v2625
      %v5969 = vunpack.c.l.b16 %v2626
      %v5970 = vunpack.c.h.b16 %v2626
      %v5971 = vunpack.c.l.b16 %v2627
      %v5972 = vunpack.c.h.b16 %v2627
      %v5973 = vunpack.c.l.b16 %v2628
      %v5974 = vunpack.c.h.b16 %v2628
      %v5975 = vunpack.c.l.b16 %v2629
      %v5976 = vunpack.c.h.b16 %v2629
      %v5977 = vunpack.c.l.b16 %v2630
      %v5978 = vunpack.c.h.b16 %v2630
      %v5979 = vunpack.c.l.b16 %v2631
      %v5980 = vunpack.c.h.b16 %v2631
      %v5981 = vunpack.c.l.b16 %v2632
      %v5982 = vunpack.c.h.b16 %v2632
      %v5983 = vunpack.c.l.b16 %v2633
      %v5984 = vunpack.c.h.b16 %v2633
      %v5985 = vunpack.c.l.b16 %v2634
      %v5986 = vunpack.c.h.b16 %v2634
      %v5987 = vunpack.c.l.b16 %v2635
      %v5988 = vunpack.c.h.b16 %v2635
      %v5989 = vunpack.c.l.b16 %v2636
      %v5990 = vunpack.c.h.b16 %v2636
      %v5991 = vunpack.c.l.b16 %v2637
      %v5992 = vunpack.c.h.b16 %v2637
      %v5993 = vunpack.c.l.b16 %v2638
      %v5994 = vunpack.c.h.b16 %v2638
      %v5995 = vunpack.c.l.b16 %v2639
      %v5996 = vunpack.c.h.b16 %v2639
      %v5997 = vunpack.c.l.b16 %v2640
      %v5998 = vunpack.c.h.b16 %v2640
      %v5999 = vunpack.c.l.b16 %v2641
      %v6000 = vunpack.c.h.b16 %v2641
      %v6001 = vunpack.c.l.b16 %v2642
      %v6002 = vunpack.c.h.b16 %v2642
      %v6003 = vunpack.c.l.b16 %v2643
      %v6004 = vunpack.c.h.b16 %v2643
      %v6005 = vunpack.c.l.b16 %v2644
      %v6006 = vunpack.c.h.b16 %v2644
      %v6007 = vunpack.c.l.b16 %v2645
      %v6008 = vunpack.c.h.b16 %v2645
      %v6009 = vunpack.c.l.b16 %v2646
      %v6010 = vunpack.c.h.b16 %v2646
      %v6011 = vunpack.c.l.b16 %v2647
      %v6012 = vunpack.c.h.b16 %v2647
      %v6013 = vunpack.c.l.b16 %v2648
      %v6014 = vunpack.c.h.b16 %v2648
      %v6015 = vunpack.c.l.b16 %v2649
      %v6016 = vunpack.c.h.b16 %v2649
      %v6017 = vunpack.c.l.b16 %v2650
      %v6018 = vunpack.c.h.b16 %v2650
      %v6019 = vunpack.c.l.b16 %v2651
      %v6020 = vunpack.c.h.b16 %v2651
      %v6021 = vunpack.c.l.b16 %v2652
      %v6022 = vunpack.c.h.b16 %v2652
      %v6023 = vunpack.c.l.b16 %v2653
      %v6024 = vunpack.c.h.b16 %v2653
      %v6025 = vunpack.c.l.b16 %v2654
      %v6026 = vunpack.c.h.b16 %v2654
      %v6027 = vunpack.c.l.b16 %v2655
      %v6028 = vunpack.c.h.b16 %v2655
      %v6029 = vunpack.c.l.b16 %v2656
      %v6030 = vunpack.c.h.b16 %v2656
      %v6031 = vunpack.c.l.b16 %v2657
      %v6032 = vunpack.c.h.b16 %v2657
      %v6033 = vunpack.c.l.b16 %v2658
      %v6034 = vunpack.c.h.b16 %v2658
      %v6035 = vunpack.c.l.b16 %v2659
      %v6036 = vunpack.c.h.b16 %v2659
      %v6037 = vunpack.c.l.b16 %v2660
      %v6038 = vunpack.c.h.b16 %v2660
      %v6039 = vunpack.c.l.b16 %v2661
      %v6040 = vunpack.c.h.b16 %v2661
      %v6041 = vunpack.c.l.b16 %v2662
      %v6042 = vunpack.c.h.b16 %v2662
      %v6043 = vunpack.c.l.b16 %v2663
      %v6044 = vunpack.c.h.b16 %v2663
      %v6045 = vunpack.c.l.b16 %v2664
      %v6046 = vunpack.c.h.b16 %v2664
      %v6047 = vunpack.c.l.b16 %v2665
      %v6048 = vunpack.c.h.b16 %v2665
      %v6049 = vunpack.c.l.b16 %v2666
      %v6050 = vunpack.c.h.b16 %v2666
      %v6051 = vunpack.c.l.b16 %v2667
      %v6052 = vunpack.c.h.b16 %v2667
      %v6053 = vunpack.c.l.b16 %v2668
      %v6054 = vunpack.c.h.b16 %v2668
      %v6055 = vunpack.c.l.b16 %v2669
      %v6056 = vunpack.c.h.b16 %v2669
      %v6057 = vunpack.c.l.b16 %v2670
      %v6058 = vunpack.c.h.b16 %v2670
      %v6059 = vunpack.c.l.b16 %v2671
      %v6060 = vunpack.c.h.b16 %v2671
      %v6061 = vunpack.c.l.b16 %v2672
      %v6062 = vunpack.c.h.b16 %v2672
      %v6063 = vunpack.c.l.b16 %v2673
      %v6064 = vunpack.c.h.b16 %v2673
      %v6065 = vunpack.c.l.b16 %v2674
      %v6066 = vunpack.c.h.b16 %v2674
      %v6067 = vunpack.c.l.b16 %v2675
      %v6068 = vunpack.c.h.b16 %v2675
      %v6069 = vunpack.c.l.b16 %v2676
      %v6070 = vunpack.c.h.b16 %v2676
      %v6071 = vunpack.c.l.b16 %v2677
      %v6072 = vunpack.c.h.b16 %v2677
      %v6073 = vunpack.c.l.b16 %v2678
      %v6074 = vunpack.c.h.b16 %v2678
      %v6075 = vunpack.c.l.b16 %v2679
      %v6076 = vunpack.c.h.b16 %v2679
      %v6077 = vunpack.c.l.b16 %v2680
      %v6078 = vunpack.c.h.b16 %v2680
      %v6079 = vunpack.c.l.b16 %v2681
      %v6080 = vunpack.c.h.b16 %v2681
      %v6081 = vunpack.c.l.b16 %v2682
      %v6082 = vunpack.c.h.b16 %v2682
      %v6083 = vunpack.c.l.b16 %v2683
      %v6084 = vunpack.c.h.b16 %v2683
      %v6085 = vunpack.c.l.b16 %v2684
      %v6086 = vunpack.c.h.b16 %v2684
      %v6087 = vunpack.c.l.b16 %v2685
      %v6088 = vunpack.c.h.b16 %v2685
      %v6089 = vunpack.c.l.b16 %v2686
      %v6090 = vunpack.c.h.b16 %v2686
      %v6091 = vunpack.c.l.b16 %v2687
      %v6092 = vunpack.c.h.b16 %v2687
      %v6093 = vunpack.c.l.b16 %v2688
      %v6094 = vunpack.c.h.b16 %v2688
      %v6095 = vunpack.c.l.b16 %v2689
      %v6096 = vunpack.c.h.b16 %v2689
      %v6097 = vunpack.c.l.b16 %v2690
      %v6098 = vunpack.c.h.b16 %v2690
      %v6099 = vunpack.c.l.b16 %v2691
      %v6100 = vunpack.c.h.b16 %v2691
      %v6101 = vunpack.c.l.b16 %v2692
      %v6102 = vunpack.c.h.b16 %v2692
      %v6103 = vunpack.c.l.b16 %v2693
      %v6104 = vunpack.c.h.b16 %v2693
      %v6105 = vunpack.c.l.b16 %v2694
      %v6106 = vunpack.c.h.b16 %v2694
      %v6107 = vunpack.c.l.b16 %v2695
      %v6108 = vunpack.c.h.b16 %v2695
      %v6109 = vunpack.c.l.b16 %v2696
      %v6110 = vunpack.c.h.b16 %v2696
      %v6111 = vunpack.c.l.b16 %v2697
      %v6112 = vunpack.c.h.b16 %v2697
      %v6113 = vunpack.c.l.b16 %v2698
      %v6114 = vunpack.c.h.b16 %v2698
      %v6115 = vunpack.c.l.b16 %v2699
      %v6116 = vunpack.c.h.b16 %v2699
      %v6117 = vunpack.c.l.b16 %v2700
      %v6118 = vunpack.c.h.b16 %v2700
      %v6119 = vunpack.c.l.b16 %v2701
      %v6120 = vunpack.c.h.b16 %v2701
      %v6121 = vunpack.c.l.b16 %v2702
      %v6122 = vunpack.c.h.b16 %v2702
      %v6123 = vunpack.c.l.b16 %v2703
      %v6124 = vunpack.c.h.b16 %v2703
      %v6125 = vunpack.c.l.b16 %v2704
      %v6126 = vunpack.c.h.b16 %v2704
      %v6127 = vunpack.c.l.b16 %v2705
      %v6128 = vunpack.c.h.b16 %v2705
      %v6129 = vunpack.c.l.b16 %v2706
      %v6130 = vunpack.c.h.b16 %v2706
      %v6131 = vunpack.c.l.b16 %v2707
      %v6132 = vunpack.c.h.b16 %v2707
      %v6133 = vunpack.c.l.b16 %v2708
      %v6134 = vunpack.c.h.b16 %v2708
      %v6135 = vunpack.c.l.b16 %v2709
      %v6136 = vunpack.c.h.b16 %v2709
      %v6137 = vunpack.c.l.b16 %v2710
      %v6138 = vunpack.c.h.b16 %v2710
      %v6139 = vunpack.c.l.b16 %v2711
      %v6140 = vunpack.c.h.b16 %v2711
      %v6141 = vunpack.c.l.b16 %v2712
      %v6142 = vunpack.c.h.b16 %v2712
      %v6143 = vunpack.c.l.b16 %v2713
      %v6144 = vunpack.c.h.b16 %v2713
      %v6145 = vunpack.c.l.b16 %v2714
      %v6146 = vunpack.c.h.b16 %v2714
      %v6147 = vunpack.c.l.b16 %v2715
      %v6148 = vunpack.c.h.b16 %v2715
      %v6149 = vunpack.c.l.b16 %v2716
      %v6150 = vunpack.c.h.b16 %v2716
      %v6151 = vunpack.c.l.b16 %v2717
      %v6152 = vunpack.c.h.b16 %v2717
      %v6153 = vunpack.c.l.b16 %v2718
      %v6154 = vunpack.c.h.b16 %v2718
      %v6155 = vunpack.c.l.b16 %v2719
      %v6156 = vunpack.c.h.b16 %v2719
      %v6157 = vunpack.c.l.b16 %v2720
      %v6158 = vunpack.c.h.b16 %v2720
      %v6159 = vunpack.c.l.b16 %v2721
      %v6160 = vunpack.c.h.b16 %v2721
      %v6161 = vunpack.c.l.b16 %v2722
      %v6162 = vunpack.c.h.b16 %v2722
      %v6163 = vunpack.c.l.b16 %v2723
      %v6164 = vunpack.c.h.b16 %v2723
      %v6165 = vunpack.c.l.b16 %v2724
      %v6166 = vunpack.c.h.b16 %v2724
      %v6167 = vunpack.c.l.b16 %v2725
      %v6168 = vunpack.c.h.b16 %v2725
      %v6169 = vunpack.c.l.b16 %v2726
      %v6170 = vunpack.c.h.b16 %v2726
      %v6171 = vunpack.c.l.b16 %v2727
      %v6172 = vunpack.c.h.b16 %v2727
      %v6173 = vunpack.c.l.b16 %v2728
      %v6174 = vunpack.c.h.b16 %v2728
      %v6175 = vunpack.c.l.b16 %v2729
      %v6176 = vunpack.c.h.b16 %v2729
      %v6177 = vunpack.c.l.b16 %v2730
      %v6178 = vunpack.c.h.b16 %v2730
      %v6179 = vunpack.c.l.b16 %v2731
      %v6180 = vunpack.c.h.b16 %v2731
      %v6181 = vunpack.c.l.b16 %v2732
      %v6182 = vunpack.c.h.b16 %v2732
      %v6183 = vunpack.c.l.b16 %v2733
      %v6184 = vunpack.c.h.b16 %v2733
      %v6185 = vunpack.c.l.b16 %v2734
      %v6186 = vunpack.c.h.b16 %v2734
      %v6187 = vunpack.c.l.b16 %v2735
      %v6188 = vunpack.c.h.b16 %v2735
      %v6189 = vunpack.c.l.b16 %v2736
      %v6190 = vunpack.c.h.b16 %v2736
      %v6191 = vunpack.c.l.b16 %v2737
      %v6192 = vunpack.c.h.b16 %v2737
      %v6193 = vunpack.c.l.b16 %v2738
      %v6194 = vunpack.c.h.b16 %v2738
      %v6195 = vpack.c.b16 %v3903, %v3891
      %v6196 = vpack.c.b16 %v3904, %v3892
      %v6197 = vpack.c.b16 %v3905, %v3893
      %v6198 = vpack.c.b16 %v3906, %v3894
      %v6199 = vpack.c.b16 %v3907, %v3895
      %v6200 = vpack.c.b16 %v3908, %v3896
      %v6201 = vpack.c.b16 %v3909, %v3897
      %v6202 = vpack.c.b16 %v3910, %v3898
      %v6203 = vpack.c.b16 %v3911, %v3899
      %v6204 = vpack.c.b16 %v3912, %v3900
      %v6205 = vpack.c.b16 %v3913, %v3901
      %v6206 = vpack.c.b16 %v3914, %v3902
      %v6207 = vpack.c.b16 %v3927, %v3915
      %v6208 = vpack.c.b16 %v3928, %v3916
      %v6209 = vpack.c.b16 %v3929, %v3917
      %v6210 = vpack.c.b16 %v3930, %v3918
      %v6211 = vpack.c.b16 %v3931, %v3919
      %v6212 = vpack.c.b16 %v3932, %v3920
      %v6213 = vpack.c.b16 %v3933, %v3921
      %v6214 = vpack.c.b16 %v3934, %v3922
      %v6215 = vpack.c.b16 %v3935, %v3923
      %v6216 = vpack.c.b16 %v3936, %v3924
      %v6217 = vpack.c.b16 %v3937, %v3925
      %v6218 = vpack.c.b16 %v3938, %v3926
      %v6219 = vpack.c.b16 %v3951, %v3939
      %v6220 = vpack.c.b16 %v3952, %v3940
      %v6221 = vpack.c.b16 %v3953, %v3941
      %v6222 = vpack.c.b16 %v3954, %v3942
      %v6223 = vpack.c.b16 %v3955, %v3943
      %v6224 = vpack.c.b16 %v3956, %v3944
      %v6225 = vpack.c.b16 %v3957, %v3945
      %v6226 = vpack.c.b16 %v3958, %v3946
      %v6227 = vpack.c.b16 %v3959, %v3947
      %v6228 = vpack.c.b16 %v3960, %v3948
      %v6229 = vpack.c.b16 %v3961, %v3949
      %v6230 = vpack.c.b16 %v3962, %v3950
      %v6231 = vpack.c.b16 %v3975, %v3963
      %v6232 = vpack.c.b16 %v3976, %v3964
      %v6233 = vpack.c.b16 %v3977, %v3965
      %v6234 = vpack.c.b16 %v3978, %v3966
      %v6235 = vpack.c.b16 %v3979, %v3967
      %v6236 = vpack.c.b16 %v3980, %v3968
      %v6237 = vpack.c.b16 %v3981, %v3969
      %v6238 = vpack.c.b16 %v3982, %v3970
      %v6239 = vpack.c.b16 %v3983, %v3971
      %v6240 = vpack.c.b16 %v3984, %v3972
      %v6241 = vpack.c.b16 %v3985, %v3973
      %v6242 = vpack.c.b16 %v3986, %v3974
      %v6243 = vpack.c.b16 %v3999, %v3987
      %v6244 = vpack.c.b16 %v4000, %v3988
      %v6245 = vpack.c.b16 %v4001, %v3989
      %v6246 = vpack.c.b16 %v4002, %v3990
      %v6247 = vpack.c.b16 %v4003, %v3991
      %v6248 = vpack.c.b16 %v4004, %v3992
      %v6249 = vpack.c.b16 %v4005, %v3993
      %v6250 = vpack.c.b16 %v4006, %v3994
      %v6251 = vpack.c.b16 %v4007, %v3995
      %v6252 = vpack.c.b16 %v4008, %v3996
      %v6253 = vpack.c.b16 %v4009, %v3997
      %v6254 = vpack.c.b16 %v4010, %v3998
      %v6255 = vpack.c.b16 %v4023, %v4011
      %v6256 = vpack.c.b16 %v4024, %v4012
      %v6257 = vpack.c.b16 %v4025, %v4013
      %v6258 = vpack.c.b16 %v4026, %v4014
      %v6259 = vpack.c.b16 %v4027, %v4015
      %v6260 = vpack.c.b16 %v4028, %v4016
      %v6261 = vpack.c.b16 %v4029, %v4017
      %v6262 = vpack.c.b16 %v4030, %v4018
      %v6263 = vpack.c.b16 %v4031, %v4019
      %v6264 = vpack.c.b16 %v4032, %v4020
      %v6265 = vpack.c.b16 %v4033, %v4021
      %v6266 = vpack.c.b16 %v4034, %v4022
      %v6267 = vpack.c.b16 %v4047, %v4035
      %v6268 = vpack.c.b16 %v4048, %v4036
      %v6269 = vpack.c.b16 %v4049, %v4037
      %v6270 = vpack.c.b16 %v4050, %v4038
      %v6271 = vpack.c.b16 %v4051, %v4039
      %v6272 = vpack.c.b16 %v4052, %v4040
      %v6273 = vpack.c.b16 %v4053, %v4041
      %v6274 = vpack.c.b16 %v4054, %v4042
      %v6275 = vpack.c.b16 %v4055, %v4043
      %v6276 = vpack.c.b16 %v4056, %v4044
      %v6277 = vpack.c.b16 %v4057, %v4045
      %v6278 = vpack.c.b16 %v4058, %v4046
      %v6279 = vpack.c.b16 %v4071, %v4059
      %v6280 = vpack.c.b16 %v4072, %v4060
      %v6281 = vpack.c.b16 %v4073, %v4061
      %v6282 = vpack.c.b16 %v4074, %v4062
      %v6283 = vpack.c.b16 %v4075, %v4063
      %v6284 = vpack.c.b16 %v4076, %v4064
      %v6285 = vpack.c.b16 %v4077, %v4065
      %v6286 = vpack.c.b16 %v4078, %v4066
      %v6287 = vpack.c.b16 %v4079, %v4067
      %v6288 = vpack.c.b16 %v4080, %v4068
      %v6289 = vpack.c.b16 %v4081, %v4069
      %v6290 = vpack.c.b16 %v4082, %v4070
      %v6291 = vpack.c.b16 %v4095, %v4083
      %v6292 = vpack.c.b16 %v4096, %v4084
      %v6293 = vpack.c.b16 %v4097, %v4085
      %v6294 = vpack.c.b16 %v4098, %v4086
      %v6295 = vpack.c.b16 %v4099, %v4087
      %v6296 = vpack.c.b16 %v4100, %v4088
      %v6297 = vpack.c.b16 %v4101, %v4089
      %v6298 = vpack.c.b16 %v4102, %v4090
      %v6299 = vpack.c.b16 %v4103, %v4091
      %v6300 = vpack.c.b16 %v4104, %v4092
      %v6301 = vpack.c.b16 %v4105, %v4093
      %v6302 = vpack.c.b16 %v4106, %v4094
      %v6303 = vpack.c.b16 %v4119, %v4107
      %v6304 = vpack.c.b16 %v4120, %v4108
      %v6305 = vpack.c.b16 %v4121, %v4109
      %v6306 = vpack.c.b16 %v4122, %v4110
      %v6307 = vpack.c.b16 %v4123, %v4111
      %v6308 = vpack.c.b16 %v4124, %v4112
      %v6309 = vpack.c.b16 %v4125, %v4113
      %v6310 = vpack.c.b16 %v4126, %v4114
      %v6311 = vpack.c.b16 %v4127, %v4115
      %v6312 = vpack.c.b16 %v4128, %v4116
      %v6313 = vpack.c.b16 %v4129, %v4117
      %v6314 = vpack.c.b16 %v4130, %v4118
      %v6315 = vpack.c.b16 %v4143, %v4131
      %v6316 = vpack.c.b16 %v4144, %v4132
      %v6317 = vpack.c.b16 %v4145, %v4133
      %v6318 = vpack.c.b16 %v4146, %v4134
      %v6319 = vpack.c.b16 %v4147, %v4135
      %v6320 = vpack.c.b16 %v4148, %v4136
      %v6321 = vpack.c.b16 %v4149, %v4137
      %v6322 = vpack.c.b16 %v4150, %v4138
      %v6323 = vpack.c.b16 %v4151, %v4139
      %v6324 = vpack.c.b16 %v4152, %v4140
      %v6325 = vpack.c.b16 %v4153, %v4141
      %v6326 = vpack.c.b16 %v4154, %v4142
      %v6327 = vpack.c.b16 %v4167, %v4155
      %v6328 = vpack.c.b16 %v4168, %v4156
      %v6329 = vpack.c.b16 %v4169, %v4157
      %v6330 = vpack.c.b16 %v4170, %v4158
      %v6331 = vpack.c.b16 %v4171, %v4159
      %v6332 = vpack.c.b16 %v4172, %v4160
      %v6333 = vpack.c.b16 %v4173, %v4161
      %v6334 = vpack.c.b16 %v4174, %v4162
      %v6335 = vpack.c.b16 %v4175, %v4163
      %v6336 = vpack.c.b16 %v4176, %v4164
      %v6337 = vpack.c.b16 %v4177, %v4165
      %v6338 = vpack.c.b16 %v4178, %v4166
      %v6339 = vpack.c.b16 %v4191, %v4179
      %v6340 = vpack.c.b16 %v4192, %v4180
      %v6341 = vpack.c.b16 %v4193, %v4181
      %v6342 = vpack.c.b16 %v4194, %v4182
      %v6343 = vpack.c.b16 %v4195, %v4183
      %v6344 = vpack.c.b16 %v4196, %v4184
      %v6345 = vpack.c.b16 %v4197, %v4185
      %v6346 = vpack.c.b16 %v4198, %v4186
      %v6347 = vpack.c.b16 %v4199, %v4187
      %v6348 = vpack.c.b16 %v4200, %v4188
      %v6349 = vpack.c.b16 %v4201, %v4189
      %v6350 = vpack.c.b16 %v4202, %v4190
      %v6351 = vpack.c.b16 %v4215, %v4203
      %v6352 = vpack.c.b16 %v4216, %v4204
      %v6353 = vpack.c.b16 %v4217, %v4205
      %v6354 = vpack.c.b16 %v4218, %v4206
      %v6355 = vpack.c.b16 %v4219, %v4207
      %v6356 = vpack.c.b16 %v4220, %v4208
      %v6357 = vpack.c.b16 %v4221, %v4209
      %v6358 = vpack.c.b16 %v4222, %v4210
      %v6359 = vpack.c.b16 %v4223, %v4211
      %v6360 = vpack.c.b16 %v4224, %v4212
      %v6361 = vpack.c.b16 %v4225, %v4213
      %v6362 = vpack.c.b16 %v4226, %v4214
      %v6363 = vpack.c.b16 %v4239, %v4227
      %v6364 = vpack.c.b16 %v4240, %v4228
      %v6365 = vpack.c.b16 %v4241, %v4229
      %v6366 = vpack.c.b16 %v4242, %v4230
      %v6367 = vpack.c.b16 %v4243, %v4231
      %v6368 = vpack.c.b16 %v4244, %v4232
      %v6369 = vpack.c.b16 %v4245, %v4233
      %v6370 = vpack.c.b16 %v4246, %v4234
      %v6371 = vpack.c.b16 %v4247, %v4235
      %v6372 = vpack.c.b16 %v4248, %v4236
      %v6373 = vpack.c.b16 %v4249, %v4237
      %v6374 = vpack.c.b16 %v4250, %v4238
      %v6375 = vpack.c.b16 %v4263, %v4251
      %v6376 = vpack.c.b16 %v4264, %v4252
      %v6377 = vpack.c.b16 %v4265, %v4253
      %v6378 = vpack.c.b16 %v4266, %v4254
      %v6379 = vpack.c.b16 %v4267, %v4255
      %v6380 = vpack.c.b16 %v4268, %v4256
      %v6381 = vpack.c.b16 %v4269, %v4257
      %v6382 = vpack.c.b16 %v4270, %v4258
      %v6383 = vpack.c.b16 %v4271, %v4259
      %v6384 = vpack.c.b16 %v4272, %v4260
      %v6385 = vpack.c.b16 %v4273, %v4261
      %v6386 = vpack.c.b16 %v4274, %v4262
      %v6387 = vpack.c.b16 %v4287, %v4275
      %v6388 = vpack.c.b16 %v4288, %v4276
      %v6389 = vpack.c.b16 %v4289, %v4277
      %v6390 = vpack.c.b16 %v4290, %v4278
      %v6391 = vpack.c.b16 %v4291, %v4279
      %v6392 = vpack.c.b16 %v4292, %v4280
      %v6393 = vpack.c.b16 %v4293, %v4281
      %v6394 = vpack.c.b16 %v4294, %v4282
      %v6395 = vpack.c.b16 %v4295, %v4283
      %v6396 = vpack.c.b16 %v4296, %v4284
      %v6397 = vpack.c.b16 %v4297, %v4285
      %v6398 = vpack.c.b16 %v4298, %v4286
      %v6399 = vpack.c.b16 %v4311, %v4299
      %v6400 = vpack.c.b16 %v4312, %v4300
      %v6401 = vpack.c.b16 %v4313, %v4301
      %v6402 = vpack.c.b16 %v4314, %v4302
      %v6403 = vpack.c.b16 %v4315, %v4303
      %v6404 = vpack.c.b16 %v4316, %v4304
      %v6405 = vpack.c.b16 %v4317, %v4305
      %v6406 = vpack.c.b16 %v4318, %v4306
      %v6407 = vpack.c.b16 %v4319, %v4307
      %v6408 = vpack.c.b16 %v4320, %v4308
      %v6409 = vpack.c.b16 %v4321, %v4309
      %v6410 = vpack.c.b16 %v4322, %v4310
      %v6411 = vpack.c.b16 %v4335, %v4323
      %v6412 = vpack.c.b16 %v4336, %v4324
      %v6413 = vpack.c.b16 %v4337, %v4325
      %v6414 = vpack.c.b16 %v4338, %v4326
      %v6415 = vpack.c.b16 %v4339, %v4327
      %v6416 = vpack.c.b16 %v4340, %v4328
      %v6417 = vpack.c.b16 %v4341, %v4329
      %v6418 = vpack.c.b16 %v4342, %v4330
      %v6419 = vpack.c.b16 %v4343, %v4331
      %v6420 = vpack.c.b16 %v4344, %v4332
      %v6421 = vpack.c.b16 %v4345, %v4333
      %v6422 = vpack.c.b16 %v4346, %v4334
      %v6423 = vpack.c.b16 %v4359, %v4347
      %v6424 = vpack.c.b16 %v4360, %v4348
      %v6425 = vpack.c.b16 %v4361, %v4349
      %v6426 = vpack.c.b16 %v4362, %v4350
      %v6427 = vpack.c.b16 %v4363, %v4351
      %v6428 = vpack.c.b16 %v4364, %v4352
      %v6429 = vpack.c.b16 %v4365, %v4353
      %v6430 = vpack.c.b16 %v4366, %v4354
      %v6431 = vpack.c.b16 %v4367, %v4355
      %v6432 = vpack.c.b16 %v4368, %v4356
      %v6433 = vpack.c.b16 %v4369, %v4357
      %v6434 = vpack.c.b16 %v4370, %v4358
      %v6435 = vpack.c.b16 %v4383, %v4371
      %v6436 = vpack.c.b16 %v4384, %v4372
      %v6437 = vpack.c.b16 %v4385, %v4373
      %v6438 = vpack.c.b16 %v4386, %v4374
      %v6439 = vpack.c.b16 %v4387, %v4375
      %v6440 = vpack.c.b16 %v4388, %v4376
      %v6441 = vpack.c.b16 %v4389, %v4377
      %v6442 = vpack.c.b16 %v4390, %v4378
      %v6443 = vpack.c.b16 %v4391, %v4379
      %v6444 = vpack.c.b16 %v4392, %v4380
      %v6445 = vpack.c.b16 %v4393, %v4381
      %v6446 = vpack.c.b16 %v4394, %v4382
      %v6447 = vpack.c.b16 %v4407, %v4395
      %v6448 = vpack.c.b16 %v4408, %v4396
      %v6449 = vpack.c.b16 %v4409, %v4397
      %v6450 = vpack.c.b16 %v4410, %v4398
      %v6451 = vpack.c.b16 %v4411, %v4399
      %v6452 = vpack.c.b16 %v4412, %v4400
      %v6453 = vpack.c.b16 %v4413, %v4401
      %v6454 = vpack.c.b16 %v4414, %v4402
      %v6455 = vpack.c.b16 %v4415, %v4403
      %v6456 = vpack.c.b16 %v4416, %v4404
      %v6457 = vpack.c.b16 %v4417, %v4405
      %v6458 = vpack.c.b16 %v4418, %v4406
      %v6459 = vpack.c.b16 %v4431, %v4419
      %v6460 = vpack.c.b16 %v4432, %v4420
      %v6461 = vpack.c.b16 %v4433, %v4421
      %v6462 = vpack.c.b16 %v4434, %v4422
      %v6463 = vpack.c.b16 %v4435, %v4423
      %v6464 = vpack.c.b16 %v4436, %v4424
      %v6465 = vpack.c.b16 %v4437, %v4425
      %v6466 = vpack.c.b16 %v4438, %v4426
      %v6467 = vpack.c.b16 %v4439, %v4427
      %v6468 = vpack.c.b16 %v4440, %v4428
      %v6469 = vpack.c.b16 %v4441, %v4429
      %v6470 = vpack.c.b16 %v4442, %v4430
      %v6471 = vpack.c.b16 %v4455, %v4443
      %v6472 = vpack.c.b16 %v4456, %v4444
      %v6473 = vpack.c.b16 %v4457, %v4445
      %v6474 = vpack.c.b16 %v4458, %v4446
      %v6475 = vpack.c.b16 %v4459, %v4447
      %v6476 = vpack.c.b16 %v4460, %v4448
      %v6477 = vpack.c.b16 %v4461, %v4449
      %v6478 = vpack.c.b16 %v4462, %v4450
      %v6479 = vpack.c.b16 %v4463, %v4451
      %v6480 = vpack.c.b16 %v4464, %v4452
      %v6481 = vpack.c.b16 %v4465, %v4453
      %v6482 = vpack.c.b16 %v4466, %v4454
      %v6483 = vpack.c.b16 %v4479, %v4467
      %v6484 = vpack.c.b16 %v4480, %v4468
      %v6485 = vpack.c.b16 %v4481, %v4469
      %v6486 = vpack.c.b16 %v4482, %v4470
      %v6487 = vpack.c.b16 %v4483, %v4471
      %v6488 = vpack.c.b16 %v4484, %v4472
      %v6489 = vpack.c.b16 %v4485, %v4473
      %v6490 = vpack.c.b16 %v4486, %v4474
      %v6491 = vpack.c.b16 %v4487, %v4475
      %v6492 = vpack.c.b16 %v4488, %v4476
      %v6493 = vpack.c.b16 %v4489, %v4477
      %v6494 = vpack.c.b16 %v4490, %v4478
      %v6495 = vpack.c.b16 %v4503, %v4491
      %v6496 = vpack.c.b16 %v4504, %v4492
      %v6497 = vpack.c.b16 %v4505, %v4493
      %v6498 = vpack.c.b16 %v4506, %v4494
      %v6499 = vpack.c.b16 %v4507, %v4495
      %v6500 = vpack.c.b16 %v4508, %v4496
      %v6501 = vpack.c.b16 %v4509, %v4497
      %v6502 = vpack.c.b16 %v4510, %v4498
      %v6503 = vpack.c.b16 %v4511, %v4499
      %v6504 = vpack.c.b16 %v4512, %v4500
      %v6505 = vpack.c.b16 %v4513, %v4501
      %v6506 = vpack.c.b16 %v4514, %v4502
      %v6507 = vpack.c.b16 %v4527, %v4515
      %v6508 = vpack.c.b16 %v4528, %v4516
      %v6509 = vpack.c.b16 %v4529, %v4517
      %v6510 = vpack.c.b16 %v4530, %v4518
      %v6511 = vpack.c.b16 %v4531, %v4519
      %v6512 = vpack.c.b16 %v4532, %v4520
      %v6513 = vpack.c.b16 %v4533, %v4521
      %v6514 = vpack.c.b16 %v4534, %v4522
      %v6515 = vpack.c.b16 %v4535, %v4523
      %v6516 = vpack.c.b16 %v4536, %v4524
      %v6517 = vpack.c.b16 %v4537, %v4525
      %v6518 = vpack.c.b16 %v4538, %v4526
      %v6519 = vpack.c.b16 %v4551, %v4539
      %v6520 = vpack.c.b16 %v4552, %v4540
      %v6521 = vpack.c.b16 %v4553, %v4541
      %v6522 = vpack.c.b16 %v4554, %v4542
      %v6523 = vpack.c.b16 %v4555, %v4543
      %v6524 = vpack.c.b16 %v4556, %v4544
      %v6525 = vpack.c.b16 %v4557, %v4545
      %v6526 = vpack.c.b16 %v4558, %v4546
      %v6527 = vpack.c.b16 %v4559, %v4547
      %v6528 = vpack.c.b16 %v4560, %v4548
      %v6529 = vpack.c.b16 %v4561, %v4549
      %v6530 = vpack.c.b16 %v4562, %v4550
      %v6531 = vpack.c.b16 %v4575, %v4563
      %v6532 = vpack.c.b16 %v4576, %v4564
      %v6533 = vpack.c.b16 %v4577, %v4565
      %v6534 = vpack.c.b16 %v4578, %v4566
      %v6535 = vpack.c.b16 %v4579, %v4567
      %v6536 = vpack.c.b16 %v4580, %v4568
      %v6537 = vpack.c.b16 %v4581, %v4569
      %v6538 = vpack.c.b16 %v4582, %v4570
      %v6539 = vpack.c.b16 %v4583, %v4571
      %v6540 = vpack.c.b16 %v4584, %v4572
      %v6541 = vpack.c.b16 %v4585, %v4573
      %v6542 = vpack.c.b16 %v4586, %v4574
      %v6543 = vpack.c.b16 %v4599, %v4587
      %v6544 = vpack.c.b16 %v4600, %v4588
      %v6545 = vpack.c.b16 %v4601, %v4589
      %v6546 = vpack.c.b16 %v4602, %v4590
      %v6547 = vpack.c.b16 %v4603, %v4591
      %v6548 = vpack.c.b16 %v4604, %v4592
      %v6549 = vpack.c.b16 %v4605, %v4593
      %v6550 = vpack.c.b16 %v4606, %v4594
      %v6551 = vpack.c.b16 %v4607, %v4595
      %v6552 = vpack.c.b16 %v4608, %v4596
      %v6553 = vpack.c.b16 %v4609, %v4597
      %v6554 = vpack.c.b16 %v4610, %v4598
      %v6555 = vpack.c.b16 %v4623, %v4611
      %v6556 = vpack.c.b16 %v4624, %v4612
      %v6557 = vpack.c.b16 %v4625, %v4613
      %v6558 = vpack.c.b16 %v4626, %v4614
      %v6559 = vpack.c.b16 %v4627, %v4615
      %v6560 = vpack.c.b16 %v4628, %v4616
      %v6561 = vpack.c.b16 %v4629, %v4617
      %v6562 = vpack.c.b16 %v4630, %v4618
      %v6563 = vpack.c.b16 %v4631, %v4619
      %v6564 = vpack.c.b16 %v4632, %v4620
      %v6565 = vpack.c.b16 %v4633, %v4621
      %v6566 = vpack.c.b16 %v4634, %v4622
      %v6567 = vpack.c.b16 %v4647, %v4635
      %v6568 = vpack.c.b16 %v4648, %v4636
      %v6569 = vpack.c.b16 %v4649, %v4637
      %v6570 = vpack.c.b16 %v4650, %v4638
      %v6571 = vpack.c.b16 %v4651, %v4639
      %v6572 = vpack.c.b16 %v4652, %v4640
      %v6573 = vpack.c.b16 %v4653, %v4641
      %v6574 = vpack.c.b16 %v4654, %v4642
      %v6575 = vpack.c.b16 %v4655, %v4643
      %v6576 = vpack.c.b16 %v4656, %v4644
      %v6577 = vpack.c.b16 %v4657, %v4645
      %v6578 = vpack.c.b16 %v4658, %v4646
      %v6579 = vpack.c.b16 %v4671, %v4659
      %v6580 = vpack.c.b16 %v4672, %v4660
      %v6581 = vpack.c.b16 %v4673, %v4661
      %v6582 = vpack.c.b16 %v4674, %v4662
      %v6583 = vpack.c.b16 %v4675, %v4663
      %v6584 = vpack.c.b16 %v4676, %v4664
      %v6585 = vpack.c.b16 %v4677, %v4665
      %v6586 = vpack.c.b16 %v4678, %v4666
      %v6587 = vpack.c.b16 %v4679, %v4667
      %v6588 = vpack.c.b16 %v4680, %v4668
      %v6589 = vpack.c.b16 %v4681, %v4669
      %v6590 = vpack.c.b16 %v4682, %v4670
      %v6591 = vpack.c.b16 %v4695, %v4683
      %v6592 = vpack.c.b16 %v4696, %v4684
      %v6593 = vpack.c.b16 %v4697, %v4685
      %v6594 = vpack.c.b16 %v4698, %v4686
      %v6595 = vpack.c.b16 %v4699, %v4687
      %v6596 = vpack.c.b16 %v4700, %v4688
      %v6597 = vpack.c.b16 %v4701, %v4689
      %v6598 = vpack.c.b16 %v4702, %v4690
      %v6599 = vpack.c.b16 %v4703, %v4691
      %v6600 = vpack.c.b16 %v4704, %v4692
      %v6601 = vpack.c.b16 %v4705, %v4693
      %v6602 = vpack.c.b16 %v4706, %v4694
      %v6603 = vpack.c.b16 %v4719, %v4707
      %v6604 = vpack.c.b16 %v4720, %v4708
      %v6605 = vpack.c.b16 %v4721, %v4709
      %v6606 = vpack.c.b16 %v4722, %v4710
      %v6607 = vpack.c.b16 %v4723, %v4711
      %v6608 = vpack.c.b16 %v4724, %v4712
      %v6609 = vpack.c.b16 %v4725, %v4713
      %v6610 = vpack.c.b16 %v4726, %v4714
      %v6611 = vpack.c.b16 %v4727, %v4715
      %v6612 = vpack.c.b16 %v4728, %v4716
      %v6613 = vpack.c.b16 %v4729, %v4717
      %v6614 = vpack.c.b16 %v4730, %v4718
      %v6615 = vpack.c.b16 %v4743, %v4731
      %v6616 = vpack.c.b16 %v4744, %v4732
      %v6617 = vpack.c.b16 %v4745, %v4733
      %v6618 = vpack.c.b16 %v4746, %v4734
      %v6619 = vpack.c.b16 %v4747, %v4735
      %v6620 = vpack.c.b16 %v4748, %v4736
      %v6621 = vpack.c.b16 %v4749, %v4737
      %v6622 = vpack.c.b16 %v4750, %v4738
      %v6623 = vpack.c.b16 %v4751, %v4739
      %v6624 = vpack.c.b16 %v4752, %v4740
      %v6625 = vpack.c.b16 %v4753, %v4741
      %v6626 = vpack.c.b16 %v4754, %v4742
      %v6627 = vpack.c.b16 %v4767, %v4755
      %v6628 = vpack.c.b16 %v4768, %v4756
      %v6629 = vpack.c.b16 %v4769, %v4757
      %v6630 = vpack.c.b16 %v4770, %v4758
      %v6631 = vpack.c.b16 %v4771, %v4759
      %v6632 = vpack.c.b16 %v4772, %v4760
      %v6633 = vpack.c.b16 %v4773, %v4761
      %v6634 = vpack.c.b16 %v4774, %v4762
      %v6635 = vpack.c.b16 %v4775, %v4763
      %v6636 = vpack.c.b16 %v4776, %v4764
      %v6637 = vpack.c.b16 %v4777, %v4765
      %v6638 = vpack.c.b16 %v4778, %v4766
      %v6639 = vpack.c.b16 %v4791, %v4779
      %v6640 = vpack.c.b16 %v4792, %v4780
      %v6641 = vpack.c.b16 %v4793, %v4781
      %v6642 = vpack.c.b16 %v4794, %v4782
      %v6643 = vpack.c.b16 %v4795, %v4783
      %v6644 = vpack.c.b16 %v4796, %v4784
      %v6645 = vpack.c.b16 %v4797, %v4785
      %v6646 = vpack.c.b16 %v4798, %v4786
      %v6647 = vpack.c.b16 %v4799, %v4787
      %v6648 = vpack.c.b16 %v4800, %v4788
      %v6649 = vpack.c.b16 %v4801, %v4789
      %v6650 = vpack.c.b16 %v4802, %v4790
      %v6651 = vpack.c.b16 %v4815, %v4803
      %v6652 = vpack.c.b16 %v4816, %v4804
      %v6653 = vpack.c.b16 %v4817, %v4805
      %v6654 = vpack.c.b16 %v4818, %v4806
      %v6655 = vpack.c.b16 %v4819, %v4807
      %v6656 = vpack.c.b16 %v4820, %v4808
      %v6657 = vpack.c.b16 %v4821, %v4809
      %v6658 = vpack.c.b16 %v4822, %v4810
      %v6659 = vpack.c.b16 %v4823, %v4811
      %v6660 = vpack.c.b16 %v4824, %v4812
      %v6661 = vpack.c.b16 %v4825, %v4813
      %v6662 = vpack.c.b16 %v4826, %v4814
      %v6663 = vpack.c.b16 %v4839, %v4827
      %v6664 = vpack.c.b16 %v4840, %v4828
      %v6665 = vpack.c.b16 %v4841, %v4829
      %v6666 = vpack.c.b16 %v4842, %v4830
      %v6667 = vpack.c.b16 %v4843, %v4831
      %v6668 = vpack.c.b16 %v4844, %v4832
      %v6669 = vpack.c.b16 %v4845, %v4833
      %v6670 = vpack.c.b16 %v4846, %v4834
      %v6671 = vpack.c.b16 %v4847, %v4835
      %v6672 = vpack.c.b16 %v4848, %v4836
      %v6673 = vpack.c.b16 %v4849, %v4837
      %v6674 = vpack.c.b16 %v4850, %v4838
      %v6675 = vpack.c.b16 %v4863, %v4851
      %v6676 = vpack.c.b16 %v4864, %v4852
      %v6677 = vpack.c.b16 %v4865, %v4853
      %v6678 = vpack.c.b16 %v4866, %v4854
      %v6679 = vpack.c.b16 %v4867, %v4855
      %v6680 = vpack.c.b16 %v4868, %v4856
      %v6681 = vpack.c.b16 %v4869, %v4857
      %v6682 = vpack.c.b16 %v4870, %v4858
      %v6683 = vpack.c.b16 %v4871, %v4859
      %v6684 = vpack.c.b16 %v4872, %v4860
      %v6685 = vpack.c.b16 %v4873, %v4861
      %v6686 = vpack.c.b16 %v4874, %v4862
      %v6687 = vpack.c.b16 %v4887, %v4875
      %v6688 = vpack.c.b16 %v4888, %v4876
      %v6689 = vpack.c.b16 %v4889, %v4877
      %v6690 = vpack.c.b16 %v4890, %v4878
      %v6691 = vpack.c.b16 %v4891, %v4879
      %v6692 = vpack.c.b16 %v4892, %v4880
      %v6693 = vpack.c.b16 %v4893, %v4881
      %v6694 = vpack.c.b16 %v4894, %v4882
      %v6695 = vpack.c.b16 %v4895, %v4883
      %v6696 = vpack.c.b16 %v4896, %v4884
      %v6697 = vpack.c.b16 %v4897, %v4885
      %v6698 = vpack.c.b16 %v4898, %v4886
      %v6699 = vpack.c.b16 %v4911, %v4899
      %v6700 = vpack.c.b16 %v4912, %v4900
      %v6701 = vpack.c.b16 %v4913, %v4901
      %v6702 = vpack.c.b16 %v4914, %v4902
      %v6703 = vpack.c.b16 %v4915, %v4903
      %v6704 = vpack.c.b16 %v4916, %v4904
      %v6705 = vpack.c.b16 %v4917, %v4905
      %v6706 = vpack.c.b16 %v4918, %v4906
      %v6707 = vpack.c.b16 %v4919, %v4907
      %v6708 = vpack.c.b16 %v4920, %v4908
      %v6709 = vpack.c.b16 %v4921, %v4909
      %v6710 = vpack.c.b16 %v4922, %v4910
      %v6711 = vpack.c.b16 %v4935, %v4923
      %v6712 = vpack.c.b16 %v4936, %v4924
      %v6713 = vpack.c.b16 %v4937, %v4925
      %v6714 = vpack.c.b16 %v4938, %v4926
      %v6715 = vpack.c.b16 %v4939, %v4927
      %v6716 = vpack.c.b16 %v4940, %v4928
      %v6717 = vpack.c.b16 %v4941, %v4929
      %v6718 = vpack.c.b16 %v4942, %v4930
      %v6719 = vpack.c.b16 %v4943, %v4931
      %v6720 = vpack.c.b16 %v4944, %v4932
      %v6721 = vpack.c.b16 %v4945, %v4933
      %v6722 = vpack.c.b16 %v4946, %v4934
      %v6723 = vpack.c.b16 %v4959, %v4947
      %v6724 = vpack.c.b16 %v4960, %v4948
      %v6725 = vpack.c.b16 %v4961, %v4949
      %v6726 = vpack.c.b16 %v4962, %v4950
      %v6727 = vpack.c.b16 %v4963, %v4951
      %v6728 = vpack.c.b16 %v4964, %v4952
      %v6729 = vpack.c.b16 %v4965, %v4953
      %v6730 = vpack.c.b16 %v4966, %v4954
      %v6731 = vpack.c.b16 %v4967, %v4955
      %v6732 = vpack.c.b16 %v4968, %v4956
      %v6733 = vpack.c.b16 %v4969, %v4957
      %v6734 = vpack.c.b16 %v4970, %v4958
      %v6735 = vpack.c.b16 %v4983, %v4971
      %v6736 = vpack.c.b16 %v4984, %v4972
      %v6737 = vpack.c.b16 %v4985, %v4973
      %v6738 = vpack.c.b16 %v4986, %v4974
      %v6739 = vpack.c.b16 %v4987, %v4975
      %v6740 = vpack.c.b16 %v4988, %v4976
      %v6741 = vpack.c.b16 %v4989, %v4977
      %v6742 = vpack.c.b16 %v4990, %v4978
      %v6743 = vpack.c.b16 %v4991, %v4979
      %v6744 = vpack.c.b16 %v4992, %v4980
      %v6745 = vpack.c.b16 %v4993, %v4981
      %v6746 = vpack.c.b16 %v4994, %v4982
      %v6747 = vpack.c.b16 %v5007, %v4995
      %v6748 = vpack.c.b16 %v5008, %v4996
      %v6749 = vpack.c.b16 %v5009, %v4997
      %v6750 = vpack.c.b16 %v5010, %v4998
      %v6751 = vpack.c.b16 %v5011, %v4999
      %v6752 = vpack.c.b16 %v5012, %v5000
      %v6753 = vpack.c.b16 %v5013, %v5001
      %v6754 = vpack.c.b16 %v5014, %v5002
      %v6755 = vpack.c.b16 %v5015, %v5003
      %v6756 = vpack.c.b16 %v5016, %v5004
      %v6757 = vpack.c.b16 %v5017, %v5005
      %v6758 = vpack.c.b16 %v5018, %v5006
      %v6759 = vpack.c.b16 %v5031, %v5019
      %v6760 = vpack.c.b16 %v5032, %v5020
      %v6761 = vpack.c.b16 %v5033, %v5021
      %v6762 = vpack.c.b16 %v5034, %v5022
      %v6763 = vpack.c.b16 %v5035, %v5023
      %v6764 = vpack.c.b16 %v5036, %v5024
      %v6765 = vpack.c.b16 %v5037, %v5025
      %v6766 = vpack.c.b16 %v5038, %v5026
      %v6767 = vpack.c.b16 %v5039, %v5027
      %v6768 = vpack.c.b16 %v5040, %v5028
      %v6769 = vpack.c.b16 %v5041, %v5029
      %v6770 = vpack.c.b16 %v5042, %v5030
      %v6771 = vpack.c.b16 %v5055, %v5043
      %v6772 = vpack.c.b16 %v5056, %v5044
      %v6773 = vpack.c.b16 %v5057, %v5045
      %v6774 = vpack.c.b16 %v5058, %v5046
      %v6775 = vpack.c.b16 %v5059, %v5047
      %v6776 = vpack.c.b16 %v5060, %v5048
      %v6777 = vpack.c.b16 %v5061, %v5049
      %v6778 = vpack.c.b16 %v5062, %v5050
      %v6779 = vpack.c.b16 %v5063, %v5051
      %v6780 = vpack.c.b16 %v5064, %v5052
      %v6781 = vpack.c.b16 %v5065, %v5053
      %v6782 = vpack.c.b16 %v5066, %v5054
      %v6783 = vpack.c.b16 %v5079, %v5067
      %v6784 = vpack.c.b16 %v5080, %v5068
      %v6785 = vpack.c.b16 %v5081, %v5069
      %v6786 = vpack.c.b16 %v5082, %v5070
      %v6787 = vpack.c.b16 %v5083, %v5071
      %v6788 = vpack.c.b16 %v5084, %v5072
      %v6789 = vpack.c.b16 %v5085, %v5073
      %v6790 = vpack.c.b16 %v5086, %v5074
      %v6791 = vpack.c.b16 %v5087, %v5075
      %v6792 = vpack.c.b16 %v5088, %v5076
      %v6793 = vpack.c.b16 %v5089, %v5077
      %v6794 = vpack.c.b16 %v5090, %v5078
      %v6795 = vpack.c.b16 %v5103, %v5091
      %v6796 = vpack.c.b16 %v5104, %v5092
      %v6797 = vpack.c.b16 %v5105, %v5093
      %v6798 = vpack.c.b16 %v5106, %v5094
      %v6799 = vpack.c.b16 %v5107, %v5095
      %v6800 = vpack.c.b16 %v5108, %v5096
      %v6801 = vpack.c.b16 %v5109, %v5097
      %v6802 = vpack.c.b16 %v5110, %v5098
      %v6803 = vpack.c.b16 %v5111, %v5099
      %v6804 = vpack.c.b16 %v5112, %v5100
      %v6805 = vpack.c.b16 %v5113, %v5101
      %v6806 = vpack.c.b16 %v5114, %v5102
      %v6807 = vpack.c.b16 %v5127, %v5115
      %v6808 = vpack.c.b16 %v5128, %v5116
      %v6809 = vpack.c.b16 %v5129, %v5117
      %v6810 = vpack.c.b16 %v5130, %v5118
      %v6811 = vpack.c.b16 %v5131, %v5119
      %v6812 = vpack.c.b16 %v5132, %v5120
      %v6813 = vpack.c.b16 %v5133, %v5121
      %v6814 = vpack.c.b16 %v5134, %v5122
      %v6815 = vpack.c.b16 %v5135, %v5123
      %v6816 = vpack.c.b16 %v5136, %v5124
      %v6817 = vpack.c.b16 %v5137, %v5125
      %v6818 = vpack.c.b16 %v5138, %v5126
      %v6819 = vpack.c.b16 %v5151, %v5139
      %v6820 = vpack.c.b16 %v5152, %v5140
      %v6821 = vpack.c.b16 %v5153, %v5141
      %v6822 = vpack.c.b16 %v5154, %v5142
      %v6823 = vpack.c.b16 %v5155, %v5143
      %v6824 = vpack.c.b16 %v5156, %v5144
      %v6825 = vpack.c.b16 %v5157, %v5145
      %v6826 = vpack.c.b16 %v5158, %v5146
      %v6827 = vpack.c.b16 %v5159, %v5147
      %v6828 = vpack.c.b16 %v5160, %v5148
      %v6829 = vpack.c.b16 %v5161, %v5149
      %v6830 = vpack.c.b16 %v5162, %v5150
      %v6831 = vpack.c.b16 %v5175, %v5163
      %v6832 = vpack.c.b16 %v5176, %v5164
      %v6833 = vpack.c.b16 %v5177, %v5165
      %v6834 = vpack.c.b16 %v5178, %v5166
      %v6835 = vpack.c.b16 %v5179, %v5167
      %v6836 = vpack.c.b16 %v5180, %v5168
      %v6837 = vpack.c.b16 %v5181, %v5169
      %v6838 = vpack.c.b16 %v5182, %v5170
      %v6839 = vpack.c.b16 %v5183, %v5171
      %v6840 = vpack.c.b16 %v5184, %v5172
      %v6841 = vpack.c.b16 %v5185, %v5173
      %v6842 = vpack.c.b16 %v5186, %v5174
      %v6843 = vpack.c.b16 %v5199, %v5187
      %v6844 = vpack.c.b16 %v5200, %v5188
      %v6845 = vpack.c.b16 %v5201, %v5189
      %v6846 = vpack.c.b16 %v5202, %v5190
      %v6847 = vpack.c.b16 %v5203, %v5191
      %v6848 = vpack.c.b16 %v5204, %v5192
      %v6849 = vpack.c.b16 %v5205, %v5193
      %v6850 = vpack.c.b16 %v5206, %v5194
      %v6851 = vpack.c.b16 %v5207, %v5195
      %v6852 = vpack.c.b16 %v5208, %v5196
      %v6853 = vpack.c.b16 %v5209, %v5197
      %v6854 = vpack.c.b16 %v5210, %v5198
      %v6855 = vpack.c.b16 %v5223, %v5211
      %v6856 = vpack.c.b16 %v5224, %v5212
      %v6857 = vpack.c.b16 %v5225, %v5213
      %v6858 = vpack.c.b16 %v5226, %v5214
      %v6859 = vpack.c.b16 %v5227, %v5215
      %v6860 = vpack.c.b16 %v5228, %v5216
      %v6861 = vpack.c.b16 %v5229, %v5217
      %v6862 = vpack.c.b16 %v5230, %v5218
      %v6863 = vpack.c.b16 %v5231, %v5219
      %v6864 = vpack.c.b16 %v5232, %v5220
      %v6865 = vpack.c.b16 %v5233, %v5221
      %v6866 = vpack.c.b16 %v5234, %v5222
      %v6867 = vpack.c.b16 %v5247, %v5235
      %v6868 = vpack.c.b16 %v5248, %v5236
      %v6869 = vpack.c.b16 %v5249, %v5237
      %v6870 = vpack.c.b16 %v5250, %v5238
      %v6871 = vpack.c.b16 %v5251, %v5239
      %v6872 = vpack.c.b16 %v5252, %v5240
      %v6873 = vpack.c.b16 %v5253, %v5241
      %v6874 = vpack.c.b16 %v5254, %v5242
      %v6875 = vpack.c.b16 %v5255, %v5243
      %v6876 = vpack.c.b16 %v5256, %v5244
      %v6877 = vpack.c.b16 %v5257, %v5245
      %v6878 = vpack.c.b16 %v5258, %v5246
      %v6879 = vpack.c.b16 %v5271, %v5259
      %v6880 = vpack.c.b16 %v5272, %v5260
      %v6881 = vpack.c.b16 %v5273, %v5261
      %v6882 = vpack.c.b16 %v5274, %v5262
      %v6883 = vpack.c.b16 %v5275, %v5263
      %v6884 = vpack.c.b16 %v5276, %v5264
      %v6885 = vpack.c.b16 %v5277, %v5265
      %v6886 = vpack.c.b16 %v5278, %v5266
      %v6887 = vpack.c.b16 %v5279, %v5267
      %v6888 = vpack.c.b16 %v5280, %v5268
      %v6889 = vpack.c.b16 %v5281, %v5269
      %v6890 = vpack.c.b16 %v5282, %v5270
      %v6891 = vpack.c.b16 %v5295, %v5283
      %v6892 = vpack.c.b16 %v5296, %v5284
      %v6893 = vpack.c.b16 %v5297, %v5285
      %v6894 = vpack.c.b16 %v5298, %v5286
      %v6895 = vpack.c.b16 %v5299, %v5287
      %v6896 = vpack.c.b16 %v5300, %v5288
      %v6897 = vpack.c.b16 %v5301, %v5289
      %v6898 = vpack.c.b16 %v5302, %v5290
      %v6899 = vpack.c.b16 %v5303, %v5291
      %v6900 = vpack.c.b16 %v5304, %v5292
      %v6901 = vpack.c.b16 %v5305, %v5293
      %v6902 = vpack.c.b16 %v5306, %v5294
      %v6903 = vpack.c.b16 %v5319, %v5307
      %v6904 = vpack.c.b16 %v5320, %v5308
      %v6905 = vpack.c.b16 %v5321, %v5309
      %v6906 = vpack.c.b16 %v5322, %v5310
      %v6907 = vpack.c.b16 %v5323, %v5311
      %v6908 = vpack.c.b16 %v5324, %v5312
      %v6909 = vpack.c.b16 %v5325, %v5313
      %v6910 = vpack.c.b16 %v5326, %v5314
      %v6911 = vpack.c.b16 %v5327, %v5315
      %v6912 = vpack.c.b16 %v5328, %v5316
      %v6913 = vpack.c.b16 %v5329, %v5317
      %v6914 = vpack.c.b16 %v5330, %v5318
      %v6915 = vpack.c.b16 %v5343, %v5331
      %v6916 = vpack.c.b16 %v5344, %v5332
      %v6917 = vpack.c.b16 %v5345, %v5333
      %v6918 = vpack.c.b16 %v5346, %v5334
      %v6919 = vpack.c.b16 %v5347, %v5335
      %v6920 = vpack.c.b16 %v5348, %v5336
      %v6921 = vpack.c.b16 %v5349, %v5337
      %v6922 = vpack.c.b16 %v5350, %v5338
      %v6923 = vpack.c.b16 %v5351, %v5339
      %v6924 = vpack.c.b16 %v5352, %v5340
      %v6925 = vpack.c.b16 %v5353, %v5341
      %v6926 = vpack.c.b16 %v5354, %v5342
      %v6927 = vpack.c.b16 %v5367, %v5355
      %v6928 = vpack.c.b16 %v5368, %v5356
      %v6929 = vpack.c.b16 %v5369, %v5357
      %v6930 = vpack.c.b16 %v5370, %v5358
      %v6931 = vpack.c.b16 %v5371, %v5359
      %v6932 = vpack.c.b16 %v5372, %v5360
      %v6933 = vpack.c.b16 %v5373, %v5361
      %v6934 = vpack.c.b16 %v5374, %v5362
      %v6935 = vpack.c.b16 %v5375, %v5363
      %v6936 = vpack.c.b16 %v5376, %v5364
      %v6937 = vpack.c.b16 %v5377, %v5365
      %v6938 = vpack.c.b16 %v5378, %v5366
      %v6939 = vpack.c.b16 %v5391, %v5379
      %v6940 = vpack.c.b16 %v5392, %v5380
      %v6941 = vpack.c.b16 %v5393, %v5381
      %v6942 = vpack.c.b16 %v5394, %v5382
      %v6943 = vpack.c.b16 %v5395, %v5383
      %v6944 = vpack.c.b16 %v5396, %v5384
      %v6945 = vpack.c.b16 %v5397, %v5385
      %v6946 = vpack.c.b16 %v5398, %v5386
      %v6947 = vpack.c.b16 %v5399, %v5387
      %v6948 = vpack.c.b16 %v5400, %v5388
      %v6949 = vpack.c.b16 %v5401, %v5389
      %v6950 = vpack.c.b16 %v5402, %v5390
      %v6951 = vpack.c.b16 %v5415, %v5403
      %v6952 = vpack.c.b16 %v5416, %v5404
      %v6953 = vpack.c.b16 %v5417, %v5405
      %v6954 = vpack.c.b16 %v5418, %v5406
      %v6955 = vpack.c.b16 %v5419, %v5407
      %v6956 = vpack.c.b16 %v5420, %v5408
      %v6957 = vpack.c.b16 %v5421, %v5409
      %v6958 = vpack.c.b16 %v5422, %v5410
      %v6959 = vpack.c.b16 %v5423, %v5411
      %v6960 = vpack.c.b16 %v5424, %v5412
      %v6961 = vpack.c.b16 %v5425, %v5413
      %v6962 = vpack.c.b16 %v5426, %v5414
      %v6963 = vpack.c.b16 %v5439, %v5427
      %v6964 = vpack.c.b16 %v5440, %v5428
      %v6965 = vpack.c.b16 %v5441, %v5429
      %v6966 = vpack.c.b16 %v5442, %v5430
      %v6967 = vpack.c.b16 %v5443, %v5431
      %v6968 = vpack.c.b16 %v5444, %v5432
      %v6969 = vpack.c.b16 %v5445, %v5433
      %v6970 = vpack.c.b16 %v5446, %v5434
      %v6971 = vpack.c.b16 %v5447, %v5435
      %v6972 = vpack.c.b16 %v5448, %v5436
      %v6973 = vpack.c.b16 %v5449, %v5437
      %v6974 = vpack.c.b16 %v5450, %v5438
      %v6975 = vpack.c.b16 %v5463, %v5451
      %v6976 = vpack.c.b16 %v5464, %v5452
      %v6977 = vpack.c.b16 %v5465, %v5453
      %v6978 = vpack.c.b16 %v5466, %v5454
      %v6979 = vpack.c.b16 %v5467, %v5455
      %v6980 = vpack.c.b16 %v5468, %v5456
      %v6981 = vpack.c.b16 %v5469, %v5457
      %v6982 = vpack.c.b16 %v5470, %v5458
      %v6983 = vpack.c.b16 %v5471, %v5459
      %v6984 = vpack.c.b16 %v5472, %v5460
      %v6985 = vpack.c.b16 %v5473, %v5461
      %v6986 = vpack.c.b16 %v5474, %v5462
      %v6987 = vpack.c.b16 %v5487, %v5475
      %v6988 = vpack.c.b16 %v5488, %v5476
      %v6989 = vpack.c.b16 %v5489, %v5477
      %v6990 = vpack.c.b16 %v5490, %v5478
      %v6991 = vpack.c.b16 %v5491, %v5479
      %v6992 = vpack.c.b16 %v5492, %v5480
      %v6993 = vpack.c.b16 %v5493, %v5481
      %v6994 = vpack.c.b16 %v5494, %v5482
      %v6995 = vpack.c.b16 %v5495, %v5483
      %v6996 = vpack.c.b16 %v5496, %v5484
      %v6997 = vpack.c.b16 %v5497, %v5485
      %v6998 = vpack.c.b16 %v5498, %v5486
      %v6999 = vpack.c.b16 %v5511, %v5499
      %v7000 = vpack.c.b16 %v5512, %v5500
      %v7001 = vpack.c.b16 %v5513, %v5501
      %v7002 = vpack.c.b16 %v5514, %v5502
      %v7003 = vpack.c.b16 %v5515, %v5503
      %v7004 = vpack.c.b16 %v5516, %v5504
      %v7005 = vpack.c.b16 %v5517, %v5505
      %v7006 = vpack.c.b16 %v5518, %v5506
      %v7007 = vpack.c.b16 %v5519, %v5507
      %v7008 = vpack.c.b16 %v5520, %v5508
      %v7009 = vpack.c.b16 %v5521, %v5509
      %v7010 = vpack.c.b16 %v5522, %v5510
      %v7011 = vpack.c.b16 %v5535, %v5523
      %v7012 = vpack.c.b16 %v5536, %v5524
      %v7013 = vpack.c.b16 %v5537, %v5525
      %v7014 = vpack.c.b16 %v5538, %v5526
      %v7015 = vpack.c.b16 %v5539, %v5527
      %v7016 = vpack.c.b16 %v5540, %v5528
      %v7017 = vpack.c.b16 %v5541, %v5529
      %v7018 = vpack.c.b16 %v5542, %v5530
      %v7019 = vpack.c.b16 %v5543, %v5531
      %v7020 = vpack.c.b16 %v5544, %v5532
      %v7021 = vpack.c.b16 %v5545, %v5533
      %v7022 = vpack.c.b16 %v5546, %v5534
      %v7023 = vpack.c.b16 %v5559, %v5547
      %v7024 = vpack.c.b16 %v5560, %v5548
      %v7025 = vpack.c.b16 %v5561, %v5549
      %v7026 = vpack.c.b16 %v5562, %v5550
      %v7027 = vpack.c.b16 %v5563, %v5551
      %v7028 = vpack.c.b16 %v5564, %v5552
      %v7029 = vpack.c.b16 %v5565, %v5553
      %v7030 = vpack.c.b16 %v5566, %v5554
      %v7031 = vpack.c.b16 %v5567, %v5555
      %v7032 = vpack.c.b16 %v5568, %v5556
      %v7033 = vpack.c.b16 %v5569, %v5557
      %v7034 = vpack.c.b16 %v5570, %v5558
      %v7035 = vpack.c.b16 %v5583, %v5571
      %v7036 = vpack.c.b16 %v5584, %v5572
      %v7037 = vpack.c.b16 %v5585, %v5573
      %v7038 = vpack.c.b16 %v5586, %v5574
      %v7039 = vpack.c.b16 %v5587, %v5575
      %v7040 = vpack.c.b16 %v5588, %v5576
      %v7041 = vpack.c.b16 %v5589, %v5577
      %v7042 = vpack.c.b16 %v5590, %v5578
      %v7043 = vpack.c.b16 %v5591, %v5579
      %v7044 = vpack.c.b16 %v5592, %v5580
      %v7045 = vpack.c.b16 %v5593, %v5581
      %v7046 = vpack.c.b16 %v5594, %v5582
      %v7047 = vpack.c.b16 %v5607, %v5595
      %v7048 = vpack.c.b16 %v5608, %v5596
      %v7049 = vpack.c.b16 %v5609, %v5597
      %v7050 = vpack.c.b16 %v5610, %v5598
      %v7051 = vpack.c.b16 %v5611, %v5599
      %v7052 = vpack.c.b16 %v5612, %v5600
      %v7053 = vpack.c.b16 %v5613, %v5601
      %v7054 = vpack.c.b16 %v5614, %v5602
      %v7055 = vpack.c.b16 %v5615, %v5603
      %v7056 = vpack.c.b16 %v5616, %v5604
      %v7057 = vpack.c.b16 %v5617, %v5605
      %v7058 = vpack.c.b16 %v5618, %v5606
      %v7059 = vpack.c.b16 %v5631, %v5619
      %v7060 = vpack.c.b16 %v5632, %v5620
      %v7061 = vpack.c.b16 %v5633, %v5621
      %v7062 = vpack.c.b16 %v5634, %v5622
      %v7063 = vpack.c.b16 %v5635, %v5623
      %v7064 = vpack.c.b16 %v5636, %v5624
      %v7065 = vpack.c.b16 %v5637, %v5625
      %v7066 = vpack.c.b16 %v5638, %v5626
      %v7067 = vpack.c.b16 %v5639, %v5627
      %v7068 = vpack.c.b16 %v5640, %v5628
      %v7069 = vpack.c.b16 %v5641, %v5629
      %v7070 = vpack.c.b16 %v5642, %v5630
      %v7071 = vpack.c.b16 %v5655, %v5643
      %v7072 = vpack.c.b16 %v5656, %v5644
      %v7073 = vpack.c.b16 %v5657, %v5645
      %v7074 = vpack.c.b16 %v5658, %v5646
      %v7075 = vpack.c.b16 %v5659, %v5647
      %v7076 = vpack.c.b16 %v5660, %v5648
      %v7077 = vpack.c.b16 %v5661, %v5649
      %v7078 = vpack.c.b16 %v5662, %v5650
      %v7079 = vpack.c.b16 %v5663, %v5651
      %v7080 = vpack.c.b16 %v5664, %v5652
      %v7081 = vpack.c.b16 %v5665, %v5653
      %v7082 = vpack.c.b16 %v5666, %v5654
      %v7083 = vpack.c.b16 %v5679, %v5667
      %v7084 = vpack.c.b16 %v5680, %v5668
      %v7085 = vpack.c.b16 %v5681, %v5669
      %v7086 = vpack.c.b16 %v5682, %v5670
      %v7087 = vpack.c.b16 %v5683, %v5671
      %v7088 = vpack.c.b16 %v5684, %v5672
      %v7089 = vpack.c.b16 %v5685, %v5673
      %v7090 = vpack.c.b16 %v5686, %v5674
      %v7091 = vpack.c.b16 %v5687, %v5675
      %v7092 = vpack.c.b16 %v5688, %v5676
      %v7093 = vpack.c.b16 %v5689, %v5677
      %v7094 = vpack.c.b16 %v5690, %v5678
      %v7095 = vpack.c.b16 %v5703, %v5691
      %v7096 = vpack.c.b16 %v5704, %v5692
      %v7097 = vpack.c.b16 %v5705, %v5693
      %v7098 = vpack.c.b16 %v5706, %v5694
      %v7099 = vpack.c.b16 %v5707, %v5695
      %v7100 = vpack.c.b16 %v5708, %v5696
      %v7101 = vpack.c.b16 %v5709, %v5697
      %v7102 = vpack.c.b16 %v5710, %v5698
      %v7103 = vpack.c.b16 %v5711, %v5699
      %v7104 = vpack.c.b16 %v5712, %v5700
      %v7105 = vpack.c.b16 %v5713, %v5701
      %v7106 = vpack.c.b16 %v5714, %v5702
      %v7107 = vpack.c.b16 %v5727, %v5715
      %v7108 = vpack.c.b16 %v5728, %v5716
      %v7109 = vpack.c.b16 %v5729, %v5717
      %v7110 = vpack.c.b16 %v5730, %v5718
      %v7111 = vpack.c.b16 %v5731, %v5719
      %v7112 = vpack.c.b16 %v5732, %v5720
      %v7113 = vpack.c.b16 %v5733, %v5721
      %v7114 = vpack.c.b16 %v5734, %v5722
      %v7115 = vpack.c.b16 %v5735, %v5723
      %v7116 = vpack.c.b16 %v5736, %v5724
      %v7117 = vpack.c.b16 %v5737, %v5725
      %v7118 = vpack.c.b16 %v5738, %v5726
      %v7119 = vpack.c.b16 %v5751, %v5739
      %v7120 = vpack.c.b16 %v5752, %v5740
      %v7121 = vpack.c.b16 %v5753, %v5741
      %v7122 = vpack.c.b16 %v5754, %v5742
      %v7123 = vpack.c.b16 %v5755, %v5743
      %v7124 = vpack.c.b16 %v5756, %v5744
      %v7125 = vpack.c.b16 %v5757, %v5745
      %v7126 = vpack.c.b16 %v5758, %v5746
      %v7127 = vpack.c.b16 %v5759, %v5747
      %v7128 = vpack.c.b16 %v5760, %v5748
      %v7129 = vpack.c.b16 %v5761, %v5749
      %v7130 = vpack.c.b16 %v5762, %v5750
      %v7131 = vpack.c.b16 %v5775, %v5763
      %v7132 = vpack.c.b16 %v5776, %v5764
      %v7133 = vpack.c.b16 %v5777, %v5765
      %v7134 = vpack.c.b16 %v5778, %v5766
      %v7135 = vpack.c.b16 %v5779, %v5767
      %v7136 = vpack.c.b16 %v5780, %v5768
      %v7137 = vpack.c.b16 %v5781, %v5769
      %v7138 = vpack.c.b16 %v5782, %v5770
      %v7139 = vpack.c.b16 %v5783, %v5771
      %v7140 = vpack.c.b16 %v5784, %v5772
      %v7141 = vpack.c.b16 %v5785, %v5773
      %v7142 = vpack.c.b16 %v5786, %v5774
      %v7143 = vpack.c.b16 %v5799, %v5787
      %v7144 = vpack.c.b16 %v5800, %v5788
      %v7145 = vpack.c.b16 %v5801, %v5789
      %v7146 = vpack.c.b16 %v5802, %v5790
      %v7147 = vpack.c.b16 %v5803, %v5791
      %v7148 = vpack.c.b16 %v5804, %v5792
      %v7149 = vpack.c.b16 %v5805, %v5793
      %v7150 = vpack.c.b16 %v5806, %v5794
      %v7151 = vpack.c.b16 %v5807, %v5795
      %v7152 = vpack.c.b16 %v5808, %v5796
      %v7153 = vpack.c.b16 %v5809, %v5797
      %v7154 = vpack.c.b16 %v5810, %v5798
      %v7155 = vpack.c.b16 %v5823, %v5811
      %v7156 = vpack.c.b16 %v5824, %v5812
      %v7157 = vpack.c.b16 %v5825, %v5813
      %v7158 = vpack.c.b16 %v5826, %v5814
      %v7159 = vpack.c.b16 %v5827, %v5815
      %v7160 = vpack.c.b16 %v5828, %v5816
      %v7161 = vpack.c.b16 %v5829, %v5817
      %v7162 = vpack.c.b16 %v5830, %v5818
      %v7163 = vpack.c.b16 %v5831, %v5819
      %v7164 = vpack.c.b16 %v5832, %v5820
      %v7165 = vpack.c.b16 %v5833, %v5821
      %v7166 = vpack.c.b16 %v5834, %v5822
      %v7167 = vpack.c.b16 %v5847, %v5835
      %v7168 = vpack.c.b16 %v5848, %v5836
      %v7169 = vpack.c.b16 %v5849, %v5837
      %v7170 = vpack.c.b16 %v5850, %v5838
      %v7171 = vpack.c.b16 %v5851, %v5839
      %v7172 = vpack.c.b16 %v5852, %v5840
      %v7173 = vpack.c.b16 %v5853, %v5841
      %v7174 = vpack.c.b16 %v5854, %v5842
      %v7175 = vpack.c.b16 %v5855, %v5843
      %v7176 = vpack.c.b16 %v5856, %v5844
      %v7177 = vpack.c.b16 %v5857, %v5845
      %v7178 = vpack.c.b16 %v5858, %v5846
      %v7179 = vpack.c.b16 %v5871, %v5859
      %v7180 = vpack.c.b16 %v5872, %v5860
      %v7181 = vpack.c.b16 %v5873, %v5861
      %v7182 = vpack.c.b16 %v5874, %v5862
      %v7183 = vpack.c.b16 %v5875, %v5863
      %v7184 = vpack.c.b16 %v5876, %v5864
      %v7185 = vpack.c.b16 %v5877, %v5865
      %v7186 = vpack.c.b16 %v5878, %v5866
      %v7187 = vpack.c.b16 %v5879, %v5867
      %v7188 = vpack.c.b16 %v5880, %v5868
      %v7189 = vpack.c.b16 %v5881, %v5869
      %v7190 = vpack.c.b16 %v5882, %v5870
      %v7191 = vpack.c.b16 %v5895, %v5883
      %v7192 = vpack.c.b16 %v5896, %v5884
      %v7193 = vpack.c.b16 %v5897, %v5885
      %v7194 = vpack.c.b16 %v5898, %v5886
      %v7195 = vpack.c.b16 %v5899, %v5887
      %v7196 = vpack.c.b16 %v5900, %v5888
      %v7197 = vpack.c.b16 %v5901, %v5889
      %v7198 = vpack.c.b16 %v5902, %v5890
      %v7199 = vpack.c.b16 %v5903, %v5891
      %v7200 = vpack.c.b16 %v5904, %v5892
      %v7201 = vpack.c.b16 %v5905, %v5893
      %v7202 = vpack.c.b16 %v5906, %v5894
      %v7203 = vpack.c.b16 %v5919, %v5907
      %v7204 = vpack.c.b16 %v5920, %v5908
      %v7205 = vpack.c.b16 %v5921, %v5909
      %v7206 = vpack.c.b16 %v5922, %v5910
      %v7207 = vpack.c.b16 %v5923, %v5911
      %v7208 = vpack.c.b16 %v5924, %v5912
      %v7209 = vpack.c.b16 %v5925, %v5913
      %v7210 = vpack.c.b16 %v5926, %v5914
      %v7211 = vpack.c.b16 %v5927, %v5915
      %v7212 = vpack.c.b16 %v5928, %v5916
      %v7213 = vpack.c.b16 %v5929, %v5917
      %v7214 = vpack.c.b16 %v5930, %v5918
      %v7215 = vpack.c.b16 %v5943, %v5931
      %v7216 = vpack.c.b16 %v5944, %v5932
      %v7217 = vpack.c.b16 %v5945, %v5933
      %v7218 = vpack.c.b16 %v5946, %v5934
      %v7219 = vpack.c.b16 %v5947, %v5935
      %v7220 = vpack.c.b16 %v5948, %v5936
      %v7221 = vpack.c.b16 %v5949, %v5937
      %v7222 = vpack.c.b16 %v5950, %v5938
      %v7223 = vpack.c.b16 %v5951, %v5939
      %v7224 = vpack.c.b16 %v5952, %v5940
      %v7225 = vpack.c.b16 %v5953, %v5941
      %v7226 = vpack.c.b16 %v5954, %v5942
      %v7227 = vpack.c.b16 %v5967, %v5955
      %v7228 = vpack.c.b16 %v5968, %v5956
      %v7229 = vpack.c.b16 %v5969, %v5957
      %v7230 = vpack.c.b16 %v5970, %v5958
      %v7231 = vpack.c.b16 %v5971, %v5959
      %v7232 = vpack.c.b16 %v5972, %v5960
      %v7233 = vpack.c.b16 %v5973, %v5961
      %v7234 = vpack.c.b16 %v5974, %v5962
      %v7235 = vpack.c.b16 %v5975, %v5963
      %v7236 = vpack.c.b16 %v5976, %v5964
      %v7237 = vpack.c.b16 %v5977, %v5965
      %v7238 = vpack.c.b16 %v5978, %v5966
      %v7239 = vpack.c.b16 %v5991, %v5979
      %v7240 = vpack.c.b16 %v5992, %v5980
      %v7241 = vpack.c.b16 %v5993, %v5981
      %v7242 = vpack.c.b16 %v5994, %v5982
      %v7243 = vpack.c.b16 %v5995, %v5983
      %v7244 = vpack.c.b16 %v5996, %v5984
      %v7245 = vpack.c.b16 %v5997, %v5985
      %v7246 = vpack.c.b16 %v5998, %v5986
      %v7247 = vpack.c.b16 %v5999, %v5987
      %v7248 = vpack.c.b16 %v6000, %v5988
      %v7249 = vpack.c.b16 %v6001, %v5989
      %v7250 = vpack.c.b16 %v6002, %v5990
      %v7251 = vpack.c.b16 %v6015, %v6003
      %v7252 = vpack.c.b16 %v6016, %v6004
      %v7253 = vpack.c.b16 %v6017, %v6005
      %v7254 = vpack.c.b16 %v6018, %v6006
      %v7255 = vpack.c.b16 %v6019, %v6007
      %v7256 = vpack.c.b16 %v6020, %v6008
      %v7257 = vpack.c.b16 %v6021, %v6009
      %v7258 = vpack.c.b16 %v6022, %v6010
      %v7259 = vpack.c.b16 %v6023, %v6011
      %v7260 = vpack.c.b16 %v6024, %v6012
      %v7261 = vpack.c.b16 %v6025, %v6013
      %v7262 = vpack.c.b16 %v6026, %v6014
      %v7263 = vpack.c.b16 %v6039, %v6027
      %v7264 = vpack.c.b16 %v6040, %v6028
      %v7265 = vpack.c.b16 %v6041, %v6029
      %v7266 = vpack.c.b16 %v6042, %v6030
      %v7267 = vpack.c.b16 %v6043, %v6031
      %v7268 = vpack.c.b16 %v6044, %v6032
      %v7269 = vpack.c.b16 %v6045, %v6033
      %v7270 = vpack.c.b16 %v6046, %v6034
      %v7271 = vpack.c.b16 %v6047, %v6035
      %v7272 = vpack.c.b16 %v6048, %v6036
      %v7273 = vpack.c.b16 %v6049, %v6037
      %v7274 = vpack.c.b16 %v6050, %v6038
      %v7275 = vpack.c.b16 %v6063, %v6051
      %v7276 = vpack.c.b16 %v6064, %v6052
      %v7277 = vpack.c.b16 %v6065, %v6053
      %v7278 = vpack.c.b16 %v6066, %v6054
      %v7279 = vpack.c.b16 %v6067, %v6055
      %v7280 = vpack.c.b16 %v6068, %v6056
      %v7281 = vpack.c.b16 %v6069, %v6057
      %v7282 = vpack.c.b16 %v6070, %v6058
      %v7283 = vpack.c.b16 %v6071, %v6059
      %v7284 = vpack.c.b16 %v6072, %v6060
      %v7285 = vpack.c.b16 %v6073, %v6061
      %v7286 = vpack.c.b16 %v6074, %v6062
      %v7287 = vpack.c.b16 %v6087, %v6075
      %v7288 = vpack.c.b16 %v6088, %v6076
      %v7289 = vpack.c.b16 %v6089, %v6077
      %v7290 = vpack.c.b16 %v6090, %v6078
      %v7291 = vpack.c.b16 %v6091, %v6079
      %v7292 = vpack.c.b16 %v6092, %v6080
      %v7293 = vpack.c.b16 %v6093, %v6081
      %v7294 = vpack.c.b16 %v6094, %v6082
      %v7295 = vpack.c.b16 %v6095, %v6083
      %v7296 = vpack.c.b16 %v6096, %v6084
      %v7297 = vpack.c.b16 %v6097, %v6085
      %v7298 = vpack.c.b16 %v6098, %v6086
      %v7299 = vpack.c.b16 %v6111, %v6099
      %v7300 = vpack.c.b16 %v6112, %v6100
      %v7301 = vpack.c.b16 %v6113, %v6101
      %v7302 = vpack.c.b16 %v6114, %v6102
      %v7303 = vpack.c.b16 %v6115, %v6103
      %v7304 = vpack.c.b16 %v6116, %v6104
      %v7305 = vpack.c.b16 %v6117, %v6105
      %v7306 = vpack.c.b16 %v6118, %v6106
      %v7307 = vpack.c.b16 %v6119, %v6107
      %v7308 = vpack.c.b16 %v6120, %v6108
      %v7309 = vpack.c.b16 %v6121, %v6109
      %v7310 = vpack.c.b16 %v6122, %v6110
      %v7311 = vpack.c.b16 %v6135, %v6123
      %v7312 = vpack.c.b16 %v6136, %v6124
      %v7313 = vpack.c.b16 %v6137, %v6125
      %v7314 = vpack.c.b16 %v6138, %v6126
      %v7315 = vpack.c.b16 %v6139, %v6127
      %v7316 = vpack.c.b16 %v6140, %v6128
      %v7317 = vpack.c.b16 %v6141, %v6129
      %v7318 = vpack.c.b16 %v6142, %v6130
      %v7319 = vpack.c.b16 %v6143, %v6131
      %v7320 = vpack.c.b16 %v6144, %v6132
      %v7321 = vpack.c.b16 %v6145, %v6133
      %v7322 = vpack.c.b16 %v6146, %v6134
      %v7323 = vpack.c.b16 %v6159, %v6147
      %v7324 = vpack.c.b16 %v6160, %v6148
      %v7325 = vpack.c.b16 %v6161, %v6149
      %v7326 = vpack.c.b16 %v6162, %v6150
      %v7327 = vpack.c.b16 %v6163, %v6151
      %v7328 = vpack.c.b16 %v6164, %v6152
      %v7329 = vpack.c.b16 %v6165, %v6153
      %v7330 = vpack.c.b16 %v6166, %v6154
      %v7331 = vpack.c.b16 %v6167, %v6155
      %v7332 = vpack.c.b16 %v6168, %v6156
      %v7333 = vpack.c.b16 %v6169, %v6157
      %v7334 = vpack.c.b16 %v6170, %v6158
      %v7335 = vpack.c.b16 %v6183, %v6171
      %v7336 = vpack.c.b16 %v6184, %v6172
      %v7337 = vpack.c.b16 %v6185, %v6173
      %v7338 = vpack.c.b16 %v6186, %v6174
      %v7339 = vpack.c.b16 %v6187, %v6175
      %v7340 = vpack.c.b16 %v6188, %v6176
      %v7341 = vpack.c.b16 %v6189, %v6177
      %v7342 = vpack.c.b16 %v6190, %v6178
      %v7343 = vpack.c.b16 %v6191, %v6179
      %v7344 = vpack.c.b16 %v6192, %v6180
      %v7345 = vpack.c.b16 %v6193, %v6181
      %v7346 = vpack.c.b16 %v6194, %v6182
      %8499 = vmatpush.bf16.msra.mxu0 %v6279
      %8500 = vmatpush.bf16.msra.mxu0 %v6267
      %8501 = vmatpush.bf16.msra.mxu0 %v6255
      %8502 = vmatpush.bf16.msra.mxu0 %v6243
      %8503 = vmatpush.bf16.msra.mxu0 %v6231
      %8504 = vmatpush.bf16.msra.mxu0 %v6219
      %8505 = vmatpush.bf16.msra.mxu0 %v6207
      %8506 = vmatpush.bf16.msra.mxu0 %v6195
      %8507 = vmatmul.bf16.gmra.mxu0 %v1519
      %v8508 = vpop.f32.mrf.mxu0
      %v8509 = vadd.f32 0.0, %v8508
      %v8510 = vpop.f32.mrf.mxu0
      %v8511 = vadd.f32 0.0, %v8510
      %8512 = vdwg.mxu0
      %8513 = vmatpush.bf16.msra.mxu0 %v6375
      %8514 = vmatpush.bf16.msra.mxu0 %v6363
      %8515 = vmatpush.bf16.msra.mxu0 %v6351
      %8516 = vmatpush.bf16.msra.mxu0 %v6339
      %8517 = vmatpush.bf16.msra.mxu0 %v6327
      %8518 = vmatpush.bf16.msra.mxu0 %v6315
      %8519 = vmatpush.bf16.msra.mxu0 %v6303
      %8520 = vmatpush.bf16.msra.mxu0 %v6291
      %8521 = vmatmul.bf16.gmra.mxu0 %v1525
      %v8522 = vpop.f32.mrf.mxu0
      %v8523 = vadd.f32 %v8509, %v8522
      %v8524 = vpop.f32.mrf.mxu0
      %v8525 = vadd.f32 %v8511, %v8524
      %8526 = vdwg.mxu0
      %8527 = vmatpush.bf16.msra.mxu0 %v6471
      %8528 = vmatpush.bf16.msra.mxu0 %v6459
      %8529 = vmatpush.bf16.msra.mxu0 %v6447
      %8530 = vmatpush.bf16.msra.mxu0 %v6435
      %8531 = vmatpush.bf16.msra.mxu0 %v6423
      %8532 = vmatpush.bf16.msra.mxu0 %v6411
      %8533 = vmatpush.bf16.msra.mxu0 %v6399
      %8534 = vmatpush.bf16.msra.mxu0 %v6387
      %8535 = vmatmul.bf16.gmra.mxu0 %v1531
      %v8536 = vpop.f32.mrf.mxu0
      %v8537 = vadd.f32 %v8523, %v8536
      %v8538 = vpop.f32.mrf.mxu0
      %v8539 = vadd.f32 %v8525, %v8538
      %8540 = vdwg.mxu0
      %8541 = vmatpush.bf16.msra.mxu0 %v6567
      %8542 = vmatpush.bf16.msra.mxu0 %v6555
      %8543 = vmatpush.bf16.msra.mxu0 %v6543
      %8544 = vmatpush.bf16.msra.mxu0 %v6531
      %8545 = vmatpush.bf16.msra.mxu0 %v6519
      %8546 = vmatpush.bf16.msra.mxu0 %v6507
      %8547 = vmatpush.bf16.msra.mxu0 %v6495
      %8548 = vmatpush.bf16.msra.mxu0 %v6483
      %8549 = vmatmul.bf16.gmra.mxu0 %v1537
      %v8550 = vpop.f32.mrf.mxu0
      %v8551 = vadd.f32 %v8537, %v8550
      %v8552 = vpop.f32.mrf.mxu0
      %v8553 = vadd.f32 %v8539, %v8552
      %8554 = vdwg.mxu0
      %8555 = vmatpush.bf16.msra.mxu0 %v6663
      %8556 = vmatpush.bf16.msra.mxu0 %v6651
      %8557 = vmatpush.bf16.msra.mxu0 %v6639
      %8558 = vmatpush.bf16.msra.mxu0 %v6627
      %8559 = vmatpush.bf16.msra.mxu0 %v6615
      %8560 = vmatpush.bf16.msra.mxu0 %v6603
      %8561 = vmatpush.bf16.msra.mxu0 %v6591
      %8562 = vmatpush.bf16.msra.mxu0 %v6579
      %8563 = vmatmul.bf16.gmra.mxu0 %v1543
      %v8564 = vpop.f32.mrf.mxu0
      %v8565 = vadd.f32 %v8551, %v8564
      %v8566 = vpop.f32.mrf.mxu0
      %v8567 = vadd.f32 %v8553, %v8566
      %8568 = vdwg.mxu0
      %8569 = vmatpush.bf16.msra.mxu0 %v6759
      %8570 = vmatpush.bf16.msra.mxu0 %v6747
      %8571 = vmatpush.bf16.msra.mxu0 %v6735
      %8572 = vmatpush.bf16.msra.mxu0 %v6723
      %8573 = vmatpush.bf16.msra.mxu0 %v6711
      %8574 = vmatpush.bf16.msra.mxu0 %v6699
      %8575 = vmatpush.bf16.msra.mxu0 %v6687
      %8576 = vmatpush.bf16.msra.mxu0 %v6675
      %8577 = vmatmul.bf16.gmra.mxu0 %v1549
      %v8578 = vpop.f32.mrf.mxu0
      %v8579 = vadd.f32 %v8565, %v8578
      %v8580 = vpop.f32.mrf.mxu0
      %v8581 = vadd.f32 %v8567, %v8580
      %8582 = vdwg.mxu0
      %8583 = vmatpush.bf16.msra.mxu0 %v6855
      %8584 = vmatpush.bf16.msra.mxu0 %v6843
      %8585 = vmatpush.bf16.msra.mxu0 %v6831
      %8586 = vmatpush.bf16.msra.mxu0 %v6819
      %8587 = vmatpush.bf16.msra.mxu0 %v6807
      %8588 = vmatpush.bf16.msra.mxu0 %v6795
      %8589 = vmatpush.bf16.msra.mxu0 %v6783
      %8590 = vmatpush.bf16.msra.mxu0 %v6771
      %8591 = vmatmul.bf16.gmra.mxu0 %v1555
      %v8592 = vpop.f32.mrf.mxu0
      %v8593 = vadd.f32 %v8579, %v8592
      %v8594 = vpop.f32.mrf.mxu0
      %v8595 = vadd.f32 %v8581, %v8594
      %8596 = vdwg.mxu0
      %8597 = vmatpush.bf16.msra.mxu0 %v6951
      %8598 = vmatpush.bf16.msra.mxu0 %v6939
      %8599 = vmatpush.bf16.msra.mxu0 %v6927
      %8600 = vmatpush.bf16.msra.mxu0 %v6915
      %8601 = vmatpush.bf16.msra.mxu0 %v6903
      %8602 = vmatpush.bf16.msra.mxu0 %v6891
      %8603 = vmatpush.bf16.msra.mxu0 %v6879
      %8604 = vmatpush.bf16.msra.mxu0 %v6867
      %8605 = vmatmul.bf16.gmra.mxu0 %v1561
      %v8606 = vpop.f32.mrf.mxu0
      %v8607 = vadd.f32 %v8593, %v8606
      %v8608 = vpop.f32.mrf.mxu0
      %v8609 = vadd.f32 %v8595, %v8608
      %8610 = vdwg.mxu0
      %8611 = vmatpush.bf16.msra.mxu0 %v7047
      %8612 = vmatpush.bf16.msra.mxu0 %v7035
      %8613 = vmatpush.bf16.msra.mxu0 %v7023
      %8614 = vmatpush.bf16.msra.mxu0 %v7011
      %8615 = vmatpush.bf16.msra.mxu0 %v6999
      %8616 = vmatpush.bf16.msra.mxu0 %v6987
      %8617 = vmatpush.bf16.msra.mxu0 %v6975
      %8618 = vmatpush.bf16.msra.mxu0 %v6963
      %8619 = vmatmul.bf16.gmra.mxu0 %v1567
      %v8620 = vpop.f32.mrf.mxu0
      %v8621 = vadd.f32 %v8607, %v8620
      %v8622 = vpop.f32.mrf.mxu0
      %v8623 = vadd.f32 %v8609, %v8622
      %8624 = vdwg.mxu0
      %8625 = vmatpush.bf16.msra.mxu0 %v7143
      %8626 = vmatpush.bf16.msra.mxu0 %v7131
      %8627 = vmatpush.bf16.msra.mxu0 %v7119
      %8628 = vmatpush.bf16.msra.mxu0 %v7107
      %8629 = vmatpush.bf16.msra.mxu0 %v7095
      %8630 = vmatpush.bf16.msra.mxu0 %v7083
      %8631 = vmatpush.bf16.msra.mxu0 %v7071
      %8632 = vmatpush.bf16.msra.mxu0 %v7059
      %8633 = vmatmul.bf16.gmra.mxu0 %v1573
      %v8634 = vpop.f32.mrf.mxu0
      %v8635 = vadd.f32 %v8621, %v8634
      %v8636 = vpop.f32.mrf.mxu0
      %v8637 = vadd.f32 %v8623, %v8636
      %8638 = vdwg.mxu0
      %8639 = vmatpush.bf16.msra.mxu0 %v7239
      %8640 = vmatpush.bf16.msra.mxu0 %v7227
      %8641 = vmatpush.bf16.msra.mxu0 %v7215
      %8642 = vmatpush.bf16.msra.mxu0 %v7203
      %8643 = vmatpush.bf16.msra.mxu0 %v7191
      %8644 = vmatpush.bf16.msra.mxu0 %v7179
      %8645 = vmatpush.bf16.msra.mxu0 %v7167
      %8646 = vmatpush.bf16.msra.mxu0 %v7155
      %8647 = vmatmul.bf16.gmra.mxu0 %v1579
      %v8648 = vpop.f32.mrf.mxu0
      %v8649 = vadd.f32 %v8635, %v8648
      %v8650 = vpop.f32.mrf.mxu0
      %v8651 = vadd.f32 %v8637, %v8650
      %8652 = vdwg.mxu0
      %8653 = vmatpush.bf16.msra.mxu0 %v7335
      %8654 = vmatpush.bf16.msra.mxu0 %v7323
      %8655 = vmatpush.bf16.msra.mxu0 %v7311
      %8656 = vmatpush.bf16.msra.mxu0 %v7299
      %8657 = vmatpush.bf16.msra.mxu0 %v7287
      %8658 = vmatpush.bf16.msra.mxu0 %v7275
      %8659 = vmatpush.bf16.msra.mxu0 %v7263
      %8660 = vmatpush.bf16.msra.mxu0 %v7251
      %8661 = vmatmul.bf16.gmra.mxu0 %v1585
      %v8662 = vpop.f32.mrf.mxu0
      %v8663 = vadd.f32 %v8649, %v8662
      %v8664 = vpop.f32.mrf.mxu0
      %v8665 = vadd.f32 %v8651, %v8664
      %8666 = vdwg.mxu0
      %8667 = vmatpush.bf16.msra.mxu0 %v6280
      %8668 = vmatpush.bf16.msra.mxu0 %v6268
      %8669 = vmatpush.bf16.msra.mxu0 %v6256
      %8670 = vmatpush.bf16.msra.mxu0 %v6244
      %8671 = vmatpush.bf16.msra.mxu0 %v6232
      %8672 = vmatpush.bf16.msra.mxu0 %v6220
      %8673 = vmatpush.bf16.msra.mxu0 %v6208
      %8674 = vmatpush.bf16.msra.mxu0 %v6196
      %8675 = vmatmul.bf16.gmra.mxu0 %v1519
      %v8676 = vpop.f32.mrf.mxu0
      %v8677 = vadd.f32 0.0, %v8676
      %v8678 = vpop.f32.mrf.mxu0
      %v8679 = vadd.f32 0.0, %v8678
      %8680 = vdwg.mxu0
      %8681 = vmatpush.bf16.msra.mxu0 %v6376
      %8682 = vmatpush.bf16.msra.mxu0 %v6364
      %8683 = vmatpush.bf16.msra.mxu0 %v6352
      %8684 = vmatpush.bf16.msra.mxu0 %v6340
      %8685 = vmatpush.bf16.msra.mxu0 %v6328
      %8686 = vmatpush.bf16.msra.mxu0 %v6316
      %8687 = vmatpush.bf16.msra.mxu0 %v6304
      %8688 = vmatpush.bf16.msra.mxu0 %v6292
      %8689 = vmatmul.bf16.gmra.mxu0 %v1525
      %v8690 = vpop.f32.mrf.mxu0
      %v8691 = vadd.f32 %v8677, %v8690
      %v8692 = vpop.f32.mrf.mxu0
      %v8693 = vadd.f32 %v8679, %v8692
      %8694 = vdwg.mxu0
      %8695 = vmatpush.bf16.msra.mxu0 %v6472
      %8696 = vmatpush.bf16.msra.mxu0 %v6460
      %8697 = vmatpush.bf16.msra.mxu0 %v6448
      %8698 = vmatpush.bf16.msra.mxu0 %v6436
      %8699 = vmatpush.bf16.msra.mxu0 %v6424
      %8700 = vmatpush.bf16.msra.mxu0 %v6412
      %8701 = vmatpush.bf16.msra.mxu0 %v6400
      %8702 = vmatpush.bf16.msra.mxu0 %v6388
      %8703 = vmatmul.bf16.gmra.mxu0 %v1531
      %v8704 = vpop.f32.mrf.mxu0
      %v8705 = vadd.f32 %v8691, %v8704
      %v8706 = vpop.f32.mrf.mxu0
      %v8707 = vadd.f32 %v8693, %v8706
      %8708 = vdwg.mxu0
      %8709 = vmatpush.bf16.msra.mxu0 %v6568
      %8710 = vmatpush.bf16.msra.mxu0 %v6556
      %8711 = vmatpush.bf16.msra.mxu0 %v6544
      %8712 = vmatpush.bf16.msra.mxu0 %v6532
      %8713 = vmatpush.bf16.msra.mxu0 %v6520
      %8714 = vmatpush.bf16.msra.mxu0 %v6508
      %8715 = vmatpush.bf16.msra.mxu0 %v6496
      %8716 = vmatpush.bf16.msra.mxu0 %v6484
      %8717 = vmatmul.bf16.gmra.mxu0 %v1537
      %v8718 = vpop.f32.mrf.mxu0
      %v8719 = vadd.f32 %v8705, %v8718
      %v8720 = vpop.f32.mrf.mxu0
      %v8721 = vadd.f32 %v8707, %v8720
      %8722 = vdwg.mxu0
      %8723 = vmatpush.bf16.msra.mxu0 %v6664
      %8724 = vmatpush.bf16.msra.mxu0 %v6652
      %8725 = vmatpush.bf16.msra.mxu0 %v6640
      %8726 = vmatpush.bf16.msra.mxu0 %v6628
      %8727 = vmatpush.bf16.msra.mxu0 %v6616
      %8728 = vmatpush.bf16.msra.mxu0 %v6604
      %8729 = vmatpush.bf16.msra.mxu0 %v6592
      %8730 = vmatpush.bf16.msra.mxu0 %v6580
      %8731 = vmatmul.bf16.gmra.mxu0 %v1543
      %v8732 = vpop.f32.mrf.mxu0
      %v8733 = vadd.f32 %v8719, %v8732
      %v8734 = vpop.f32.mrf.mxu0
      %v8735 = vadd.f32 %v8721, %v8734
      %8736 = vdwg.mxu0
      %8737 = vmatpush.bf16.msra.mxu0 %v6760
      %8738 = vmatpush.bf16.msra.mxu0 %v6748
      %8739 = vmatpush.bf16.msra.mxu0 %v6736
      %8740 = vmatpush.bf16.msra.mxu0 %v6724
      %8741 = vmatpush.bf16.msra.mxu0 %v6712
      %8742 = vmatpush.bf16.msra.mxu0 %v6700
      %8743 = vmatpush.bf16.msra.mxu0 %v6688
      %8744 = vmatpush.bf16.msra.mxu0 %v6676
      %8745 = vmatmul.bf16.gmra.mxu0 %v1549
      %v8746 = vpop.f32.mrf.mxu0
      %v8747 = vadd.f32 %v8733, %v8746
      %v8748 = vpop.f32.mrf.mxu0
      %v8749 = vadd.f32 %v8735, %v8748
      %8750 = vdwg.mxu0
      %8751 = vmatpush.bf16.msra.mxu0 %v6856
      %8752 = vmatpush.bf16.msra.mxu0 %v6844
      %8753 = vmatpush.bf16.msra.mxu0 %v6832
      %8754 = vmatpush.bf16.msra.mxu0 %v6820
      %8755 = vmatpush.bf16.msra.mxu0 %v6808
      %8756 = vmatpush.bf16.msra.mxu0 %v6796
      %8757 = vmatpush.bf16.msra.mxu0 %v6784
      %8758 = vmatpush.bf16.msra.mxu0 %v6772
      %8759 = vmatmul.bf16.gmra.mxu0 %v1555
      %v8760 = vpop.f32.mrf.mxu0
      %v8761 = vadd.f32 %v8747, %v8760
      %v8762 = vpop.f32.mrf.mxu0
      %v8763 = vadd.f32 %v8749, %v8762
      %8764 = vdwg.mxu0
      %8765 = vmatpush.bf16.msra.mxu0 %v6952
      %8766 = vmatpush.bf16.msra.mxu0 %v6940
      %8767 = vmatpush.bf16.msra.mxu0 %v6928
      %8768 = vmatpush.bf16.msra.mxu0 %v6916
      %8769 = vmatpush.bf16.msra.mxu0 %v6904
      %8770 = vmatpush.bf16.msra.mxu0 %v6892
      %8771 = vmatpush.bf16.msra.mxu0 %v6880
      %8772 = vmatpush.bf16.msra.mxu0 %v6868
      %8773 = vmatmul.bf16.gmra.mxu0 %v1561
      %v8774 = vpop.f32.mrf.mxu0
      %v8775 = vadd.f32 %v8761, %v8774
      %v8776 = vpop.f32.mrf.mxu0
      %v8777 = vadd.f32 %v8763, %v8776
      %8778 = vdwg.mxu0
      %8779 = vmatpush.bf16.msra.mxu0 %v7048
      %8780 = vmatpush.bf16.msra.mxu0 %v7036
      %8781 = vmatpush.bf16.msra.mxu0 %v7024
      %8782 = vmatpush.bf16.msra.mxu0 %v7012
      %8783 = vmatpush.bf16.msra.mxu0 %v7000
      %8784 = vmatpush.bf16.msra.mxu0 %v6988
      %8785 = vmatpush.bf16.msra.mxu0 %v6976
      %8786 = vmatpush.bf16.msra.mxu0 %v6964
      %8787 = vmatmul.bf16.gmra.mxu0 %v1567
      %v8788 = vpop.f32.mrf.mxu0
      %v8789 = vadd.f32 %v8775, %v8788
      %v8790 = vpop.f32.mrf.mxu0
      %v8791 = vadd.f32 %v8777, %v8790
      %8792 = vdwg.mxu0
      %8793 = vmatpush.bf16.msra.mxu0 %v7144
      %8794 = vmatpush.bf16.msra.mxu0 %v7132
      %8795 = vmatpush.bf16.msra.mxu0 %v7120
      %8796 = vmatpush.bf16.msra.mxu0 %v7108
      %8797 = vmatpush.bf16.msra.mxu0 %v7096
      %8798 = vmatpush.bf16.msra.mxu0 %v7084
      %8799 = vmatpush.bf16.msra.mxu0 %v7072
      %8800 = vmatpush.bf16.msra.mxu0 %v7060
      %8801 = vmatmul.bf16.gmra.mxu0 %v1573
      %v8802 = vpop.f32.mrf.mxu0
      %v8803 = vadd.f32 %v8789, %v8802
      %v8804 = vpop.f32.mrf.mxu0
      %v8805 = vadd.f32 %v8791, %v8804
      %8806 = vdwg.mxu0
      %8807 = vmatpush.bf16.msra.mxu0 %v7240
      %8808 = vmatpush.bf16.msra.mxu0 %v7228
      %8809 = vmatpush.bf16.msra.mxu0 %v7216
      %8810 = vmatpush.bf16.msra.mxu0 %v7204
      %8811 = vmatpush.bf16.msra.mxu0 %v7192
      %8812 = vmatpush.bf16.msra.mxu0 %v7180
      %8813 = vmatpush.bf16.msra.mxu0 %v7168
      %8814 = vmatpush.bf16.msra.mxu0 %v7156
      %8815 = vmatmul.bf16.gmra.mxu0 %v1579
      %v8816 = vpop.f32.mrf.mxu0
      %v8817 = vadd.f32 %v8803, %v8816
      %v8818 = vpop.f32.mrf.mxu0
      %v8819 = vadd.f32 %v8805, %v8818
      %8820 = vdwg.mxu0
      %8821 = vmatpush.bf16.msra.mxu0 %v7336
      %8822 = vmatpush.bf16.msra.mxu0 %v7324
      %8823 = vmatpush.bf16.msra.mxu0 %v7312
      %8824 = vmatpush.bf16.msra.mxu0 %v7300
      %8825 = vmatpush.bf16.msra.mxu0 %v7288
      %8826 = vmatpush.bf16.msra.mxu0 %v7276
      %8827 = vmatpush.bf16.msra.mxu0 %v7264
      %8828 = vmatpush.bf16.msra.mxu0 %v7252
      %8829 = vmatmul.bf16.gmra.mxu0 %v1585
      %v8830 = vpop.f32.mrf.mxu0
      %v8831 = vadd.f32 %v8817, %v8830
      %v8832 = vpop.f32.mrf.mxu0
      %v8833 = vadd.f32 %v8819, %v8832
      %8834 = vdwg.mxu0
      %8835 = vmatpush.bf16.msra.mxu0 %v6281
      %8836 = vmatpush.bf16.msra.mxu0 %v6269
      %8837 = vmatpush.bf16.msra.mxu0 %v6257
      %8838 = vmatpush.bf16.msra.mxu0 %v6245
      %8839 = vmatpush.bf16.msra.mxu0 %v6233
      %8840 = vmatpush.bf16.msra.mxu0 %v6221
      %8841 = vmatpush.bf16.msra.mxu0 %v6209
      %8842 = vmatpush.bf16.msra.mxu0 %v6197
      %8843 = vmatmul.bf16.gmra.mxu0 %v1519
      %v8844 = vpop.f32.mrf.mxu0
      %v8845 = vadd.f32 0.0, %v8844
      %v8846 = vpop.f32.mrf.mxu0
      %v8847 = vadd.f32 0.0, %v8846
      %8848 = vdwg.mxu0
      %8849 = vmatpush.bf16.msra.mxu0 %v6377
      %8850 = vmatpush.bf16.msra.mxu0 %v6365
      %8851 = vmatpush.bf16.msra.mxu0 %v6353
      %8852 = vmatpush.bf16.msra.mxu0 %v6341
      %8853 = vmatpush.bf16.msra.mxu0 %v6329
      %8854 = vmatpush.bf16.msra.mxu0 %v6317
      %8855 = vmatpush.bf16.msra.mxu0 %v6305
      %8856 = vmatpush.bf16.msra.mxu0 %v6293
      %8857 = vmatmul.bf16.gmra.mxu0 %v1525
      %v8858 = vpop.f32.mrf.mxu0
      %v8859 = vadd.f32 %v8845, %v8858
      %v8860 = vpop.f32.mrf.mxu0
      %v8861 = vadd.f32 %v8847, %v8860
      %8862 = vdwg.mxu0
      %8863 = vmatpush.bf16.msra.mxu0 %v6473
      %8864 = vmatpush.bf16.msra.mxu0 %v6461
      %8865 = vmatpush.bf16.msra.mxu0 %v6449
      %8866 = vmatpush.bf16.msra.mxu0 %v6437
      %8867 = vmatpush.bf16.msra.mxu0 %v6425
      %8868 = vmatpush.bf16.msra.mxu0 %v6413
      %8869 = vmatpush.bf16.msra.mxu0 %v6401
      %8870 = vmatpush.bf16.msra.mxu0 %v6389
      %8871 = vmatmul.bf16.gmra.mxu0 %v1531
      %v8872 = vpop.f32.mrf.mxu0
      %v8873 = vadd.f32 %v8859, %v8872
      %v8874 = vpop.f32.mrf.mxu0
      %v8875 = vadd.f32 %v8861, %v8874
      %8876 = vdwg.mxu0
      %8877 = vmatpush.bf16.msra.mxu0 %v6569
      %8878 = vmatpush.bf16.msra.mxu0 %v6557
      %8879 = vmatpush.bf16.msra.mxu0 %v6545
      %8880 = vmatpush.bf16.msra.mxu0 %v6533
      %8881 = vmatpush.bf16.msra.mxu0 %v6521
      %8882 = vmatpush.bf16.msra.mxu0 %v6509
      %8883 = vmatpush.bf16.msra.mxu0 %v6497
      %8884 = vmatpush.bf16.msra.mxu0 %v6485
      %8885 = vmatmul.bf16.gmra.mxu0 %v1537
      %v8886 = vpop.f32.mrf.mxu0
      %v8887 = vadd.f32 %v8873, %v8886
      %v8888 = vpop.f32.mrf.mxu0
      %v8889 = vadd.f32 %v8875, %v8888
      %8890 = vdwg.mxu0
      %8891 = vmatpush.bf16.msra.mxu0 %v6665
      %8892 = vmatpush.bf16.msra.mxu0 %v6653
      %8893 = vmatpush.bf16.msra.mxu0 %v6641
      %8894 = vmatpush.bf16.msra.mxu0 %v6629
      %8895 = vmatpush.bf16.msra.mxu0 %v6617
      %8896 = vmatpush.bf16.msra.mxu0 %v6605
      %8897 = vmatpush.bf16.msra.mxu0 %v6593
      %8898 = vmatpush.bf16.msra.mxu0 %v6581
      %8899 = vmatmul.bf16.gmra.mxu0 %v1543
      %v8900 = vpop.f32.mrf.mxu0
      %v8901 = vadd.f32 %v8887, %v8900
      %v8902 = vpop.f32.mrf.mxu0
      %v8903 = vadd.f32 %v8889, %v8902
      %8904 = vdwg.mxu0
      %8905 = vmatpush.bf16.msra.mxu0 %v6761
      %8906 = vmatpush.bf16.msra.mxu0 %v6749
      %8907 = vmatpush.bf16.msra.mxu0 %v6737
      %8908 = vmatpush.bf16.msra.mxu0 %v6725
      %8909 = vmatpush.bf16.msra.mxu0 %v6713
      %8910 = vmatpush.bf16.msra.mxu0 %v6701
      %8911 = vmatpush.bf16.msra.mxu0 %v6689
      %8912 = vmatpush.bf16.msra.mxu0 %v6677
      %8913 = vmatmul.bf16.gmra.mxu0 %v1549
      %v8914 = vpop.f32.mrf.mxu0
      %v8915 = vadd.f32 %v8901, %v8914
      %v8916 = vpop.f32.mrf.mxu0
      %v8917 = vadd.f32 %v8903, %v8916
      %8918 = vdwg.mxu0
      %8919 = vmatpush.bf16.msra.mxu0 %v6857
      %8920 = vmatpush.bf16.msra.mxu0 %v6845
      %8921 = vmatpush.bf16.msra.mxu0 %v6833
      %8922 = vmatpush.bf16.msra.mxu0 %v6821
      %8923 = vmatpush.bf16.msra.mxu0 %v6809
      %8924 = vmatpush.bf16.msra.mxu0 %v6797
      %8925 = vmatpush.bf16.msra.mxu0 %v6785
      %8926 = vmatpush.bf16.msra.mxu0 %v6773
      %8927 = vmatmul.bf16.gmra.mxu0 %v1555
      %v8928 = vpop.f32.mrf.mxu0
      %v8929 = vadd.f32 %v8915, %v8928
      %v8930 = vpop.f32.mrf.mxu0
      %v8931 = vadd.f32 %v8917, %v8930
      %8932 = vdwg.mxu0
      %8933 = vmatpush.bf16.msra.mxu0 %v6953
      %8934 = vmatpush.bf16.msra.mxu0 %v6941
      %8935 = vmatpush.bf16.msra.mxu0 %v6929
      %8936 = vmatpush.bf16.msra.mxu0 %v6917
      %8937 = vmatpush.bf16.msra.mxu0 %v6905
      %8938 = vmatpush.bf16.msra.mxu0 %v6893
      %8939 = vmatpush.bf16.msra.mxu0 %v6881
      %8940 = vmatpush.bf16.msra.mxu0 %v6869
      %8941 = vmatmul.bf16.gmra.mxu0 %v1561
      %v8942 = vpop.f32.mrf.mxu0
      %v8943 = vadd.f32 %v8929, %v8942
      %v8944 = vpop.f32.mrf.mxu0
      %v8945 = vadd.f32 %v8931, %v8944
      %8946 = vdwg.mxu0
      %8947 = vmatpush.bf16.msra.mxu0 %v7049
      %8948 = vmatpush.bf16.msra.mxu0 %v7037
      %8949 = vmatpush.bf16.msra.mxu0 %v7025
      %8950 = vmatpush.bf16.msra.mxu0 %v7013
      %8951 = vmatpush.bf16.msra.mxu0 %v7001
      %8952 = vmatpush.bf16.msra.mxu0 %v6989
      %8953 = vmatpush.bf16.msra.mxu0 %v6977
      %8954 = vmatpush.bf16.msra.mxu0 %v6965
      %8955 = vmatmul.bf16.gmra.mxu0 %v1567
      %v8956 = vpop.f32.mrf.mxu0
      %v8957 = vadd.f32 %v8943, %v8956
      %v8958 = vpop.f32.mrf.mxu0
      %v8959 = vadd.f32 %v8945, %v8958
      %8960 = vdwg.mxu0
      %8961 = vmatpush.bf16.msra.mxu0 %v7145
      %8962 = vmatpush.bf16.msra.mxu0 %v7133
      %8963 = vmatpush.bf16.msra.mxu0 %v7121
      %8964 = vmatpush.bf16.msra.mxu0 %v7109
      %8965 = vmatpush.bf16.msra.mxu0 %v7097
      %8966 = vmatpush.bf16.msra.mxu0 %v7085
      %8967 = vmatpush.bf16.msra.mxu0 %v7073
      %8968 = vmatpush.bf16.msra.mxu0 %v7061
      %8969 = vmatmul.bf16.gmra.mxu0 %v1573
      %v8970 = vpop.f32.mrf.mxu0
      %v8971 = vadd.f32 %v8957, %v8970
      %v8972 = vpop.f32.mrf.mxu0
      %v8973 = vadd.f32 %v8959, %v8972
      %8974 = vdwg.mxu0
      %8975 = vmatpush.bf16.msra.mxu0 %v7241
      %8976 = vmatpush.bf16.msra.mxu0 %v7229
      %8977 = vmatpush.bf16.msra.mxu0 %v7217
      %8978 = vmatpush.bf16.msra.mxu0 %v7205
      %8979 = vmatpush.bf16.msra.mxu0 %v7193
      %8980 = vmatpush.bf16.msra.mxu0 %v7181
      %8981 = vmatpush.bf16.msra.mxu0 %v7169
      %8982 = vmatpush.bf16.msra.mxu0 %v7157
      %8983 = vmatmul.bf16.gmra.mxu0 %v1579
      %v8984 = vpop.f32.mrf.mxu0
      %v8985 = vadd.f32 %v8971, %v8984
      %v8986 = vpop.f32.mrf.mxu0
      %v8987 = vadd.f32 %v8973, %v8986
      %8988 = vdwg.mxu0
      %8989 = vmatpush.bf16.msra.mxu0 %v7337
      %8990 = vmatpush.bf16.msra.mxu0 %v7325
      %8991 = vmatpush.bf16.msra.mxu0 %v7313
      %8992 = vmatpush.bf16.msra.mxu0 %v7301
      %8993 = vmatpush.bf16.msra.mxu0 %v7289
      %8994 = vmatpush.bf16.msra.mxu0 %v7277
      %8995 = vmatpush.bf16.msra.mxu0 %v7265
      %8996 = vmatpush.bf16.msra.mxu0 %v7253
      %8997 = vmatmul.bf16.gmra.mxu0 %v1585
      %v8998 = vpop.f32.mrf.mxu0
      %v8999 = vadd.f32 %v8985, %v8998
      %v9000 = vpop.f32.mrf.mxu0
      %v9001 = vadd.f32 %v8987, %v9000
      %9002 = vdwg.mxu0
      %9003 = vmatpush.bf16.msra.mxu0 %v6282
      %9004 = vmatpush.bf16.msra.mxu0 %v6270
      %9005 = vmatpush.bf16.msra.mxu0 %v6258
      %9006 = vmatpush.bf16.msra.mxu0 %v6246
      %9007 = vmatpush.bf16.msra.mxu0 %v6234
      %9008 = vmatpush.bf16.msra.mxu0 %v6222
      %9009 = vmatpush.bf16.msra.mxu0 %v6210
      %9010 = vmatpush.bf16.msra.mxu0 %v6198
      %9011 = vmatmul.bf16.gmra.mxu0 %v1519
      %v9012 = vpop.f32.mrf.mxu0
      %v9013 = vadd.f32 0.0, %v9012
      %v9014 = vpop.f32.mrf.mxu0
      %v9015 = vadd.f32 0.0, %v9014
      %9016 = vdwg.mxu0
      %9017 = vmatpush.bf16.msra.mxu0 %v6378
      %9018 = vmatpush.bf16.msra.mxu0 %v6366
      %9019 = vmatpush.bf16.msra.mxu0 %v6354
      %9020 = vmatpush.bf16.msra.mxu0 %v6342
      %9021 = vmatpush.bf16.msra.mxu0 %v6330
      %9022 = vmatpush.bf16.msra.mxu0 %v6318
      %9023 = vmatpush.bf16.msra.mxu0 %v6306
      %9024 = vmatpush.bf16.msra.mxu0 %v6294
      %9025 = vmatmul.bf16.gmra.mxu0 %v1525
      %v9026 = vpop.f32.mrf.mxu0
      %v9027 = vadd.f32 %v9013, %v9026
      %v9028 = vpop.f32.mrf.mxu0
      %v9029 = vadd.f32 %v9015, %v9028
      %9030 = vdwg.mxu0
      %9031 = vmatpush.bf16.msra.mxu0 %v6474
      %9032 = vmatpush.bf16.msra.mxu0 %v6462
      %9033 = vmatpush.bf16.msra.mxu0 %v6450
      %9034 = vmatpush.bf16.msra.mxu0 %v6438
      %9035 = vmatpush.bf16.msra.mxu0 %v6426
      %9036 = vmatpush.bf16.msra.mxu0 %v6414
      %9037 = vmatpush.bf16.msra.mxu0 %v6402
      %9038 = vmatpush.bf16.msra.mxu0 %v6390
      %9039 = vmatmul.bf16.gmra.mxu0 %v1531
      %v9040 = vpop.f32.mrf.mxu0
      %v9041 = vadd.f32 %v9027, %v9040
      %v9042 = vpop.f32.mrf.mxu0
      %v9043 = vadd.f32 %v9029, %v9042
      %9044 = vdwg.mxu0
      %9045 = vmatpush.bf16.msra.mxu0 %v6570
      %9046 = vmatpush.bf16.msra.mxu0 %v6558
      %9047 = vmatpush.bf16.msra.mxu0 %v6546
      %9048 = vmatpush.bf16.msra.mxu0 %v6534
      %9049 = vmatpush.bf16.msra.mxu0 %v6522
      %9050 = vmatpush.bf16.msra.mxu0 %v6510
      %9051 = vmatpush.bf16.msra.mxu0 %v6498
      %9052 = vmatpush.bf16.msra.mxu0 %v6486
      %9053 = vmatmul.bf16.gmra.mxu0 %v1537
      %v9054 = vpop.f32.mrf.mxu0
      %v9055 = vadd.f32 %v9041, %v9054
      %v9056 = vpop.f32.mrf.mxu0
      %v9057 = vadd.f32 %v9043, %v9056
      %9058 = vdwg.mxu0
      %9059 = vmatpush.bf16.msra.mxu0 %v6666
      %9060 = vmatpush.bf16.msra.mxu0 %v6654
      %9061 = vmatpush.bf16.msra.mxu0 %v6642
      %9062 = vmatpush.bf16.msra.mxu0 %v6630
      %9063 = vmatpush.bf16.msra.mxu0 %v6618
      %9064 = vmatpush.bf16.msra.mxu0 %v6606
      %9065 = vmatpush.bf16.msra.mxu0 %v6594
      %9066 = vmatpush.bf16.msra.mxu0 %v6582
      %9067 = vmatmul.bf16.gmra.mxu0 %v1543
      %v9068 = vpop.f32.mrf.mxu0
      %v9069 = vadd.f32 %v9055, %v9068
      %v9070 = vpop.f32.mrf.mxu0
      %v9071 = vadd.f32 %v9057, %v9070
      %9072 = vdwg.mxu0
      %9073 = vmatpush.bf16.msra.mxu0 %v6762
      %9074 = vmatpush.bf16.msra.mxu0 %v6750
      %9075 = vmatpush.bf16.msra.mxu0 %v6738
      %9076 = vmatpush.bf16.msra.mxu0 %v6726
      %9077 = vmatpush.bf16.msra.mxu0 %v6714
      %9078 = vmatpush.bf16.msra.mxu0 %v6702
      %9079 = vmatpush.bf16.msra.mxu0 %v6690
      %9080 = vmatpush.bf16.msra.mxu0 %v6678
      %9081 = vmatmul.bf16.gmra.mxu0 %v1549
      %v9082 = vpop.f32.mrf.mxu0
      %v9083 = vadd.f32 %v9069, %v9082
      %v9084 = vpop.f32.mrf.mxu0
      %v9085 = vadd.f32 %v9071, %v9084
      %9086 = vdwg.mxu0
      %9087 = vmatpush.bf16.msra.mxu0 %v6858
      %9088 = vmatpush.bf16.msra.mxu0 %v6846
      %9089 = vmatpush.bf16.msra.mxu0 %v6834
      %9090 = vmatpush.bf16.msra.mxu0 %v6822
      %9091 = vmatpush.bf16.msra.mxu0 %v6810
      %9092 = vmatpush.bf16.msra.mxu0 %v6798
      %9093 = vmatpush.bf16.msra.mxu0 %v6786
      %9094 = vmatpush.bf16.msra.mxu0 %v6774
      %9095 = vmatmul.bf16.gmra.mxu0 %v1555
      %v9096 = vpop.f32.mrf.mxu0
      %v9097 = vadd.f32 %v9083, %v9096
      %v9098 = vpop.f32.mrf.mxu0
      %v9099 = vadd.f32 %v9085, %v9098
      %9100 = vdwg.mxu0
      %9101 = vmatpush.bf16.msra.mxu0 %v6954
      %9102 = vmatpush.bf16.msra.mxu0 %v6942
      %9103 = vmatpush.bf16.msra.mxu0 %v6930
      %9104 = vmatpush.bf16.msra.mxu0 %v6918
      %9105 = vmatpush.bf16.msra.mxu0 %v6906
      %9106 = vmatpush.bf16.msra.mxu0 %v6894
      %9107 = vmatpush.bf16.msra.mxu0 %v6882
      %9108 = vmatpush.bf16.msra.mxu0 %v6870
      %9109 = vmatmul.bf16.gmra.mxu0 %v1561
      %v9110 = vpop.f32.mrf.mxu0
      %v9111 = vadd.f32 %v9097, %v9110
      %v9112 = vpop.f32.mrf.mxu0
      %v9113 = vadd.f32 %v9099, %v9112
      %9114 = vdwg.mxu0
      %9115 = vmatpush.bf16.msra.mxu0 %v7050
      %9116 = vmatpush.bf16.msra.mxu0 %v7038
      %9117 = vmatpush.bf16.msra.mxu0 %v7026
      %9118 = vmatpush.bf16.msra.mxu0 %v7014
      %9119 = vmatpush.bf16.msra.mxu0 %v7002
      %9120 = vmatpush.bf16.msra.mxu0 %v6990
      %9121 = vmatpush.bf16.msra.mxu0 %v6978
      %9122 = vmatpush.bf16.msra.mxu0 %v6966
      %9123 = vmatmul.bf16.gmra.mxu0 %v1567
      %v9124 = vpop.f32.mrf.mxu0
      %v9125 = vadd.f32 %v9111, %v9124
      %v9126 = vpop.f32.mrf.mxu0
      %v9127 = vadd.f32 %v9113, %v9126
      %9128 = vdwg.mxu0
      %9129 = vmatpush.bf16.msra.mxu0 %v7146
      %9130 = vmatpush.bf16.msra.mxu0 %v7134
      %9131 = vmatpush.bf16.msra.mxu0 %v7122
      %9132 = vmatpush.bf16.msra.mxu0 %v7110
      %9133 = vmatpush.bf16.msra.mxu0 %v7098
      %9134 = vmatpush.bf16.msra.mxu0 %v7086
      %9135 = vmatpush.bf16.msra.mxu0 %v7074
      %9136 = vmatpush.bf16.msra.mxu0 %v7062
      %9137 = vmatmul.bf16.gmra.mxu0 %v1573
      %v9138 = vpop.f32.mrf.mxu0
      %v9139 = vadd.f32 %v9125, %v9138
      %v9140 = vpop.f32.mrf.mxu0
      %v9141 = vadd.f32 %v9127, %v9140
      %9142 = vdwg.mxu0
      %9143 = vmatpush.bf16.msra.mxu0 %v7242
      %9144 = vmatpush.bf16.msra.mxu0 %v7230
      %9145 = vmatpush.bf16.msra.mxu0 %v7218
      %9146 = vmatpush.bf16.msra.mxu0 %v7206
      %9147 = vmatpush.bf16.msra.mxu0 %v7194
      %9148 = vmatpush.bf16.msra.mxu0 %v7182
      %9149 = vmatpush.bf16.msra.mxu0 %v7170
      %9150 = vmatpush.bf16.msra.mxu0 %v7158
      %9151 = vmatmul.bf16.gmra.mxu0 %v1579
      %v9152 = vpop.f32.mrf.mxu0
      %v9153 = vadd.f32 %v9139, %v9152
      %v9154 = vpop.f32.mrf.mxu0
      %v9155 = vadd.f32 %v9141, %v9154
      %9156 = vdwg.mxu0
      %9157 = vmatpush.bf16.msra.mxu0 %v7338
      %9158 = vmatpush.bf16.msra.mxu0 %v7326
      %9159 = vmatpush.bf16.msra.mxu0 %v7314
      %9160 = vmatpush.bf16.msra.mxu0 %v7302
      %9161 = vmatpush.bf16.msra.mxu0 %v7290
      %9162 = vmatpush.bf16.msra.mxu0 %v7278
      %9163 = vmatpush.bf16.msra.mxu0 %v7266
      %9164 = vmatpush.bf16.msra.mxu0 %v7254
      %9165 = vmatmul.bf16.gmra.mxu0 %v1585
      %v9166 = vpop.f32.mrf.mxu0
      %v9167 = vadd.f32 %v9153, %v9166
      %v9168 = vpop.f32.mrf.mxu0
      %v9169 = vadd.f32 %v9155, %v9168
      %9170 = vdwg.mxu0
      %9171 = vmatpush.bf16.msra.mxu0 %v6283
      %9172 = vmatpush.bf16.msra.mxu0 %v6271
      %9173 = vmatpush.bf16.msra.mxu0 %v6259
      %9174 = vmatpush.bf16.msra.mxu0 %v6247
      %9175 = vmatpush.bf16.msra.mxu0 %v6235
      %9176 = vmatpush.bf16.msra.mxu0 %v6223
      %9177 = vmatpush.bf16.msra.mxu0 %v6211
      %9178 = vmatpush.bf16.msra.mxu0 %v6199
      %9179 = vmatmul.bf16.gmra.mxu0 %v1519
      %v9180 = vpop.f32.mrf.mxu0
      %v9181 = vadd.f32 0.0, %v9180
      %v9182 = vpop.f32.mrf.mxu0
      %v9183 = vadd.f32 0.0, %v9182
      %9184 = vdwg.mxu0
      %9185 = vmatpush.bf16.msra.mxu0 %v6379
      %9186 = vmatpush.bf16.msra.mxu0 %v6367
      %9187 = vmatpush.bf16.msra.mxu0 %v6355
      %9188 = vmatpush.bf16.msra.mxu0 %v6343
      %9189 = vmatpush.bf16.msra.mxu0 %v6331
      %9190 = vmatpush.bf16.msra.mxu0 %v6319
      %9191 = vmatpush.bf16.msra.mxu0 %v6307
      %9192 = vmatpush.bf16.msra.mxu0 %v6295
      %9193 = vmatmul.bf16.gmra.mxu0 %v1525
      %v9194 = vpop.f32.mrf.mxu0
      %v9195 = vadd.f32 %v9181, %v9194
      %v9196 = vpop.f32.mrf.mxu0
      %v9197 = vadd.f32 %v9183, %v9196
      %9198 = vdwg.mxu0
      %9199 = vmatpush.bf16.msra.mxu0 %v6475
      %9200 = vmatpush.bf16.msra.mxu0 %v6463
      %9201 = vmatpush.bf16.msra.mxu0 %v6451
      %9202 = vmatpush.bf16.msra.mxu0 %v6439
      %9203 = vmatpush.bf16.msra.mxu0 %v6427
      %9204 = vmatpush.bf16.msra.mxu0 %v6415
      %9205 = vmatpush.bf16.msra.mxu0 %v6403
      %9206 = vmatpush.bf16.msra.mxu0 %v6391
      %9207 = vmatmul.bf16.gmra.mxu0 %v1531
      %v9208 = vpop.f32.mrf.mxu0
      %v9209 = vadd.f32 %v9195, %v9208
      %v9210 = vpop.f32.mrf.mxu0
      %v9211 = vadd.f32 %v9197, %v9210
      %9212 = vdwg.mxu0
      %9213 = vmatpush.bf16.msra.mxu0 %v6571
      %9214 = vmatpush.bf16.msra.mxu0 %v6559
      %9215 = vmatpush.bf16.msra.mxu0 %v6547
      %9216 = vmatpush.bf16.msra.mxu0 %v6535
      %9217 = vmatpush.bf16.msra.mxu0 %v6523
      %9218 = vmatpush.bf16.msra.mxu0 %v6511
      %9219 = vmatpush.bf16.msra.mxu0 %v6499
      %9220 = vmatpush.bf16.msra.mxu0 %v6487
      %9221 = vmatmul.bf16.gmra.mxu0 %v1537
      %v9222 = vpop.f32.mrf.mxu0
      %v9223 = vadd.f32 %v9209, %v9222
      %v9224 = vpop.f32.mrf.mxu0
      %v9225 = vadd.f32 %v9211, %v9224
      %9226 = vdwg.mxu0
      %9227 = vmatpush.bf16.msra.mxu0 %v6667
      %9228 = vmatpush.bf16.msra.mxu0 %v6655
      %9229 = vmatpush.bf16.msra.mxu0 %v6643
      %9230 = vmatpush.bf16.msra.mxu0 %v6631
      %9231 = vmatpush.bf16.msra.mxu0 %v6619
      %9232 = vmatpush.bf16.msra.mxu0 %v6607
      %9233 = vmatpush.bf16.msra.mxu0 %v6595
      %9234 = vmatpush.bf16.msra.mxu0 %v6583
      %9235 = vmatmul.bf16.gmra.mxu0 %v1543
      %v9236 = vpop.f32.mrf.mxu0
      %v9237 = vadd.f32 %v9223, %v9236
      %v9238 = vpop.f32.mrf.mxu0
      %v9239 = vadd.f32 %v9225, %v9238
      %9240 = vdwg.mxu0
      %9241 = vmatpush.bf16.msra.mxu0 %v6763
      %9242 = vmatpush.bf16.msra.mxu0 %v6751
      %9243 = vmatpush.bf16.msra.mxu0 %v6739
      %9244 = vmatpush.bf16.msra.mxu0 %v6727
      %9245 = vmatpush.bf16.msra.mxu0 %v6715
      %9246 = vmatpush.bf16.msra.mxu0 %v6703
      %9247 = vmatpush.bf16.msra.mxu0 %v6691
      %9248 = vmatpush.bf16.msra.mxu0 %v6679
      %9249 = vmatmul.bf16.gmra.mxu0 %v1549
      %v9250 = vpop.f32.mrf.mxu0
      %v9251 = vadd.f32 %v9237, %v9250
      %v9252 = vpop.f32.mrf.mxu0
      %v9253 = vadd.f32 %v9239, %v9252
      %9254 = vdwg.mxu0
      %9255 = vmatpush.bf16.msra.mxu0 %v6859
      %9256 = vmatpush.bf16.msra.mxu0 %v6847
      %9257 = vmatpush.bf16.msra.mxu0 %v6835
      %9258 = vmatpush.bf16.msra.mxu0 %v6823
      %9259 = vmatpush.bf16.msra.mxu0 %v6811
      %9260 = vmatpush.bf16.msra.mxu0 %v6799
      %9261 = vmatpush.bf16.msra.mxu0 %v6787
      %9262 = vmatpush.bf16.msra.mxu0 %v6775
      %9263 = vmatmul.bf16.gmra.mxu0 %v1555
      %v9264 = vpop.f32.mrf.mxu0
      %v9265 = vadd.f32 %v9251, %v9264
      %v9266 = vpop.f32.mrf.mxu0
      %v9267 = vadd.f32 %v9253, %v9266
      %9268 = vdwg.mxu0
      %9269 = vmatpush.bf16.msra.mxu0 %v6955
      %9270 = vmatpush.bf16.msra.mxu0 %v6943
      %9271 = vmatpush.bf16.msra.mxu0 %v6931
      %9272 = vmatpush.bf16.msra.mxu0 %v6919
      %9273 = vmatpush.bf16.msra.mxu0 %v6907
      %9274 = vmatpush.bf16.msra.mxu0 %v6895
      %9275 = vmatpush.bf16.msra.mxu0 %v6883
      %9276 = vmatpush.bf16.msra.mxu0 %v6871
      %9277 = vmatmul.bf16.gmra.mxu0 %v1561
      %v9278 = vpop.f32.mrf.mxu0
      %v9279 = vadd.f32 %v9265, %v9278
      %v9280 = vpop.f32.mrf.mxu0
      %v9281 = vadd.f32 %v9267, %v9280
      %9282 = vdwg.mxu0
      %9283 = vmatpush.bf16.msra.mxu0 %v7051
      %9284 = vmatpush.bf16.msra.mxu0 %v7039
      %9285 = vmatpush.bf16.msra.mxu0 %v7027
      %9286 = vmatpush.bf16.msra.mxu0 %v7015
      %9287 = vmatpush.bf16.msra.mxu0 %v7003
      %9288 = vmatpush.bf16.msra.mxu0 %v6991
      %9289 = vmatpush.bf16.msra.mxu0 %v6979
      %9290 = vmatpush.bf16.msra.mxu0 %v6967
      %9291 = vmatmul.bf16.gmra.mxu0 %v1567
      %v9292 = vpop.f32.mrf.mxu0
      %v9293 = vadd.f32 %v9279, %v9292
      %v9294 = vpop.f32.mrf.mxu0
      %v9295 = vadd.f32 %v9281, %v9294
      %9296 = vdwg.mxu0
      %9297 = vmatpush.bf16.msra.mxu0 %v7147
      %9298 = vmatpush.bf16.msra.mxu0 %v7135
      %9299 = vmatpush.bf16.msra.mxu0 %v7123
      %9300 = vmatpush.bf16.msra.mxu0 %v7111
      %9301 = vmatpush.bf16.msra.mxu0 %v7099
      %9302 = vmatpush.bf16.msra.mxu0 %v7087
      %9303 = vmatpush.bf16.msra.mxu0 %v7075
      %9304 = vmatpush.bf16.msra.mxu0 %v7063
      %9305 = vmatmul.bf16.gmra.mxu0 %v1573
      %v9306 = vpop.f32.mrf.mxu0
      %v9307 = vadd.f32 %v9293, %v9306
      %v9308 = vpop.f32.mrf.mxu0
      %v9309 = vadd.f32 %v9295, %v9308
      %9310 = vdwg.mxu0
      %9311 = vmatpush.bf16.msra.mxu0 %v7243
      %9312 = vmatpush.bf16.msra.mxu0 %v7231
      %9313 = vmatpush.bf16.msra.mxu0 %v7219
      %9314 = vmatpush.bf16.msra.mxu0 %v7207
      %9315 = vmatpush.bf16.msra.mxu0 %v7195
      %9316 = vmatpush.bf16.msra.mxu0 %v7183
      %9317 = vmatpush.bf16.msra.mxu0 %v7171
      %9318 = vmatpush.bf16.msra.mxu0 %v7159
      %9319 = vmatmul.bf16.gmra.mxu0 %v1579
      %v9320 = vpop.f32.mrf.mxu0
      %v9321 = vadd.f32 %v9307, %v9320
      %v9322 = vpop.f32.mrf.mxu0
      %v9323 = vadd.f32 %v9309, %v9322
      %9324 = vdwg.mxu0
      %9325 = vmatpush.bf16.msra.mxu0 %v7339
      %9326 = vmatpush.bf16.msra.mxu0 %v7327
      %9327 = vmatpush.bf16.msra.mxu0 %v7315
      %9328 = vmatpush.bf16.msra.mxu0 %v7303
      %9329 = vmatpush.bf16.msra.mxu0 %v7291
      %9330 = vmatpush.bf16.msra.mxu0 %v7279
      %9331 = vmatpush.bf16.msra.mxu0 %v7267
      %9332 = vmatpush.bf16.msra.mxu0 %v7255
      %9333 = vmatmul.bf16.gmra.mxu0 %v1585
      %v9334 = vpop.f32.mrf.mxu0
      %v9335 = vadd.f32 %v9321, %v9334
      %v9336 = vpop.f32.mrf.mxu0
      %v9337 = vadd.f32 %v9323, %v9336
      %9338 = vdwg.mxu0
      %9339 = vmatpush.bf16.msra.mxu0 %v6284
      %9340 = vmatpush.bf16.msra.mxu0 %v6272
      %9341 = vmatpush.bf16.msra.mxu0 %v6260
      %9342 = vmatpush.bf16.msra.mxu0 %v6248
      %9343 = vmatpush.bf16.msra.mxu0 %v6236
      %9344 = vmatpush.bf16.msra.mxu0 %v6224
      %9345 = vmatpush.bf16.msra.mxu0 %v6212
      %9346 = vmatpush.bf16.msra.mxu0 %v6200
      %9347 = vmatmul.bf16.gmra.mxu0 %v1519
      %v9348 = vpop.f32.mrf.mxu0
      %v9349 = vadd.f32 0.0, %v9348
      %v9350 = vpop.f32.mrf.mxu0
      %v9351 = vadd.f32 0.0, %v9350
      %9352 = vdwg.mxu0
      %9353 = vmatpush.bf16.msra.mxu0 %v6380
      %9354 = vmatpush.bf16.msra.mxu0 %v6368
      %9355 = vmatpush.bf16.msra.mxu0 %v6356
      %9356 = vmatpush.bf16.msra.mxu0 %v6344
      %9357 = vmatpush.bf16.msra.mxu0 %v6332
      %9358 = vmatpush.bf16.msra.mxu0 %v6320
      %9359 = vmatpush.bf16.msra.mxu0 %v6308
      %9360 = vmatpush.bf16.msra.mxu0 %v6296
      %9361 = vmatmul.bf16.gmra.mxu0 %v1525
      %v9362 = vpop.f32.mrf.mxu0
      %v9363 = vadd.f32 %v9349, %v9362
      %v9364 = vpop.f32.mrf.mxu0
      %v9365 = vadd.f32 %v9351, %v9364
      %9366 = vdwg.mxu0
      %9367 = vmatpush.bf16.msra.mxu0 %v6476
      %9368 = vmatpush.bf16.msra.mxu0 %v6464
      %9369 = vmatpush.bf16.msra.mxu0 %v6452
      %9370 = vmatpush.bf16.msra.mxu0 %v6440
      %9371 = vmatpush.bf16.msra.mxu0 %v6428
      %9372 = vmatpush.bf16.msra.mxu0 %v6416
      %9373 = vmatpush.bf16.msra.mxu0 %v6404
      %9374 = vmatpush.bf16.msra.mxu0 %v6392
      %9375 = vmatmul.bf16.gmra.mxu0 %v1531
      %v9376 = vpop.f32.mrf.mxu0
      %v9377 = vadd.f32 %v9363, %v9376
      %v9378 = vpop.f32.mrf.mxu0
      %v9379 = vadd.f32 %v9365, %v9378
      %9380 = vdwg.mxu0
      %9381 = vmatpush.bf16.msra.mxu0 %v6572
      %9382 = vmatpush.bf16.msra.mxu0 %v6560
      %9383 = vmatpush.bf16.msra.mxu0 %v6548
      %9384 = vmatpush.bf16.msra.mxu0 %v6536
      %9385 = vmatpush.bf16.msra.mxu0 %v6524
      %9386 = vmatpush.bf16.msra.mxu0 %v6512
      %9387 = vmatpush.bf16.msra.mxu0 %v6500
      %9388 = vmatpush.bf16.msra.mxu0 %v6488
      %9389 = vmatmul.bf16.gmra.mxu0 %v1537
      %v9390 = vpop.f32.mrf.mxu0
      %v9391 = vadd.f32 %v9377, %v9390
      %v9392 = vpop.f32.mrf.mxu0
      %v9393 = vadd.f32 %v9379, %v9392
      %9394 = vdwg.mxu0
      %9395 = vmatpush.bf16.msra.mxu0 %v6668
      %9396 = vmatpush.bf16.msra.mxu0 %v6656
      %9397 = vmatpush.bf16.msra.mxu0 %v6644
      %9398 = vmatpush.bf16.msra.mxu0 %v6632
      %9399 = vmatpush.bf16.msra.mxu0 %v6620
      %9400 = vmatpush.bf16.msra.mxu0 %v6608
      %9401 = vmatpush.bf16.msra.mxu0 %v6596
      %9402 = vmatpush.bf16.msra.mxu0 %v6584
      %9403 = vmatmul.bf16.gmra.mxu0 %v1543
      %v9404 = vpop.f32.mrf.mxu0
      %v9405 = vadd.f32 %v9391, %v9404
      %v9406 = vpop.f32.mrf.mxu0
      %v9407 = vadd.f32 %v9393, %v9406
      %9408 = vdwg.mxu0
      %9409 = vmatpush.bf16.msra.mxu0 %v6764
      %9410 = vmatpush.bf16.msra.mxu0 %v6752
      %9411 = vmatpush.bf16.msra.mxu0 %v6740
      %9412 = vmatpush.bf16.msra.mxu0 %v6728
      %9413 = vmatpush.bf16.msra.mxu0 %v6716
      %9414 = vmatpush.bf16.msra.mxu0 %v6704
      %9415 = vmatpush.bf16.msra.mxu0 %v6692
      %9416 = vmatpush.bf16.msra.mxu0 %v6680
      %9417 = vmatmul.bf16.gmra.mxu0 %v1549
      %v9418 = vpop.f32.mrf.mxu0
      %v9419 = vadd.f32 %v9405, %v9418
      %v9420 = vpop.f32.mrf.mxu0
      %v9421 = vadd.f32 %v9407, %v9420
      %9422 = vdwg.mxu0
      %9423 = vmatpush.bf16.msra.mxu0 %v6860
      %9424 = vmatpush.bf16.msra.mxu0 %v6848
      %9425 = vmatpush.bf16.msra.mxu0 %v6836
      %9426 = vmatpush.bf16.msra.mxu0 %v6824
      %9427 = vmatpush.bf16.msra.mxu0 %v6812
      %9428 = vmatpush.bf16.msra.mxu0 %v6800
      %9429 = vmatpush.bf16.msra.mxu0 %v6788
      %9430 = vmatpush.bf16.msra.mxu0 %v6776
      %9431 = vmatmul.bf16.gmra.mxu0 %v1555
      %v9432 = vpop.f32.mrf.mxu0
      %v9433 = vadd.f32 %v9419, %v9432
      %v9434 = vpop.f32.mrf.mxu0
      %v9435 = vadd.f32 %v9421, %v9434
      %9436 = vdwg.mxu0
      %9437 = vmatpush.bf16.msra.mxu0 %v6956
      %9438 = vmatpush.bf16.msra.mxu0 %v6944
      %9439 = vmatpush.bf16.msra.mxu0 %v6932
      %9440 = vmatpush.bf16.msra.mxu0 %v6920
      %9441 = vmatpush.bf16.msra.mxu0 %v6908
      %9442 = vmatpush.bf16.msra.mxu0 %v6896
      %9443 = vmatpush.bf16.msra.mxu0 %v6884
      %9444 = vmatpush.bf16.msra.mxu0 %v6872
      %9445 = vmatmul.bf16.gmra.mxu0 %v1561
      %v9446 = vpop.f32.mrf.mxu0
      %v9447 = vadd.f32 %v9433, %v9446
      %v9448 = vpop.f32.mrf.mxu0
      %v9449 = vadd.f32 %v9435, %v9448
      %9450 = vdwg.mxu0
      %9451 = vmatpush.bf16.msra.mxu0 %v7052
      %9452 = vmatpush.bf16.msra.mxu0 %v7040
      %9453 = vmatpush.bf16.msra.mxu0 %v7028
      %9454 = vmatpush.bf16.msra.mxu0 %v7016
      %9455 = vmatpush.bf16.msra.mxu0 %v7004
      %9456 = vmatpush.bf16.msra.mxu0 %v6992
      %9457 = vmatpush.bf16.msra.mxu0 %v6980
      %9458 = vmatpush.bf16.msra.mxu0 %v6968
      %9459 = vmatmul.bf16.gmra.mxu0 %v1567
      %v9460 = vpop.f32.mrf.mxu0
      %v9461 = vadd.f32 %v9447, %v9460
      %v9462 = vpop.f32.mrf.mxu0
      %v9463 = vadd.f32 %v9449, %v9462
      %9464 = vdwg.mxu0
      %9465 = vmatpush.bf16.msra.mxu0 %v7148
      %9466 = vmatpush.bf16.msra.mxu0 %v7136
      %9467 = vmatpush.bf16.msra.mxu0 %v7124
      %9468 = vmatpush.bf16.msra.mxu0 %v7112
      %9469 = vmatpush.bf16.msra.mxu0 %v7100
      %9470 = vmatpush.bf16.msra.mxu0 %v7088
      %9471 = vmatpush.bf16.msra.mxu0 %v7076
      %9472 = vmatpush.bf16.msra.mxu0 %v7064
      %9473 = vmatmul.bf16.gmra.mxu0 %v1573
      %v9474 = vpop.f32.mrf.mxu0
      %v9475 = vadd.f32 %v9461, %v9474
      %v9476 = vpop.f32.mrf.mxu0
      %v9477 = vadd.f32 %v9463, %v9476
      %9478 = vdwg.mxu0
      %9479 = vmatpush.bf16.msra.mxu0 %v7244
      %9480 = vmatpush.bf16.msra.mxu0 %v7232
      %9481 = vmatpush.bf16.msra.mxu0 %v7220
      %9482 = vmatpush.bf16.msra.mxu0 %v7208
      %9483 = vmatpush.bf16.msra.mxu0 %v7196
      %9484 = vmatpush.bf16.msra.mxu0 %v7184
      %9485 = vmatpush.bf16.msra.mxu0 %v7172
      %9486 = vmatpush.bf16.msra.mxu0 %v7160
      %9487 = vmatmul.bf16.gmra.mxu0 %v1579
      %v9488 = vpop.f32.mrf.mxu0
      %v9489 = vadd.f32 %v9475, %v9488
      %v9490 = vpop.f32.mrf.mxu0
      %v9491 = vadd.f32 %v9477, %v9490
      %9492 = vdwg.mxu0
      %9493 = vmatpush.bf16.msra.mxu0 %v7340
      %9494 = vmatpush.bf16.msra.mxu0 %v7328
      %9495 = vmatpush.bf16.msra.mxu0 %v7316
      %9496 = vmatpush.bf16.msra.mxu0 %v7304
      %9497 = vmatpush.bf16.msra.mxu0 %v7292
      %9498 = vmatpush.bf16.msra.mxu0 %v7280
      %9499 = vmatpush.bf16.msra.mxu0 %v7268
      %9500 = vmatpush.bf16.msra.mxu0 %v7256
      %9501 = vmatmul.bf16.gmra.mxu0 %v1585
      %v9502 = vpop.f32.mrf.mxu0
      %v9503 = vadd.f32 %v9489, %v9502
      %v9504 = vpop.f32.mrf.mxu0
      %v9505 = vadd.f32 %v9491, %v9504
      %9506 = vdwg.mxu0
      %9507 = vmatpush.bf16.msra.mxu0 %v6285
      %9508 = vmatpush.bf16.msra.mxu0 %v6273
      %9509 = vmatpush.bf16.msra.mxu0 %v6261
      %9510 = vmatpush.bf16.msra.mxu0 %v6249
      %9511 = vmatpush.bf16.msra.mxu0 %v6237
      %9512 = vmatpush.bf16.msra.mxu0 %v6225
      %9513 = vmatpush.bf16.msra.mxu0 %v6213
      %9514 = vmatpush.bf16.msra.mxu0 %v6201
      %9515 = vmatmul.bf16.gmra.mxu0 %v1519
      %v9516 = vpop.f32.mrf.mxu0
      %v9517 = vadd.f32 0.0, %v9516
      %v9518 = vpop.f32.mrf.mxu0
      %v9519 = vadd.f32 0.0, %v9518
      %9520 = vdwg.mxu0
      %9521 = vmatpush.bf16.msra.mxu0 %v6381
      %9522 = vmatpush.bf16.msra.mxu0 %v6369
      %9523 = vmatpush.bf16.msra.mxu0 %v6357
      %9524 = vmatpush.bf16.msra.mxu0 %v6345
      %9525 = vmatpush.bf16.msra.mxu0 %v6333
      %9526 = vmatpush.bf16.msra.mxu0 %v6321
      %9527 = vmatpush.bf16.msra.mxu0 %v6309
      %9528 = vmatpush.bf16.msra.mxu0 %v6297
      %9529 = vmatmul.bf16.gmra.mxu0 %v1525
      %v9530 = vpop.f32.mrf.mxu0
      %v9531 = vadd.f32 %v9517, %v9530
      %v9532 = vpop.f32.mrf.mxu0
      %v9533 = vadd.f32 %v9519, %v9532
      %9534 = vdwg.mxu0
      %9535 = vmatpush.bf16.msra.mxu0 %v6477
      %9536 = vmatpush.bf16.msra.mxu0 %v6465
      %9537 = vmatpush.bf16.msra.mxu0 %v6453
      %9538 = vmatpush.bf16.msra.mxu0 %v6441
      %9539 = vmatpush.bf16.msra.mxu0 %v6429
      %9540 = vmatpush.bf16.msra.mxu0 %v6417
      %9541 = vmatpush.bf16.msra.mxu0 %v6405
      %9542 = vmatpush.bf16.msra.mxu0 %v6393
      %9543 = vmatmul.bf16.gmra.mxu0 %v1531
      %v9544 = vpop.f32.mrf.mxu0
      %v9545 = vadd.f32 %v9531, %v9544
      %v9546 = vpop.f32.mrf.mxu0
      %v9547 = vadd.f32 %v9533, %v9546
      %9548 = vdwg.mxu0
      %9549 = vmatpush.bf16.msra.mxu0 %v6573
      %9550 = vmatpush.bf16.msra.mxu0 %v6561
      %9551 = vmatpush.bf16.msra.mxu0 %v6549
      %9552 = vmatpush.bf16.msra.mxu0 %v6537
      %9553 = vmatpush.bf16.msra.mxu0 %v6525
      %9554 = vmatpush.bf16.msra.mxu0 %v6513
      %9555 = vmatpush.bf16.msra.mxu0 %v6501
      %9556 = vmatpush.bf16.msra.mxu0 %v6489
      %9557 = vmatmul.bf16.gmra.mxu0 %v1537
      %v9558 = vpop.f32.mrf.mxu0
      %v9559 = vadd.f32 %v9545, %v9558
      %v9560 = vpop.f32.mrf.mxu0
      %v9561 = vadd.f32 %v9547, %v9560
      %9562 = vdwg.mxu0
      %9563 = vmatpush.bf16.msra.mxu0 %v6669
      %9564 = vmatpush.bf16.msra.mxu0 %v6657
      %9565 = vmatpush.bf16.msra.mxu0 %v6645
      %9566 = vmatpush.bf16.msra.mxu0 %v6633
      %9567 = vmatpush.bf16.msra.mxu0 %v6621
      %9568 = vmatpush.bf16.msra.mxu0 %v6609
      %9569 = vmatpush.bf16.msra.mxu0 %v6597
      %9570 = vmatpush.bf16.msra.mxu0 %v6585
      %9571 = vmatmul.bf16.gmra.mxu0 %v1543
      %v9572 = vpop.f32.mrf.mxu0
      %v9573 = vadd.f32 %v9559, %v9572
      %v9574 = vpop.f32.mrf.mxu0
      %v9575 = vadd.f32 %v9561, %v9574
      %9576 = vdwg.mxu0
      %9577 = vmatpush.bf16.msra.mxu0 %v6765
      %9578 = vmatpush.bf16.msra.mxu0 %v6753
      %9579 = vmatpush.bf16.msra.mxu0 %v6741
      %9580 = vmatpush.bf16.msra.mxu0 %v6729
      %9581 = vmatpush.bf16.msra.mxu0 %v6717
      %9582 = vmatpush.bf16.msra.mxu0 %v6705
      %9583 = vmatpush.bf16.msra.mxu0 %v6693
      %9584 = vmatpush.bf16.msra.mxu0 %v6681
      %9585 = vmatmul.bf16.gmra.mxu0 %v1549
      %v9586 = vpop.f32.mrf.mxu0
      %v9587 = vadd.f32 %v9573, %v9586
      %v9588 = vpop.f32.mrf.mxu0
      %v9589 = vadd.f32 %v9575, %v9588
      %9590 = vdwg.mxu0
      %9591 = vmatpush.bf16.msra.mxu0 %v6861
      %9592 = vmatpush.bf16.msra.mxu0 %v6849
      %9593 = vmatpush.bf16.msra.mxu0 %v6837
      %9594 = vmatpush.bf16.msra.mxu0 %v6825
      %9595 = vmatpush.bf16.msra.mxu0 %v6813
      %9596 = vmatpush.bf16.msra.mxu0 %v6801
      %9597 = vmatpush.bf16.msra.mxu0 %v6789
      %9598 = vmatpush.bf16.msra.mxu0 %v6777
      %9599 = vmatmul.bf16.gmra.mxu0 %v1555
      %v9600 = vpop.f32.mrf.mxu0
      %v9601 = vadd.f32 %v9587, %v9600
      %v9602 = vpop.f32.mrf.mxu0
      %v9603 = vadd.f32 %v9589, %v9602
      %9604 = vdwg.mxu0
      %9605 = vmatpush.bf16.msra.mxu0 %v6957
      %9606 = vmatpush.bf16.msra.mxu0 %v6945
      %9607 = vmatpush.bf16.msra.mxu0 %v6933
      %9608 = vmatpush.bf16.msra.mxu0 %v6921
      %9609 = vmatpush.bf16.msra.mxu0 %v6909
      %9610 = vmatpush.bf16.msra.mxu0 %v6897
      %9611 = vmatpush.bf16.msra.mxu0 %v6885
      %9612 = vmatpush.bf16.msra.mxu0 %v6873
      %9613 = vmatmul.bf16.gmra.mxu0 %v1561
      %v9614 = vpop.f32.mrf.mxu0
      %v9615 = vadd.f32 %v9601, %v9614
      %v9616 = vpop.f32.mrf.mxu0
      %v9617 = vadd.f32 %v9603, %v9616
      %9618 = vdwg.mxu0
      %9619 = vmatpush.bf16.msra.mxu0 %v7053
      %9620 = vmatpush.bf16.msra.mxu0 %v7041
      %9621 = vmatpush.bf16.msra.mxu0 %v7029
      %9622 = vmatpush.bf16.msra.mxu0 %v7017
      %9623 = vmatpush.bf16.msra.mxu0 %v7005
      %9624 = vmatpush.bf16.msra.mxu0 %v6993
      %9625 = vmatpush.bf16.msra.mxu0 %v6981
      %9626 = vmatpush.bf16.msra.mxu0 %v6969
      %9627 = vmatmul.bf16.gmra.mxu0 %v1567
      %v9628 = vpop.f32.mrf.mxu0
      %v9629 = vadd.f32 %v9615, %v9628
      %v9630 = vpop.f32.mrf.mxu0
      %v9631 = vadd.f32 %v9617, %v9630
      %9632 = vdwg.mxu0
      %9633 = vmatpush.bf16.msra.mxu0 %v7149
      %9634 = vmatpush.bf16.msra.mxu0 %v7137
      %9635 = vmatpush.bf16.msra.mxu0 %v7125
      %9636 = vmatpush.bf16.msra.mxu0 %v7113
      %9637 = vmatpush.bf16.msra.mxu0 %v7101
      %9638 = vmatpush.bf16.msra.mxu0 %v7089
      %9639 = vmatpush.bf16.msra.mxu0 %v7077
      %9640 = vmatpush.bf16.msra.mxu0 %v7065
      %9641 = vmatmul.bf16.gmra.mxu0 %v1573
      %v9642 = vpop.f32.mrf.mxu0
      %v9643 = vadd.f32 %v9629, %v9642
      %v9644 = vpop.f32.mrf.mxu0
      %v9645 = vadd.f32 %v9631, %v9644
      %9646 = vdwg.mxu0
      %9647 = vmatpush.bf16.msra.mxu0 %v7245
      %9648 = vmatpush.bf16.msra.mxu0 %v7233
      %9649 = vmatpush.bf16.msra.mxu0 %v7221
      %9650 = vmatpush.bf16.msra.mxu0 %v7209
      %9651 = vmatpush.bf16.msra.mxu0 %v7197
      %9652 = vmatpush.bf16.msra.mxu0 %v7185
      %9653 = vmatpush.bf16.msra.mxu0 %v7173
      %9654 = vmatpush.bf16.msra.mxu0 %v7161
      %9655 = vmatmul.bf16.gmra.mxu0 %v1579
      %v9656 = vpop.f32.mrf.mxu0
      %v9657 = vadd.f32 %v9643, %v9656
      %v9658 = vpop.f32.mrf.mxu0
      %v9659 = vadd.f32 %v9645, %v9658
      %9660 = vdwg.mxu0
      %9661 = vmatpush.bf16.msra.mxu0 %v7341
      %9662 = vmatpush.bf16.msra.mxu0 %v7329
      %9663 = vmatpush.bf16.msra.mxu0 %v7317
      %9664 = vmatpush.bf16.msra.mxu0 %v7305
      %9665 = vmatpush.bf16.msra.mxu0 %v7293
      %9666 = vmatpush.bf16.msra.mxu0 %v7281
      %9667 = vmatpush.bf16.msra.mxu0 %v7269
      %9668 = vmatpush.bf16.msra.mxu0 %v7257
      %9669 = vmatmul.bf16.gmra.mxu0 %v1585
      %v9670 = vpop.f32.mrf.mxu0
      %v9671 = vadd.f32 %v9657, %v9670
      %v9672 = vpop.f32.mrf.mxu0
      %v9673 = vadd.f32 %v9659, %v9672
      %9674 = vdwg.mxu0
      %9675 = vmatpush.bf16.msra.mxu0 %v6286
      %9676 = vmatpush.bf16.msra.mxu0 %v6274
      %9677 = vmatpush.bf16.msra.mxu0 %v6262
      %9678 = vmatpush.bf16.msra.mxu0 %v6250
      %9679 = vmatpush.bf16.msra.mxu0 %v6238
      %9680 = vmatpush.bf16.msra.mxu0 %v6226
      %9681 = vmatpush.bf16.msra.mxu0 %v6214
      %9682 = vmatpush.bf16.msra.mxu0 %v6202
      %9683 = vmatmul.bf16.gmra.mxu0 %v1519
      %v9684 = vpop.f32.mrf.mxu0
      %v9685 = vadd.f32 0.0, %v9684
      %v9686 = vpop.f32.mrf.mxu0
      %v9687 = vadd.f32 0.0, %v9686
      %9688 = vdwg.mxu0
      %9689 = vmatpush.bf16.msra.mxu0 %v6382
      %9690 = vmatpush.bf16.msra.mxu0 %v6370
      %9691 = vmatpush.bf16.msra.mxu0 %v6358
      %9692 = vmatpush.bf16.msra.mxu0 %v6346
      %9693 = vmatpush.bf16.msra.mxu0 %v6334
      %9694 = vmatpush.bf16.msra.mxu0 %v6322
      %9695 = vmatpush.bf16.msra.mxu0 %v6310
      %9696 = vmatpush.bf16.msra.mxu0 %v6298
      %9697 = vmatmul.bf16.gmra.mxu0 %v1525
      %v9698 = vpop.f32.mrf.mxu0
      %v9699 = vadd.f32 %v9685, %v9698
      %v9700 = vpop.f32.mrf.mxu0
      %v9701 = vadd.f32 %v9687, %v9700
      %9702 = vdwg.mxu0
      %9703 = vmatpush.bf16.msra.mxu0 %v6478
      %9704 = vmatpush.bf16.msra.mxu0 %v6466
      %9705 = vmatpush.bf16.msra.mxu0 %v6454
      %9706 = vmatpush.bf16.msra.mxu0 %v6442
      %9707 = vmatpush.bf16.msra.mxu0 %v6430
      %9708 = vmatpush.bf16.msra.mxu0 %v6418
      %9709 = vmatpush.bf16.msra.mxu0 %v6406
      %9710 = vmatpush.bf16.msra.mxu0 %v6394
      %9711 = vmatmul.bf16.gmra.mxu0 %v1531
      %v9712 = vpop.f32.mrf.mxu0
      %v9713 = vadd.f32 %v9699, %v9712
      %v9714 = vpop.f32.mrf.mxu0
      %v9715 = vadd.f32 %v9701, %v9714
      %9716 = vdwg.mxu0
      %9717 = vmatpush.bf16.msra.mxu0 %v6574
      %9718 = vmatpush.bf16.msra.mxu0 %v6562
      %9719 = vmatpush.bf16.msra.mxu0 %v6550
      %9720 = vmatpush.bf16.msra.mxu0 %v6538
      %9721 = vmatpush.bf16.msra.mxu0 %v6526
      %9722 = vmatpush.bf16.msra.mxu0 %v6514
      %9723 = vmatpush.bf16.msra.mxu0 %v6502
      %9724 = vmatpush.bf16.msra.mxu0 %v6490
      %9725 = vmatmul.bf16.gmra.mxu0 %v1537
      %v9726 = vpop.f32.mrf.mxu0
      %v9727 = vadd.f32 %v9713, %v9726
      %v9728 = vpop.f32.mrf.mxu0
      %v9729 = vadd.f32 %v9715, %v9728
      %9730 = vdwg.mxu0
      %9731 = vmatpush.bf16.msra.mxu0 %v6670
      %9732 = vmatpush.bf16.msra.mxu0 %v6658
      %9733 = vmatpush.bf16.msra.mxu0 %v6646
      %9734 = vmatpush.bf16.msra.mxu0 %v6634
      %9735 = vmatpush.bf16.msra.mxu0 %v6622
      %9736 = vmatpush.bf16.msra.mxu0 %v6610
      %9737 = vmatpush.bf16.msra.mxu0 %v6598
      %9738 = vmatpush.bf16.msra.mxu0 %v6586
      %9739 = vmatmul.bf16.gmra.mxu0 %v1543
      %v9740 = vpop.f32.mrf.mxu0
      %v9741 = vadd.f32 %v9727, %v9740
      %v9742 = vpop.f32.mrf.mxu0
      %v9743 = vadd.f32 %v9729, %v9742
      %9744 = vdwg.mxu0
      %9745 = vmatpush.bf16.msra.mxu0 %v6766
      %9746 = vmatpush.bf16.msra.mxu0 %v6754
      %9747 = vmatpush.bf16.msra.mxu0 %v6742
      %9748 = vmatpush.bf16.msra.mxu0 %v6730
      %9749 = vmatpush.bf16.msra.mxu0 %v6718
      %9750 = vmatpush.bf16.msra.mxu0 %v6706
      %9751 = vmatpush.bf16.msra.mxu0 %v6694
      %9752 = vmatpush.bf16.msra.mxu0 %v6682
      %9753 = vmatmul.bf16.gmra.mxu0 %v1549
      %v9754 = vpop.f32.mrf.mxu0
      %v9755 = vadd.f32 %v9741, %v9754
      %v9756 = vpop.f32.mrf.mxu0
      %v9757 = vadd.f32 %v9743, %v9756
      %9758 = vdwg.mxu0
      %9759 = vmatpush.bf16.msra.mxu0 %v6862
      %9760 = vmatpush.bf16.msra.mxu0 %v6850
      %9761 = vmatpush.bf16.msra.mxu0 %v6838
      %9762 = vmatpush.bf16.msra.mxu0 %v6826
      %9763 = vmatpush.bf16.msra.mxu0 %v6814
      %9764 = vmatpush.bf16.msra.mxu0 %v6802
      %9765 = vmatpush.bf16.msra.mxu0 %v6790
      %9766 = vmatpush.bf16.msra.mxu0 %v6778
      %9767 = vmatmul.bf16.gmra.mxu0 %v1555
      %v9768 = vpop.f32.mrf.mxu0
      %v9769 = vadd.f32 %v9755, %v9768
      %v9770 = vpop.f32.mrf.mxu0
      %v9771 = vadd.f32 %v9757, %v9770
      %9772 = vdwg.mxu0
      %9773 = vmatpush.bf16.msra.mxu0 %v6958
      %9774 = vmatpush.bf16.msra.mxu0 %v6946
      %9775 = vmatpush.bf16.msra.mxu0 %v6934
      %9776 = vmatpush.bf16.msra.mxu0 %v6922
      %9777 = vmatpush.bf16.msra.mxu0 %v6910
      %9778 = vmatpush.bf16.msra.mxu0 %v6898
      %9779 = vmatpush.bf16.msra.mxu0 %v6886
      %9780 = vmatpush.bf16.msra.mxu0 %v6874
      %9781 = vmatmul.bf16.gmra.mxu0 %v1561
      %v9782 = vpop.f32.mrf.mxu0
      %v9783 = vadd.f32 %v9769, %v9782
      %v9784 = vpop.f32.mrf.mxu0
      %v9785 = vadd.f32 %v9771, %v9784
      %9786 = vdwg.mxu0
      %9787 = vmatpush.bf16.msra.mxu0 %v7054
      %9788 = vmatpush.bf16.msra.mxu0 %v7042
      %9789 = vmatpush.bf16.msra.mxu0 %v7030
      %9790 = vmatpush.bf16.msra.mxu0 %v7018
      %9791 = vmatpush.bf16.msra.mxu0 %v7006
      %9792 = vmatpush.bf16.msra.mxu0 %v6994
      %9793 = vmatpush.bf16.msra.mxu0 %v6982
      %9794 = vmatpush.bf16.msra.mxu0 %v6970
      %9795 = vmatmul.bf16.gmra.mxu0 %v1567
      %v9796 = vpop.f32.mrf.mxu0
      %v9797 = vadd.f32 %v9783, %v9796
      %v9798 = vpop.f32.mrf.mxu0
      %v9799 = vadd.f32 %v9785, %v9798
      %9800 = vdwg.mxu0
      %9801 = vmatpush.bf16.msra.mxu0 %v7150
      %9802 = vmatpush.bf16.msra.mxu0 %v7138
      %9803 = vmatpush.bf16.msra.mxu0 %v7126
      %9804 = vmatpush.bf16.msra.mxu0 %v7114
      %9805 = vmatpush.bf16.msra.mxu0 %v7102
      %9806 = vmatpush.bf16.msra.mxu0 %v7090
      %9807 = vmatpush.bf16.msra.mxu0 %v7078
      %9808 = vmatpush.bf16.msra.mxu0 %v7066
      %9809 = vmatmul.bf16.gmra.mxu0 %v1573
      %v9810 = vpop.f32.mrf.mxu0
      %v9811 = vadd.f32 %v9797, %v9810
      %v9812 = vpop.f32.mrf.mxu0
      %v9813 = vadd.f32 %v9799, %v9812
      %9814 = vdwg.mxu0
      %9815 = vmatpush.bf16.msra.mxu0 %v7246
      %9816 = vmatpush.bf16.msra.mxu0 %v7234
      %9817 = vmatpush.bf16.msra.mxu0 %v7222
      %9818 = vmatpush.bf16.msra.mxu0 %v7210
      %9819 = vmatpush.bf16.msra.mxu0 %v7198
      %9820 = vmatpush.bf16.msra.mxu0 %v7186
      %9821 = vmatpush.bf16.msra.mxu0 %v7174
      %9822 = vmatpush.bf16.msra.mxu0 %v7162
      %9823 = vmatmul.bf16.gmra.mxu0 %v1579
      %v9824 = vpop.f32.mrf.mxu0
      %v9825 = vadd.f32 %v9811, %v9824
      %v9826 = vpop.f32.mrf.mxu0
      %v9827 = vadd.f32 %v9813, %v9826
      %9828 = vdwg.mxu0
      %9829 = vmatpush.bf16.msra.mxu0 %v7342
      %9830 = vmatpush.bf16.msra.mxu0 %v7330
      %9831 = vmatpush.bf16.msra.mxu0 %v7318
      %9832 = vmatpush.bf16.msra.mxu0 %v7306
      %9833 = vmatpush.bf16.msra.mxu0 %v7294
      %9834 = vmatpush.bf16.msra.mxu0 %v7282
      %9835 = vmatpush.bf16.msra.mxu0 %v7270
      %9836 = vmatpush.bf16.msra.mxu0 %v7258
      %9837 = vmatmul.bf16.gmra.mxu0 %v1585
      %v9838 = vpop.f32.mrf.mxu0
      %v9839 = vadd.f32 %v9825, %v9838
      %v9840 = vpop.f32.mrf.mxu0
      %v9841 = vadd.f32 %v9827, %v9840
      %9842 = vdwg.mxu0
      %9843 = vmatpush.bf16.msra.mxu0 %v6287
      %9844 = vmatpush.bf16.msra.mxu0 %v6275
      %9845 = vmatpush.bf16.msra.mxu0 %v6263
      %9846 = vmatpush.bf16.msra.mxu0 %v6251
      %9847 = vmatpush.bf16.msra.mxu0 %v6239
      %9848 = vmatpush.bf16.msra.mxu0 %v6227
      %9849 = vmatpush.bf16.msra.mxu0 %v6215
      %9850 = vmatpush.bf16.msra.mxu0 %v6203
      %9851 = vmatmul.bf16.gmra.mxu0 %v1519
      %v9852 = vpop.f32.mrf.mxu0
      %v9853 = vadd.f32 0.0, %v9852
      %v9854 = vpop.f32.mrf.mxu0
      %v9855 = vadd.f32 0.0, %v9854
      %9856 = vdwg.mxu0
      %9857 = vmatpush.bf16.msra.mxu0 %v6383
      %9858 = vmatpush.bf16.msra.mxu0 %v6371
      %9859 = vmatpush.bf16.msra.mxu0 %v6359
      %9860 = vmatpush.bf16.msra.mxu0 %v6347
      %9861 = vmatpush.bf16.msra.mxu0 %v6335
      %9862 = vmatpush.bf16.msra.mxu0 %v6323
      %9863 = vmatpush.bf16.msra.mxu0 %v6311
      %9864 = vmatpush.bf16.msra.mxu0 %v6299
      %9865 = vmatmul.bf16.gmra.mxu0 %v1525
      %v9866 = vpop.f32.mrf.mxu0
      %v9867 = vadd.f32 %v9853, %v9866
      %v9868 = vpop.f32.mrf.mxu0
      %v9869 = vadd.f32 %v9855, %v9868
      %9870 = vdwg.mxu0
      %9871 = vmatpush.bf16.msra.mxu0 %v6479
      %9872 = vmatpush.bf16.msra.mxu0 %v6467
      %9873 = vmatpush.bf16.msra.mxu0 %v6455
      %9874 = vmatpush.bf16.msra.mxu0 %v6443
      %9875 = vmatpush.bf16.msra.mxu0 %v6431
      %9876 = vmatpush.bf16.msra.mxu0 %v6419
      %9877 = vmatpush.bf16.msra.mxu0 %v6407
      %9878 = vmatpush.bf16.msra.mxu0 %v6395
      %9879 = vmatmul.bf16.gmra.mxu0 %v1531
      %v9880 = vpop.f32.mrf.mxu0
      %v9881 = vadd.f32 %v9867, %v9880
      %v9882 = vpop.f32.mrf.mxu0
      %v9883 = vadd.f32 %v9869, %v9882
      %9884 = vdwg.mxu0
      %9885 = vmatpush.bf16.msra.mxu0 %v6575
      %9886 = vmatpush.bf16.msra.mxu0 %v6563
      %9887 = vmatpush.bf16.msra.mxu0 %v6551
      %9888 = vmatpush.bf16.msra.mxu0 %v6539
      %9889 = vmatpush.bf16.msra.mxu0 %v6527
      %9890 = vmatpush.bf16.msra.mxu0 %v6515
      %9891 = vmatpush.bf16.msra.mxu0 %v6503
      %9892 = vmatpush.bf16.msra.mxu0 %v6491
      %9893 = vmatmul.bf16.gmra.mxu0 %v1537
      %v9894 = vpop.f32.mrf.mxu0
      %v9895 = vadd.f32 %v9881, %v9894
      %v9896 = vpop.f32.mrf.mxu0
      %v9897 = vadd.f32 %v9883, %v9896
      %9898 = vdwg.mxu0
      %9899 = vmatpush.bf16.msra.mxu0 %v6671
      %9900 = vmatpush.bf16.msra.mxu0 %v6659
      %9901 = vmatpush.bf16.msra.mxu0 %v6647
      %9902 = vmatpush.bf16.msra.mxu0 %v6635
      %9903 = vmatpush.bf16.msra.mxu0 %v6623
      %9904 = vmatpush.bf16.msra.mxu0 %v6611
      %9905 = vmatpush.bf16.msra.mxu0 %v6599
      %9906 = vmatpush.bf16.msra.mxu0 %v6587
      %9907 = vmatmul.bf16.gmra.mxu0 %v1543
      %v9908 = vpop.f32.mrf.mxu0
      %v9909 = vadd.f32 %v9895, %v9908
      %v9910 = vpop.f32.mrf.mxu0
      %v9911 = vadd.f32 %v9897, %v9910
      %9912 = vdwg.mxu0
      %9913 = vmatpush.bf16.msra.mxu0 %v6767
      %9914 = vmatpush.bf16.msra.mxu0 %v6755
      %9915 = vmatpush.bf16.msra.mxu0 %v6743
      %9916 = vmatpush.bf16.msra.mxu0 %v6731
      %9917 = vmatpush.bf16.msra.mxu0 %v6719
      %9918 = vmatpush.bf16.msra.mxu0 %v6707
      %9919 = vmatpush.bf16.msra.mxu0 %v6695
      %9920 = vmatpush.bf16.msra.mxu0 %v6683
      %9921 = vmatmul.bf16.gmra.mxu0 %v1549
      %v9922 = vpop.f32.mrf.mxu0
      %v9923 = vadd.f32 %v9909, %v9922
      %v9924 = vpop.f32.mrf.mxu0
      %v9925 = vadd.f32 %v9911, %v9924
      %9926 = vdwg.mxu0
      %9927 = vmatpush.bf16.msra.mxu0 %v6863
      %9928 = vmatpush.bf16.msra.mxu0 %v6851
      %9929 = vmatpush.bf16.msra.mxu0 %v6839
      %9930 = vmatpush.bf16.msra.mxu0 %v6827
      %9931 = vmatpush.bf16.msra.mxu0 %v6815
      %9932 = vmatpush.bf16.msra.mxu0 %v6803
      %9933 = vmatpush.bf16.msra.mxu0 %v6791
      %9934 = vmatpush.bf16.msra.mxu0 %v6779
      %9935 = vmatmul.bf16.gmra.mxu0 %v1555
      %v9936 = vpop.f32.mrf.mxu0
      %v9937 = vadd.f32 %v9923, %v9936
      %v9938 = vpop.f32.mrf.mxu0
      %v9939 = vadd.f32 %v9925, %v9938
      %9940 = vdwg.mxu0
      %9941 = vmatpush.bf16.msra.mxu0 %v6959
      %9942 = vmatpush.bf16.msra.mxu0 %v6947
      %9943 = vmatpush.bf16.msra.mxu0 %v6935
      %9944 = vmatpush.bf16.msra.mxu0 %v6923
      %9945 = vmatpush.bf16.msra.mxu0 %v6911
      %9946 = vmatpush.bf16.msra.mxu0 %v6899
      %9947 = vmatpush.bf16.msra.mxu0 %v6887
      %9948 = vmatpush.bf16.msra.mxu0 %v6875
      %9949 = vmatmul.bf16.gmra.mxu0 %v1561
      %v9950 = vpop.f32.mrf.mxu0
      %v9951 = vadd.f32 %v9937, %v9950
      %v9952 = vpop.f32.mrf.mxu0
      %v9953 = vadd.f32 %v9939, %v9952
      %9954 = vdwg.mxu0
      %9955 = vmatpush.bf16.msra.mxu0 %v7055
      %9956 = vmatpush.bf16.msra.mxu0 %v7043
      %9957 = vmatpush.bf16.msra.mxu0 %v7031
      %9958 = vmatpush.bf16.msra.mxu0 %v7019
      %9959 = vmatpush.bf16.msra.mxu0 %v7007
      %9960 = vmatpush.bf16.msra.mxu0 %v6995
      %9961 = vmatpush.bf16.msra.mxu0 %v6983
      %9962 = vmatpush.bf16.msra.mxu0 %v6971
      %9963 = vmatmul.bf16.gmra.mxu0 %v1567
      %v9964 = vpop.f32.mrf.mxu0
      %v9965 = vadd.f32 %v9951, %v9964
      %v9966 = vpop.f32.mrf.mxu0
      %v9967 = vadd.f32 %v9953, %v9966
      %9968 = vdwg.mxu0
      %9969 = vmatpush.bf16.msra.mxu0 %v7151
      %9970 = vmatpush.bf16.msra.mxu0 %v7139
      %9971 = vmatpush.bf16.msra.mxu0 %v7127
      %9972 = vmatpush.bf16.msra.mxu0 %v7115
      %9973 = vmatpush.bf16.msra.mxu0 %v7103
      %9974 = vmatpush.bf16.msra.mxu0 %v7091
      %9975 = vmatpush.bf16.msra.mxu0 %v7079
      %9976 = vmatpush.bf16.msra.mxu0 %v7067
      %9977 = vmatmul.bf16.gmra.mxu0 %v1573
      %v9978 = vpop.f32.mrf.mxu0
      %v9979 = vadd.f32 %v9965, %v9978
      %v9980 = vpop.f32.mrf.mxu0
      %v9981 = vadd.f32 %v9967, %v9980
      %9982 = vdwg.mxu0
      %9983 = vmatpush.bf16.msra.mxu0 %v7247
      %9984 = vmatpush.bf16.msra.mxu0 %v7235
      %9985 = vmatpush.bf16.msra.mxu0 %v7223
      %9986 = vmatpush.bf16.msra.mxu0 %v7211
      %9987 = vmatpush.bf16.msra.mxu0 %v7199
      %9988 = vmatpush.bf16.msra.mxu0 %v7187
      %9989 = vmatpush.bf16.msra.mxu0 %v7175
      %9990 = vmatpush.bf16.msra.mxu0 %v7163
      %9991 = vmatmul.bf16.gmra.mxu0 %v1579
      %v9992 = vpop.f32.mrf.mxu0
      %v9993 = vadd.f32 %v9979, %v9992
      %v9994 = vpop.f32.mrf.mxu0
      %v9995 = vadd.f32 %v9981, %v9994
      %9996 = vdwg.mxu0
      %9997 = vmatpush.bf16.msra.mxu0 %v7343
      %9998 = vmatpush.bf16.msra.mxu0 %v7331
      %9999 = vmatpush.bf16.msra.mxu0 %v7319
      %10000 = vmatpush.bf16.msra.mxu0 %v7307
      %10001 = vmatpush.bf16.msra.mxu0 %v7295
      %10002 = vmatpush.bf16.msra.mxu0 %v7283
      %10003 = vmatpush.bf16.msra.mxu0 %v7271
      %10004 = vmatpush.bf16.msra.mxu0 %v7259
      %10005 = vmatmul.bf16.gmra.mxu0 %v1585
      %v10006 = vpop.f32.mrf.mxu0
      %v10007 = vadd.f32 %v9993, %v10006
      %v10008 = vpop.f32.mrf.mxu0
      %v10009 = vadd.f32 %v9995, %v10008
      %10010 = vdwg.mxu0
      %10011 = vmatpush.bf16.msra.mxu0 %v6288
      %10012 = vmatpush.bf16.msra.mxu0 %v6276
      %10013 = vmatpush.bf16.msra.mxu0 %v6264
      %10014 = vmatpush.bf16.msra.mxu0 %v6252
      %10015 = vmatpush.bf16.msra.mxu0 %v6240
      %10016 = vmatpush.bf16.msra.mxu0 %v6228
      %10017 = vmatpush.bf16.msra.mxu0 %v6216
      %10018 = vmatpush.bf16.msra.mxu0 %v6204
      %10019 = vmatmul.bf16.gmra.mxu0 %v1519
      %v10020 = vpop.f32.mrf.mxu0
      %v10021 = vadd.f32 0.0, %v10020
      %v10022 = vpop.f32.mrf.mxu0
      %v10023 = vadd.f32 0.0, %v10022
      %10024 = vdwg.mxu0
      %10025 = vmatpush.bf16.msra.mxu0 %v6384
      %10026 = vmatpush.bf16.msra.mxu0 %v6372
      %10027 = vmatpush.bf16.msra.mxu0 %v6360
      %10028 = vmatpush.bf16.msra.mxu0 %v6348
      %10029 = vmatpush.bf16.msra.mxu0 %v6336
      %10030 = vmatpush.bf16.msra.mxu0 %v6324
      %10031 = vmatpush.bf16.msra.mxu0 %v6312
      %10032 = vmatpush.bf16.msra.mxu0 %v6300
      %10033 = vmatmul.bf16.gmra.mxu0 %v1525
      %v10034 = vpop.f32.mrf.mxu0
      %v10035 = vadd.f32 %v10021, %v10034
      %v10036 = vpop.f32.mrf.mxu0
      %v10037 = vadd.f32 %v10023, %v10036
      %10038 = vdwg.mxu0
      %10039 = vmatpush.bf16.msra.mxu0 %v6480
      %10040 = vmatpush.bf16.msra.mxu0 %v6468
      %10041 = vmatpush.bf16.msra.mxu0 %v6456
      %10042 = vmatpush.bf16.msra.mxu0 %v6444
      %10043 = vmatpush.bf16.msra.mxu0 %v6432
      %10044 = vmatpush.bf16.msra.mxu0 %v6420
      %10045 = vmatpush.bf16.msra.mxu0 %v6408
      %10046 = vmatpush.bf16.msra.mxu0 %v6396
      %10047 = vmatmul.bf16.gmra.mxu0 %v1531
      %v10048 = vpop.f32.mrf.mxu0
      %v10049 = vadd.f32 %v10035, %v10048
      %v10050 = vpop.f32.mrf.mxu0
      %v10051 = vadd.f32 %v10037, %v10050
      %10052 = vdwg.mxu0
      %10053 = vmatpush.bf16.msra.mxu0 %v6576
      %10054 = vmatpush.bf16.msra.mxu0 %v6564
      %10055 = vmatpush.bf16.msra.mxu0 %v6552
      %10056 = vmatpush.bf16.msra.mxu0 %v6540
      %10057 = vmatpush.bf16.msra.mxu0 %v6528
      %10058 = vmatpush.bf16.msra.mxu0 %v6516
      %10059 = vmatpush.bf16.msra.mxu0 %v6504
      %10060 = vmatpush.bf16.msra.mxu0 %v6492
      %10061 = vmatmul.bf16.gmra.mxu0 %v1537
      %v10062 = vpop.f32.mrf.mxu0
      %v10063 = vadd.f32 %v10049, %v10062
      %v10064 = vpop.f32.mrf.mxu0
      %v10065 = vadd.f32 %v10051, %v10064
      %10066 = vdwg.mxu0
      %10067 = vmatpush.bf16.msra.mxu0 %v6672
      %10068 = vmatpush.bf16.msra.mxu0 %v6660
      %10069 = vmatpush.bf16.msra.mxu0 %v6648
      %10070 = vmatpush.bf16.msra.mxu0 %v6636
      %10071 = vmatpush.bf16.msra.mxu0 %v6624
      %10072 = vmatpush.bf16.msra.mxu0 %v6612
      %10073 = vmatpush.bf16.msra.mxu0 %v6600
      %10074 = vmatpush.bf16.msra.mxu0 %v6588
      %10075 = vmatmul.bf16.gmra.mxu0 %v1543
      %v10076 = vpop.f32.mrf.mxu0
      %v10077 = vadd.f32 %v10063, %v10076
      %v10078 = vpop.f32.mrf.mxu0
      %v10079 = vadd.f32 %v10065, %v10078
      %10080 = vdwg.mxu0
      %10081 = vmatpush.bf16.msra.mxu0 %v6768
      %10082 = vmatpush.bf16.msra.mxu0 %v6756
      %10083 = vmatpush.bf16.msra.mxu0 %v6744
      %10084 = vmatpush.bf16.msra.mxu0 %v6732
      %10085 = vmatpush.bf16.msra.mxu0 %v6720
      %10086 = vmatpush.bf16.msra.mxu0 %v6708
      %10087 = vmatpush.bf16.msra.mxu0 %v6696
      %10088 = vmatpush.bf16.msra.mxu0 %v6684
      %10089 = vmatmul.bf16.gmra.mxu0 %v1549
      %v10090 = vpop.f32.mrf.mxu0
      %v10091 = vadd.f32 %v10077, %v10090
      %v10092 = vpop.f32.mrf.mxu0
      %v10093 = vadd.f32 %v10079, %v10092
      %10094 = vdwg.mxu0
      %10095 = vmatpush.bf16.msra.mxu0 %v6864
      %10096 = vmatpush.bf16.msra.mxu0 %v6852
      %10097 = vmatpush.bf16.msra.mxu0 %v6840
      %10098 = vmatpush.bf16.msra.mxu0 %v6828
      %10099 = vmatpush.bf16.msra.mxu0 %v6816
      %10100 = vmatpush.bf16.msra.mxu0 %v6804
      %10101 = vmatpush.bf16.msra.mxu0 %v6792
      %10102 = vmatpush.bf16.msra.mxu0 %v6780
      %10103 = vmatmul.bf16.gmra.mxu0 %v1555
      %v10104 = vpop.f32.mrf.mxu0
      %v10105 = vadd.f32 %v10091, %v10104
      %v10106 = vpop.f32.mrf.mxu0
      %v10107 = vadd.f32 %v10093, %v10106
      %10108 = vdwg.mxu0
      %10109 = vmatpush.bf16.msra.mxu0 %v6960
      %10110 = vmatpush.bf16.msra.mxu0 %v6948
      %10111 = vmatpush.bf16.msra.mxu0 %v6936
      %10112 = vmatpush.bf16.msra.mxu0 %v6924
      %10113 = vmatpush.bf16.msra.mxu0 %v6912
      %10114 = vmatpush.bf16.msra.mxu0 %v6900
      %10115 = vmatpush.bf16.msra.mxu0 %v6888
      %10116 = vmatpush.bf16.msra.mxu0 %v6876
      %10117 = vmatmul.bf16.gmra.mxu0 %v1561
      %v10118 = vpop.f32.mrf.mxu0
      %v10119 = vadd.f32 %v10105, %v10118
      %v10120 = vpop.f32.mrf.mxu0
      %v10121 = vadd.f32 %v10107, %v10120
      %10122 = vdwg.mxu0
      %10123 = vmatpush.bf16.msra.mxu0 %v7056
      %10124 = vmatpush.bf16.msra.mxu0 %v7044
      %10125 = vmatpush.bf16.msra.mxu0 %v7032
      %10126 = vmatpush.bf16.msra.mxu0 %v7020
      %10127 = vmatpush.bf16.msra.mxu0 %v7008
      %10128 = vmatpush.bf16.msra.mxu0 %v6996
      %10129 = vmatpush.bf16.msra.mxu0 %v6984
      %10130 = vmatpush.bf16.msra.mxu0 %v6972
      %10131 = vmatmul.bf16.gmra.mxu0 %v1567
      %v10132 = vpop.f32.mrf.mxu0
      %v10133 = vadd.f32 %v10119, %v10132
      %v10134 = vpop.f32.mrf.mxu0
      %v10135 = vadd.f32 %v10121, %v10134
      %10136 = vdwg.mxu0
      %10137 = vmatpush.bf16.msra.mxu0 %v7152
      %10138 = vmatpush.bf16.msra.mxu0 %v7140
      %10139 = vmatpush.bf16.msra.mxu0 %v7128
      %10140 = vmatpush.bf16.msra.mxu0 %v7116
      %10141 = vmatpush.bf16.msra.mxu0 %v7104
      %10142 = vmatpush.bf16.msra.mxu0 %v7092
      %10143 = vmatpush.bf16.msra.mxu0 %v7080
      %10144 = vmatpush.bf16.msra.mxu0 %v7068
      %10145 = vmatmul.bf16.gmra.mxu0 %v1573
      %v10146 = vpop.f32.mrf.mxu0
      %v10147 = vadd.f32 %v10133, %v10146
      %v10148 = vpop.f32.mrf.mxu0
      %v10149 = vadd.f32 %v10135, %v10148
      %10150 = vdwg.mxu0
      %10151 = vmatpush.bf16.msra.mxu0 %v7248
      %10152 = vmatpush.bf16.msra.mxu0 %v7236
      %10153 = vmatpush.bf16.msra.mxu0 %v7224
      %10154 = vmatpush.bf16.msra.mxu0 %v7212
      %10155 = vmatpush.bf16.msra.mxu0 %v7200
      %10156 = vmatpush.bf16.msra.mxu0 %v7188
      %10157 = vmatpush.bf16.msra.mxu0 %v7176
      %10158 = vmatpush.bf16.msra.mxu0 %v7164
      %10159 = vmatmul.bf16.gmra.mxu0 %v1579
      %v10160 = vpop.f32.mrf.mxu0
      %v10161 = vadd.f32 %v10147, %v10160
      %v10162 = vpop.f32.mrf.mxu0
      %v10163 = vadd.f32 %v10149, %v10162
      %10164 = vdwg.mxu0
      %10165 = vmatpush.bf16.msra.mxu0 %v7344
      %10166 = vmatpush.bf16.msra.mxu0 %v7332
      %10167 = vmatpush.bf16.msra.mxu0 %v7320
      %10168 = vmatpush.bf16.msra.mxu0 %v7308
      %10169 = vmatpush.bf16.msra.mxu0 %v7296
      %10170 = vmatpush.bf16.msra.mxu0 %v7284
      %10171 = vmatpush.bf16.msra.mxu0 %v7272
      %10172 = vmatpush.bf16.msra.mxu0 %v7260
      %10173 = vmatmul.bf16.gmra.mxu0 %v1585
      %v10174 = vpop.f32.mrf.mxu0
      %v10175 = vadd.f32 %v10161, %v10174
      %v10176 = vpop.f32.mrf.mxu0
      %v10177 = vadd.f32 %v10163, %v10176
      %10178 = vdwg.mxu0
      %10179 = vmatpush.bf16.msra.mxu0 %v6289
      %10180 = vmatpush.bf16.msra.mxu0 %v6277
      %10181 = vmatpush.bf16.msra.mxu0 %v6265
      %10182 = vmatpush.bf16.msra.mxu0 %v6253
      %10183 = vmatpush.bf16.msra.mxu0 %v6241
      %10184 = vmatpush.bf16.msra.mxu0 %v6229
      %10185 = vmatpush.bf16.msra.mxu0 %v6217
      %10186 = vmatpush.bf16.msra.mxu0 %v6205
      %10187 = vmatmul.bf16.gmra.mxu0 %v1519
      %v10188 = vpop.f32.mrf.mxu0
      %v10189 = vadd.f32 0.0, %v10188
      %v10190 = vpop.f32.mrf.mxu0
      %v10191 = vadd.f32 0.0, %v10190
      %10192 = vdwg.mxu0
      %10193 = vmatpush.bf16.msra.mxu0 %v6385
      %10194 = vmatpush.bf16.msra.mxu0 %v6373
      %10195 = vmatpush.bf16.msra.mxu0 %v6361
      %10196 = vmatpush.bf16.msra.mxu0 %v6349
      %10197 = vmatpush.bf16.msra.mxu0 %v6337
      %10198 = vmatpush.bf16.msra.mxu0 %v6325
      %10199 = vmatpush.bf16.msra.mxu0 %v6313
      %10200 = vmatpush.bf16.msra.mxu0 %v6301
      %10201 = vmatmul.bf16.gmra.mxu0 %v1525
      %v10202 = vpop.f32.mrf.mxu0
      %v10203 = vadd.f32 %v10189, %v10202
      %v10204 = vpop.f32.mrf.mxu0
      %v10205 = vadd.f32 %v10191, %v10204
      %10206 = vdwg.mxu0
      %10207 = vmatpush.bf16.msra.mxu0 %v6481
      %10208 = vmatpush.bf16.msra.mxu0 %v6469
      %10209 = vmatpush.bf16.msra.mxu0 %v6457
      %10210 = vmatpush.bf16.msra.mxu0 %v6445
      %10211 = vmatpush.bf16.msra.mxu0 %v6433
      %10212 = vmatpush.bf16.msra.mxu0 %v6421
      %10213 = vmatpush.bf16.msra.mxu0 %v6409
      %10214 = vmatpush.bf16.msra.mxu0 %v6397
      %10215 = vmatmul.bf16.gmra.mxu0 %v1531
      %v10216 = vpop.f32.mrf.mxu0
      %v10217 = vadd.f32 %v10203, %v10216
      %v10218 = vpop.f32.mrf.mxu0
      %v10219 = vadd.f32 %v10205, %v10218
      %10220 = vdwg.mxu0
      %10221 = vmatpush.bf16.msra.mxu0 %v6577
      %10222 = vmatpush.bf16.msra.mxu0 %v6565
      %10223 = vmatpush.bf16.msra.mxu0 %v6553
      %10224 = vmatpush.bf16.msra.mxu0 %v6541
      %10225 = vmatpush.bf16.msra.mxu0 %v6529
      %10226 = vmatpush.bf16.msra.mxu0 %v6517
      %10227 = vmatpush.bf16.msra.mxu0 %v6505
      %10228 = vmatpush.bf16.msra.mxu0 %v6493
      %10229 = vmatmul.bf16.gmra.mxu0 %v1537
      %v10230 = vpop.f32.mrf.mxu0
      %v10231 = vadd.f32 %v10217, %v10230
      %v10232 = vpop.f32.mrf.mxu0
      %v10233 = vadd.f32 %v10219, %v10232
      %10234 = vdwg.mxu0
      %10235 = vmatpush.bf16.msra.mxu0 %v6673
      %10236 = vmatpush.bf16.msra.mxu0 %v6661
      %10237 = vmatpush.bf16.msra.mxu0 %v6649
      %10238 = vmatpush.bf16.msra.mxu0 %v6637
      %10239 = vmatpush.bf16.msra.mxu0 %v6625
      %10240 = vmatpush.bf16.msra.mxu0 %v6613
      %10241 = vmatpush.bf16.msra.mxu0 %v6601
      %10242 = vmatpush.bf16.msra.mxu0 %v6589
      %10243 = vmatmul.bf16.gmra.mxu0 %v1543
      %v10244 = vpop.f32.mrf.mxu0
      %v10245 = vadd.f32 %v10231, %v10244
      %v10246 = vpop.f32.mrf.mxu0
      %v10247 = vadd.f32 %v10233, %v10246
      %10248 = vdwg.mxu0
      %10249 = vmatpush.bf16.msra.mxu0 %v6769
      %10250 = vmatpush.bf16.msra.mxu0 %v6757
      %10251 = vmatpush.bf16.msra.mxu0 %v6745
      %10252 = vmatpush.bf16.msra.mxu0 %v6733
      %10253 = vmatpush.bf16.msra.mxu0 %v6721
      %10254 = vmatpush.bf16.msra.mxu0 %v6709
      %10255 = vmatpush.bf16.msra.mxu0 %v6697
      %10256 = vmatpush.bf16.msra.mxu0 %v6685
      %10257 = vmatmul.bf16.gmra.mxu0 %v1549
      %v10258 = vpop.f32.mrf.mxu0
      %v10259 = vadd.f32 %v10245, %v10258
      %v10260 = vpop.f32.mrf.mxu0
      %v10261 = vadd.f32 %v10247, %v10260
      %10262 = vdwg.mxu0
      %10263 = vmatpush.bf16.msra.mxu0 %v6865
      %10264 = vmatpush.bf16.msra.mxu0 %v6853
      %10265 = vmatpush.bf16.msra.mxu0 %v6841
      %10266 = vmatpush.bf16.msra.mxu0 %v6829
      %10267 = vmatpush.bf16.msra.mxu0 %v6817
      %10268 = vmatpush.bf16.msra.mxu0 %v6805
      %10269 = vmatpush.bf16.msra.mxu0 %v6793
      %10270 = vmatpush.bf16.msra.mxu0 %v6781
      %10271 = vmatmul.bf16.gmra.mxu0 %v1555
      %v10272 = vpop.f32.mrf.mxu0
      %v10273 = vadd.f32 %v10259, %v10272
      %v10274 = vpop.f32.mrf.mxu0
      %v10275 = vadd.f32 %v10261, %v10274
      %10276 = vdwg.mxu0
      %10277 = vmatpush.bf16.msra.mxu0 %v6961
      %10278 = vmatpush.bf16.msra.mxu0 %v6949
      %10279 = vmatpush.bf16.msra.mxu0 %v6937
      %10280 = vmatpush.bf16.msra.mxu0 %v6925
      %10281 = vmatpush.bf16.msra.mxu0 %v6913
      %10282 = vmatpush.bf16.msra.mxu0 %v6901
      %10283 = vmatpush.bf16.msra.mxu0 %v6889
      %10284 = vmatpush.bf16.msra.mxu0 %v6877
      %10285 = vmatmul.bf16.gmra.mxu0 %v1561
      %v10286 = vpop.f32.mrf.mxu0
      %v10287 = vadd.f32 %v10273, %v10286
      %v10288 = vpop.f32.mrf.mxu0
      %v10289 = vadd.f32 %v10275, %v10288
      %10290 = vdwg.mxu0
      %10291 = vmatpush.bf16.msra.mxu0 %v7057
      %10292 = vmatpush.bf16.msra.mxu0 %v7045
      %10293 = vmatpush.bf16.msra.mxu0 %v7033
      %10294 = vmatpush.bf16.msra.mxu0 %v7021
      %10295 = vmatpush.bf16.msra.mxu0 %v7009
      %10296 = vmatpush.bf16.msra.mxu0 %v6997
      %10297 = vmatpush.bf16.msra.mxu0 %v6985
      %10298 = vmatpush.bf16.msra.mxu0 %v6973
      %10299 = vmatmul.bf16.gmra.mxu0 %v1567
      %v10300 = vpop.f32.mrf.mxu0
      %v10301 = vadd.f32 %v10287, %v10300
      %v10302 = vpop.f32.mrf.mxu0
      %v10303 = vadd.f32 %v10289, %v10302
      %10304 = vdwg.mxu0
      %10305 = vmatpush.bf16.msra.mxu0 %v7153
      %10306 = vmatpush.bf16.msra.mxu0 %v7141
      %10307 = vmatpush.bf16.msra.mxu0 %v7129
      %10308 = vmatpush.bf16.msra.mxu0 %v7117
      %10309 = vmatpush.bf16.msra.mxu0 %v7105
      %10310 = vmatpush.bf16.msra.mxu0 %v7093
      %10311 = vmatpush.bf16.msra.mxu0 %v7081
      %10312 = vmatpush.bf16.msra.mxu0 %v7069
      %10313 = vmatmul.bf16.gmra.mxu0 %v1573
      %v10314 = vpop.f32.mrf.mxu0
      %v10315 = vadd.f32 %v10301, %v10314
      %v10316 = vpop.f32.mrf.mxu0
      %v10317 = vadd.f32 %v10303, %v10316
      %10318 = vdwg.mxu0
      %10319 = vmatpush.bf16.msra.mxu0 %v7249
      %10320 = vmatpush.bf16.msra.mxu0 %v7237
      %10321 = vmatpush.bf16.msra.mxu0 %v7225
      %10322 = vmatpush.bf16.msra.mxu0 %v7213
      %10323 = vmatpush.bf16.msra.mxu0 %v7201
      %10324 = vmatpush.bf16.msra.mxu0 %v7189
      %10325 = vmatpush.bf16.msra.mxu0 %v7177
      %10326 = vmatpush.bf16.msra.mxu0 %v7165
      %10327 = vmatmul.bf16.gmra.mxu0 %v1579
      %v10328 = vpop.f32.mrf.mxu0
      %v10329 = vadd.f32 %v10315, %v10328
      %v10330 = vpop.f32.mrf.mxu0
      %v10331 = vadd.f32 %v10317, %v10330
      %10332 = vdwg.mxu0
      %10333 = vmatpush.bf16.msra.mxu0 %v7345
      %10334 = vmatpush.bf16.msra.mxu0 %v7333
      %10335 = vmatpush.bf16.msra.mxu0 %v7321
      %10336 = vmatpush.bf16.msra.mxu0 %v7309
      %10337 = vmatpush.bf16.msra.mxu0 %v7297
      %10338 = vmatpush.bf16.msra.mxu0 %v7285
      %10339 = vmatpush.bf16.msra.mxu0 %v7273
      %10340 = vmatpush.bf16.msra.mxu0 %v7261
      %10341 = vmatmul.bf16.gmra.mxu0 %v1585
      %v10342 = vpop.f32.mrf.mxu0
      %v10343 = vadd.f32 %v10329, %v10342
      %v10344 = vpop.f32.mrf.mxu0
      %v10345 = vadd.f32 %v10331, %v10344
      %10346 = vdwg.mxu0
      %10347 = vmatpush.bf16.msra.mxu0 %v6290
      %10348 = vmatpush.bf16.msra.mxu0 %v6278
      %10349 = vmatpush.bf16.msra.mxu0 %v6266
      %10350 = vmatpush.bf16.msra.mxu0 %v6254
      %10351 = vmatpush.bf16.msra.mxu0 %v6242
      %10352 = vmatpush.bf16.msra.mxu0 %v6230
      %10353 = vmatpush.bf16.msra.mxu0 %v6218
      %10354 = vmatpush.bf16.msra.mxu0 %v6206
      %10355 = vmatmul.bf16.gmra.mxu0 %v1519
      %v10356 = vpop.f32.mrf.mxu0
      %v10357 = vadd.f32 0.0, %v10356
      %v10358 = vpop.f32.mrf.mxu0
      %v10359 = vadd.f32 0.0, %v10358
      %10360 = vdwg.mxu0
      %10361 = vmatpush.bf16.msra.mxu0 %v6386
      %10362 = vmatpush.bf16.msra.mxu0 %v6374
      %10363 = vmatpush.bf16.msra.mxu0 %v6362
      %10364 = vmatpush.bf16.msra.mxu0 %v6350
      %10365 = vmatpush.bf16.msra.mxu0 %v6338
      %10366 = vmatpush.bf16.msra.mxu0 %v6326
      %10367 = vmatpush.bf16.msra.mxu0 %v6314
      %10368 = vmatpush.bf16.msra.mxu0 %v6302
      %10369 = vmatmul.bf16.gmra.mxu0 %v1525
      %v10370 = vpop.f32.mrf.mxu0
      %v10371 = vadd.f32 %v10357, %v10370
      %v10372 = vpop.f32.mrf.mxu0
      %v10373 = vadd.f32 %v10359, %v10372
      %10374 = vdwg.mxu0
      %10375 = vmatpush.bf16.msra.mxu0 %v6482
      %10376 = vmatpush.bf16.msra.mxu0 %v6470
      %10377 = vmatpush.bf16.msra.mxu0 %v6458
      %10378 = vmatpush.bf16.msra.mxu0 %v6446
      %10379 = vmatpush.bf16.msra.mxu0 %v6434
      %10380 = vmatpush.bf16.msra.mxu0 %v6422
      %10381 = vmatpush.bf16.msra.mxu0 %v6410
      %10382 = vmatpush.bf16.msra.mxu0 %v6398
      %10383 = vmatmul.bf16.gmra.mxu0 %v1531
      %v10384 = vpop.f32.mrf.mxu0
      %v10385 = vadd.f32 %v10371, %v10384
      %v10386 = vpop.f32.mrf.mxu0
      %v10387 = vadd.f32 %v10373, %v10386
      %10388 = vdwg.mxu0
      %10389 = vmatpush.bf16.msra.mxu0 %v6578
      %10390 = vmatpush.bf16.msra.mxu0 %v6566
      %10391 = vmatpush.bf16.msra.mxu0 %v6554
      %10392 = vmatpush.bf16.msra.mxu0 %v6542
      %10393 = vmatpush.bf16.msra.mxu0 %v6530
      %10394 = vmatpush.bf16.msra.mxu0 %v6518
      %10395 = vmatpush.bf16.msra.mxu0 %v6506
      %10396 = vmatpush.bf16.msra.mxu0 %v6494
      %10397 = vmatmul.bf16.gmra.mxu0 %v1537
      %v10398 = vpop.f32.mrf.mxu0
      %v10399 = vadd.f32 %v10385, %v10398
      %v10400 = vpop.f32.mrf.mxu0
      %v10401 = vadd.f32 %v10387, %v10400
      %10402 = vdwg.mxu0
      %10403 = vmatpush.bf16.msra.mxu0 %v6674
      %10404 = vmatpush.bf16.msra.mxu0 %v6662
      %10405 = vmatpush.bf16.msra.mxu0 %v6650
      %10406 = vmatpush.bf16.msra.mxu0 %v6638
      %10407 = vmatpush.bf16.msra.mxu0 %v6626
      %10408 = vmatpush.bf16.msra.mxu0 %v6614
      %10409 = vmatpush.bf16.msra.mxu0 %v6602
      %10410 = vmatpush.bf16.msra.mxu0 %v6590
      %10411 = vmatmul.bf16.gmra.mxu0 %v1543
      %v10412 = vpop.f32.mrf.mxu0
      %v10413 = vadd.f32 %v10399, %v10412
      %v10414 = vpop.f32.mrf.mxu0
      %v10415 = vadd.f32 %v10401, %v10414
      %10416 = vdwg.mxu0
      %10417 = vmatpush.bf16.msra.mxu0 %v6770
      %10418 = vmatpush.bf16.msra.mxu0 %v6758
      %10419 = vmatpush.bf16.msra.mxu0 %v6746
      %10420 = vmatpush.bf16.msra.mxu0 %v6734
      %10421 = vmatpush.bf16.msra.mxu0 %v6722
      %10422 = vmatpush.bf16.msra.mxu0 %v6710
      %10423 = vmatpush.bf16.msra.mxu0 %v6698
      %10424 = vmatpush.bf16.msra.mxu0 %v6686
      %10425 = vmatmul.bf16.gmra.mxu0 %v1549
      %v10426 = vpop.f32.mrf.mxu0
      %v10427 = vadd.f32 %v10413, %v10426
      %v10428 = vpop.f32.mrf.mxu0
      %v10429 = vadd.f32 %v10415, %v10428
      %10430 = vdwg.mxu0
      %10431 = vmatpush.bf16.msra.mxu0 %v6866
      %10432 = vmatpush.bf16.msra.mxu0 %v6854
      %10433 = vmatpush.bf16.msra.mxu0 %v6842
      %10434 = vmatpush.bf16.msra.mxu0 %v6830
      %10435 = vmatpush.bf16.msra.mxu0 %v6818
      %10436 = vmatpush.bf16.msra.mxu0 %v6806
      %10437 = vmatpush.bf16.msra.mxu0 %v6794
      %10438 = vmatpush.bf16.msra.mxu0 %v6782
      %10439 = vmatmul.bf16.gmra.mxu0 %v1555
      %v10440 = vpop.f32.mrf.mxu0
      %v10441 = vadd.f32 %v10427, %v10440
      %v10442 = vpop.f32.mrf.mxu0
      %v10443 = vadd.f32 %v10429, %v10442
      %10444 = vdwg.mxu0
      %10445 = vmatpush.bf16.msra.mxu0 %v6962
      %10446 = vmatpush.bf16.msra.mxu0 %v6950
      %10447 = vmatpush.bf16.msra.mxu0 %v6938
      %10448 = vmatpush.bf16.msra.mxu0 %v6926
      %10449 = vmatpush.bf16.msra.mxu0 %v6914
      %10450 = vmatpush.bf16.msra.mxu0 %v6902
      %10451 = vmatpush.bf16.msra.mxu0 %v6890
      %10452 = vmatpush.bf16.msra.mxu0 %v6878
      %10453 = vmatmul.bf16.gmra.mxu0 %v1561
      %v10454 = vpop.f32.mrf.mxu0
      %v10455 = vadd.f32 %v10441, %v10454
      %v10456 = vpop.f32.mrf.mxu0
      %v10457 = vadd.f32 %v10443, %v10456
      %10458 = vdwg.mxu0
      %10459 = vmatpush.bf16.msra.mxu0 %v7058
      %10460 = vmatpush.bf16.msra.mxu0 %v7046
      %10461 = vmatpush.bf16.msra.mxu0 %v7034
      %10462 = vmatpush.bf16.msra.mxu0 %v7022
      %10463 = vmatpush.bf16.msra.mxu0 %v7010
      %10464 = vmatpush.bf16.msra.mxu0 %v6998
      %10465 = vmatpush.bf16.msra.mxu0 %v6986
      %10466 = vmatpush.bf16.msra.mxu0 %v6974
      %10467 = vmatmul.bf16.gmra.mxu0 %v1567
      %v10468 = vpop.f32.mrf.mxu0
      %v10469 = vadd.f32 %v10455, %v10468
      %v10470 = vpop.f32.mrf.mxu0
      %v10471 = vadd.f32 %v10457, %v10470
      %10472 = vdwg.mxu0
      %10473 = vmatpush.bf16.msra.mxu0 %v7154
      %10474 = vmatpush.bf16.msra.mxu0 %v7142
      %10475 = vmatpush.bf16.msra.mxu0 %v7130
      %10476 = vmatpush.bf16.msra.mxu0 %v7118
      %10477 = vmatpush.bf16.msra.mxu0 %v7106
      %10478 = vmatpush.bf16.msra.mxu0 %v7094
      %10479 = vmatpush.bf16.msra.mxu0 %v7082
      %10480 = vmatpush.bf16.msra.mxu0 %v7070
      %10481 = vmatmul.bf16.gmra.mxu0 %v1573
      %v10482 = vpop.f32.mrf.mxu0
      %v10483 = vadd.f32 %v10469, %v10482
      %v10484 = vpop.f32.mrf.mxu0
      %v10485 = vadd.f32 %v10471, %v10484
      %10486 = vdwg.mxu0
      %10487 = vmatpush.bf16.msra.mxu0 %v7250
      %10488 = vmatpush.bf16.msra.mxu0 %v7238
      %10489 = vmatpush.bf16.msra.mxu0 %v7226
      %10490 = vmatpush.bf16.msra.mxu0 %v7214
      %10491 = vmatpush.bf16.msra.mxu0 %v7202
      %10492 = vmatpush.bf16.msra.mxu0 %v7190
      %10493 = vmatpush.bf16.msra.mxu0 %v7178
      %10494 = vmatpush.bf16.msra.mxu0 %v7166
      %10495 = vmatmul.bf16.gmra.mxu0 %v1579
      %v10496 = vpop.f32.mrf.mxu0
      %v10497 = vadd.f32 %v10483, %v10496
      %v10498 = vpop.f32.mrf.mxu0
      %v10499 = vadd.f32 %v10485, %v10498
      %10500 = vdwg.mxu0
      %10501 = vmatpush.bf16.msra.mxu0 %v7346
      %10502 = vmatpush.bf16.msra.mxu0 %v7334
      %10503 = vmatpush.bf16.msra.mxu0 %v7322
      %10504 = vmatpush.bf16.msra.mxu0 %v7310
      %10505 = vmatpush.bf16.msra.mxu0 %v7298
      %10506 = vmatpush.bf16.msra.mxu0 %v7286
      %10507 = vmatpush.bf16.msra.mxu0 %v7274
      %10508 = vmatpush.bf16.msra.mxu0 %v7262
      %10509 = vmatmul.bf16.gmra.mxu0 %v1585
      %v10510 = vpop.f32.mrf.mxu0
      %v10511 = vadd.f32 %v10497, %v10510
      %v10512 = vpop.f32.mrf.mxu0
      %v10513 = vadd.f32 %v10499, %v10512
      %10514 = vdwg.mxu0
      %v10515 = vmax.f32 %v8663, %v9167
      %v10516 = vmax.f32 %v8831, %v9335
      %v10517 = vmax.f32 %v8999, %v9503
      %v10518 = vmax.f32 %v8665, %v9169
      %v10519 = vmax.f32 %v8833, %v9337
      %v10520 = vmax.f32 %v9001, %v9505
      %v10521 = vmax.f32 %v9671, %v10175
      %v10522 = vmax.f32 %v9839, %v10343
      %v10523 = vmax.f32 %v10007, %v10511
      %v10524 = vmax.f32 %v9673, %v10177
      %v10525 = vmax.f32 %v9841, %v10345
      %v10526 = vmax.f32 %v10009, %v10513
      %v10527 = vmax.f32 %v10515, %v10521
      %v10528 = vmax.f32 %v10516, %v10522
      %v10529 = vmax.f32 %v10517, %v10523
      %v10530 = vmax.f32 %v10518, %v10524
      %v10531 = vmax.f32 %v10519, %v10525
      %v10532 = vmax.f32 %v10520, %v10526
      %v10534 = vperm.slane %v286, 0
      %v10535 = vperm.slane %v286, 1
      %v10536 = vperm.slane %v286, 2
      %v10540 = vadd.f32 %v10527, %v10534
      %v10541 = vadd.f32 %v10528, %v10535
      %v10542 = vadd.f32 %v10529, %v10536
      %v10543 = vadd.f32 %v10530, %v10534
      %v10544 = vadd.f32 %v10531, %v10535
      %v10545 = vadd.f32 %v10532, %v10536
      %v10546 = vmax.f32 %v10540, 0.0
      %v10547 = vmax.f32 %v10541, 0.0
      %v10548 = vmax.f32 %v10542, 0.0
      %v10549 = vmax.f32 %v10543, 0.0
      %v10550 = vmax.f32 %v10544, 0.0
      %v10551 = vmax.f32 %v10545, 0.0
      %v10552 = vpack.c.bf16 %v10549, %v10546
      %v10553 = vpack.c.bf16 %v10550, %v10547
      %v10554 = vpack.c.bf16 %v10551, %v10548
      %v10555 = vld [vmem:[%s5] sm:$0xf]
      %v10556 = vld [vmem:[%s5 + $0x4] sm:$0xf]
      %v10557 = vld [vmem:[%s5 + $0x8] sm:$0xf]
      %v10558 = vld [vmem:[%s5 + $0xc] sm:$0xf]
      %v10559 = vld [vmem:[%s5 + $0x10] sm:$0xf]
      %v10560 = vld [vmem:[%s5 + $0x14] sm:$0xf]
      %v10561 = vld [vmem:[%s5 + $0x18] sm:$0xf]
      %v10562 = vld [vmem:[%s5 + $0x1c] sm:$0xf]
      %v10563 = vld [vmem:[%s5 + $0x20] sm:$0xf]
      %v10564 = vld [vmem:[%s5 + $0x24] sm:$0xf]
      %v10565 = vld [vmem:[%s5 + $0x28] sm:$0xf]
      %v10566 = vld [vmem:[%s5 + $0x2c] sm:$0xf]
      %v10567 = vld [vmem:[%s5 + $0x30] sm:$0xf]
      %v10568 = vld [vmem:[%s5 + $0x34] sm:$0xf]
      %v10569 = vld [vmem:[%s5 + $0x38] sm:$0xf]
      %v10570 = vld [vmem:[%s5 + $0x3c] sm:$0xf]
      %v10571 = vld [vmem:[%s5 + $0x40] sm:$0xf]
      %v10572 = vld [vmem:[%s5 + $0x44] sm:$0xf]
      %v10573 = vld [vmem:[%s5 + $0x48] sm:$0xf]
      %v10574 = vld [vmem:[%s5 + $0x4c] sm:$0xf]
      %v10575 = vld [vmem:[%s5 + $0x50] sm:$0xf]
      %v10576 = vld [vmem:[%s5 + $0x54] sm:$0xf]
      %v10577 = vld [vmem:[%s5 + $0x58] sm:$0xf]
      %v10578 = vld [vmem:[%s5 + $0x5c] sm:$0xf]
      %v10579 = vld [vmem:[%s5 + $0x60] sm:$0xf]
      %v10580 = vld [vmem:[%s5 + $0x64] sm:$0xf]
      %v10581 = vld [vmem:[%s5 + $0x68] sm:$0xf]
      %v10582 = vld [vmem:[%s5 + $0x6c] sm:$0xf]
      %v10583 = vld [vmem:[%s5 + $0x70] sm:$0xf]
      %v10584 = vld [vmem:[%s5 + $0x74] sm:$0xf]
      %v10585 = vld [vmem:[%s5 + $0x78] sm:$0xf]
      %v10586 = vld [vmem:[%s5 + $0x7c] sm:$0xf]
      %v10587 = vld [vmem:[%s5 + $0x80] sm:$0xf]
      %v10588 = vld [vmem:[%s5 + $0x84] sm:$0xf]
      %v10589 = vld [vmem:[%s5 + $0x88] sm:$0xf]
      %v10590 = vld [vmem:[%s5 + $0x8c] sm:$0xf]
      %v10591 = vld [vmem:[%s5 + $0x90] sm:$0xf]
      %v10592 = vld [vmem:[%s5 + $0x94] sm:$0xf]
      %v10593 = vld [vmem:[%s5 + $0x98] sm:$0xf]
      %v10594 = vld [vmem:[%s5 + $0x9c] sm:$0xf]
      %v10595 = vld [vmem:[%s5 + $0xa0] sm:$0xf]
      %v10596 = vld [vmem:[%s5 + $0xa4] sm:$0xf]
      %v10597 = vld [vmem:[%s5 + $0xa8] sm:$0xf]
      %v10598 = vld [vmem:[%s5 + $0xac] sm:$0xf]
      %v10599 = vld [vmem:[%s5 + $0xb0] sm:$0xf]
      %v10600 = vld [vmem:[%s5 + $0xb4] sm:$0xf]
      %v10601 = vld [vmem:[%s5 + $0xb8] sm:$0xf]
      %v10602 = vld [vmem:[%s5 + $0xbc] sm:$0xf]
      %v10604 = vperm.slane %v287, 0
      %v10654 = vunpack.c.l.b16 %v10555
      %v10655 = vunpack.c.l.b16 %v10556
      %v10656 = vunpack.c.l.b16 %v10557
      %v10657 = vunpack.c.l.b16 %v10558
      %v10658 = vunpack.c.l.b16 %v10559
      %v10659 = vunpack.c.l.b16 %v10560
      %v10660 = vunpack.c.l.b16 %v10561
      %v10661 = vunpack.c.l.b16 %v10562
      %v10662 = vunpack.c.l.b16 %v10563
      %v10663 = vunpack.c.l.b16 %v10564
      %v10664 = vunpack.c.l.b16 %v10565
      %v10665 = vunpack.c.l.b16 %v10566
      %v10666 = vunpack.c.l.b16 %v10567
      %v10667 = vunpack.c.l.b16 %v10568
      %v10668 = vunpack.c.l.b16 %v10569
      %v10669 = vunpack.c.l.b16 %v10570
      %v10670 = vunpack.c.l.b16 %v10571
      %v10671 = vunpack.c.l.b16 %v10572
      %v10672 = vunpack.c.l.b16 %v10573
      %v10673 = vunpack.c.l.b16 %v10574
      %v10674 = vunpack.c.l.b16 %v10575
      %v10675 = vunpack.c.l.b16 %v10576
      %v10676 = vunpack.c.l.b16 %v10577
      %v10677 = vunpack.c.l.b16 %v10578
      %v10678 = vunpack.c.l.b16 %v10579
      %v10679 = vunpack.c.l.b16 %v10580
      %v10680 = vunpack.c.l.b16 %v10581
      %v10681 = vunpack.c.l.b16 %v10582
      %v10682 = vunpack.c.l.b16 %v10583
      %v10683 = vunpack.c.l.b16 %v10584
      %v10684 = vunpack.c.l.b16 %v10585
      %v10685 = vunpack.c.l.b16 %v10586
      %v10686 = vunpack.c.l.b16 %v10587
      %v10687 = vunpack.c.l.b16 %v10588
      %v10688 = vunpack.c.l.b16 %v10589
      %v10689 = vunpack.c.l.b16 %v10590
      %v10690 = vunpack.c.l.b16 %v10591
      %v10691 = vunpack.c.l.b16 %v10592
      %v10692 = vunpack.c.l.b16 %v10593
      %v10693 = vunpack.c.l.b16 %v10594
      %v10694 = vunpack.c.l.b16 %v10595
      %v10695 = vunpack.c.l.b16 %v10596
      %v10696 = vunpack.c.l.b16 %v10597
      %v10697 = vunpack.c.l.b16 %v10598
      %v10698 = vunpack.c.l.b16 %v10599
      %v10699 = vunpack.c.l.b16 %v10600
      %v10700 = vunpack.c.l.b16 %v10601
      %v10701 = vunpack.c.l.b16 %v10602
      %v10702 = vpack.c.b16 %v10655, %v10654
      %v10703 = vpack.c.b16 %v10657, %v10656
      %v10704 = vpack.c.b16 %v10659, %v10658
      %v10705 = vpack.c.b16 %v10661, %v10660
      %v10706 = vpack.c.b16 %v10663, %v10662
      %v10707 = vpack.c.b16 %v10665, %v10664
      %v10708 = vpack.c.b16 %v10667, %v10666
      %v10709 = vpack.c.b16 %v10669, %v10668
      %v10710 = vpack.c.b16 %v10671, %v10670
      %v10711 = vpack.c.b16 %v10673, %v10672
      %v10712 = vpack.c.b16 %v10675, %v10674
      %v10713 = vpack.c.b16 %v10677, %v10676
      %v10714 = vpack.c.b16 %v10679, %v10678
      %v10715 = vpack.c.b16 %v10681, %v10680
      %v10716 = vpack.c.b16 %v10683, %v10682
      %v10717 = vpack.c.b16 %v10685, %v10684
      %v10718 = vpack.c.b16 %v10687, %v10686
      %v10719 = vpack.c.b16 %v10689, %v10688
      %v10720 = vpack.c.b16 %v10691, %v10690
      %v10721 = vpack.c.b16 %v10693, %v10692
      %v10722 = vpack.c.b16 %v10695, %v10694
      %v10723 = vpack.c.b16 %v10697, %v10696
      %v10724 = vpack.c.b16 %v10699, %v10698
      %v10725 = vpack.c.b16 %v10701, %v10700
      %10750 = vmatpush.bf16.msra.mxu0 %v10709
      %10751 = vmatpush.bf16.msra.mxu0 %v10708
      %10752 = vmatpush.bf16.msra.mxu0 %v10707
      %10753 = vmatpush.bf16.msra.mxu0 %v10706
      %10754 = vmatpush.bf16.msra.mxu0 %v10705
      %10755 = vmatpush.bf16.msra.mxu0 %v10704
      %10756 = vmatpush.bf16.msra.mxu0 %v10703
      %10757 = vmatpush.bf16.msra.mxu0 %v10702
      %10758 = vmatmul.bf16.gmra.mxu0 %v10552
      %v10759 = vpop.f32.mrf.mxu0
      %v10760 = vadd.f32 %v10604, %v10759
      %v10761 = vpop.f32.mrf.mxu0
      %v10762 = vadd.f32 %v10604, %v10761
      %10763 = vdwg.mxu0
      %10764 = vmatpush.bf16.msra.mxu0 %v10717
      %10765 = vmatpush.bf16.msra.mxu0 %v10716
      %10766 = vmatpush.bf16.msra.mxu0 %v10715
      %10767 = vmatpush.bf16.msra.mxu0 %v10714
      %10768 = vmatpush.bf16.msra.mxu0 %v10713
      %10769 = vmatpush.bf16.msra.mxu0 %v10712
      %10770 = vmatpush.bf16.msra.mxu0 %v10711
      %10771 = vmatpush.bf16.msra.mxu0 %v10710
      %10772 = vmatmul.bf16.gmra.mxu0 %v10553
      %v10773 = vpop.f32.mrf.mxu0
      %v10774 = vadd.f32 %v10760, %v10773
      %v10775 = vpop.f32.mrf.mxu0
      %v10776 = vadd.f32 %v10762, %v10775
      %10777 = vdwg.mxu0
      %10778 = vmatpush.bf16.msra.mxu0 %v10725
      %10779 = vmatpush.bf16.msra.mxu0 %v10724
      %10780 = vmatpush.bf16.msra.mxu0 %v10723
      %10781 = vmatpush.bf16.msra.mxu0 %v10722
      %10782 = vmatpush.bf16.msra.mxu0 %v10721
      %10783 = vmatpush.bf16.msra.mxu0 %v10720
      %10784 = vmatpush.bf16.msra.mxu0 %v10719
      %10785 = vmatpush.bf16.msra.mxu0 %v10718
      %10786 = vmatmul.bf16.gmra.mxu0 %v10554
      %v10787 = vpop.f32.mrf.mxu0
      %v10788 = vadd.f32 %v10774, %v10787
      %v10789 = vpop.f32.mrf.mxu0
      %v10790 = vadd.f32 %v10776, %v10789
      %10791 = vdwg.mxu0
      %10792 = vst [vmem:[%s283] sm:$0xff] %v10788
      %10793 = vst [vmem:[%s283 + $0x8] sm:$0xff] %v10790
      %s10794 = smul.u32 2, %s18
      %p10795 = scmp.lt.s32.totalorder %s10794, 3
      %s10796 = scalar_select %p10795, %s10794, 3
      %s10797 = smul.addr %s10796, 8
      %s10798 = scalar_lea.vmem %s7, %s10797
      // Predicated region
      $region49: #{cnn_forward.1} parent=47 // pred_check
        %p10799 = pneg %p188
      $region50: #{cnn_forward.1} parent=47 // pred_check_branch
        %10801 = sbr.rel (%p10799) target = $region52
      $region51: #{cnn_forward.1} parent=47 // pred_region
        %s10802 = smul.u32 2, %s18
      $region52: #{cnn_forward.1} parent=47 // pred_fallthru
        _
    $region48: #{cnn_forward.1} parent=5 // pred_fallthru
      _
    %p10803 = scmp.le.s32.totalorder 2, %s13
    // Predicated region
    $region53: #{cnn_forward.1} parent=5 // pred_check
      %p10804 = pneg %p10803
    $region54: #{cnn_forward.1} parent=5 // pred_check_branch
      %10806 = sbr.rel (%p10804) target = $region56
    $region55: #{cnn_forward.1} parent=5 // pred_region
      %s10807 = ssub.s32 %s13, 2
      // Predicated region
      $region57: #{cnn_forward.1} parent=55 // pred_check
        %p10808 = pneg %p194
      $region58: #{cnn_forward.1} parent=55 // pred_check_branch
        %10810 = sbr.rel (%p10808) target = $region60
      $region59: #{cnn_forward.1} parent=55 // pred_region
        %s10811 = smul.u32 2, %s19
        %p10812 = scmp.lt.s32.totalorder %s10811, 3
        %s10813 = scalar_select %p10812, %s10811, 3
        %s10814 = smul.addr %s10813, 8
        %s10815 = scalar_lea.vmem %s7, %s10814
      $region60: #{cnn_forward.1} parent=55 // pred_fallthru
        _
    $region56: #{cnn_forward.1} parent=5 // pred_fallthru
      _
  $region6: #{cnn_forward.1} parent=0 // loop_footer
    %s17 = sadd.s32 1, %s13
  $region7: #{cnn_forward.1} parent=0 // loop_footer_branch
    %12 = sbr.rel target = $region3
  $region8: #{cnn_forward.1} parent=0 // loop_exit
    _

</llo_original>
